<compile_context>
chip_gen: v5e
topology: v5e:2x2
jax: 0.10.0
libtpu: 0.0.40
codegen_flags: <defaults>
</compile_context>

<pallas_src>
import jax
import jax.numpy as jnp
from jax import lax
from jax.experimental import pallas as pl
from jax.experimental.pallas import tpu as pltpu

H = 128                  # hidden size
GATES = 4 * H            # i, f, g, o (PyTorch gate order)
BB = 32                  # LSTM batch dim (the "32" rows per timestep)
D_IN = 32 * 3            # 96 features per timestep
D_PAD = 128              # lane-padded input feature dim
NUM_LAYERS = 10
NUM_CLASSES = 10
OUT_PAD = 128            # lane-padded logits width (sliced back to 10 outside)


# ---------------------------------------------------------------------------
# Fused Pallas kernel: 10-layer LSTM (layer-time wavefront) + Linear
# ---------------------------------------------------------------------------
def net3_kernel(x_ref, win_ref, whh_ref, bias_ref, ow_ref, ob_ref,
                o_ref, h_ref, c_ref, last_ref):
    """
    x_ref   : (T, BB, D_PAD) bf16   time-major input, features zero-padded to 128
    win_ref : (L, D_PAD, 4H) bf16   input->gates weights (layer 0 row-padded)
    whh_ref : (L, H, 4H)     bf16   recurrent weights
    bias_ref: (L, 1, 4H)     f32    b_ih + b_hh per layer
    ow_ref  : (H, OUT_PAD)   bf16   output Linear weight (cols zero-padded)
    ob_ref  : (1, OUT_PAD)   f32    output Linear bias   (cols zero-padded)
    o_ref   : (T, OUT_PAD)   f32    lane-dense logits slab
    h_ref   : (L, BB, H)     f32    scratch — per-layer hidden state
    c_ref   : (L, BB, H)     f32    scratch — per-layer cell state
    last_ref: (T, H)         f32    scratch — row BB-1 of last layer's h_t
    """
    t_len = x_ref.shape[0]
    n_steps = t_len + NUM_LAYERS - 1        # wavefront length

    h_ref[...] = jnp.zeros_like(h_ref)
    c_ref[...] = jnp.zeros_like(c_ref)

    def wavefront_step(s, carry):
        # Layer-0 input for this wavefront step (clamped index; masked below).
        x_t = x_ref[jnp.minimum(s, t_len - 1)]            # (BB, D_PAD) bf16

        # Snapshot of every layer's hidden state from the previous wavefront
        # step.  All reads happen before any state writes, so the 10 per-layer
        # updates below are pure dataflow (visible ILP for the scheduler).
        h_all = [h_ref[l] for l in range(NUM_LAYERS)]      # f32 (BB, H) each
        h_bf = [h.astype(jnp.bfloat16) for h in h_all]     # MXU operands

        new_h, new_c = [], []
        last_row = None
        last_idx = None
        for l in range(NUM_LAYERS):
            t = s - l                                       # this layer's timestep
            h_old = h_all[l]
            c_old = c_ref[l]                                # only layer l touches c[l]
            inp = x_t if l == 0 else h_bf[l - 1]            # bf16 (BB, 128)

            g = (jnp.dot(inp, win_ref[l], preferred_element_type=jnp.float32)
                 + jnp.dot(h_bf[l], whh_ref[l], preferred_element_type=jnp.float32)
                 + bias_ref[l])                             # (BB, 4H) f32

            i_g = jax.nn.sigmoid(g[:, 0 * H:1 * H])
            f_g = jax.nn.sigmoid(g[:, 1 * H:2 * H])
            g_g = jnp.tanh(g[:, 2 * H:3 * H])
            o_g = jax.nn.sigmoid(g[:, 3 * H:4 * H])
            c_new = f_g * c_old + i_g * g_g
            h_new = o_g * jnp.tanh(c_new)

            # Mask out-of-window steps (t < 0 before the layer's wave arrives,
            # t >= T after it passes) with an exact 0/1 blend so the layer's
            # state is only advanced on its own valid timesteps.
            m = jnp.logical_and(t >= 0, t < t_len).astype(jnp.float32)
            new_h.append(m * h_new + (1.0 - m) * h_old)
            new_c.append(m * c_new + (1.0 - m) * c_old)

            if l == NUM_LAYERS - 1:
                # torch x[:, -1, :] == batch row BB-1 of the last layer.
                # Pre-window (t < 0) garbage lands in row 0 and is overwritten
                # at s == NUM_LAYERS-1; post-window never occurs (loop ends).
                last_row = h_new[BB - 1:BB, :]
                last_idx = jnp.maximum(t, 0)

        # Commit this wavefront's state updates (after all reads).
        for l in range(NUM_LAYERS):
            h_ref[l] = new_h[l]
            c_ref[l] = new_c[l]
        last_ref[pl.ds(last_idx, 1), :] = last_row
        return carry

    lax.fori_loop(0, n_steps, wavefront_step, 0)

    # Fused output Linear on the gathered last rows: (T, H) @ (H, 128-pad).
    o_ref[...] = (jnp.dot(last_ref[...].astype(jnp.bfloat16), ow_ref[...],
                          preferred_element_type=jnp.float32)
                  + ob_ref[...]).astype(o_ref.dtype)


# ---------------------------------------------------------------------------
# Wrapper
# ---------------------------------------------------------------------------
_VMEM = pl.BlockSpec(memory_space=pltpu.MemorySpace.VMEM)


@jax.jit
def net3_forward(x, params):
    b = x.shape[0]                               # torch: the LSTM sequence length
    xs = x.reshape(b, BB, D_IN)                  # == torch .view(B, 32, 96)
    xs = jnp.pad(xs, ((0, 0), (0, 0), (0, D_PAD - D_IN)))   # lane-dense 128 feats
    xs = xs.astype(jnp.bfloat16)

    w_in = params["w_in"].astype(jnp.bfloat16)   # (L, 128, 4H)
    w_hh = params["w_hh"].astype(jnp.bfloat16)   # (L, 128, 4H)
    ow = params["out_w"].astype(jnp.bfloat16)    # (H, 128)

    out = pl.pallas_call(
        net3_kernel,
        out_shape=jax.ShapeDtypeStruct((b, OUT_PAD), jnp.float32),
        in_specs=[_VMEM] * 6,
        out_specs=_VMEM,
        scratch_shapes=[
            pltpu.VMEM((NUM_LAYERS, BB, H), jnp.float32),   # h state, all layers
            pltpu.VMEM((NUM_LAYERS, BB, H), jnp.float32),   # c state, all layers
            pltpu.VMEM((b, H), jnp.float32),                # last-row collector
        ],
        # ~2.6 MB bf16 weights + O(T) bf16 input; 48 MiB is safe on v7x's 64 MiB
        # VMEM and leaves large headroom on v5e/v6e (raise toward ~100 MiB there
        # for very long sequences).
        compiler_params=pltpu.CompilerParams(
            vmem_limit_bytes=48 * 1024 * 1024),
    )(xs, w_in, w_hh, params["bias"], ow, params["out_b"])
    return out[:, :NUM_CLASSES]


# ---------------------------------------------------------------------------
# Deterministic parameter init (PyTorch-style uniform(-1/sqrt(H), 1/sqrt(H))).
# Weights are stored pre-transposed, layer-stacked, and lane-padded.
# ---------------------------------------------------------------------------
def init_params(key):
    k = 1.0 / jnp.sqrt(jnp.float32(H))
    keys = jax.random.split(key, 4 * NUM_LAYERS + 2)
    w_in, w_hh, bias = [], [], []
    idx = 0
    for layer in range(NUM_LAYERS):
        d_in = D_IN if layer == 0 else H
        w_ih = jax.random.uniform(keys[idx], (d_in, GATES), jnp.float32, -k, k); idx += 1
        w_hh_l = jax.random.uniform(keys[idx], (H, GATES), jnp.float32, -k, k); idx += 1
        b_ih = jax.random.uniform(keys[idx], (1, GATES), jnp.float32, -k, k); idx += 1
        b_hh = jax.random.uniform(keys[idx], (1, GATES), jnp.float32, -k, k); idx += 1
        if layer == 0:
            w_ih = jnp.pad(w_ih, ((0, D_PAD - D_IN), (0, 0)))   # zero rows 96..127
        w_in.append(w_ih)
        w_hh.append(w_hh_l)
        bias.append(b_ih + b_hh)
    out_w = jax.random.uniform(keys[idx], (H, NUM_CLASSES), jnp.float32, -k, k); idx += 1
    out_b = jax.random.uniform(keys[idx], (1, NUM_CLASSES), jnp.float32, -k, k)
    return {
        "w_in": jnp.stack(w_in),                                        # (L, 128, 4H)
        "w_hh": jnp.stack(w_hh),                                        # (L, 128, 4H)
        "bias": jnp.stack(bias),                                        # (L, 1, 4H)
        "out_w": jnp.pad(out_w, ((0, 0), (0, OUT_PAD - NUM_CLASSES))),  # (H, 128)
        "out_b": jnp.pad(out_b, ((0, 0), (0, OUT_PAD - NUM_CLASSES))),  # (1, 128)
    }


# ---------------------------------------------------------------------------
# Pure-JAX reference mirroring PyTorch seq-first semantics AND the kernel's
# MXU precision (bf16 matmul operands, f32 accumulation, f32 cell math).
# ---------------------------------------------------------------------------
def net3_reference(x, params):
    b = x.shape[0]
    seq = x.reshape(b, BB, D_IN)            # (seq=b, batch=32, feat=96)
    bf = jnp.bfloat16

    def run_layer(seq_in, w_in, w_hh, bias):
        w_in_b = w_in.astype(bf)
        w_hh_b = w_hh.astype(bf)
        h0 = jnp.zeros((BB, H), jnp.float32)
        c0 = jnp.zeros((BB, H), jnp.float32)

        def step(carry, xt):
            h, c = carry
            g = (jnp.dot(xt.astype(bf), w_in_b, preferred_element_type=jnp.float32)
                 + jnp.dot(h.astype(bf), w_hh_b, preferred_element_type=jnp.float32)
                 + bias)
            i = jax.nn.sigmoid(g[:, 0 * H:1 * H])
            f = jax.nn.sigmoid(g[:, 1 * H:2 * H])
            gg = jnp.tanh(g[:, 2 * H:3 * H])
            o = jax.nn.sigmoid(g[:, 3 * H:4 * H])
            c = f * c + i * gg
            h = o * jnp.tanh(c)
            return (h, c), h

        _, ys = lax.scan(step, (h0, c0), seq_in)
        return ys

    for l in range(NUM_LAYERS):
        d = D_IN if l == 0 else H
        seq = run_layer(seq, params["w_in"][l, :d], params["w_hh"][l],
                        params["bias"][l])
    last = seq[:, -1, :]                     # torch x[:, -1, :]
    logits = (jnp.dot(last.astype(bf),
                      params["out_w"].astype(bf)[:, :NUM_CLASSES],
                      preferred_element_type=jnp.float32)
              + params["out_b"][:, :NUM_CLASSES])
    return logits


# ---------------------------------------------------------------------------
if __name__ == "__main__":
    key = jax.random.PRNGKey(0)
    kx, kp = jax.random.split(key)
    B = 2
    x = jax.random.normal(kx, (B, 3, 32, 32), jnp.float32)   # CIFAR-like NCHW
    params = init_params(kp)

    out = jax.block_until_ready(net3_forward(x, params))
    assert out.shape == (B, NUM_CLASSES)
    assert bool(jnp.all(jnp.isfinite(out)))

    ref = net3_reference(x, params)
    max_err = float(jnp.max(jnp.abs(out - ref)))
    assert max_err < 3e-3, f"mismatch vs reference: {max_err}"

    print("KERNEL_OK")
</pallas_src>

<mosaic_0001>
module attributes {stable_mosaic.version = 11 : i64} {
  func.func @net3_kernel(%arg0: memref<2x32x128xbf16, #tpu.memory_space<vmem>>, %arg1: memref<10x128x512xbf16, #tpu.memory_space<vmem>>, %arg2: memref<10x128x512xbf16, #tpu.memory_space<vmem>>, %arg3: memref<10x1x512xf32, #tpu.memory_space<vmem>>, %arg4: memref<128x128xbf16, #tpu.memory_space<vmem>>, %arg5: memref<1x128xf32, #tpu.memory_space<vmem>>, %arg6: memref<2x128xf32, #tpu.memory_space<vmem>>, %arg7: memref<10x32x128xf32, #tpu.memory_space<vmem>>, %arg8: memref<10x32x128xf32, #tpu.memory_space<vmem>>, %arg9: memref<2x128xf32, #tpu.memory_space<vmem>>) attributes {dimension_semantics = [], scalar_prefetch = 0 : i64, scratch_operands = 3 : i64, tpu.core_type = #tpu.core_type<tc>} {
    %cst = arith.constant 0.000000e+00 : f32
    %0 = vector.broadcast %cst : f32 to vector<10x32x128xf32>
    %c0 = arith.constant 0 : index
    %c0_0 = arith.constant 0 : index
    %c0_1 = arith.constant 0 : index
    %1 = vector.load %arg7[%c0, %c0_0, %c0_1] : memref<10x32x128xf32, #tpu.memory_space<vmem>>, vector<10x32x128xf32>
    tpu.vector_store %arg7[%c0, %c0_0, %c0_1], %0 {strides = array<i32>} : memref<10x32x128xf32, #tpu.memory_space<vmem>>, vector<10x32x128xf32>,
    %cst_2 = arith.constant 0.000000e+00 : f32
    %2 = vector.broadcast %cst_2 : f32 to vector<10x32x128xf32>
    %c0_3 = arith.constant 0 : index
    %c0_4 = arith.constant 0 : index
    %c0_5 = arith.constant 0 : index
    %3 = vector.load %arg8[%c0_3, %c0_4, %c0_5] : memref<10x32x128xf32, #tpu.memory_space<vmem>>, vector<10x32x128xf32>
    tpu.vector_store %arg8[%c0_3, %c0_4, %c0_5], %2 {strides = array<i32>} : memref<10x32x128xf32, #tpu.memory_space<vmem>>, vector<10x32x128xf32>,
    %c0_i32 = arith.constant 0 : i32
    %c11_i32 = arith.constant 11 : i32
    %4 = arith.addi %c0_i32, %c11_i32 : i32
    %c1_i32 = arith.constant 1 : i32
    scf.for %arg10 = %c0_i32 to %4 step %c1_i32  : i32 {
      %c1_i32_16 = arith.constant 1 : i32
      %13 = arith.minsi %arg10, %c1_i32_16 : i32
      %14 = arith.index_cast %13 : i32 to index
      %c0_17 = arith.constant 0 : index
      %c0_18 = arith.constant 0 : index
      %15 = vector.load %arg0[%14, %c0_17, %c0_18] : memref<2x32x128xbf16, #tpu.memory_space<vmem>>, vector<1x32x128xbf16>
      %16 = vector.shape_cast %15 : vector<1x32x128xbf16> to vector<32x128xbf16>
      %c0_19 = arith.constant 0 : index
      %c0_20 = arith.constant 0 : index
      %c0_21 = arith.constant 0 : index
      %17 = vector.load %arg7[%c0_19, %c0_20, %c0_21] : memref<10x32x128xf32, #tpu.memory_space<vmem>>, vector<1x32x128xf32>
      %18 = vector.shape_cast %17 : vector<1x32x128xf32> to vector<32x128xf32>
      %c1 = arith.constant 1 : index
      %c0_22 = arith.constant 0 : index
      %c0_23 = arith.constant 0 : index
      %19 = vector.load %arg7[%c1, %c0_22, %c0_23] : memref<10x32x128xf32, #tpu.memory_space<vmem>>, vector<1x32x128xf32>
      %20 = vector.shape_cast %19 : vector<1x32x128xf32> to vector<32x128xf32>
      %c2 = arith.constant 2 : index
      %c0_24 = arith.constant 0 : index
      %c0_25 = arith.constant 0 : index
      %21 = vector.load %arg7[%c2, %c0_24, %c0_25] : memref<10x32x128xf32, #tpu.memory_space<vmem>>, vector<1x32x128xf32>
      %22 = vector.shape_cast %21 : vector<1x32x128xf32> to vector<32x128xf32>
      %c3 = arith.constant 3 : index
      %c0_26 = arith.constant 0 : index
      %c0_27 = arith.constant 0 : index
      %23 = vector.load %arg7[%c3, %c0_26, %c0_27] : memref<10x32x128xf32, #tpu.memory_space<vmem>>, vector<1x32x128xf32>
      %24 = vector.shape_cast %23 : vector<1x32x128xf32> to vector<32x128xf32>
      %c4 = arith.constant 4 : index
      %c0_28 = arith.constant 0 : index
      %c0_29 = arith.constant 0 : index
      %25 = vector.load %arg7[%c4, %c0_28, %c0_29] : memref<10x32x128xf32, #tpu.memory_space<vmem>>, vector<1x32x128xf32>
      %26 = vector.shape_cast %25 : vector<1x32x128xf32> to vector<32x128xf32>
      %c5 = arith.constant 5 : index
      %c0_30 = arith.constant 0 : index
      %c0_31 = arith.constant 0 : index
      %27 = vector.load %arg7[%c5, %c0_30, %c0_31] : memref<10x32x128xf32, #tpu.memory_space<vmem>>, vector<1x32x128xf32>
      %28 = vector.shape_cast %27 : vector<1x32x128xf32> to vector<32x128xf32>
      %c6 = arith.constant 6 : index
      %c0_32 = arith.constant 0 : index
      %c0_33 = arith.constant 0 : index
      %29 = vector.load %arg7[%c6, %c0_32, %c0_33] : memref<10x32x128xf32, #tpu.memory_space<vmem>>, vector<1x32x128xf32>
      %30 = vector.shape_cast %29 : vector<1x32x128xf32> to vector<32x128xf32>
      %c7 = arith.constant 7 : index
      %c0_34 = arith.constant 0 : index
      %c0_35 = arith.constant 0 : index
      %31 = vector.load %arg7[%c7, %c0_34, %c0_35] : memref<10x32x128xf32, #tpu.memory_space<vmem>>, vector<1x32x128xf32>
      %32 = vector.shape_cast %31 : vector<1x32x128xf32> to vector<32x128xf32>
      %c8 = arith.constant 8 : index
      %c0_36 = arith.constant 0 : index
      %c0_37 = arith.constant 0 : index
      %33 = vector.load %arg7[%c8, %c0_36, %c0_37] : memref<10x32x128xf32, #tpu.memory_space<vmem>>, vector<1x32x128xf32>
      %34 = vector.shape_cast %33 : vector<1x32x128xf32> to vector<32x128xf32>
      %c9 = arith.constant 9 : index
      %c0_38 = arith.constant 0 : index
      %c0_39 = arith.constant 0 : index
      %35 = vector.load %arg7[%c9, %c0_38, %c0_39] : memref<10x32x128xf32, #tpu.memory_space<vmem>>, vector<1x32x128xf32>
      %36 = vector.shape_cast %35 : vector<1x32x128xf32> to vector<32x128xf32>
      %37 = arith.truncf %18 : vector<32x128xf32> to vector<32x128xbf16>
      %38 = arith.truncf %20 : vector<32x128xf32> to vector<32x128xbf16>
      %39 = arith.truncf %22 : vector<32x128xf32> to vector<32x128xbf16>
      %40 = arith.truncf %24 : vector<32x128xf32> to vector<32x128xbf16>
      %41 = arith.truncf %26 : vector<32x128xf32> to vector<32x128xbf16>
      %42 = arith.truncf %28 : vector<32x128xf32> to vector<32x128xbf16>
      %43 = arith.truncf %30 : vector<32x128xf32> to vector<32x128xbf16>
      %44 = arith.truncf %32 : vector<32x128xf32> to vector<32x128xbf16>
      %45 = arith.truncf %34 : vector<32x128xf32> to vector<32x128xbf16>
      %46 = arith.truncf %36 : vector<32x128xf32> to vector<32x128xbf16>
      %c0_i32_40 = arith.constant 0 : i32
      %47 = arith.subi %arg10, %c0_i32_40 : i32
      %c0_41 = arith.constant 0 : index
      %c0_42 = arith.constant 0 : index
      %c0_43 = arith.constant 0 : index
      %48 = vector.load %arg8[%c0_41, %c0_42, %c0_43] : memref<10x32x128xf32, #tpu.memory_space<vmem>>, vector<1x32x128xf32>
      %49 = vector.shape_cast %48 : vector<1x32x128xf32> to vector<32x128xf32>
      %c0_44 = arith.constant 0 : index
      %c0_45 = arith.constant 0 : index
      %c0_46 = arith.constant 0 : index
      %50 = vector.load %arg1[%c0_44, %c0_45, %c0_46] : memref<10x128x512xbf16, #tpu.memory_space<vmem>>, vector<1x128x512xbf16>
      %51 = vector.shape_cast %50 : vector<1x128x512xbf16> to vector<128x512xbf16>
      %cst_47 = arith.constant dense<0.000000e+00> : vector<32x512xf32>
      %52 = tpu.matmul %16, %51, %cst_47 {dimension_numbers = #tpu.dot_dimension_numbers<[1], [0], [0], [1], [0, 0, 1, 1], [], []>} : vector<32x128xbf16>, vector<128x512xbf16>, vector<32x512xf32> -> vector<32x512xf32>
      %c0_48 = arith.constant 0 : index
      %c0_49 = arith.constant 0 : index
      %c0_50 = arith.constant 0 : index
      %53 = vector.load %arg2[%c0_48, %c0_49, %c0_50] : memref<10x128x512xbf16, #tpu.memory_space<vmem>>, vector<1x128x512xbf16>
      %54 = vector.shape_cast %53 : vector<1x128x512xbf16> to vector<128x512xbf16>
      %cst_51 = arith.constant dense<0.000000e+00> : vector<32x512xf32>
      %55 = tpu.matmul %37, %54, %cst_51 {dimension_numbers = #tpu.dot_dimension_numbers<[1], [0], [0], [1], [0, 0, 1, 1], [], []>} : vector<32x128xbf16>, vector<128x512xbf16>, vector<32x512xf32> -> vector<32x512xf32>
      %56 = arith.addf %52, %55 : vector<32x512xf32>
      %c0_52 = arith.constant 0 : index
      %c0_53 = arith.constant 0 : index
      %c0_54 = arith.constant 0 : index
      %57 = vector.load %arg3[%c0_52, %c0_53, %c0_54] : memref<10x1x512xf32, #tpu.memory_space<vmem>>, vector<1x1x512xf32>
      %58 = vector.shape_cast %57 : vector<1x1x512xf32> to vector<1x512xf32>
      %59 = vector.broadcast %58 : vector<1x512xf32> to vector<32x512xf32>
      %60 = arith.addf %56, %59 : vector<32x512xf32>
      %61 = vector.extract_strided_slice %60 {offsets = [0, 0], sizes = [32, 128], strides = [1, 1]} : vector<32x512xf32> to vector<32x128xf32>
      %62 = arith.negf %61 : vector<32x128xf32>
      %63 = math.exp %62 : vector<32x128xf32>
      %cst_55 = arith.constant 1.000000e+00 : f32
      %64 = vector.broadcast %cst_55 : f32 to vector<32x128xf32>
      %65 = arith.addf %64, %63 : vector<32x128xf32>
      %66 = arith.divf %64, %65 : vector<32x128xf32>
      %67 = vector.extract_strided_slice %60 {offsets = [0, 128], sizes = [32, 128], strides = [1, 1]} : vector<32x512xf32> to vector<32x128xf32>
      %68 = arith.negf %67 : vector<32x128xf32>
      %69 = math.exp %68 : vector<32x128xf32>
      %cst_56 = arith.constant 1.000000e+00 : f32
      %70 = vector.broadcast %cst_56 : f32 to vector<32x128xf32>
      %71 = arith.addf %70, %69 : vector<32x128xf32>
      %72 = arith.divf %70, %71 : vector<32x128xf32>
      %73 = vector.extract_strided_slice %60 {offsets = [0, 256], sizes = [32, 128], strides = [1, 1]} : vector<32x512xf32> to vector<32x128xf32>
      %74 = math.tanh %73 : vector<32x128xf32>
      %75 = vector.extract_strided_slice %60 {offsets = [0, 384], sizes = [32, 128], strides = [1, 1]} : vector<32x512xf32> to vector<32x128xf32>
      %76 = arith.negf %75 : vector<32x128xf32>
      %77 = math.exp %76 : vector<32x128xf32>
      %cst_57 = arith.constant 1.000000e+00 : f32
      %78 = vector.broadcast %cst_57 : f32 to vector<32x128xf32>
      %79 = arith.addf %78, %77 : vector<32x128xf32>
      %80 = arith.divf %78, %79 : vector<32x128xf32>
      %81 = arith.mulf %72, %49 : vector<32x128xf32>
      %82 = arith.mulf %66, %74 : vector<32x128xf32>
      %83 = arith.addf %81, %82 : vector<32x128xf32>
      %84 = math.tanh %83 : vector<32x128xf32>
      %85 = arith.mulf %80, %84 : vector<32x128xf32>
      %c0_i32_58 = arith.constant 0 : i32
      %86 = arith.cmpi sge, %47, %c0_i32_58 : i32
      %c2_i32 = arith.constant 2 : i32
      %87 = arith.cmpi slt, %47, %c2_i32 : i32
      %88 = arith.andi %86, %87 : i1
      %89 = arith.extui %88 : i1 to i32
      %90 = arith.sitofp %89 : i32 to f32
      %91 = vector.broadcast %90 : f32 to vector<32x128xf32>
      %92 = arith.mulf %91, %85 : vector<32x128xf32>
      %cst_59 = arith.constant 1.000000e+00 : f32
      %93 = arith.subf %cst_59, %90 : f32
      %94 = vector.broadcast %93 : f32 to vector<32x128xf32>
      %95 = arith.mulf %94, %18 : vector<32x128xf32>
      %96 = arith.addf %92, %95 : vector<32x128xf32>
      %97 = vector.broadcast %90 : f32 to vector<32x128xf32>
      %98 = arith.mulf %97, %83 : vector<32x128xf32>
      %cst_60 = arith.constant 1.000000e+00 : f32
      %99 = arith.subf %cst_60, %90 : f32
      %100 = vector.broadcast %99 : f32 to vector<32x128xf32>
      %101 = arith.mulf %100, %49 : vector<32x128xf32>
      %102 = arith.addf %98, %101 : vector<32x128xf32>
      %c1_i32_61 = arith.constant 1 : i32
      %103 = arith.subi %arg10, %c1_i32_61 : i32
      %c1_62 = arith.constant 1 : index
      %c0_63 = arith.constant 0 : index
      %c0_64 = arith.constant 0 : index
      %104 = vector.load %arg8[%c1_62, %c0_63, %c0_64] : memref<10x32x128xf32, #tpu.memory_space<vmem>>, vector<1x32x128xf32>
      %105 = vector.shape_cast %104 : vector<1x32x128xf32> to vector<32x128xf32>
      %c1_65 = arith.constant 1 : index
      %c0_66 = arith.constant 0 : index
      %c0_67 = arith.constant 0 : index
      %106 = vector.load %arg1[%c1_65, %c0_66, %c0_67] : memref<10x128x512xbf16, #tpu.memory_space<vmem>>, vector<1x128x512xbf16>
      %107 = vector.shape_cast %106 : vector<1x128x512xbf16> to vector<128x512xbf16>
      %cst_68 = arith.constant dense<0.000000e+00> : vector<32x512xf32>
      %108 = tpu.matmul %37, %107, %cst_68 {dimension_numbers = #tpu.dot_dimension_numbers<[1], [0], [0], [1], [0, 0, 1, 1], [], []>} : vector<32x128xbf16>, vector<128x512xbf16>, vector<32x512xf32> -> vector<32x512xf32>
      %c1_69 = arith.constant 1 : index
      %c0_70 = arith.constant 0 : index
      %c0_71 = arith.constant 0 : index
      %109 = vector.load %arg2[%c1_69, %c0_70, %c0_71] : memref<10x128x512xbf16, #tpu.memory_space<vmem>>, vector<1x128x512xbf16>
      %110 = vector.shape_cast %109 : vector<1x128x512xbf16> to vector<128x512xbf16>
      %cst_72 = arith.constant dense<0.000000e+00> : vector<32x512xf32>
      %111 = tpu.matmul %38, %110, %cst_72 {dimension_numbers = #tpu.dot_dimension_numbers<[1], [0], [0], [1], [0, 0, 1, 1], [], []>} : vector<32x128xbf16>, vector<128x512xbf16>, vector<32x512xf32> -> vector<32x512xf32>
      %112 = arith.addf %108, %111 : vector<32x512xf32>
      %c1_73 = arith.constant 1 : index
      %c0_74 = arith.constant 0 : index
      %c0_75 = arith.constant 0 : index
      %113 = vector.load %arg3[%c1_73, %c0_74, %c0_75] : memref<10x1x512xf32, #tpu.memory_space<vmem>>, vector<1x1x512xf32>
      %114 = vector.shape_cast %113 : vector<1x1x512xf32> to vector<1x512xf32>
      %115 = vector.broadcast %114 : vector<1x512xf32> to vector<32x512xf32>
      %116 = arith.addf %112, %115 : vector<32x512xf32>
      %117 = vector.extract_strided_slice %116 {offsets = [0, 0], sizes = [32, 128], strides = [1, 1]} : vector<32x512xf32> to vector<32x128xf32>
      %118 = arith.negf %117 : vector<32x128xf32>
      %119 = math.exp %118 : vector<32x128xf32>
      %cst_76 = arith.constant 1.000000e+00 : f32
      %120 = vector.broadcast %cst_76 : f32 to vector<32x128xf32>
      %121 = arith.addf %120, %119 : vector<32x128xf32>
      %122 = arith.divf %120, %121 : vector<32x128xf32>
      %123 = vector.extract_strided_slice %116 {offsets = [0, 128], sizes = [32, 128], strides = [1, 1]} : vector<32x512xf32> to vector<32x128xf32>
      %124 = arith.negf %123 : vector<32x128xf32>
      %125 = math.exp %124 : vector<32x128xf32>
      %cst_77 = arith.constant 1.000000e+00 : f32
      %126 = vector.broadcast %cst_77 : f32 to vector<32x128xf32>
      %127 = arith.addf %126, %125 : vector<32x128xf32>
      %128 = arith.divf %126, %127 : vector<32x128xf32>
      %129 = vector.extract_strided_slice %116 {offsets = [0, 256], sizes = [32, 128], strides = [1, 1]} : vector<32x512xf32> to vector<32x128xf32>
      %130 = math.tanh %129 : vector<32x128xf32>
      %131 = vector.extract_strided_slice %116 {offsets = [0, 384], sizes = [32, 128], strides = [1, 1]} : vector<32x512xf32> to vector<32x128xf32>
      %132 = arith.negf %131 : vector<32x128xf32>
      %133 = math.exp %132 : vector<32x128xf32>
      %cst_78 = arith.constant 1.000000e+00 : f32
      %134 = vector.broadcast %cst_78 : f32 to vector<32x128xf32>
      %135 = arith.addf %134, %133 : vector<32x128xf32>
      %136 = arith.divf %134, %135 : vector<32x128xf32>
      %137 = arith.mulf %128, %105 : vector<32x128xf32>
      %138 = arith.mulf %122, %130 : vector<32x128xf32>
      %139 = arith.addf %137, %138 : vector<32x128xf32>
      %140 = math.tanh %139 : vector<32x128xf32>
      %141 = arith.mulf %136, %140 : vector<32x128xf32>
      %c0_i32_79 = arith.constant 0 : i32
      %142 = arith.cmpi sge, %103, %c0_i32_79 : i32
      %c2_i32_80 = arith.constant 2 : i32
      %143 = arith.cmpi slt, %103, %c2_i32_80 : i32
      %144 = arith.andi %142, %143 : i1
      %145 = arith.extui %144 : i1 to i32
      %146 = arith.sitofp %145 : i32 to f32
      %147 = vector.broadcast %146 : f32 to vector<32x128xf32>
      %148 = arith.mulf %147, %141 : vector<32x128xf32>
      %cst_81 = arith.constant 1.000000e+00 : f32
      %149 = arith.subf %cst_81, %146 : f32
      %150 = vector.broadcast %149 : f32 to vector<32x128xf32>
      %151 = arith.mulf %150, %20 : vector<32x128xf32>
      %152 = arith.addf %148, %151 : vector<32x128xf32>
      %153 = vector.broadcast %146 : f32 to vector<32x128xf32>
      %154 = arith.mulf %153, %139 : vector<32x128xf32>
      %cst_82 = arith.constant 1.000000e+00 : f32
      %155 = arith.subf %cst_82, %146 : f32
      %156 = vector.broadcast %155 : f32 to vector<32x128xf32>
      %157 = arith.mulf %156, %105 : vector<32x128xf32>
      %158 = arith.addf %154, %157 : vector<32x128xf32>
      %c2_i32_83 = arith.constant 2 : i32
      %159 = arith.subi %arg10, %c2_i32_83 : i32
      %c2_84 = arith.constant 2 : index
      %c0_85 = arith.constant 0 : index
      %c0_86 = arith.constant 0 : index
      %160 = vector.load %arg8[%c2_84, %c0_85, %c0_86] : memref<10x32x128xf32, #tpu.memory_space<vmem>>, vector<1x32x128xf32>
      %161 = vector.shape_cast %160 : vector<1x32x128xf32> to vector<32x128xf32>
      %c2_87 = arith.constant 2 : index
      %c0_88 = arith.constant 0 : index
      %c0_89 = arith.constant 0 : index
      %162 = vector.load %arg1[%c2_87, %c0_88, %c0_89] : memref<10x128x512xbf16, #tpu.memory_space<vmem>>, vector<1x128x512xbf16>
      %163 = vector.shape_cast %162 : vector<1x128x512xbf16> to vector<128x512xbf16>
      %cst_90 = arith.constant dense<0.000000e+00> : vector<32x512xf32>
      %164 = tpu.matmul %38, %163, %cst_90 {dimension_numbers = #tpu.dot_dimension_numbers<[1], [0], [0], [1], [0, 0, 1, 1], [], []>} : vector<32x128xbf16>, vector<128x512xbf16>, vector<32x512xf32> -> vector<32x512xf32>
      %c2_91 = arith.constant 2 : index
      %c0_92 = arith.constant 0 : index
      %c0_93 = arith.constant 0 : index
      %165 = vector.load %arg2[%c2_91, %c0_92, %c0_93] : memref<10x128x512xbf16, #tpu.memory_space<vmem>>, vector<1x128x512xbf16>
      %166 = vector.shape_cast %165 : vector<1x128x512xbf16> to vector<128x512xbf16>
      %cst_94 = arith.constant dense<0.000000e+00> : vector<32x512xf32>
      %167 = tpu.matmul %39, %166, %cst_94 {dimension_numbers = #tpu.dot_dimension_numbers<[1], [0], [0], [1], [0, 0, 1, 1], [], []>} : vector<32x128xbf16>, vector<128x512xbf16>, vector<32x512xf32> -> vector<32x512xf32>
      %168 = arith.addf %164, %167 : vector<32x512xf32>
      %c2_95 = arith.constant 2 : index
      %c0_96 = arith.constant 0 : index
      %c0_97 = arith.constant 0 : index
      %169 = vector.load %arg3[%c2_95, %c0_96, %c0_97] : memref<10x1x512xf32, #tpu.memory_space<vmem>>, vector<1x1x512xf32>
      %170 = vector.shape_cast %169 : vector<1x1x512xf32> to vector<1x512xf32>
      %171 = vector.broadcast %170 : vector<1x512xf32> to vector<32x512xf32>
      %172 = arith.addf %168, %171 : vector<32x512xf32>
      %173 = vector.extract_strided_slice %172 {offsets = [0, 0], sizes = [32, 128], strides = [1, 1]} : vector<32x512xf32> to vector<32x128xf32>
      %174 = arith.negf %173 : vector<32x128xf32>
      %175 = math.exp %174 : vector<32x128xf32>
      %cst_98 = arith.constant 1.000000e+00 : f32
      %176 = vector.broadcast %cst_98 : f32 to vector<32x128xf32>
      %177 = arith.addf %176, %175 : vector<32x128xf32>
      %178 = arith.divf %176, %177 : vector<32x128xf32>
      %179 = vector.extract_strided_slice %172 {offsets = [0, 128], sizes = [32, 128], strides = [1, 1]} : vector<32x512xf32> to vector<32x128xf32>
      %180 = arith.negf %179 : vector<32x128xf32>
      %181 = math.exp %180 : vector<32x128xf32>
      %cst_99 = arith.constant 1.000000e+00 : f32
      %182 = vector.broadcast %cst_99 : f32 to vector<32x128xf32>
      %183 = arith.addf %182, %181 : vector<32x128xf32>
      %184 = arith.divf %182, %183 : vector<32x128xf32>
      %185 = vector.extract_strided_slice %172 {offsets = [0, 256], sizes = [32, 128], strides = [1, 1]} : vector<32x512xf32> to vector<32x128xf32>
      %186 = math.tanh %185 : vector<32x128xf32>
      %187 = vector.extract_strided_slice %172 {offsets = [0, 384], sizes = [32, 128], strides = [1, 1]} : vector<32x512xf32> to vector<32x128xf32>
      %188 = arith.negf %187 : vector<32x128xf32>
      %189 = math.exp %188 : vector<32x128xf32>
      %cst_100 = arith.constant 1.000000e+00 : f32
      %190 = vector.broadcast %cst_100 : f32 to vector<32x128xf32>
      %191 = arith.addf %190, %189 : vector<32x128xf32>
      %192 = arith.divf %190, %191 : vector<32x128xf32>
      %193 = arith.mulf %184, %161 : vector<32x128xf32>
      %194 = arith.mulf %178, %186 : vector<32x128xf32>
      %195 = arith.addf %193, %194 : vector<32x128xf32>
      %196 = math.tanh %195 : vector<32x128xf32>
      %197 = arith.mulf %192, %196 : vector<32x128xf32>
      %c0_i32_101 = arith.constant 0 : i32
      %198 = arith.cmpi sge, %159, %c0_i32_101 : i32
      %c2_i32_102 = arith.constant 2 : i32
      %199 = arith.cmpi slt, %159, %c2_i32_102 : i32
      %200 = arith.andi %198, %199 : i1
      %201 = arith.extui %200 : i1 to i32
      %202 = arith.sitofp %201 : i32 to f32
      %203 = vector.broadcast %202 : f32 to vector<32x128xf32>
      %204 = arith.mulf %203, %197 : vector<32x128xf32>
      %cst_103 = arith.constant 1.000000e+00 : f32
      %205 = arith.subf %cst_103, %202 : f32
      %206 = vector.broadcast %205 : f32 to vector<32x128xf32>
      %207 = arith.mulf %206, %22 : vector<32x128xf32>
      %208 = arith.addf %204, %207 : vector<32x128xf32>
      %209 = vector.broadcast %202 : f32 to vector<32x128xf32>
      %210 = arith.mulf %209, %195 : vector<32x128xf32>
      %cst_104 = arith.constant 1.000000e+00 : f32
      %211 = arith.subf %cst_104, %202 : f32
      %212 = vector.broadcast %211 : f32 to vector<32x128xf32>
      %213 = arith.mulf %212, %161 : vector<32x128xf32>
      %214 = arith.addf %210, %213 : vector<32x128xf32>
      %c3_i32 = arith.constant 3 : i32
      %215 = arith.subi %arg10, %c3_i32 : i32
      %c3_105 = arith.constant 3 : index
      %c0_106 = arith.constant 0 : index
      %c0_107 = arith.constant 0 : index
      %216 = vector.load %arg8[%c3_105, %c0_106, %c0_107] : memref<10x32x128xf32, #tpu.memory_space<vmem>>, vector<1x32x128xf32>
      %217 = vector.shape_cast %216 : vector<1x32x128xf32> to vector<32x128xf32>
      %c3_108 = arith.constant 3 : index
      %c0_109 = arith.constant 0 : index
      %c0_110 = arith.constant 0 : index
      %218 = vector.load %arg1[%c3_108, %c0_109, %c0_110] : memref<10x128x512xbf16, #tpu.memory_space<vmem>>, vector<1x128x512xbf16>
      %219 = vector.shape_cast %218 : vector<1x128x512xbf16> to vector<128x512xbf16>
      %cst_111 = arith.constant dense<0.000000e+00> : vector<32x512xf32>
      %220 = tpu.matmul %39, %219, %cst_111 {dimension_numbers = #tpu.dot_dimension_numbers<[1], [0], [0], [1], [0, 0, 1, 1], [], []>} : vector<32x128xbf16>, vector<128x512xbf16>, vector<32x512xf32> -> vector<32x512xf32>
      %c3_112 = arith.constant 3 : index
      %c0_113 = arith.constant 0 : index
      %c0_114 = arith.constant 0 : index
      %221 = vector.load %arg2[%c3_112, %c0_113, %c0_114] : memref<10x128x512xbf16, #tpu.memory_space<vmem>>, vector<1x128x512xbf16>
      %222 = vector.shape_cast %221 : vector<1x128x512xbf16> to vector<128x512xbf16>
      %cst_115 = arith.constant dense<0.000000e+00> : vector<32x512xf32>
      %223 = tpu.matmul %40, %222, %cst_115 {dimension_numbers = #tpu.dot_dimension_numbers<[1], [0], [0], [1], [0, 0, 1, 1], [], []>} : vector<32x128xbf16>, vector<128x512xbf16>, vector<32x512xf32> -> vector<32x512xf32>
      %224 = arith.addf %220, %223 : vector<32x512xf32>
      %c3_116 = arith.constant 3 : index
      %c0_117 = arith.constant 0 : index
      %c0_118 = arith.constant 0 : index
      %225 = vector.load %arg3[%c3_116, %c0_117, %c0_118] : memref<10x1x512xf32, #tpu.memory_space<vmem>>, vector<1x1x512xf32>
      %226 = vector.shape_cast %225 : vector<1x1x512xf32> to vector<1x512xf32>
      %227 = vector.broadcast %226 : vector<1x512xf32> to vector<32x512xf32>
      %228 = arith.addf %224, %227 : vector<32x512xf32>
      %229 = vector.extract_strided_slice %228 {offsets = [0, 0], sizes = [32, 128], strides = [1, 1]} : vector<32x512xf32> to vector<32x128xf32>
      %230 = arith.negf %229 : vector<32x128xf32>
      %231 = math.exp %230 : vector<32x128xf32>
      %cst_119 = arith.constant 1.000000e+00 : f32
      %232 = vector.broadcast %cst_119 : f32 to vector<32x128xf32>
      %233 = arith.addf %232, %231 : vector<32x128xf32>
      %234 = arith.divf %232, %233 : vector<32x128xf32>
      %235 = vector.extract_strided_slice %228 {offsets = [0, 128], sizes = [32, 128], strides = [1, 1]} : vector<32x512xf32> to vector<32x128xf32>
      %236 = arith.negf %235 : vector<32x128xf32>
      %237 = math.exp %236 : vector<32x128xf32>
      %cst_120 = arith.constant 1.000000e+00 : f32
      %238 = vector.broadcast %cst_120 : f32 to vector<32x128xf32>
      %239 = arith.addf %238, %237 : vector<32x128xf32>
      %240 = arith.divf %238, %239 : vector<32x128xf32>
      %241 = vector.extract_strided_slice %228 {offsets = [0, 256], sizes = [32, 128], strides = [1, 1]} : vector<32x512xf32> to vector<32x128xf32>
      %242 = math.tanh %241 : vector<32x128xf32>
      %243 = vector.extract_strided_slice %228 {offsets = [0, 384], sizes = [32, 128], strides = [1, 1]} : vector<32x512xf32> to vector<32x128xf32>
      %244 = arith.negf %243 : vector<32x128xf32>
      %245 = math.exp %244 : vector<32x128xf32>
      %cst_121 = arith.constant 1.000000e+00 : f32
      %246 = vector.broadcast %cst_121 : f32 to vector<32x128xf32>
      %247 = arith.addf %246, %245 : vector<32x128xf32>
      %248 = arith.divf %246, %247 : vector<32x128xf32>
      %249 = arith.mulf %240, %217 : vector<32x128xf32>
      %250 = arith.mulf %234, %242 : vector<32x128xf32>
      %251 = arith.addf %249, %250 : vector<32x128xf32>
      %252 = math.tanh %251 : vector<32x128xf32>
      %253 = arith.mulf %248, %252 : vector<32x128xf32>
      %c0_i32_122 = arith.constant 0 : i32
      %254 = arith.cmpi sge, %215, %c0_i32_122 : i32
      %c2_i32_123 = arith.constant 2 : i32
      %255 = arith.cmpi slt, %215, %c2_i32_123 : i32
      %256 = arith.andi %254, %255 : i1
      %257 = arith.extui %256 : i1 to i32
      %258 = arith.sitofp %257 : i32 to f32
      %259 = vector.broadcast %258 : f32 to vector<32x128xf32>
      %260 = arith.mulf %259, %253 : vector<32x128xf32>
      %cst_124 = arith.constant 1.000000e+00 : f32
      %261 = arith.subf %cst_124, %258 : f32
      %262 = vector.broadcast %261 : f32 to vector<32x128xf32>
      %263 = arith.mulf %262, %24 : vector<32x128xf32>
      %264 = arith.addf %260, %263 : vector<32x128xf32>
      %265 = vector.broadcast %258 : f32 to vector<32x128xf32>
      %266 = arith.mulf %265, %251 : vector<32x128xf32>
      %cst_125 = arith.constant 1.000000e+00 : f32
      %267 = arith.subf %cst_125, %258 : f32
      %268 = vector.broadcast %267 : f32 to vector<32x128xf32>
      %269 = arith.mulf %268, %217 : vector<32x128xf32>
      %270 = arith.addf %266, %269 : vector<32x128xf32>
      %c4_i32 = arith.constant 4 : i32
      %271 = arith.subi %arg10, %c4_i32 : i32
      %c4_126 = arith.constant 4 : index
      %c0_127 = arith.constant 0 : index
      %c0_128 = arith.constant 0 : index
      %272 = vector.load %arg8[%c4_126, %c0_127, %c0_128] : memref<10x32x128xf32, #tpu.memory_space<vmem>>, vector<1x32x128xf32>
      %273 = vector.shape_cast %272 : vector<1x32x128xf32> to vector<32x128xf32>
      %c4_129 = arith.constant 4 : index
      %c0_130 = arith.constant 0 : index
      %c0_131 = arith.constant 0 : index
      %274 = vector.load %arg1[%c4_129, %c0_130, %c0_131] : memref<10x128x512xbf16, #tpu.memory_space<vmem>>, vector<1x128x512xbf16>
      %275 = vector.shape_cast %274 : vector<1x128x512xbf16> to vector<128x512xbf16>
      %cst_132 = arith.constant dense<0.000000e+00> : vector<32x512xf32>
      %276 = tpu.matmul %40, %275, %cst_132 {dimension_numbers = #tpu.dot_dimension_numbers<[1], [0], [0], [1], [0, 0, 1, 1], [], []>} : vector<32x128xbf16>, vector<128x512xbf16>, vector<32x512xf32> -> vector<32x512xf32>
      %c4_133 = arith.constant 4 : index
      %c0_134 = arith.constant 0 : index
      %c0_135 = arith.constant 0 : index
      %277 = vector.load %arg2[%c4_133, %c0_134, %c0_135] : memref<10x128x512xbf16, #tpu.memory_space<vmem>>, vector<1x128x512xbf16>
      %278 = vector.shape_cast %277 : vector<1x128x512xbf16> to vector<128x512xbf16>
      %cst_136 = arith.constant dense<0.000000e+00> : vector<32x512xf32>
      %279 = tpu.matmul %41, %278, %cst_136 {dimension_numbers = #tpu.dot_dimension_numbers<[1], [0], [0], [1], [0, 0, 1, 1], [], []>} : vector<32x128xbf16>, vector<128x512xbf16>, vector<32x512xf32> -> vector<32x512xf32>
      %280 = arith.addf %276, %279 : vector<32x512xf32>
      %c4_137 = arith.constant 4 : index
      %c0_138 = arith.constant 0 : index
      %c0_139 = arith.constant 0 : index
      %281 = vector.load %arg3[%c4_137, %c0_138, %c0_139] : memref<10x1x512xf32, #tpu.memory_space<vmem>>, vector<1x1x512xf32>
      %282 = vector.shape_cast %281 : vector<1x1x512xf32> to vector<1x512xf32>
      %283 = vector.broadcast %282 : vector<1x512xf32> to vector<32x512xf32>
      %284 = arith.addf %280, %283 : vector<32x512xf32>
      %285 = vector.extract_strided_slice %284 {offsets = [0, 0], sizes = [32, 128], strides = [1, 1]} : vector<32x512xf32> to vector<32x128xf32>
      %286 = arith.negf %285 : vector<32x128xf32>
      %287 = math.exp %286 : vector<32x128xf32>
      %cst_140 = arith.constant 1.000000e+00 : f32
      %288 = vector.broadcast %cst_140 : f32 to vector<32x128xf32>
      %289 = arith.addf %288, %287 : vector<32x128xf32>
      %290 = arith.divf %288, %289 : vector<32x128xf32>
      %291 = vector.extract_strided_slice %284 {offsets = [0, 128], sizes = [32, 128], strides = [1, 1]} : vector<32x512xf32> to vector<32x128xf32>
      %292 = arith.negf %291 : vector<32x128xf32>
      %293 = math.exp %292 : vector<32x128xf32>
      %cst_141 = arith.constant 1.000000e+00 : f32
      %294 = vector.broadcast %cst_141 : f32 to vector<32x128xf32>
      %295 = arith.addf %294, %293 : vector<32x128xf32>
      %296 = arith.divf %294, %295 : vector<32x128xf32>
      %297 = vector.extract_strided_slice %284 {offsets = [0, 256], sizes = [32, 128], strides = [1, 1]} : vector<32x512xf32> to vector<32x128xf32>
      %298 = math.tanh %297 : vector<32x128xf32>
      %299 = vector.extract_strided_slice %284 {offsets = [0, 384], sizes = [32, 128], strides = [1, 1]} : vector<32x512xf32> to vector<32x128xf32>
      %300 = arith.negf %299 : vector<32x128xf32>
      %301 = math.exp %300 : vector<32x128xf32>
      %cst_142 = arith.constant 1.000000e+00 : f32
      %302 = vector.broadcast %cst_142 : f32 to vector<32x128xf32>
      %303 = arith.addf %302, %301 : vector<32x128xf32>
      %304 = arith.divf %302, %303 : vector<32x128xf32>
      %305 = arith.mulf %296, %273 : vector<32x128xf32>
      %306 = arith.mulf %290, %298 : vector<32x128xf32>
      %307 = arith.addf %305, %306 : vector<32x128xf32>
      %308 = math.tanh %307 : vector<32x128xf32>
      %309 = arith.mulf %304, %308 : vector<32x128xf32>
      %c0_i32_143 = arith.constant 0 : i32
      %310 = arith.cmpi sge, %271, %c0_i32_143 : i32
      %c2_i32_144 = arith.constant 2 : i32
      %311 = arith.cmpi slt, %271, %c2_i32_144 : i32
      %312 = arith.andi %310, %311 : i1
      %313 = arith.extui %312 : i1 to i32
      %314 = arith.sitofp %313 : i32 to f32
      %315 = vector.broadcast %314 : f32 to vector<32x128xf32>
      %316 = arith.mulf %315, %309 : vector<32x128xf32>
      %cst_145 = arith.constant 1.000000e+00 : f32
      %317 = arith.subf %cst_145, %314 : f32
      %318 = vector.broadcast %317 : f32 to vector<32x128xf32>
      %319 = arith.mulf %318, %26 : vector<32x128xf32>
      %320 = arith.addf %316, %319 : vector<32x128xf32>
      %321 = vector.broadcast %314 : f32 to vector<32x128xf32>
      %322 = arith.mulf %321, %307 : vector<32x128xf32>
      %cst_146 = arith.constant 1.000000e+00 : f32
      %323 = arith.subf %cst_146, %314 : f32
      %324 = vector.broadcast %323 : f32 to vector<32x128xf32>
      %325 = arith.mulf %324, %273 : vector<32x128xf32>
      %326 = arith.addf %322, %325 : vector<32x128xf32>
      %c5_i32 = arith.constant 5 : i32
      %327 = arith.subi %arg10, %c5_i32 : i32
      %c5_147 = arith.constant 5 : index
      %c0_148 = arith.constant 0 : index
      %c0_149 = arith.constant 0 : index
      %328 = vector.load %arg8[%c5_147, %c0_148, %c0_149] : memref<10x32x128xf32, #tpu.memory_space<vmem>>, vector<1x32x128xf32>
      %329 = vector.shape_cast %328 : vector<1x32x128xf32> to vector<32x128xf32>
      %c5_150 = arith.constant 5 : index
      %c0_151 = arith.constant 0 : index
      %c0_152 = arith.constant 0 : index
      %330 = vector.load %arg1[%c5_150, %c0_151, %c0_152] : memref<10x128x512xbf16, #tpu.memory_space<vmem>>, vector<1x128x512xbf16>
      %331 = vector.shape_cast %330 : vector<1x128x512xbf16> to vector<128x512xbf16>
      %cst_153 = arith.constant dense<0.000000e+00> : vector<32x512xf32>
      %332 = tpu.matmul %41, %331, %cst_153 {dimension_numbers = #tpu.dot_dimension_numbers<[1], [0], [0], [1], [0, 0, 1, 1], [], []>} : vector<32x128xbf16>, vector<128x512xbf16>, vector<32x512xf32> -> vector<32x512xf32>
      %c5_154 = arith.constant 5 : index
      %c0_155 = arith.constant 0 : index
      %c0_156 = arith.constant 0 : index
      %333 = vector.load %arg2[%c5_154, %c0_155, %c0_156] : memref<10x128x512xbf16, #tpu.memory_space<vmem>>, vector<1x128x512xbf16>
      %334 = vector.shape_cast %333 : vector<1x128x512xbf16> to vector<128x512xbf16>
      %cst_157 = arith.constant dense<0.000000e+00> : vector<32x512xf32>
      %335 = tpu.matmul %42, %334, %cst_157 {dimension_numbers = #tpu.dot_dimension_numbers<[1], [0], [0], [1], [0, 0, 1, 1], [], []>} : vector<32x128xbf16>, vector<128x512xbf16>, vector<32x512xf32> -> vector<32x512xf32>
      %336 = arith.addf %332, %335 : vector<32x512xf32>
      %c5_158 = arith.constant 5 : index
      %c0_159 = arith.constant 0 : index
      %c0_160 = arith.constant 0 : index
      %337 = vector.load %arg3[%c5_158, %c0_159, %c0_160] : memref<10x1x512xf32, #tpu.memory_space<vmem>>, vector<1x1x512xf32>
      %338 = vector.shape_cast %337 : vector<1x1x512xf32> to vector<1x512xf32>
      %339 = vector.broadcast %338 : vector<1x512xf32> to vector<32x512xf32>
      %340 = arith.addf %336, %339 : vector<32x512xf32>
      %341 = vector.extract_strided_slice %340 {offsets = [0, 0], sizes = [32, 128], strides = [1, 1]} : vector<32x512xf32> to vector<32x128xf32>
      %342 = arith.negf %341 : vector<32x128xf32>
      %343 = math.exp %342 : vector<32x128xf32>
      %cst_161 = arith.constant 1.000000e+00 : f32
      %344 = vector.broadcast %cst_161 : f32 to vector<32x128xf32>
      %345 = arith.addf %344, %343 : vector<32x128xf32>
      %346 = arith.divf %344, %345 : vector<32x128xf32>
      %347 = vector.extract_strided_slice %340 {offsets = [0, 128], sizes = [32, 128], strides = [1, 1]} : vector<32x512xf32> to vector<32x128xf32>
      %348 = arith.negf %347 : vector<32x128xf32>
      %349 = math.exp %348 : vector<32x128xf32>
      %cst_162 = arith.constant 1.000000e+00 : f32
      %350 = vector.broadcast %cst_162 : f32 to vector<32x128xf32>
      %351 = arith.addf %350, %349 : vector<32x128xf32>
      %352 = arith.divf %350, %351 : vector<32x128xf32>
      %353 = vector.extract_strided_slice %340 {offsets = [0, 256], sizes = [32, 128], strides = [1, 1]} : vector<32x512xf32> to vector<32x128xf32>
      %354 = math.tanh %353 : vector<32x128xf32>
      %355 = vector.extract_strided_slice %340 {offsets = [0, 384], sizes = [32, 128], strides = [1, 1]} : vector<32x512xf32> to vector<32x128xf32>
      %356 = arith.negf %355 : vector<32x128xf32>
      %357 = math.exp %356 : vector<32x128xf32>
      %cst_163 = arith.constant 1.000000e+00 : f32
      %358 = vector.broadcast %cst_163 : f32 to vector<32x128xf32>
      %359 = arith.addf %358, %357 : vector<32x128xf32>
      %360 = arith.divf %358, %359 : vector<32x128xf32>
      %361 = arith.mulf %352, %329 : vector<32x128xf32>
      %362 = arith.mulf %346, %354 : vector<32x128xf32>
      %363 = arith.addf %361, %362 : vector<32x128xf32>
      %364 = math.tanh %363 : vector<32x128xf32>
      %365 = arith.mulf %360, %364 : vector<32x128xf32>
      %c0_i32_164 = arith.constant 0 : i32
      %366 = arith.cmpi sge, %327, %c0_i32_164 : i32
      %c2_i32_165 = arith.constant 2 : i32
      %367 = arith.cmpi slt, %327, %c2_i32_165 : i32
      %368 = arith.andi %366, %367 : i1
      %369 = arith.extui %368 : i1 to i32
      %370 = arith.sitofp %369 : i32 to f32
      %371 = vector.broadcast %370 : f32 to vector<32x128xf32>
      %372 = arith.mulf %371, %365 : vector<32x128xf32>
      %cst_166 = arith.constant 1.000000e+00 : f32
      %373 = arith.subf %cst_166, %370 : f32
      %374 = vector.broadcast %373 : f32 to vector<32x128xf32>
      %375 = arith.mulf %374, %28 : vector<32x128xf32>
      %376 = arith.addf %372, %375 : vector<32x128xf32>
      %377 = vector.broadcast %370 : f32 to vector<32x128xf32>
      %378 = arith.mulf %377, %363 : vector<32x128xf32>
      %cst_167 = arith.constant 1.000000e+00 : f32
      %379 = arith.subf %cst_167, %370 : f32
      %380 = vector.broadcast %379 : f32 to vector<32x128xf32>
      %381 = arith.mulf %380, %329 : vector<32x128xf32>
      %382 = arith.addf %378, %381 : vector<32x128xf32>
      %c6_i32 = arith.constant 6 : i32
      %383 = arith.subi %arg10, %c6_i32 : i32
      %c6_168 = arith.constant 6 : index
      %c0_169 = arith.constant 0 : index
      %c0_170 = arith.constant 0 : index
      %384 = vector.load %arg8[%c6_168, %c0_169, %c0_170] : memref<10x32x128xf32, #tpu.memory_space<vmem>>, vector<1x32x128xf32>
      %385 = vector.shape_cast %384 : vector<1x32x128xf32> to vector<32x128xf32>
      %c6_171 = arith.constant 6 : index
      %c0_172 = arith.constant 0 : index
      %c0_173 = arith.constant 0 : index
      %386 = vector.load %arg1[%c6_171, %c0_172, %c0_173] : memref<10x128x512xbf16, #tpu.memory_space<vmem>>, vector<1x128x512xbf16>
      %387 = vector.shape_cast %386 : vector<1x128x512xbf16> to vector<128x512xbf16>
      %cst_174 = arith.constant dense<0.000000e+00> : vector<32x512xf32>
      %388 = tpu.matmul %42, %387, %cst_174 {dimension_numbers = #tpu.dot_dimension_numbers<[1], [0], [0], [1], [0, 0, 1, 1], [], []>} : vector<32x128xbf16>, vector<128x512xbf16>, vector<32x512xf32> -> vector<32x512xf32>
      %c6_175 = arith.constant 6 : index
      %c0_176 = arith.constant 0 : index
      %c0_177 = arith.constant 0 : index
      %389 = vector.load %arg2[%c6_175, %c0_176, %c0_177] : memref<10x128x512xbf16, #tpu.memory_space<vmem>>, vector<1x128x512xbf16>
      %390 = vector.shape_cast %389 : vector<1x128x512xbf16> to vector<128x512xbf16>
      %cst_178 = arith.constant dense<0.000000e+00> : vector<32x512xf32>
      %391 = tpu.matmul %43, %390, %cst_178 {dimension_numbers = #tpu.dot_dimension_numbers<[1], [0], [0], [1], [0, 0, 1, 1], [], []>} : vector<32x128xbf16>, vector<128x512xbf16>, vector<32x512xf32> -> vector<32x512xf32>
      %392 = arith.addf %388, %391 : vector<32x512xf32>
      %c6_179 = arith.constant 6 : index
      %c0_180 = arith.constant 0 : index
      %c0_181 = arith.constant 0 : index
      %393 = vector.load %arg3[%c6_179, %c0_180, %c0_181] : memref<10x1x512xf32, #tpu.memory_space<vmem>>, vector<1x1x512xf32>
      %394 = vector.shape_cast %393 : vector<1x1x512xf32> to vector<1x512xf32>
      %395 = vector.broadcast %394 : vector<1x512xf32> to vector<32x512xf32>
      %396 = arith.addf %392, %395 : vector<32x512xf32>
      %397 = vector.extract_strided_slice %396 {offsets = [0, 0], sizes = [32, 128], strides = [1, 1]} : vector<32x512xf32> to vector<32x128xf32>
      %398 = arith.negf %397 : vector<32x128xf32>
      %399 = math.exp %398 : vector<32x128xf32>
      %cst_182 = arith.constant 1.000000e+00 : f32
      %400 = vector.broadcast %cst_182 : f32 to vector<32x128xf32>
      %401 = arith.addf %400, %399 : vector<32x128xf32>
      %402 = arith.divf %400, %401 : vector<32x128xf32>
      %403 = vector.extract_strided_slice %396 {offsets = [0, 128], sizes = [32, 128], strides = [1, 1]} : vector<32x512xf32> to vector<32x128xf32>
      %404 = arith.negf %403 : vector<32x128xf32>
      %405 = math.exp %404 : vector<32x128xf32>
      %cst_183 = arith.constant 1.000000e+00 : f32
      %406 = vector.broadcast %cst_183 : f32 to vector<32x128xf32>
      %407 = arith.addf %406, %405 : vector<32x128xf32>
      %408 = arith.divf %406, %407 : vector<32x128xf32>
      %409 = vector.extract_strided_slice %396 {offsets = [0, 256], sizes = [32, 128], strides = [1, 1]} : vector<32x512xf32> to vector<32x128xf32>
      %410 = math.tanh %409 : vector<32x128xf32>
      %411 = vector.extract_strided_slice %396 {offsets = [0, 384], sizes = [32, 128], strides = [1, 1]} : vector<32x512xf32> to vector<32x128xf32>
      %412 = arith.negf %411 : vector<32x128xf32>
      %413 = math.exp %412 : vector<32x128xf32>
      %cst_184 = arith.constant 1.000000e+00 : f32
      %414 = vector.broadcast %cst_184 : f32 to vector<32x128xf32>
      %415 = arith.addf %414, %413 : vector<32x128xf32>
      %416 = arith.divf %414, %415 : vector<32x128xf32>
      %417 = arith.mulf %408, %385 : vector<32x128xf32>
      %418 = arith.mulf %402, %410 : vector<32x128xf32>
      %419 = arith.addf %417, %418 : vector<32x128xf32>
      %420 = math.tanh %419 : vector<32x128xf32>
      %421 = arith.mulf %416, %420 : vector<32x128xf32>
      %c0_i32_185 = arith.constant 0 : i32
      %422 = arith.cmpi sge, %383, %c0_i32_185 : i32
      %c2_i32_186 = arith.constant 2 : i32
      %423 = arith.cmpi slt, %383, %c2_i32_186 : i32
      %424 = arith.andi %422, %423 : i1
      %425 = arith.extui %424 : i1 to i32
      %426 = arith.sitofp %425 : i32 to f32
      %427 = vector.broadcast %426 : f32 to vector<32x128xf32>
      %428 = arith.mulf %427, %421 : vector<32x128xf32>
      %cst_187 = arith.constant 1.000000e+00 : f32
      %429 = arith.subf %cst_187, %426 : f32
      %430 = vector.broadcast %429 : f32 to vector<32x128xf32>
      %431 = arith.mulf %430, %30 : vector<32x128xf32>
      %432 = arith.addf %428, %431 : vector<32x128xf32>
      %433 = vector.broadcast %426 : f32 to vector<32x128xf32>
      %434 = arith.mulf %433, %419 : vector<32x128xf32>
      %cst_188 = arith.constant 1.000000e+00 : f32
      %435 = arith.subf %cst_188, %426 : f32
      %436 = vector.broadcast %435 : f32 to vector<32x128xf32>
      %437 = arith.mulf %436, %385 : vector<32x128xf32>
      %438 = arith.addf %434, %437 : vector<32x128xf32>
      %c7_i32 = arith.constant 7 : i32
      %439 = arith.subi %arg10, %c7_i32 : i32
      %c7_189 = arith.constant 7 : index
      %c0_190 = arith.constant 0 : index
      %c0_191 = arith.constant 0 : index
      %440 = vector.load %arg8[%c7_189, %c0_190, %c0_191] : memref<10x32x128xf32, #tpu.memory_space<vmem>>, vector<1x32x128xf32>
      %441 = vector.shape_cast %440 : vector<1x32x128xf32> to vector<32x128xf32>
      %c7_192 = arith.constant 7 : index
      %c0_193 = arith.constant 0 : index
      %c0_194 = arith.constant 0 : index
      %442 = vector.load %arg1[%c7_192, %c0_193, %c0_194] : memref<10x128x512xbf16, #tpu.memory_space<vmem>>, vector<1x128x512xbf16>
      %443 = vector.shape_cast %442 : vector<1x128x512xbf16> to vector<128x512xbf16>
      %cst_195 = arith.constant dense<0.000000e+00> : vector<32x512xf32>
      %444 = tpu.matmul %43, %443, %cst_195 {dimension_numbers = #tpu.dot_dimension_numbers<[1], [0], [0], [1], [0, 0, 1, 1], [], []>} : vector<32x128xbf16>, vector<128x512xbf16>, vector<32x512xf32> -> vector<32x512xf32>
      %c7_196 = arith.constant 7 : index
      %c0_197 = arith.constant 0 : index
      %c0_198 = arith.constant 0 : index
      %445 = vector.load %arg2[%c7_196, %c0_197, %c0_198] : memref<10x128x512xbf16, #tpu.memory_space<vmem>>, vector<1x128x512xbf16>
      %446 = vector.shape_cast %445 : vector<1x128x512xbf16> to vector<128x512xbf16>
      %cst_199 = arith.constant dense<0.000000e+00> : vector<32x512xf32>
      %447 = tpu.matmul %44, %446, %cst_199 {dimension_numbers = #tpu.dot_dimension_numbers<[1], [0], [0], [1], [0, 0, 1, 1], [], []>} : vector<32x128xbf16>, vector<128x512xbf16>, vector<32x512xf32> -> vector<32x512xf32>
      %448 = arith.addf %444, %447 : vector<32x512xf32>
      %c7_200 = arith.constant 7 : index
      %c0_201 = arith.constant 0 : index
      %c0_202 = arith.constant 0 : index
      %449 = vector.load %arg3[%c7_200, %c0_201, %c0_202] : memref<10x1x512xf32, #tpu.memory_space<vmem>>, vector<1x1x512xf32>
      %450 = vector.shape_cast %449 : vector<1x1x512xf32> to vector<1x512xf32>
      %451 = vector.broadcast %450 : vector<1x512xf32> to vector<32x512xf32>
      %452 = arith.addf %448, %451 : vector<32x512xf32>
      %453 = vector.extract_strided_slice %452 {offsets = [0, 0], sizes = [32, 128], strides = [1, 1]} : vector<32x512xf32> to vector<32x128xf32>
      %454 = arith.negf %453 : vector<32x128xf32>
      %455 = math.exp %454 : vector<32x128xf32>
      %cst_203 = arith.constant 1.000000e+00 : f32
      %456 = vector.broadcast %cst_203 : f32 to vector<32x128xf32>
      %457 = arith.addf %456, %455 : vector<32x128xf32>
      %458 = arith.divf %456, %457 : vector<32x128xf32>
      %459 = vector.extract_strided_slice %452 {offsets = [0, 128], sizes = [32, 128], strides = [1, 1]} : vector<32x512xf32> to vector<32x128xf32>
      %460 = arith.negf %459 : vector<32x128xf32>
      %461 = math.exp %460 : vector<32x128xf32>
      %cst_204 = arith.constant 1.000000e+00 : f32
      %462 = vector.broadcast %cst_204 : f32 to vector<32x128xf32>
      %463 = arith.addf %462, %461 : vector<32x128xf32>
      %464 = arith.divf %462, %463 : vector<32x128xf32>
      %465 = vector.extract_strided_slice %452 {offsets = [0, 256], sizes = [32, 128], strides = [1, 1]} : vector<32x512xf32> to vector<32x128xf32>
      %466 = math.tanh %465 : vector<32x128xf32>
      %467 = vector.extract_strided_slice %452 {offsets = [0, 384], sizes = [32, 128], strides = [1, 1]} : vector<32x512xf32> to vector<32x128xf32>
      %468 = arith.negf %467 : vector<32x128xf32>
      %469 = math.exp %468 : vector<32x128xf32>
      %cst_205 = arith.constant 1.000000e+00 : f32
      %470 = vector.broadcast %cst_205 : f32 to vector<32x128xf32>
      %471 = arith.addf %470, %469 : vector<32x128xf32>
      %472 = arith.divf %470, %471 : vector<32x128xf32>
      %473 = arith.mulf %464, %441 : vector<32x128xf32>
      %474 = arith.mulf %458, %466 : vector<32x128xf32>
      %475 = arith.addf %473, %474 : vector<32x128xf32>
      %476 = math.tanh %475 : vector<32x128xf32>
      %477 = arith.mulf %472, %476 : vector<32x128xf32>
      %c0_i32_206 = arith.constant 0 : i32
      %478 = arith.cmpi sge, %439, %c0_i32_206 : i32
      %c2_i32_207 = arith.constant 2 : i32
      %479 = arith.cmpi slt, %439, %c2_i32_207 : i32
      %480 = arith.andi %478, %479 : i1
      %481 = arith.extui %480 : i1 to i32
      %482 = arith.sitofp %481 : i32 to f32
      %483 = vector.broadcast %482 : f32 to vector<32x128xf32>
      %484 = arith.mulf %483, %477 : vector<32x128xf32>
      %cst_208 = arith.constant 1.000000e+00 : f32
      %485 = arith.subf %cst_208, %482 : f32
      %486 = vector.broadcast %485 : f32 to vector<32x128xf32>
      %487 = arith.mulf %486, %32 : vector<32x128xf32>
      %488 = arith.addf %484, %487 : vector<32x128xf32>
      %489 = vector.broadcast %482 : f32 to vector<32x128xf32>
      %490 = arith.mulf %489, %475 : vector<32x128xf32>
      %cst_209 = arith.constant 1.000000e+00 : f32
      %491 = arith.subf %cst_209, %482 : f32
      %492 = vector.broadcast %491 : f32 to vector<32x128xf32>
      %493 = arith.mulf %492, %441 : vector<32x128xf32>
      %494 = arith.addf %490, %493 : vector<32x128xf32>
      %c8_i32 = arith.constant 8 : i32
      %495 = arith.subi %arg10, %c8_i32 : i32
      %c8_210 = arith.constant 8 : index
      %c0_211 = arith.constant 0 : index
      %c0_212 = arith.constant 0 : index
      %496 = vector.load %arg8[%c8_210, %c0_211, %c0_212] : memref<10x32x128xf32, #tpu.memory_space<vmem>>, vector<1x32x128xf32>
      %497 = vector.shape_cast %496 : vector<1x32x128xf32> to vector<32x128xf32>
      %c8_213 = arith.constant 8 : index
      %c0_214 = arith.constant 0 : index
      %c0_215 = arith.constant 0 : index
      %498 = vector.load %arg1[%c8_213, %c0_214, %c0_215] : memref<10x128x512xbf16, #tpu.memory_space<vmem>>, vector<1x128x512xbf16>
      %499 = vector.shape_cast %498 : vector<1x128x512xbf16> to vector<128x512xbf16>
      %cst_216 = arith.constant dense<0.000000e+00> : vector<32x512xf32>
      %500 = tpu.matmul %44, %499, %cst_216 {dimension_numbers = #tpu.dot_dimension_numbers<[1], [0], [0], [1], [0, 0, 1, 1], [], []>} : vector<32x128xbf16>, vector<128x512xbf16>, vector<32x512xf32> -> vector<32x512xf32>
      %c8_217 = arith.constant 8 : index
      %c0_218 = arith.constant 0 : index
      %c0_219 = arith.constant 0 : index
      %501 = vector.load %arg2[%c8_217, %c0_218, %c0_219] : memref<10x128x512xbf16, #tpu.memory_space<vmem>>, vector<1x128x512xbf16>
      %502 = vector.shape_cast %501 : vector<1x128x512xbf16> to vector<128x512xbf16>
      %cst_220 = arith.constant dense<0.000000e+00> : vector<32x512xf32>
      %503 = tpu.matmul %45, %502, %cst_220 {dimension_numbers = #tpu.dot_dimension_numbers<[1], [0], [0], [1], [0, 0, 1, 1], [], []>} : vector<32x128xbf16>, vector<128x512xbf16>, vector<32x512xf32> -> vector<32x512xf32>
      %504 = arith.addf %500, %503 : vector<32x512xf32>
      %c8_221 = arith.constant 8 : index
      %c0_222 = arith.constant 0 : index
      %c0_223 = arith.constant 0 : index
      %505 = vector.load %arg3[%c8_221, %c0_222, %c0_223] : memref<10x1x512xf32, #tpu.memory_space<vmem>>, vector<1x1x512xf32>
      %506 = vector.shape_cast %505 : vector<1x1x512xf32> to vector<1x512xf32>
      %507 = vector.broadcast %506 : vector<1x512xf32> to vector<32x512xf32>
      %508 = arith.addf %504, %507 : vector<32x512xf32>
      %509 = vector.extract_strided_slice %508 {offsets = [0, 0], sizes = [32, 128], strides = [1, 1]} : vector<32x512xf32> to vector<32x128xf32>
      %510 = arith.negf %509 : vector<32x128xf32>
      %511 = math.exp %510 : vector<32x128xf32>
      %cst_224 = arith.constant 1.000000e+00 : f32
      %512 = vector.broadcast %cst_224 : f32 to vector<32x128xf32>
      %513 = arith.addf %512, %511 : vector<32x128xf32>
      %514 = arith.divf %512, %513 : vector<32x128xf32>
      %515 = vector.extract_strided_slice %508 {offsets = [0, 128], sizes = [32, 128], strides = [1, 1]} : vector<32x512xf32> to vector<32x128xf32>
      %516 = arith.negf %515 : vector<32x128xf32>
      %517 = math.exp %516 : vector<32x128xf32>
      %cst_225 = arith.constant 1.000000e+00 : f32
      %518 = vector.broadcast %cst_225 : f32 to vector<32x128xf32>
      %519 = arith.addf %518, %517 : vector<32x128xf32>
      %520 = arith.divf %518, %519 : vector<32x128xf32>
      %521 = vector.extract_strided_slice %508 {offsets = [0, 256], sizes = [32, 128], strides = [1, 1]} : vector<32x512xf32> to vector<32x128xf32>
      %522 = math.tanh %521 : vector<32x128xf32>
      %523 = vector.extract_strided_slice %508 {offsets = [0, 384], sizes = [32, 128], strides = [1, 1]} : vector<32x512xf32> to vector<32x128xf32>
      %524 = arith.negf %523 : vector<32x128xf32>
      %525 = math.exp %524 : vector<32x128xf32>
      %cst_226 = arith.constant 1.000000e+00 : f32
      %526 = vector.broadcast %cst_226 : f32 to vector<32x128xf32>
      %527 = arith.addf %526, %525 : vector<32x128xf32>
      %528 = arith.divf %526, %527 : vector<32x128xf32>
      %529 = arith.mulf %520, %497 : vector<32x128xf32>
      %530 = arith.mulf %514, %522 : vector<32x128xf32>
      %531 = arith.addf %529, %530 : vector<32x128xf32>
      %532 = math.tanh %531 : vector<32x128xf32>
      %533 = arith.mulf %528, %532 : vector<32x128xf32>
      %c0_i32_227 = arith.constant 0 : i32
      %534 = arith.cmpi sge, %495, %c0_i32_227 : i32
      %c2_i32_228 = arith.constant 2 : i32
      %535 = arith.cmpi slt, %495, %c2_i32_228 : i32
      %536 = arith.andi %534, %535 : i1
      %537 = arith.extui %536 : i1 to i32
      %538 = arith.sitofp %537 : i32 to f32
      %539 = vector.broadcast %538 : f32 to vector<32x128xf32>
      %540 = arith.mulf %539, %533 : vector<32x128xf32>
      %cst_229 = arith.constant 1.000000e+00 : f32
      %541 = arith.subf %cst_229, %538 : f32
      %542 = vector.broadcast %541 : f32 to vector<32x128xf32>
      %543 = arith.mulf %542, %34 : vector<32x128xf32>
      %544 = arith.addf %540, %543 : vector<32x128xf32>
      %545 = vector.broadcast %538 : f32 to vector<32x128xf32>
      %546 = arith.mulf %545, %531 : vector<32x128xf32>
      %cst_230 = arith.constant 1.000000e+00 : f32
      %547 = arith.subf %cst_230, %538 : f32
      %548 = vector.broadcast %547 : f32 to vector<32x128xf32>
      %549 = arith.mulf %548, %497 : vector<32x128xf32>
      %550 = arith.addf %546, %549 : vector<32x128xf32>
      %c9_i32 = arith.constant 9 : i32
      %551 = arith.subi %arg10, %c9_i32 : i32
      %c9_231 = arith.constant 9 : index
      %c0_232 = arith.constant 0 : index
      %c0_233 = arith.constant 0 : index
      %552 = vector.load %arg8[%c9_231, %c0_232, %c0_233] : memref<10x32x128xf32, #tpu.memory_space<vmem>>, vector<1x32x128xf32>
      %553 = vector.shape_cast %552 : vector<1x32x128xf32> to vector<32x128xf32>
      %c9_234 = arith.constant 9 : index
      %c0_235 = arith.constant 0 : index
      %c0_236 = arith.constant 0 : index
      %554 = vector.load %arg1[%c9_234, %c0_235, %c0_236] : memref<10x128x512xbf16, #tpu.memory_space<vmem>>, vector<1x128x512xbf16>
      %555 = vector.shape_cast %554 : vector<1x128x512xbf16> to vector<128x512xbf16>
      %cst_237 = arith.constant dense<0.000000e+00> : vector<32x512xf32>
      %556 = tpu.matmul %45, %555, %cst_237 {dimension_numbers = #tpu.dot_dimension_numbers<[1], [0], [0], [1], [0, 0, 1, 1], [], []>} : vector<32x128xbf16>, vector<128x512xbf16>, vector<32x512xf32> -> vector<32x512xf32>
      %c9_238 = arith.constant 9 : index
      %c0_239 = arith.constant 0 : index
      %c0_240 = arith.constant 0 : index
      %557 = vector.load %arg2[%c9_238, %c0_239, %c0_240] : memref<10x128x512xbf16, #tpu.memory_space<vmem>>, vector<1x128x512xbf16>
      %558 = vector.shape_cast %557 : vector<1x128x512xbf16> to vector<128x512xbf16>
      %cst_241 = arith.constant dense<0.000000e+00> : vector<32x512xf32>
      %559 = tpu.matmul %46, %558, %cst_241 {dimension_numbers = #tpu.dot_dimension_numbers<[1], [0], [0], [1], [0, 0, 1, 1], [], []>} : vector<32x128xbf16>, vector<128x512xbf16>, vector<32x512xf32> -> vector<32x512xf32>
      %560 = arith.addf %556, %559 : vector<32x512xf32>
      %c9_242 = arith.constant 9 : index
      %c0_243 = arith.constant 0 : index
      %c0_244 = arith.constant 0 : index
      %561 = vector.load %arg3[%c9_242, %c0_243, %c0_244] : memref<10x1x512xf32, #tpu.memory_space<vmem>>, vector<1x1x512xf32>
      %562 = vector.shape_cast %561 : vector<1x1x512xf32> to vector<1x512xf32>
      %563 = vector.broadcast %562 : vector<1x512xf32> to vector<32x512xf32>
      %564 = arith.addf %560, %563 : vector<32x512xf32>
      %565 = vector.extract_strided_slice %564 {offsets = [0, 0], sizes = [32, 128], strides = [1, 1]} : vector<32x512xf32> to vector<32x128xf32>
      %566 = arith.negf %565 : vector<32x128xf32>
      %567 = math.exp %566 : vector<32x128xf32>
      %cst_245 = arith.constant 1.000000e+00 : f32
      %568 = vector.broadcast %cst_245 : f32 to vector<32x128xf32>
      %569 = arith.addf %568, %567 : vector<32x128xf32>
      %570 = arith.divf %568, %569 : vector<32x128xf32>
      %571 = vector.extract_strided_slice %564 {offsets = [0, 128], sizes = [32, 128], strides = [1, 1]} : vector<32x512xf32> to vector<32x128xf32>
      %572 = arith.negf %571 : vector<32x128xf32>
      %573 = math.exp %572 : vector<32x128xf32>
      %cst_246 = arith.constant 1.000000e+00 : f32
      %574 = vector.broadcast %cst_246 : f32 to vector<32x128xf32>
      %575 = arith.addf %574, %573 : vector<32x128xf32>
      %576 = arith.divf %574, %575 : vector<32x128xf32>
      %577 = vector.extract_strided_slice %564 {offsets = [0, 256], sizes = [32, 128], strides = [1, 1]} : vector<32x512xf32> to vector<32x128xf32>
      %578 = math.tanh %577 : vector<32x128xf32>
      %579 = vector.extract_strided_slice %564 {offsets = [0, 384], sizes = [32, 128], strides = [1, 1]} : vector<32x512xf32> to vector<32x128xf32>
      %580 = arith.negf %579 : vector<32x128xf32>
      %581 = math.exp %580 : vector<32x128xf32>
      %cst_247 = arith.constant 1.000000e+00 : f32
      %582 = vector.broadcast %cst_247 : f32 to vector<32x128xf32>
      %583 = arith.addf %582, %581 : vector<32x128xf32>
      %584 = arith.divf %582, %583 : vector<32x128xf32>
      %585 = arith.mulf %576, %553 : vector<32x128xf32>
      %586 = arith.mulf %570, %578 : vector<32x128xf32>
      %587 = arith.addf %585, %586 : vector<32x128xf32>
      %588 = math.tanh %587 : vector<32x128xf32>
      %589 = arith.mulf %584, %588 : vector<32x128xf32>
      %c0_i32_248 = arith.constant 0 : i32
      %590 = arith.cmpi sge, %551, %c0_i32_248 : i32
      %c2_i32_249 = arith.constant 2 : i32
      %591 = arith.cmpi slt, %551, %c2_i32_249 : i32
      %592 = arith.andi %590, %591 : i1
      %593 = arith.extui %592 : i1 to i32
      %594 = arith.sitofp %593 : i32 to f32
      %595 = vector.broadcast %594 : f32 to vector<32x128xf32>
      %596 = arith.mulf %595, %589 : vector<32x128xf32>
      %cst_250 = arith.constant 1.000000e+00 : f32
      %597 = arith.subf %cst_250, %594 : f32
      %598 = vector.broadcast %597 : f32 to vector<32x128xf32>
      %599 = arith.mulf %598, %36 : vector<32x128xf32>
      %600 = arith.addf %596, %599 : vector<32x128xf32>
      %601 = vector.broadcast %594 : f32 to vector<32x128xf32>
      %602 = arith.mulf %601, %587 : vector<32x128xf32>
      %cst_251 = arith.constant 1.000000e+00 : f32
      %603 = arith.subf %cst_251, %594 : f32
      %604 = vector.broadcast %603 : f32 to vector<32x128xf32>
      %605 = arith.mulf %604, %553 : vector<32x128xf32>
      %606 = arith.addf %602, %605 : vector<32x128xf32>
      %607 = vector.extract_strided_slice %589 {offsets = [31, 0], sizes = [1, 128], strides = [1, 1]} : vector<32x128xf32> to vector<1x128xf32>
      %c0_i32_252 = arith.constant 0 : i32
      %608 = arith.maxsi %551, %c0_i32_252 : i32
      %c0_253 = arith.constant 0 : index
      %c0_254 = arith.constant 0 : index
      %c0_255 = arith.constant 0 : index
      %609 = vector.load %arg7[%c0_253, %c0_254, %c0_255] : memref<10x32x128xf32, #tpu.memory_space<vmem>>, vector<1x32x128xf32>
      %610 = vector.shape_cast %609 : vector<1x32x128xf32> to vector<32x128xf32>
      %611 = vector.shape_cast %96 : vector<32x128xf32> to vector<1x32x128xf32>
      tpu.vector_store %arg7[%c0_253, %c0_254, %c0_255], %611 {strides = array<i32>} : memref<10x32x128xf32, #tpu.memory_space<vmem>>, vector<1x32x128xf32>,
      %c0_256 = arith.constant 0 : index
      %c0_257 = arith.constant 0 : index
      %c0_258 = arith.constant 0 : index
      %612 = vector.load %arg8[%c0_256, %c0_257, %c0_258] : memref<10x32x128xf32, #tpu.memory_space<vmem>>, vector<1x32x128xf32>
      %613 = vector.shape_cast %612 : vector<1x32x128xf32> to vector<32x128xf32>
      %614 = vector.shape_cast %102 : vector<32x128xf32> to vector<1x32x128xf32>
      tpu.vector_store %arg8[%c0_256, %c0_257, %c0_258], %614 {strides = array<i32>} : memref<10x32x128xf32, #tpu.memory_space<vmem>>, vector<1x32x128xf32>,
      %c1_259 = arith.constant 1 : index
      %c0_260 = arith.constant 0 : index
      %c0_261 = arith.constant 0 : index
      %615 = vector.load %arg7[%c1_259, %c0_260, %c0_261] : memref<10x32x128xf32, #tpu.memory_space<vmem>>, vector<1x32x128xf32>
      %616 = vector.shape_cast %615 : vector<1x32x128xf32> to vector<32x128xf32>
      %617 = vector.shape_cast %152 : vector<32x128xf32> to vector<1x32x128xf32>
      tpu.vector_store %arg7[%c1_259, %c0_260, %c0_261], %617 {strides = array<i32>} : memref<10x32x128xf32, #tpu.memory_space<vmem>>, vector<1x32x128xf32>,
      %c1_262 = arith.constant 1 : index
      %c0_263 = arith.constant 0 : index
      %c0_264 = arith.constant 0 : index
      %618 = vector.load %arg8[%c1_262, %c0_263, %c0_264] : memref<10x32x128xf32, #tpu.memory_space<vmem>>, vector<1x32x128xf32>
      %619 = vector.shape_cast %618 : vector<1x32x128xf32> to vector<32x128xf32>
      %620 = vector.shape_cast %158 : vector<32x128xf32> to vector<1x32x128xf32>
      tpu.vector_store %arg8[%c1_262, %c0_263, %c0_264], %620 {strides = array<i32>} : memref<10x32x128xf32, #tpu.memory_space<vmem>>, vector<1x32x128xf32>,
      %c2_265 = arith.constant 2 : index
      %c0_266 = arith.constant 0 : index
      %c0_267 = arith.constant 0 : index
      %621 = vector.load %arg7[%c2_265, %c0_266, %c0_267] : memref<10x32x128xf32, #tpu.memory_space<vmem>>, vector<1x32x128xf32>
      %622 = vector.shape_cast %621 : vector<1x32x128xf32> to vector<32x128xf32>
      %623 = vector.shape_cast %208 : vector<32x128xf32> to vector<1x32x128xf32>
      tpu.vector_store %arg7[%c2_265, %c0_266, %c0_267], %623 {strides = array<i32>} : memref<10x32x128xf32, #tpu.memory_space<vmem>>, vector<1x32x128xf32>,
      %c2_268 = arith.constant 2 : index
      %c0_269 = arith.constant 0 : index
      %c0_270 = arith.constant 0 : index
      %624 = vector.load %arg8[%c2_268, %c0_269, %c0_270] : memref<10x32x128xf32, #tpu.memory_space<vmem>>, vector<1x32x128xf32>
      %625 = vector.shape_cast %624 : vector<1x32x128xf32> to vector<32x128xf32>
      %626 = vector.shape_cast %214 : vector<32x128xf32> to vector<1x32x128xf32>
      tpu.vector_store %arg8[%c2_268, %c0_269, %c0_270], %626 {strides = array<i32>} : memref<10x32x128xf32, #tpu.memory_space<vmem>>, vector<1x32x128xf32>,
      %c3_271 = arith.constant 3 : index
      %c0_272 = arith.constant 0 : index
      %c0_273 = arith.constant 0 : index
      %627 = vector.load %arg7[%c3_271, %c0_272, %c0_273] : memref<10x32x128xf32, #tpu.memory_space<vmem>>, vector<1x32x128xf32>
      %628 = vector.shape_cast %627 : vector<1x32x128xf32> to vector<32x128xf32>
      %629 = vector.shape_cast %264 : vector<32x128xf32> to vector<1x32x128xf32>
      tpu.vector_store %arg7[%c3_271, %c0_272, %c0_273], %629 {strides = array<i32>} : memref<10x32x128xf32, #tpu.memory_space<vmem>>, vector<1x32x128xf32>,
      %c3_274 = arith.constant 3 : index
      %c0_275 = arith.constant 0 : index
      %c0_276 = arith.constant 0 : index
      %630 = vector.load %arg8[%c3_274, %c0_275, %c0_276] : memref<10x32x128xf32, #tpu.memory_space<vmem>>, vector<1x32x128xf32>
      %631 = vector.shape_cast %630 : vector<1x32x128xf32> to vector<32x128xf32>
      %632 = vector.shape_cast %270 : vector<32x128xf32> to vector<1x32x128xf32>
      tpu.vector_store %arg8[%c3_274, %c0_275, %c0_276], %632 {strides = array<i32>} : memref<10x32x128xf32, #tpu.memory_space<vmem>>, vector<1x32x128xf32>,
      %c4_277 = arith.constant 4 : index
      %c0_278 = arith.constant 0 : index
      %c0_279 = arith.constant 0 : index
      %633 = vector.load %arg7[%c4_277, %c0_278, %c0_279] : memref<10x32x128xf32, #tpu.memory_space<vmem>>, vector<1x32x128xf32>
      %634 = vector.shape_cast %633 : vector<1x32x128xf32> to vector<32x128xf32>
      %635 = vector.shape_cast %320 : vector<32x128xf32> to vector<1x32x128xf32>
      tpu.vector_store %arg7[%c4_277, %c0_278, %c0_279], %635 {strides = array<i32>} : memref<10x32x128xf32, #tpu.memory_space<vmem>>, vector<1x32x128xf32>,
      %c4_280 = arith.constant 4 : index
      %c0_281 = arith.constant 0 : index
      %c0_282 = arith.constant 0 : index
      %636 = vector.load %arg8[%c4_280, %c0_281, %c0_282] : memref<10x32x128xf32, #tpu.memory_space<vmem>>, vector<1x32x128xf32>
      %637 = vector.shape_cast %636 : vector<1x32x128xf32> to vector<32x128xf32>
      %638 = vector.shape_cast %326 : vector<32x128xf32> to vector<1x32x128xf32>
      tpu.vector_store %arg8[%c4_280, %c0_281, %c0_282], %638 {strides = array<i32>} : memref<10x32x128xf32, #tpu.memory_space<vmem>>, vector<1x32x128xf32>,
      %c5_283 = arith.constant 5 : index
      %c0_284 = arith.constant 0 : index
      %c0_285 = arith.constant 0 : index
      %639 = vector.load %arg7[%c5_283, %c0_284, %c0_285] : memref<10x32x128xf32, #tpu.memory_space<vmem>>, vector<1x32x128xf32>
      %640 = vector.shape_cast %639 : vector<1x32x128xf32> to vector<32x128xf32>
      %641 = vector.shape_cast %376 : vector<32x128xf32> to vector<1x32x128xf32>
      tpu.vector_store %arg7[%c5_283, %c0_284, %c0_285], %641 {strides = array<i32>} : memref<10x32x128xf32, #tpu.memory_space<vmem>>, vector<1x32x128xf32>,
      %c5_286 = arith.constant 5 : index
      %c0_287 = arith.constant 0 : index
      %c0_288 = arith.constant 0 : index
      %642 = vector.load %arg8[%c5_286, %c0_287, %c0_288] : memref<10x32x128xf32, #tpu.memory_space<vmem>>, vector<1x32x128xf32>
      %643 = vector.shape_cast %642 : vector<1x32x128xf32> to vector<32x128xf32>
      %644 = vector.shape_cast %382 : vector<32x128xf32> to vector<1x32x128xf32>
      tpu.vector_store %arg8[%c5_286, %c0_287, %c0_288], %644 {strides = array<i32>} : memref<10x32x128xf32, #tpu.memory_space<vmem>>, vector<1x32x128xf32>,
      %c6_289 = arith.constant 6 : index
      %c0_290 = arith.constant 0 : index
      %c0_291 = arith.constant 0 : index
      %645 = vector.load %arg7[%c6_289, %c0_290, %c0_291] : memref<10x32x128xf32, #tpu.memory_space<vmem>>, vector<1x32x128xf32>
      %646 = vector.shape_cast %645 : vector<1x32x128xf32> to vector<32x128xf32>
      %647 = vector.shape_cast %432 : vector<32x128xf32> to vector<1x32x128xf32>
      tpu.vector_store %arg7[%c6_289, %c0_290, %c0_291], %647 {strides = array<i32>} : memref<10x32x128xf32, #tpu.memory_space<vmem>>, vector<1x32x128xf32>,
      %c6_292 = arith.constant 6 : index
      %c0_293 = arith.constant 0 : index
      %c0_294 = arith.constant 0 : index
      %648 = vector.load %arg8[%c6_292, %c0_293, %c0_294] : memref<10x32x128xf32, #tpu.memory_space<vmem>>, vector<1x32x128xf32>
      %649 = vector.shape_cast %648 : vector<1x32x128xf32> to vector<32x128xf32>
      %650 = vector.shape_cast %438 : vector<32x128xf32> to vector<1x32x128xf32>
      tpu.vector_store %arg8[%c6_292, %c0_293, %c0_294], %650 {strides = array<i32>} : memref<10x32x128xf32, #tpu.memory_space<vmem>>, vector<1x32x128xf32>,
      %c7_295 = arith.constant 7 : index
      %c0_296 = arith.constant 0 : index
      %c0_297 = arith.constant 0 : index
      %651 = vector.load %arg7[%c7_295, %c0_296, %c0_297] : memref<10x32x128xf32, #tpu.memory_space<vmem>>, vector<1x32x128xf32>
      %652 = vector.shape_cast %651 : vector<1x32x128xf32> to vector<32x128xf32>
      %653 = vector.shape_cast %488 : vector<32x128xf32> to vector<1x32x128xf32>
      tpu.vector_store %arg7[%c7_295, %c0_296, %c0_297], %653 {strides = array<i32>} : memref<10x32x128xf32, #tpu.memory_space<vmem>>, vector<1x32x128xf32>,
      %c7_298 = arith.constant 7 : index
      %c0_299 = arith.constant 0 : index
      %c0_300 = arith.constant 0 : index
      %654 = vector.load %arg8[%c7_298, %c0_299, %c0_300] : memref<10x32x128xf32, #tpu.memory_space<vmem>>, vector<1x32x128xf32>
      %655 = vector.shape_cast %654 : vector<1x32x128xf32> to vector<32x128xf32>
      %656 = vector.shape_cast %494 : vector<32x128xf32> to vector<1x32x128xf32>
      tpu.vector_store %arg8[%c7_298, %c0_299, %c0_300], %656 {strides = array<i32>} : memref<10x32x128xf32, #tpu.memory_space<vmem>>, vector<1x32x128xf32>,
      %c8_301 = arith.constant 8 : index
      %c0_302 = arith.constant 0 : index
      %c0_303 = arith.constant 0 : index
      %657 = vector.load %arg7[%c8_301, %c0_302, %c0_303] : memref<10x32x128xf32, #tpu.memory_space<vmem>>, vector<1x32x128xf32>
      %658 = vector.shape_cast %657 : vector<1x32x128xf32> to vector<32x128xf32>
      %659 = vector.shape_cast %544 : vector<32x128xf32> to vector<1x32x128xf32>
      tpu.vector_store %arg7[%c8_301, %c0_302, %c0_303], %659 {strides = array<i32>} : memref<10x32x128xf32, #tpu.memory_space<vmem>>, vector<1x32x128xf32>,
      %c8_304 = arith.constant 8 : index
      %c0_305 = arith.constant 0 : index
      %c0_306 = arith.constant 0 : index
      %660 = vector.load %arg8[%c8_304, %c0_305, %c0_306] : memref<10x32x128xf32, #tpu.memory_space<vmem>>, vector<1x32x128xf32>
      %661 = vector.shape_cast %660 : vector<1x32x128xf32> to vector<32x128xf32>
      %662 = vector.shape_cast %550 : vector<32x128xf32> to vector<1x32x128xf32>
      tpu.vector_store %arg8[%c8_304, %c0_305, %c0_306], %662 {strides = array<i32>} : memref<10x32x128xf32, #tpu.memory_space<vmem>>, vector<1x32x128xf32>,
      %c9_307 = arith.constant 9 : index
      %c0_308 = arith.constant 0 : index
      %c0_309 = arith.constant 0 : index
      %663 = vector.load %arg7[%c9_307, %c0_308, %c0_309] : memref<10x32x128xf32, #tpu.memory_space<vmem>>, vector<1x32x128xf32>
      %664 = vector.shape_cast %663 : vector<1x32x128xf32> to vector<32x128xf32>
      %665 = vector.shape_cast %600 : vector<32x128xf32> to vector<1x32x128xf32>
      tpu.vector_store %arg7[%c9_307, %c0_308, %c0_309], %665 {strides = array<i32>} : memref<10x32x128xf32, #tpu.memory_space<vmem>>, vector<1x32x128xf32>,
      %c9_310 = arith.constant 9 : index
      %c0_311 = arith.constant 0 : index
      %c0_312 = arith.constant 0 : index
      %666 = vector.load %arg8[%c9_310, %c0_311, %c0_312] : memref<10x32x128xf32, #tpu.memory_space<vmem>>, vector<1x32x128xf32>
      %667 = vector.shape_cast %666 : vector<1x32x128xf32> to vector<32x128xf32>
      %668 = vector.shape_cast %606 : vector<32x128xf32> to vector<1x32x128xf32>
      tpu.vector_store %arg8[%c9_310, %c0_311, %c0_312], %668 {strides = array<i32>} : memref<10x32x128xf32, #tpu.memory_space<vmem>>, vector<1x32x128xf32>,
      %669 = arith.index_cast %608 : i32 to index
      %c0_313 = arith.constant 0 : index
      %670 = vector.load %arg9[%669, %c0_313] : memref<2x128xf32, #tpu.memory_space<vmem>>, vector<1x128xf32>
      tpu.vector_store %arg9[%669, %c0_313], %607 {strides = array<i32>} : memref<2x128xf32, #tpu.memory_space<vmem>>, vector<1x128xf32>,
    }
    %c11_i32_6 = arith.constant 11 : i32
    %c0_7 = arith.constant 0 : index
    %c0_8 = arith.constant 0 : index
    %5 = vector.load %arg9[%c0_7, %c0_8] : memref<2x128xf32, #tpu.memory_space<vmem>>, vector<2x128xf32>
    %6 = arith.truncf %5 : vector<2x128xf32> to vector<2x128xbf16>
    %c0_9 = arith.constant 0 : index
    %c0_10 = arith.constant 0 : index
    %7 = vector.load %arg4[%c0_9, %c0_10] : memref<128x128xbf16, #tpu.memory_space<vmem>>, vector<128x128xbf16>
    %cst_11 = arith.constant dense<0.000000e+00> : vector<2x128xf32>
    %8 = tpu.matmul %6, %7, %cst_11 {dimension_numbers = #tpu.dot_dimension_numbers<[1], [0], [0], [1], [0, 0, 1, 1], [], []>} : vector<2x128xbf16>, vector<128x128xbf16>, vector<2x128xf32> -> vector<2x128xf32>
    %c0_12 = arith.constant 0 : index
    %c0_13 = arith.constant 0 : index
    %9 = vector.load %arg5[%c0_12, %c0_13] : memref<1x128xf32, #tpu.memory_space<vmem>>, vector<1x128xf32>
    %10 = vector.broadcast %9 : vector<1x128xf32> to vector<2x128xf32>
    %11 = arith.addf %8, %10 : vector<2x128xf32>
    %c0_14 = arith.constant 0 : index
    %c0_15 = arith.constant 0 : index
    %12 = vector.load %arg6[%c0_14, %c0_15] : memref<2x128xf32, #tpu.memory_space<vmem>>, vector<2x128xf32>
    tpu.vector_store %arg6[%c0_14, %c0_15], %11 {strides = array<i32>} : memref<2x128xf32, #tpu.memory_space<vmem>>, vector<2x128xf32>,
    return
  }
}

</mosaic_0001>

<llo_original>
// kernel: net3_forward.1
$region0: #{net3_forward.1}
  #allocation0 [shape = 'u32[]', space=smem, size = 0x4, offset = 0x4, fixed_abs, tag = 'smem constant byte address 0x4 - core index']
  #allocation1 [shape = 'u32[72,128]{1,0:T(1,128)}', space=vmem, size = 0x9000, scoped, tag = 'internal scratch']
  #allocation2 [shape = 'f32[10,32,128]{2,1,0:T(8,128)}', space=vmem, size = 0x28000, scoped, tag = 'scratch operand']
  #allocation3 [shape = 'f32[10,32,128]{2,1,0:T(8,128)}', space=vmem, size = 0x28000, scoped, tag = 'scratch operand']
  #allocation4 [shape = 'f32[2,128]{1,0:T(2,128)}', space=vmem, size = 0x400, scoped, tag = 'scratch operand']
  %s0 = inlined_call_operand.vmem [shape: bf16[2,32,128], index: 0, kind: input, shape index: {}]
  %s1 = inlined_call_operand.vmem [shape: bf16[10,128,512], index: 1, kind: input, shape index: {}]
  %s2 = inlined_call_operand.vmem [shape: bf16[10,128,512], index: 2, kind: input, shape index: {}]
  %s3 = inlined_call_operand.vmem [shape: f32[10,1,512], index: 3, kind: input, shape index: {}]
  %s4 = inlined_call_operand.vmem [shape: bf16[128,128], index: 4, kind: input, shape index: {}]
  %s5 = inlined_call_operand.vmem [shape: f32[1,128], index: 5, kind: input, shape index: {}]
  %s6 = inlined_call_operand.hbm [shape: f32[2,128], index: 6, kind: output, shape index: {}]
  %s7 = sld [smem:[#allocation0]]
  $region41: #{net3_forward.1} parent=0
    _
  %s9 = ssub.s32 1, %s7
  %s10 = scalar_select 0, %s9, %s7
  $region1: #{net3_forward.1} parent=0
    #allocation5 [shape = 'u8[1024]{0}', space=vmem, size = 0x400, scoped, tag = 'output window, operand 0, single buffered']
    #allocation6 [shape = 's32[1]{0}', space=sflag, size = 0x4, scoped, tag = 'scoped memory for net3_forward.1']
    %11 = vsyncpa [#allocation6], 0
    // Predicated region
    $region2: #{net3_forward.1} parent=1 // pred_check
      _
    $region3: #{net3_forward.1} parent=1 // pred_check_branch
      %13 = sbr.rel (0) target = $region5
    $region4: #{net3_forward.1} parent=1 // pred_region
      _
    $region5: #{net3_forward.1} parent=1 // pred_fallthru
      _
    // Predicated region
    $region6: #{net3_forward.1} parent=1 // pred_check
      _
    $region7: #{net3_forward.1} parent=1 // pred_check_branch
      %15 = sbr.rel (0) target = $region9
    $region8: #{net3_forward.1} parent=1 // pred_region
      _
    $region9: #{net3_forward.1} parent=1 // pred_fallthru
      _
    // Predicated region
    $region10: #{net3_forward.1} parent=1 // pred_check
      _
    $region11: #{net3_forward.1} parent=1 // pred_check_branch
      %17 = sbr.rel (0) target = $region13
    $region12: #{net3_forward.1} parent=1 // pred_region
      _
    $region13: #{net3_forward.1} parent=1 // pred_fallthru
      _
    // Predicated region
    $region14: #{net3_forward.1} parent=1 // pred_check
      _
    $region15: #{net3_forward.1} parent=1 // pred_check_branch
      %19 = sbr.rel (0) target = $region17
    $region16: #{net3_forward.1} parent=1 // pred_region
      _
    $region17: #{net3_forward.1} parent=1 // pred_fallthru
      _
    // Predicated region
    $region18: #{net3_forward.1} parent=1 // pred_check
      _
    $region19: #{net3_forward.1} parent=1 // pred_check_branch
      %21 = sbr.rel (0) target = $region21
    $region20: #{net3_forward.1} parent=1 // pred_region
      _
    $region21: #{net3_forward.1} parent=1 // pred_fallthru
      _
    // Predicated region
    $region22: #{net3_forward.1} parent=1 // pred_check
      _
    $region23: #{net3_forward.1} parent=1 // pred_check_branch
      %23 = sbr.rel (0) target = $region25
    $region24: #{net3_forward.1} parent=1 // pred_region
      _
    $region25: #{net3_forward.1} parent=1 // pred_fallthru
      _
    %24 = vst [vmem:[#allocation2] sm:$0xff] 0.0
    %25 = vst [vmem:[#allocation2 + $0x8] sm:$0xff] 0.0
    %26 = vst [vmem:[#allocation2 + $0x10] sm:$0xff] 0.0
    %27 = vst [vmem:[#allocation2 + $0x18] sm:$0xff] 0.0
    %28 = vst [vmem:[#allocation2 + $0x20] sm:$0xff] 0.0
    %29 = vst [vmem:[#allocation2 + $0x28] sm:$0xff] 0.0
    %30 = vst [vmem:[#allocation2 + $0x30] sm:$0xff] 0.0
    %31 = vst [vmem:[#allocation2 + $0x38] sm:$0xff] 0.0
    %32 = vst [vmem:[#allocation2 + $0x40] sm:$0xff] 0.0
    %33 = vst [vmem:[#allocation2 + $0x48] sm:$0xff] 0.0
    %34 = vst [vmem:[#allocation2 + $0x50] sm:$0xff] 0.0
    %35 = vst [vmem:[#allocation2 + $0x58] sm:$0xff] 0.0
    %36 = vst [vmem:[#allocation2 + $0x60] sm:$0xff] 0.0
    %37 = vst [vmem:[#allocation2 + $0x68] sm:$0xff] 0.0
    %38 = vst [vmem:[#allocation2 + $0x70] sm:$0xff] 0.0
    %39 = vst [vmem:[#allocation2 + $0x78] sm:$0xff] 0.0
    %40 = vst [vmem:[#allocation2 + $0x80] sm:$0xff] 0.0
    %41 = vst [vmem:[#allocation2 + $0x88] sm:$0xff] 0.0
    %42 = vst [vmem:[#allocation2 + $0x90] sm:$0xff] 0.0
    %43 = vst [vmem:[#allocation2 + $0x98] sm:$0xff] 0.0
    %44 = vst [vmem:[#allocation2 + $0xa0] sm:$0xff] 0.0
    %45 = vst [vmem:[#allocation2 + $0xa8] sm:$0xff] 0.0
    %46 = vst [vmem:[#allocation2 + $0xb0] sm:$0xff] 0.0
    %47 = vst [vmem:[#allocation2 + $0xb8] sm:$0xff] 0.0
    %48 = vst [vmem:[#allocation2 + $0xc0] sm:$0xff] 0.0
    %49 = vst [vmem:[#allocation2 + $0xc8] sm:$0xff] 0.0
    %50 = vst [vmem:[#allocation2 + $0xd0] sm:$0xff] 0.0
    %51 = vst [vmem:[#allocation2 + $0xd8] sm:$0xff] 0.0
    %52 = vst [vmem:[#allocation2 + $0xe0] sm:$0xff] 0.0
    %53 = vst [vmem:[#allocation2 + $0xe8] sm:$0xff] 0.0
    %54 = vst [vmem:[#allocation2 + $0xf0] sm:$0xff] 0.0
    %55 = vst [vmem:[#allocation2 + $0xf8] sm:$0xff] 0.0
    %56 = vst [vmem:[#allocation2 + $0x100] sm:$0xff] 0.0
    %57 = vst [vmem:[#allocation2 + $0x108] sm:$0xff] 0.0
    %58 = vst [vmem:[#allocation2 + $0x110] sm:$0xff] 0.0
    %59 = vst [vmem:[#allocation2 + $0x118] sm:$0xff] 0.0
    %60 = vst [vmem:[#allocation2 + $0x120] sm:$0xff] 0.0
    %61 = vst [vmem:[#allocation2 + $0x128] sm:$0xff] 0.0
    %62 = vst [vmem:[#allocation2 + $0x130] sm:$0xff] 0.0
    %63 = vst [vmem:[#allocation2 + $0x138] sm:$0xff] 0.0
    %64 = vst [vmem:[#allocation3] sm:$0xff] 0.0
    %65 = vst [vmem:[#allocation3 + $0x8] sm:$0xff] 0.0
    %66 = vst [vmem:[#allocation3 + $0x10] sm:$0xff] 0.0
    %67 = vst [vmem:[#allocation3 + $0x18] sm:$0xff] 0.0
    %68 = vst [vmem:[#allocation3 + $0x20] sm:$0xff] 0.0
    %69 = vst [vmem:[#allocation3 + $0x28] sm:$0xff] 0.0
    %70 = vst [vmem:[#allocation3 + $0x30] sm:$0xff] 0.0
    %71 = vst [vmem:[#allocation3 + $0x38] sm:$0xff] 0.0
    %72 = vst [vmem:[#allocation3 + $0x40] sm:$0xff] 0.0
    %73 = vst [vmem:[#allocation3 + $0x48] sm:$0xff] 0.0
    %74 = vst [vmem:[#allocation3 + $0x50] sm:$0xff] 0.0
    %75 = vst [vmem:[#allocation3 + $0x58] sm:$0xff] 0.0
    %76 = vst [vmem:[#allocation3 + $0x60] sm:$0xff] 0.0
    %77 = vst [vmem:[#allocation3 + $0x68] sm:$0xff] 0.0
    %78 = vst [vmem:[#allocation3 + $0x70] sm:$0xff] 0.0
    %79 = vst [vmem:[#allocation3 + $0x78] sm:$0xff] 0.0
    %80 = vst [vmem:[#allocation3 + $0x80] sm:$0xff] 0.0
    %81 = vst [vmem:[#allocation3 + $0x88] sm:$0xff] 0.0
    %82 = vst [vmem:[#allocation3 + $0x90] sm:$0xff] 0.0
    %83 = vst [vmem:[#allocation3 + $0x98] sm:$0xff] 0.0
    %84 = vst [vmem:[#allocation3 + $0xa0] sm:$0xff] 0.0
    %85 = vst [vmem:[#allocation3 + $0xa8] sm:$0xff] 0.0
    %86 = vst [vmem:[#allocation3 + $0xb0] sm:$0xff] 0.0
    %87 = vst [vmem:[#allocation3 + $0xb8] sm:$0xff] 0.0
    %88 = vst [vmem:[#allocation3 + $0xc0] sm:$0xff] 0.0
    %89 = vst [vmem:[#allocation3 + $0xc8] sm:$0xff] 0.0
    %90 = vst [vmem:[#allocation3 + $0xd0] sm:$0xff] 0.0
    %91 = vst [vmem:[#allocation3 + $0xd8] sm:$0xff] 0.0
    %92 = vst [vmem:[#allocation3 + $0xe0] sm:$0xff] 0.0
    %93 = vst [vmem:[#allocation3 + $0xe8] sm:$0xff] 0.0
    %94 = vst [vmem:[#allocation3 + $0xf0] sm:$0xff] 0.0
    %95 = vst [vmem:[#allocation3 + $0xf8] sm:$0xff] 0.0
    %96 = vst [vmem:[#allocation3 + $0x100] sm:$0xff] 0.0
    %97 = vst [vmem:[#allocation3 + $0x108] sm:$0xff] 0.0
    %98 = vst [vmem:[#allocation3 + $0x110] sm:$0xff] 0.0
    %99 = vst [vmem:[#allocation3 + $0x118] sm:$0xff] 0.0
    %100 = vst [vmem:[#allocation3 + $0x120] sm:$0xff] 0.0
    %101 = vst [vmem:[#allocation3 + $0x128] sm:$0xff] 0.0
    %102 = vst [vmem:[#allocation3 + $0x130] sm:$0xff] 0.0
    %103 = vst [vmem:[#allocation3 + $0x138] sm:$0xff] 0.0
    loop: start=0, step=1, limit=11
    $region26: #{net3_forward.1} parent=1 // loop_pre_header
      _
    $region27: #{net3_forward.1} parent=1 // loop_header
      %s105 = sphi 0, %s109
      %p106 = scmp.ge.s32.totalorder %s105, 11
    $region28: #{net3_forward.1} parent=1 // loop_header_branch
      %108 = sbr.rel (%p106) target = $region32
    $region29: #{net3_forward.1} parent=1 // loop_body
      %p110 = scmp.lt.s32.totalorder %s105, 1
      %s111 = scalar_select %p110, %s105, 1
      %s112 = smul.u32 %s111, 4
      %s113 = smul.addr %s112, 4
      %s114 = scalar_lea.vmem %s0, %s113
      %v115 = vld [vmem:[%s114] sm:$0xf]
      %v116 = vld [vmem:[%s114 + $0x4] sm:$0xf]
      %v117 = vld [vmem:[%s114 + $0x8] sm:$0xf]
      %v118 = vld [vmem:[%s114 + $0xc] sm:$0xf]
      %v119 = vld [vmem:[#allocation2] sm:$0xff]
      %v120 = vld [vmem:[#allocation2 + $0x8] sm:$0xff]
      %v121 = vld [vmem:[#allocation2 + $0x10] sm:$0xff]
      %v122 = vld [vmem:[#allocation2 + $0x18] sm:$0xff]
      %s123 = scalar_lea.vmem [#allocation2], 32
      %v124 = vld [vmem:[%s123] sm:$0xff]
      %v125 = vld [vmem:[%s123 + $0x8] sm:$0xff]
      %v126 = vld [vmem:[%s123 + $0x10] sm:$0xff]
      %v127 = vld [vmem:[%s123 + $0x18] sm:$0xff]
      %s128 = scalar_lea.vmem [#allocation2], 64
      %v129 = vld [vmem:[%s128] sm:$0xff]
      %v130 = vld [vmem:[%s128 + $0x8] sm:$0xff]
      %v131 = vld [vmem:[%s128 + $0x10] sm:$0xff]
      %v132 = vld [vmem:[%s128 + $0x18] sm:$0xff]
      %s133 = scalar_lea.vmem [#allocation2], 96
      %v134 = vld [vmem:[%s133] sm:$0xff]
      %v135 = vld [vmem:[%s133 + $0x8] sm:$0xff]
      %v136 = vld [vmem:[%s133 + $0x10] sm:$0xff]
      %v137 = vld [vmem:[%s133 + $0x18] sm:$0xff]
      %s138 = scalar_lea.vmem [#allocation2], 128
      %v139 = vld [vmem:[%s138] sm:$0xff]
      %v140 = vld [vmem:[%s138 + $0x8] sm:$0xff]
      %v141 = vld [vmem:[%s138 + $0x10] sm:$0xff]
      %v142 = vld [vmem:[%s138 + $0x18] sm:$0xff]
      %s143 = scalar_lea.vmem [#allocation2], 160
      %v144 = vld [vmem:[%s143] sm:$0xff]
      %v145 = vld [vmem:[%s143 + $0x8] sm:$0xff]
      %v146 = vld [vmem:[%s143 + $0x10] sm:$0xff]
      %v147 = vld [vmem:[%s143 + $0x18] sm:$0xff]
      %s148 = scalar_lea.vmem [#allocation2], 192
      %v149 = vld [vmem:[%s148] sm:$0xff]
      %v150 = vld [vmem:[%s148 + $0x8] sm:$0xff]
      %v151 = vld [vmem:[%s148 + $0x10] sm:$0xff]
      %v152 = vld [vmem:[%s148 + $0x18] sm:$0xff]
      %s153 = scalar_lea.vmem [#allocation2], 224
      %v154 = vld [vmem:[%s153] sm:$0xff]
      %v155 = vld [vmem:[%s153 + $0x8] sm:$0xff]
      %v156 = vld [vmem:[%s153 + $0x10] sm:$0xff]
      %v157 = vld [vmem:[%s153 + $0x18] sm:$0xff]
      %s158 = scalar_lea.vmem [#allocation2], 256
      %v159 = vld [vmem:[%s158] sm:$0xff]
      %v160 = vld [vmem:[%s158 + $0x8] sm:$0xff]
      %v161 = vld [vmem:[%s158 + $0x10] sm:$0xff]
      %v162 = vld [vmem:[%s158 + $0x18] sm:$0xff]
      %s163 = scalar_lea.vmem [#allocation2], 288
      %v164 = vld [vmem:[%s163] sm:$0xff]
      %v165 = vld [vmem:[%s163 + $0x8] sm:$0xff]
      %v166 = vld [vmem:[%s163 + $0x10] sm:$0xff]
      %v167 = vld [vmem:[%s163 + $0x18] sm:$0xff]
      %v168 = vpack.c.bf16 %v120, %v119
      %v169 = vpack.c.bf16 %v122, %v121
      %v170 = vpack.c.bf16 %v125, %v124
      %v171 = vpack.c.bf16 %v127, %v126
      %v172 = vpack.c.bf16 %v130, %v129
      %v173 = vpack.c.bf16 %v132, %v131
      %v174 = vpack.c.bf16 %v135, %v134
      %v175 = vpack.c.bf16 %v137, %v136
      %v176 = vpack.c.bf16 %v140, %v139
      %v177 = vpack.c.bf16 %v142, %v141
      %v178 = vpack.c.bf16 %v145, %v144
      %v179 = vpack.c.bf16 %v147, %v146
      %v180 = vpack.c.bf16 %v150, %v149
      %v181 = vpack.c.bf16 %v152, %v151
      %v182 = vpack.c.bf16 %v155, %v154
      %v183 = vpack.c.bf16 %v157, %v156
      %v184 = vpack.c.bf16 %v160, %v159
      %v185 = vpack.c.bf16 %v162, %v161
      %v186 = vpack.c.bf16 %v165, %v164
      %v187 = vpack.c.bf16 %v167, %v166
      %v188 = vld [vmem:[#allocation3] sm:$0xff]
      %v189 = vld [vmem:[#allocation3 + $0x8] sm:$0xff]
      %v190 = vld [vmem:[#allocation3 + $0x10] sm:$0xff]
      %v191 = vld [vmem:[#allocation3 + $0x18] sm:$0xff]
      %v192 = vld [vmem:[%s1] sm:$0xff]
      %v193 = vld [vmem:[%s1 + $0x8] sm:$0xff]
      %v194 = vld [vmem:[%s1 + $0x10] sm:$0xff]
      %v195 = vld [vmem:[%s1 + $0x18] sm:$0xff]
      %v196 = vld [vmem:[%s1 + $0x20] sm:$0xff]
      %v197 = vld [vmem:[%s1 + $0x28] sm:$0xff]
      %v198 = vld [vmem:[%s1 + $0x30] sm:$0xff]
      %v199 = vld [vmem:[%s1 + $0x38] sm:$0xff]
      %v200 = vld [vmem:[%s1 + $0x40] sm:$0xff]
      %v201 = vld [vmem:[%s1 + $0x48] sm:$0xff]
      %v202 = vld [vmem:[%s1 + $0x50] sm:$0xff]
      %v203 = vld [vmem:[%s1 + $0x58] sm:$0xff]
      %v204 = vld [vmem:[%s1 + $0x60] sm:$0xff]
      %v205 = vld [vmem:[%s1 + $0x68] sm:$0xff]
      %v206 = vld [vmem:[%s1 + $0x70] sm:$0xff]
      %v207 = vld [vmem:[%s1 + $0x78] sm:$0xff]
      %v208 = vld [vmem:[%s1 + $0x80] sm:$0xff]
      %v209 = vld [vmem:[%s1 + $0x88] sm:$0xff]
      %v210 = vld [vmem:[%s1 + $0x90] sm:$0xff]
      %v211 = vld [vmem:[%s1 + $0x98] sm:$0xff]
      %v212 = vld [vmem:[%s1 + $0xa0] sm:$0xff]
      %v213 = vld [vmem:[%s1 + $0xa8] sm:$0xff]
      %v214 = vld [vmem:[%s1 + $0xb0] sm:$0xff]
      %v215 = vld [vmem:[%s1 + $0xb8] sm:$0xff]
      %v216 = vld [vmem:[%s1 + $0xc0] sm:$0xff]
      %v217 = vld [vmem:[%s1 + $0xc8] sm:$0xff]
      %v218 = vld [vmem:[%s1 + $0xd0] sm:$0xff]
      %v219 = vld [vmem:[%s1 + $0xd8] sm:$0xff]
      %v220 = vld [vmem:[%s1 + $0xe0] sm:$0xff]
      %v221 = vld [vmem:[%s1 + $0xe8] sm:$0xff]
      %v222 = vld [vmem:[%s1 + $0xf0] sm:$0xff]
      %v223 = vld [vmem:[%s1 + $0xf8] sm:$0xff]
      %v224 = vld [vmem:[%s2] sm:$0xff]
      %v225 = vld [vmem:[%s2 + $0x8] sm:$0xff]
      %v226 = vld [vmem:[%s2 + $0x10] sm:$0xff]
      %v227 = vld [vmem:[%s2 + $0x18] sm:$0xff]
      %v228 = vld [vmem:[%s2 + $0x20] sm:$0xff]
      %v229 = vld [vmem:[%s2 + $0x28] sm:$0xff]
      %v230 = vld [vmem:[%s2 + $0x30] sm:$0xff]
      %v231 = vld [vmem:[%s2 + $0x38] sm:$0xff]
      %v232 = vld [vmem:[%s2 + $0x40] sm:$0xff]
      %v233 = vld [vmem:[%s2 + $0x48] sm:$0xff]
      %v234 = vld [vmem:[%s2 + $0x50] sm:$0xff]
      %v235 = vld [vmem:[%s2 + $0x58] sm:$0xff]
      %v236 = vld [vmem:[%s2 + $0x60] sm:$0xff]
      %v237 = vld [vmem:[%s2 + $0x68] sm:$0xff]
      %v238 = vld [vmem:[%s2 + $0x70] sm:$0xff]
      %v239 = vld [vmem:[%s2 + $0x78] sm:$0xff]
      %v240 = vld [vmem:[%s2 + $0x80] sm:$0xff]
      %v241 = vld [vmem:[%s2 + $0x88] sm:$0xff]
      %v242 = vld [vmem:[%s2 + $0x90] sm:$0xff]
      %v243 = vld [vmem:[%s2 + $0x98] sm:$0xff]
      %v244 = vld [vmem:[%s2 + $0xa0] sm:$0xff]
      %v245 = vld [vmem:[%s2 + $0xa8] sm:$0xff]
      %v246 = vld [vmem:[%s2 + $0xb0] sm:$0xff]
      %v247 = vld [vmem:[%s2 + $0xb8] sm:$0xff]
      %v248 = vld [vmem:[%s2 + $0xc0] sm:$0xff]
      %v249 = vld [vmem:[%s2 + $0xc8] sm:$0xff]
      %v250 = vld [vmem:[%s2 + $0xd0] sm:$0xff]
      %v251 = vld [vmem:[%s2 + $0xd8] sm:$0xff]
      %v252 = vld [vmem:[%s2 + $0xe0] sm:$0xff]
      %v253 = vld [vmem:[%s2 + $0xe8] sm:$0xff]
      %v254 = vld [vmem:[%s2 + $0xf0] sm:$0xff]
      %v255 = vld [vmem:[%s2 + $0xf8] sm:$0xff]
      %v288 = vunpack.c.l.b16 %v224
      %v289 = vunpack.c.h.b16 %v224
      %v290 = vunpack.c.l.b16 %v225
      %v291 = vunpack.c.h.b16 %v225
      %v292 = vunpack.c.l.b16 %v226
      %v293 = vunpack.c.h.b16 %v226
      %v294 = vunpack.c.l.b16 %v227
      %v295 = vunpack.c.h.b16 %v227
      %v296 = vunpack.c.l.b16 %v228
      %v297 = vunpack.c.h.b16 %v228
      %v298 = vunpack.c.l.b16 %v229
      %v299 = vunpack.c.h.b16 %v229
      %v300 = vunpack.c.l.b16 %v230
      %v301 = vunpack.c.h.b16 %v230
      %v302 = vunpack.c.l.b16 %v231
      %v303 = vunpack.c.h.b16 %v231
      %v304 = vunpack.c.l.b16 %v232
      %v305 = vunpack.c.h.b16 %v232
      %v306 = vunpack.c.l.b16 %v233
      %v307 = vunpack.c.h.b16 %v233
      %v308 = vunpack.c.l.b16 %v234
      %v309 = vunpack.c.h.b16 %v234
      %v310 = vunpack.c.l.b16 %v235
      %v311 = vunpack.c.h.b16 %v235
      %v312 = vunpack.c.l.b16 %v236
      %v313 = vunpack.c.h.b16 %v236
      %v314 = vunpack.c.l.b16 %v237
      %v315 = vunpack.c.h.b16 %v237
      %v316 = vunpack.c.l.b16 %v238
      %v317 = vunpack.c.h.b16 %v238
      %v318 = vunpack.c.l.b16 %v239
      %v319 = vunpack.c.h.b16 %v239
      %v320 = vunpack.c.l.b16 %v240
      %v321 = vunpack.c.h.b16 %v240
      %v322 = vunpack.c.l.b16 %v241
      %v323 = vunpack.c.h.b16 %v241
      %v324 = vunpack.c.l.b16 %v242
      %v325 = vunpack.c.h.b16 %v242
      %v326 = vunpack.c.l.b16 %v243
      %v327 = vunpack.c.h.b16 %v243
      %v328 = vunpack.c.l.b16 %v244
      %v329 = vunpack.c.h.b16 %v244
      %v330 = vunpack.c.l.b16 %v245
      %v331 = vunpack.c.h.b16 %v245
      %v332 = vunpack.c.l.b16 %v246
      %v333 = vunpack.c.h.b16 %v246
      %v334 = vunpack.c.l.b16 %v247
      %v335 = vunpack.c.h.b16 %v247
      %v336 = vunpack.c.l.b16 %v248
      %v337 = vunpack.c.h.b16 %v248
      %v338 = vunpack.c.l.b16 %v249
      %v339 = vunpack.c.h.b16 %v249
      %v340 = vunpack.c.l.b16 %v250
      %v341 = vunpack.c.h.b16 %v250
      %v342 = vunpack.c.l.b16 %v251
      %v343 = vunpack.c.h.b16 %v251
      %v344 = vunpack.c.l.b16 %v252
      %v345 = vunpack.c.h.b16 %v252
      %v346 = vunpack.c.l.b16 %v253
      %v347 = vunpack.c.h.b16 %v253
      %v348 = vunpack.c.l.b16 %v254
      %v349 = vunpack.c.h.b16 %v254
      %v350 = vunpack.c.l.b16 %v255
      %v351 = vunpack.c.h.b16 %v255
      %v352 = vpack.c.b16 %v292, %v288
      %v353 = vpack.c.b16 %v293, %v289
      %v354 = vpack.c.b16 %v294, %v290
      %v355 = vpack.c.b16 %v295, %v291
      %v356 = vpack.c.b16 %v300, %v296
      %v357 = vpack.c.b16 %v301, %v297
      %v358 = vpack.c.b16 %v302, %v298
      %v359 = vpack.c.b16 %v303, %v299
      %v360 = vpack.c.b16 %v308, %v304
      %v361 = vpack.c.b16 %v309, %v305
      %v362 = vpack.c.b16 %v310, %v306
      %v363 = vpack.c.b16 %v311, %v307
      %v364 = vpack.c.b16 %v316, %v312
      %v365 = vpack.c.b16 %v317, %v313
      %v366 = vpack.c.b16 %v318, %v314
      %v367 = vpack.c.b16 %v319, %v315
      %v368 = vpack.c.b16 %v324, %v320
      %v369 = vpack.c.b16 %v325, %v321
      %v370 = vpack.c.b16 %v326, %v322
      %v371 = vpack.c.b16 %v327, %v323
      %v372 = vpack.c.b16 %v332, %v328
      %v373 = vpack.c.b16 %v333, %v329
      %v374 = vpack.c.b16 %v334, %v330
      %v375 = vpack.c.b16 %v335, %v331
      %v376 = vpack.c.b16 %v340, %v336
      %v377 = vpack.c.b16 %v341, %v337
      %v378 = vpack.c.b16 %v342, %v338
      %v379 = vpack.c.b16 %v343, %v339
      %v380 = vpack.c.b16 %v348, %v344
      %v381 = vpack.c.b16 %v349, %v345
      %v382 = vpack.c.b16 %v350, %v346
      %v383 = vpack.c.b16 %v351, %v347
      %416 = vmatpush.bf16.msra.mxu0 %v380
      %417 = vmatpush.bf16.msra.mxu0 %v376
      %418 = vmatpush.bf16.msra.mxu0 %v372
      %419 = vmatpush.bf16.msra.mxu0 %v368
      %420 = vmatpush.bf16.msra.mxu0 %v364
      %421 = vmatpush.bf16.msra.mxu0 %v360
      %422 = vmatpush.bf16.msra.mxu0 %v356
      %423 = vmatpush.bf16.msra.mxu0 %v352
      %424 = vmatmul.bf16.gmra.mxu0 %v168
      %v425 = vpop.f32.mrf.mxu0
      %v426 = vadd.f32 0.0, %v425
      %v427 = vpop.f32.mrf.mxu0
      %v428 = vadd.f32 0.0, %v427
      %429 = vmatmul.bf16.gmra.mxu0 %v169
      %v430 = vpop.f32.mrf.mxu0
      %v431 = vadd.f32 0.0, %v430
      %v432 = vpop.f32.mrf.mxu0
      %v433 = vadd.f32 0.0, %v432
      %434 = vdwg.mxu0
      %435 = vmatpush.bf16.msra.mxu0 %v381
      %436 = vmatpush.bf16.msra.mxu0 %v377
      %437 = vmatpush.bf16.msra.mxu0 %v373
      %438 = vmatpush.bf16.msra.mxu0 %v369
      %439 = vmatpush.bf16.msra.mxu0 %v365
      %440 = vmatpush.bf16.msra.mxu0 %v361
      %441 = vmatpush.bf16.msra.mxu0 %v357
      %442 = vmatpush.bf16.msra.mxu0 %v353
      %443 = vmatmul.bf16.gmra.mxu0 %v168
      %v444 = vpop.f32.mrf.mxu0
      %v445 = vadd.f32 0.0, %v444
      %v446 = vpop.f32.mrf.mxu0
      %v447 = vadd.f32 0.0, %v446
      %448 = vmatmul.bf16.gmra.mxu0 %v169
      %v449 = vpop.f32.mrf.mxu0
      %v450 = vadd.f32 0.0, %v449
      %v451 = vpop.f32.mrf.mxu0
      %v452 = vadd.f32 0.0, %v451
      %453 = vdwg.mxu0
      %454 = vmatpush.bf16.msra.mxu0 %v382
      %455 = vmatpush.bf16.msra.mxu0 %v378
      %456 = vmatpush.bf16.msra.mxu0 %v374
      %457 = vmatpush.bf16.msra.mxu0 %v370
      %458 = vmatpush.bf16.msra.mxu0 %v366
      %459 = vmatpush.bf16.msra.mxu0 %v362
      %460 = vmatpush.bf16.msra.mxu0 %v358
      %461 = vmatpush.bf16.msra.mxu0 %v354
      %462 = vmatmul.bf16.gmra.mxu0 %v168
      %v463 = vpop.f32.mrf.mxu0
      %v464 = vadd.f32 0.0, %v463
      %v465 = vpop.f32.mrf.mxu0
      %v466 = vadd.f32 0.0, %v465
      %467 = vmatmul.bf16.gmra.mxu0 %v169
      %v468 = vpop.f32.mrf.mxu0
      %v469 = vadd.f32 0.0, %v468
      %v470 = vpop.f32.mrf.mxu0
      %v471 = vadd.f32 0.0, %v470
      %472 = vdwg.mxu0
      %473 = vmatpush.bf16.msra.mxu0 %v383
      %474 = vmatpush.bf16.msra.mxu0 %v379
      %475 = vmatpush.bf16.msra.mxu0 %v375
      %476 = vmatpush.bf16.msra.mxu0 %v371
      %477 = vmatpush.bf16.msra.mxu0 %v367
      %478 = vmatpush.bf16.msra.mxu0 %v363
      %479 = vmatpush.bf16.msra.mxu0 %v359
      %480 = vmatpush.bf16.msra.mxu0 %v355
      %481 = vmatmul.bf16.gmra.mxu0 %v168
      %v482 = vpop.f32.mrf.mxu0
      %v483 = vadd.f32 0.0, %v482
      %v484 = vpop.f32.mrf.mxu0
      %v485 = vadd.f32 0.0, %v484
      %486 = vmatmul.bf16.gmra.mxu0 %v169
      %v487 = vpop.f32.mrf.mxu0
      %v488 = vadd.f32 0.0, %v487
      %v489 = vpop.f32.mrf.mxu0
      %v490 = vadd.f32 0.0, %v489
      %491 = vdwg.mxu0
      %v496 = vunpack.c.l.b16 %v115
      %v497 = vunpack.c.l.b16 %v116
      %v498 = vunpack.c.l.b16 %v117
      %v499 = vunpack.c.l.b16 %v118
      %v500 = vpack.c.b16 %v497, %v496
      %v501 = vpack.c.b16 %v499, %v498
      %v536 = vunpack.c.l.b16 %v192
      %v537 = vunpack.c.h.b16 %v192
      %v538 = vunpack.c.l.b16 %v193
      %v539 = vunpack.c.h.b16 %v193
      %v540 = vunpack.c.l.b16 %v194
      %v541 = vunpack.c.h.b16 %v194
      %v542 = vunpack.c.l.b16 %v195
      %v543 = vunpack.c.h.b16 %v195
      %v544 = vunpack.c.l.b16 %v196
      %v545 = vunpack.c.h.b16 %v196
      %v546 = vunpack.c.l.b16 %v197
      %v547 = vunpack.c.h.b16 %v197
      %v548 = vunpack.c.l.b16 %v198
      %v549 = vunpack.c.h.b16 %v198
      %v550 = vunpack.c.l.b16 %v199
      %v551 = vunpack.c.h.b16 %v199
      %v552 = vunpack.c.l.b16 %v200
      %v553 = vunpack.c.h.b16 %v200
      %v554 = vunpack.c.l.b16 %v201
      %v555 = vunpack.c.h.b16 %v201
      %v556 = vunpack.c.l.b16 %v202
      %v557 = vunpack.c.h.b16 %v202
      %v558 = vunpack.c.l.b16 %v203
      %v559 = vunpack.c.h.b16 %v203
      %v560 = vunpack.c.l.b16 %v204
      %v561 = vunpack.c.h.b16 %v204
      %v562 = vunpack.c.l.b16 %v205
      %v563 = vunpack.c.h.b16 %v205
      %v564 = vunpack.c.l.b16 %v206
      %v565 = vunpack.c.h.b16 %v206
      %v566 = vunpack.c.l.b16 %v207
      %v567 = vunpack.c.h.b16 %v207
      %v568 = vunpack.c.l.b16 %v208
      %v569 = vunpack.c.h.b16 %v208
      %v570 = vunpack.c.l.b16 %v209
      %v571 = vunpack.c.h.b16 %v209
      %v572 = vunpack.c.l.b16 %v210
      %v573 = vunpack.c.h.b16 %v210
      %v574 = vunpack.c.l.b16 %v211
      %v575 = vunpack.c.h.b16 %v211
      %v576 = vunpack.c.l.b16 %v212
      %v577 = vunpack.c.h.b16 %v212
      %v578 = vunpack.c.l.b16 %v213
      %v579 = vunpack.c.h.b16 %v213
      %v580 = vunpack.c.l.b16 %v214
      %v581 = vunpack.c.h.b16 %v214
      %v582 = vunpack.c.l.b16 %v215
      %v583 = vunpack.c.h.b16 %v215
      %v584 = vunpack.c.l.b16 %v216
      %v585 = vunpack.c.h.b16 %v216
      %v586 = vunpack.c.l.b16 %v217
      %v587 = vunpack.c.h.b16 %v217
      %v588 = vunpack.c.l.b16 %v218
      %v589 = vunpack.c.h.b16 %v218
      %v590 = vunpack.c.l.b16 %v219
      %v591 = vunpack.c.h.b16 %v219
      %v592 = vunpack.c.l.b16 %v220
      %v593 = vunpack.c.h.b16 %v220
      %v594 = vunpack.c.l.b16 %v221
      %v595 = vunpack.c.h.b16 %v221
      %v596 = vunpack.c.l.b16 %v222
      %v597 = vunpack.c.h.b16 %v222
      %v598 = vunpack.c.l.b16 %v223
      %v599 = vunpack.c.h.b16 %v223
      %v600 = vpack.c.b16 %v540, %v536
      %v601 = vpack.c.b16 %v541, %v537
      %v602 = vpack.c.b16 %v542, %v538
      %v603 = vpack.c.b16 %v543, %v539
      %v604 = vpack.c.b16 %v548, %v544
      %v605 = vpack.c.b16 %v549, %v545
      %v606 = vpack.c.b16 %v550, %v546
      %v607 = vpack.c.b16 %v551, %v547
      %v608 = vpack.c.b16 %v556, %v552
      %v609 = vpack.c.b16 %v557, %v553
      %v610 = vpack.c.b16 %v558, %v554
      %v611 = vpack.c.b16 %v559, %v555
      %v612 = vpack.c.b16 %v564, %v560
      %v613 = vpack.c.b16 %v565, %v561
      %v614 = vpack.c.b16 %v566, %v562
      %v615 = vpack.c.b16 %v567, %v563
      %v616 = vpack.c.b16 %v572, %v568
      %v617 = vpack.c.b16 %v573, %v569
      %v618 = vpack.c.b16 %v574, %v570
      %v619 = vpack.c.b16 %v575, %v571
      %v620 = vpack.c.b16 %v580, %v576
      %v621 = vpack.c.b16 %v581, %v577
      %v622 = vpack.c.b16 %v582, %v578
      %v623 = vpack.c.b16 %v583, %v579
      %v624 = vpack.c.b16 %v588, %v584
      %v625 = vpack.c.b16 %v589, %v585
      %v626 = vpack.c.b16 %v590, %v586
      %v627 = vpack.c.b16 %v591, %v587
      %v628 = vpack.c.b16 %v596, %v592
      %v629 = vpack.c.b16 %v597, %v593
      %v630 = vpack.c.b16 %v598, %v594
      %v631 = vpack.c.b16 %v599, %v595
      %664 = vmatpush.bf16.msra.mxu0 %v628
      %665 = vmatpush.bf16.msra.mxu0 %v624
      %666 = vmatpush.bf16.msra.mxu0 %v620
      %667 = vmatpush.bf16.msra.mxu0 %v616
      %668 = vmatpush.bf16.msra.mxu0 %v612
      %669 = vmatpush.bf16.msra.mxu0 %v608
      %670 = vmatpush.bf16.msra.mxu0 %v604
      %671 = vmatpush.bf16.msra.mxu0 %v600
      %672 = vmatmul.bf16.gmra.mxu0 %v500
      %v673 = vpop.f32.mrf.mxu0
      %v674 = vadd.f32 %v426, %v673
      %v675 = vpop.f32.mrf.mxu0
      %v676 = vadd.f32 %v428, %v675
      %677 = vmatmul.bf16.gmra.mxu0 %v501
      %v678 = vpop.f32.mrf.mxu0
      %v679 = vadd.f32 %v431, %v678
      %v680 = vpop.f32.mrf.mxu0
      %v681 = vadd.f32 %v433, %v680
      %682 = vdwg.mxu0
      %683 = vmatpush.bf16.msra.mxu0 %v629
      %684 = vmatpush.bf16.msra.mxu0 %v625
      %685 = vmatpush.bf16.msra.mxu0 %v621
      %686 = vmatpush.bf16.msra.mxu0 %v617
      %687 = vmatpush.bf16.msra.mxu0 %v613
      %688 = vmatpush.bf16.msra.mxu0 %v609
      %689 = vmatpush.bf16.msra.mxu0 %v605
      %690 = vmatpush.bf16.msra.mxu0 %v601
      %691 = vmatmul.bf16.gmra.mxu0 %v500
      %v692 = vpop.f32.mrf.mxu0
      %v693 = vadd.f32 %v445, %v692
      %v694 = vpop.f32.mrf.mxu0
      %v695 = vadd.f32 %v447, %v694
      %696 = vmatmul.bf16.gmra.mxu0 %v501
      %v697 = vpop.f32.mrf.mxu0
      %v698 = vadd.f32 %v450, %v697
      %v699 = vpop.f32.mrf.mxu0
      %v700 = vadd.f32 %v452, %v699
      %701 = vdwg.mxu0
      %702 = vmatpush.bf16.msra.mxu0 %v630
      %703 = vmatpush.bf16.msra.mxu0 %v626
      %704 = vmatpush.bf16.msra.mxu0 %v622
      %705 = vmatpush.bf16.msra.mxu0 %v618
      %706 = vmatpush.bf16.msra.mxu0 %v614
      %707 = vmatpush.bf16.msra.mxu0 %v610
      %708 = vmatpush.bf16.msra.mxu0 %v606
      %709 = vmatpush.bf16.msra.mxu0 %v602
      %710 = vmatmul.bf16.gmra.mxu0 %v500
      %v711 = vpop.f32.mrf.mxu0
      %v712 = vadd.f32 %v464, %v711
      %v713 = vpop.f32.mrf.mxu0
      %v714 = vadd.f32 %v466, %v713
      %715 = vmatmul.bf16.gmra.mxu0 %v501
      %v716 = vpop.f32.mrf.mxu0
      %v717 = vadd.f32 %v469, %v716
      %v718 = vpop.f32.mrf.mxu0
      %v719 = vadd.f32 %v471, %v718
      %720 = vdwg.mxu0
      %721 = vmatpush.bf16.msra.mxu0 %v631
      %722 = vmatpush.bf16.msra.mxu0 %v627
      %723 = vmatpush.bf16.msra.mxu0 %v623
      %724 = vmatpush.bf16.msra.mxu0 %v619
      %725 = vmatpush.bf16.msra.mxu0 %v615
      %726 = vmatpush.bf16.msra.mxu0 %v611
      %727 = vmatpush.bf16.msra.mxu0 %v607
      %728 = vmatpush.bf16.msra.mxu0 %v603
      %729 = vmatmul.bf16.gmra.mxu0 %v500
      %v730 = vpop.f32.mrf.mxu0
      %v731 = vadd.f32 %v483, %v730
      %v732 = vpop.f32.mrf.mxu0
      %v733 = vadd.f32 %v485, %v732
      %734 = vmatmul.bf16.gmra.mxu0 %v501
      %v735 = vpop.f32.mrf.mxu0
      %v736 = vadd.f32 %v488, %v735
      %v737 = vpop.f32.mrf.mxu0
      %v738 = vadd.f32 %v490, %v737
      %739 = vdwg.mxu0
      %v740 = vld [vmem:[%s3] sm:$0xf]
      %v742 = vperm.slane %v740, 0
      %v743 = vperm.slane %v740, 1
      %v744 = vperm.slane %v740, 2
      %v745 = vperm.slane %v740, 3
      %v750 = vadd.f32 %v674, %v742
      %v751 = vadd.f32 %v693, %v743
      %v752 = vadd.f32 %v712, %v744
      %v753 = vadd.f32 %v731, %v745
      %v754 = vadd.f32 %v676, %v742
      %v755 = vadd.f32 %v695, %v743
      %v756 = vadd.f32 %v714, %v744
      %v757 = vadd.f32 %v733, %v745
      %v758 = vadd.f32 %v679, %v742
      %v759 = vadd.f32 %v698, %v743
      %v760 = vadd.f32 %v717, %v744
      %v761 = vadd.f32 %v736, %v745
      %v762 = vadd.f32 %v681, %v742
      %v763 = vadd.f32 %v700, %v743
      %v764 = vadd.f32 %v719, %v744
      %v765 = vadd.f32 %v738, %v745
      %v766 = vxor.u32 %v750, 2147483648
      %v767 = vxor.u32 %v754, 2147483648
      %v768 = vxor.u32 %v758, 2147483648
      %v769 = vxor.u32 %v762, 2147483648
      %v770 = vmul.f32 %v766, 1.442695
      %v771 = vpow.pop %v770
      %v772 = vmul.f32 %v767, 1.442695
      %v773 = vpow.pop %v772
      %v774 = vmul.f32 %v768, 1.442695
      %v775 = vpow.pop %v774
      %v776 = vmul.f32 %v769, 1.442695
      %v777 = vpow.pop %v776
      %v778 = vadd.f32 %v771, 1.0
      %v779 = vadd.f32 %v773, 1.0
      %v780 = vadd.f32 %v775, 1.0
      %v781 = vadd.f32 %v777, 1.0
      %v782 = vrcp.pop %v778
      %v783 = vmul.f32 %v778, %v782
      %v784 = vsub.f32 1.0, %v783
      %v785 = vmul.f32 %v782, %v784
      %v786 = vadd.f32 %v782, %v785
      %vm787 = vweird.f32 %v778
      %vm788 = vweird.f32 %v782
      %vm789 = vmor %vm787, %vm788
      %v790 = vsel %vm789, %v782, %v786
      %v791 = vand.u32 2147483647, %v778
      %vm792 = vcmp.eq.f32.partialorder %v791, 8.507059e+37
      %v793 = vand.u32 %v778, 2147483648
      %v794 = vor.u32 1.1754944e-38, %v793
      %v795 = vsel %vm792, %v794, %v790
      %v796 = vmul.f32 1.0, %v795
      %v797 = vrcp.pop %v779
      %v798 = vmul.f32 %v779, %v797
      %v799 = vsub.f32 1.0, %v798
      %v800 = vmul.f32 %v797, %v799
      %v801 = vadd.f32 %v797, %v800
      %vm802 = vweird.f32 %v779
      %vm803 = vweird.f32 %v797
      %vm804 = vmor %vm802, %vm803
      %v805 = vsel %vm804, %v797, %v801
      %v806 = vand.u32 2147483647, %v779
      %vm807 = vcmp.eq.f32.partialorder %v806, 8.507059e+37
      %v808 = vand.u32 %v779, 2147483648
      %v809 = vor.u32 1.1754944e-38, %v808
      %v810 = vsel %vm807, %v809, %v805
      %v811 = vmul.f32 1.0, %v810
      %v812 = vrcp.pop %v780
      %v813 = vmul.f32 %v780, %v812
      %v814 = vsub.f32 1.0, %v813
      %v815 = vmul.f32 %v812, %v814
      %v816 = vadd.f32 %v812, %v815
      %vm817 = vweird.f32 %v780
      %vm818 = vweird.f32 %v812
      %vm819 = vmor %vm817, %vm818
      %v820 = vsel %vm819, %v812, %v816
      %v821 = vand.u32 2147483647, %v780
      %vm822 = vcmp.eq.f32.partialorder %v821, 8.507059e+37
      %v823 = vand.u32 %v780, 2147483648
      %v824 = vor.u32 1.1754944e-38, %v823
      %v825 = vsel %vm822, %v824, %v820
      %v826 = vmul.f32 1.0, %v825
      %v827 = vrcp.pop %v781
      %v828 = vmul.f32 %v781, %v827
      %v829 = vsub.f32 1.0, %v828
      %v830 = vmul.f32 %v827, %v829
      %v831 = vadd.f32 %v827, %v830
      %vm832 = vweird.f32 %v781
      %vm833 = vweird.f32 %v827
      %vm834 = vmor %vm832, %vm833
      %v835 = vsel %vm834, %v827, %v831
      %v836 = vand.u32 2147483647, %v781
      %vm837 = vcmp.eq.f32.partialorder %v836, 8.507059e+37
      %v838 = vand.u32 %v781, 2147483648
      %v839 = vor.u32 1.1754944e-38, %v838
      %v840 = vsel %vm837, %v839, %v835
      %v841 = vmul.f32 1.0, %v840
      %v842 = vxor.u32 %v751, 2147483648
      %v843 = vxor.u32 %v755, 2147483648
      %v844 = vxor.u32 %v759, 2147483648
      %v845 = vxor.u32 %v763, 2147483648
      %v846 = vmul.f32 %v842, 1.442695
      %v847 = vpow.pop %v846
      %v848 = vmul.f32 %v843, 1.442695
      %v849 = vpow.pop %v848
      %v850 = vmul.f32 %v844, 1.442695
      %v851 = vpow.pop %v850
      %v852 = vmul.f32 %v845, 1.442695
      %v853 = vpow.pop %v852
      %v854 = vadd.f32 %v847, 1.0
      %v855 = vadd.f32 %v849, 1.0
      %v856 = vadd.f32 %v851, 1.0
      %v857 = vadd.f32 %v853, 1.0
      %v858 = vrcp.pop %v854
      %v859 = vmul.f32 %v854, %v858
      %v860 = vsub.f32 1.0, %v859
      %v861 = vmul.f32 %v858, %v860
      %v862 = vadd.f32 %v858, %v861
      %vm863 = vweird.f32 %v854
      %vm864 = vweird.f32 %v858
      %vm865 = vmor %vm863, %vm864
      %v866 = vsel %vm865, %v858, %v862
      %v867 = vand.u32 2147483647, %v854
      %vm868 = vcmp.eq.f32.partialorder %v867, 8.507059e+37
      %v869 = vand.u32 %v854, 2147483648
      %v870 = vor.u32 1.1754944e-38, %v869
      %v871 = vsel %vm868, %v870, %v866
      %v872 = vmul.f32 1.0, %v871
      %v873 = vrcp.pop %v855
      %v874 = vmul.f32 %v855, %v873
      %v875 = vsub.f32 1.0, %v874
      %v876 = vmul.f32 %v873, %v875
      %v877 = vadd.f32 %v873, %v876
      %vm878 = vweird.f32 %v855
      %vm879 = vweird.f32 %v873
      %vm880 = vmor %vm878, %vm879
      %v881 = vsel %vm880, %v873, %v877
      %v882 = vand.u32 2147483647, %v855
      %vm883 = vcmp.eq.f32.partialorder %v882, 8.507059e+37
      %v884 = vand.u32 %v855, 2147483648
      %v885 = vor.u32 1.1754944e-38, %v884
      %v886 = vsel %vm883, %v885, %v881
      %v887 = vmul.f32 1.0, %v886
      %v888 = vrcp.pop %v856
      %v889 = vmul.f32 %v856, %v888
      %v890 = vsub.f32 1.0, %v889
      %v891 = vmul.f32 %v888, %v890
      %v892 = vadd.f32 %v888, %v891
      %vm893 = vweird.f32 %v856
      %vm894 = vweird.f32 %v888
      %vm895 = vmor %vm893, %vm894
      %v896 = vsel %vm895, %v888, %v892
      %v897 = vand.u32 2147483647, %v856
      %vm898 = vcmp.eq.f32.partialorder %v897, 8.507059e+37
      %v899 = vand.u32 %v856, 2147483648
      %v900 = vor.u32 1.1754944e-38, %v899
      %v901 = vsel %vm898, %v900, %v896
      %v902 = vmul.f32 1.0, %v901
      %v903 = vrcp.pop %v857
      %v904 = vmul.f32 %v857, %v903
      %v905 = vsub.f32 1.0, %v904
      %v906 = vmul.f32 %v903, %v905
      %v907 = vadd.f32 %v903, %v906
      %vm908 = vweird.f32 %v857
      %vm909 = vweird.f32 %v903
      %vm910 = vmor %vm908, %vm909
      %v911 = vsel %vm910, %v903, %v907
      %v912 = vand.u32 2147483647, %v857
      %vm913 = vcmp.eq.f32.partialorder %v912, 8.507059e+37
      %v914 = vand.u32 %v857, 2147483648
      %v915 = vor.u32 1.1754944e-38, %v914
      %v916 = vsel %vm913, %v915, %v911
      %v917 = vmul.f32 1.0, %v916
      %v918 = vtanh.pop %v752
      %v919 = vtanh.pop %v756
      %v920 = vtanh.pop %v760
      %v921 = vtanh.pop %v764
      %v922 = vxor.u32 %v753, 2147483648
      %v923 = vxor.u32 %v757, 2147483648
      %v924 = vxor.u32 %v761, 2147483648
      %v925 = vxor.u32 %v765, 2147483648
      %v926 = vmul.f32 %v922, 1.442695
      %v927 = vpow.pop %v926
      %v928 = vmul.f32 %v923, 1.442695
      %v929 = vpow.pop %v928
      %v930 = vmul.f32 %v924, 1.442695
      %v931 = vpow.pop %v930
      %v932 = vmul.f32 %v925, 1.442695
      %v933 = vpow.pop %v932
      %v934 = vadd.f32 %v927, 1.0
      %v935 = vadd.f32 %v929, 1.0
      %v936 = vadd.f32 %v931, 1.0
      %v937 = vadd.f32 %v933, 1.0
      %v938 = vrcp.pop %v934
      %v939 = vmul.f32 %v934, %v938
      %v940 = vsub.f32 1.0, %v939
      %v941 = vmul.f32 %v938, %v940
      %v942 = vadd.f32 %v938, %v941
      %vm943 = vweird.f32 %v934
      %vm944 = vweird.f32 %v938
      %vm945 = vmor %vm943, %vm944
      %v946 = vsel %vm945, %v938, %v942
      %v947 = vand.u32 2147483647, %v934
      %vm948 = vcmp.eq.f32.partialorder %v947, 8.507059e+37
      %v949 = vand.u32 %v934, 2147483648
      %v950 = vor.u32 1.1754944e-38, %v949
      %v951 = vsel %vm948, %v950, %v946
      %v952 = vmul.f32 1.0, %v951
      %v953 = vrcp.pop %v935
      %v954 = vmul.f32 %v935, %v953
      %v955 = vsub.f32 1.0, %v954
      %v956 = vmul.f32 %v953, %v955
      %v957 = vadd.f32 %v953, %v956
      %vm958 = vweird.f32 %v935
      %vm959 = vweird.f32 %v953
      %vm960 = vmor %vm958, %vm959
      %v961 = vsel %vm960, %v953, %v957
      %v962 = vand.u32 2147483647, %v935
      %vm963 = vcmp.eq.f32.partialorder %v962, 8.507059e+37
      %v964 = vand.u32 %v935, 2147483648
      %v965 = vor.u32 1.1754944e-38, %v964
      %v966 = vsel %vm963, %v965, %v961
      %v967 = vmul.f32 1.0, %v966
      %v968 = vrcp.pop %v936
      %v969 = vmul.f32 %v936, %v968
      %v970 = vsub.f32 1.0, %v969
      %v971 = vmul.f32 %v968, %v970
      %v972 = vadd.f32 %v968, %v971
      %vm973 = vweird.f32 %v936
      %vm974 = vweird.f32 %v968
      %vm975 = vmor %vm973, %vm974
      %v976 = vsel %vm975, %v968, %v972
      %v977 = vand.u32 2147483647, %v936
      %vm978 = vcmp.eq.f32.partialorder %v977, 8.507059e+37
      %v979 = vand.u32 %v936, 2147483648
      %v980 = vor.u32 1.1754944e-38, %v979
      %v981 = vsel %vm978, %v980, %v976
      %v982 = vmul.f32 1.0, %v981
      %v983 = vrcp.pop %v937
      %v984 = vmul.f32 %v937, %v983
      %v985 = vsub.f32 1.0, %v984
      %v986 = vmul.f32 %v983, %v985
      %v987 = vadd.f32 %v983, %v986
      %vm988 = vweird.f32 %v937
      %vm989 = vweird.f32 %v983
      %vm990 = vmor %vm988, %vm989
      %v991 = vsel %vm990, %v983, %v987
      %v992 = vand.u32 2147483647, %v937
      %vm993 = vcmp.eq.f32.partialorder %v992, 8.507059e+37
      %v994 = vand.u32 %v937, 2147483648
      %v995 = vor.u32 1.1754944e-38, %v994
      %v996 = vsel %vm993, %v995, %v991
      %v997 = vmul.f32 1.0, %v996
      %v998 = vmul.f32 %v872, %v188
      %v999 = vmul.f32 %v887, %v189
      %v1000 = vmul.f32 %v902, %v190
      %v1001 = vmul.f32 %v917, %v191
      %v1002 = vmul.f32 %v796, %v918
      %v1003 = vmul.f32 %v811, %v919
      %v1004 = vmul.f32 %v826, %v920
      %v1005 = vmul.f32 %v841, %v921
      %v1006 = vadd.f32 %v998, %v1002
      %v1007 = vadd.f32 %v999, %v1003
      %v1008 = vadd.f32 %v1000, %v1004
      %v1009 = vadd.f32 %v1001, %v1005
      %v1010 = vtanh.pop %v1006
      %v1011 = vtanh.pop %v1007
      %v1012 = vtanh.pop %v1008
      %v1013 = vtanh.pop %v1009
      %v1014 = vmul.f32 %v952, %v1010
      %v1015 = vmul.f32 %v967, %v1011
      %v1016 = vmul.f32 %v982, %v1012
      %v1017 = vmul.f32 %v997, %v1013
      %p1018 = scmp.ge.s32.totalorder %s105, 0
      %p1019 = scmp.lt.s32.totalorder %s105, 2
      %p1020 = pnand %p1018, %p1019
      %p1021 = pneg %p1020
      %s1022 = scalar_select %p1021, 1, 0
      %s1023 = scvt.s32.f32 %s1022
      %v1024 = vstv %s1023
      %v1025 = vmul.f32 %v1024, %v1014
      %v1026 = vmul.f32 %v1024, %v1015
      %v1027 = vmul.f32 %v1024, %v1016
      %v1028 = vmul.f32 %v1024, %v1017
      %s1029 = ssub.f32 1.0, %s1023
      %v1030 = vstv %s1029
      %v1031 = vmul.f32 %v1030, %v119
      %v1032 = vmul.f32 %v1030, %v120
      %v1033 = vmul.f32 %v1030, %v121
      %v1034 = vmul.f32 %v1030, %v122
      %v1035 = vadd.f32 %v1025, %v1031
      %v1036 = vadd.f32 %v1026, %v1032
      %v1037 = vadd.f32 %v1027, %v1033
      %v1038 = vadd.f32 %v1028, %v1034
      %v1039 = vmul.f32 %v1024, %v1006
      %v1040 = vmul.f32 %v1024, %v1007
      %v1041 = vmul.f32 %v1024, %v1008
      %v1042 = vmul.f32 %v1024, %v1009
      %v1043 = vmul.f32 %v1030, %v188
      %v1044 = vmul.f32 %v1030, %v189
      %v1045 = vmul.f32 %v1030, %v190
      %v1046 = vmul.f32 %v1030, %v191
      %v1047 = vadd.f32 %v1039, %v1043
      %v1048 = vadd.f32 %v1040, %v1044
      %v1049 = vadd.f32 %v1041, %v1045
      %v1050 = vadd.f32 %v1042, %v1046
      %s1051 = ssub.s32 %s105, 1
      %s1052 = scalar_lea.vmem [#allocation3], 32
      %v1053 = vld [vmem:[%s1052] sm:$0xff]
      %v1054 = vld [vmem:[%s1052 + $0x8] sm:$0xff]
      %v1055 = vld [vmem:[%s1052 + $0x10] sm:$0xff]
      %v1056 = vld [vmem:[%s1052 + $0x18] sm:$0xff]
      %s1057 = scalar_lea.vmem %s1, 256
      %v1058 = vld [vmem:[%s1057] sm:$0xff]
      %v1059 = vld [vmem:[%s1057 + $0x8] sm:$0xff]
      %v1060 = vld [vmem:[%s1057 + $0x10] sm:$0xff]
      %v1061 = vld [vmem:[%s1057 + $0x18] sm:$0xff]
      %v1062 = vld [vmem:[%s1057 + $0x20] sm:$0xff]
      %v1063 = vld [vmem:[%s1057 + $0x28] sm:$0xff]
      %v1064 = vld [vmem:[%s1057 + $0x30] sm:$0xff]
      %v1065 = vld [vmem:[%s1057 + $0x38] sm:$0xff]
      %v1066 = vld [vmem:[%s1057 + $0x40] sm:$0xff]
      %v1067 = vld [vmem:[%s1057 + $0x48] sm:$0xff]
      %v1068 = vld [vmem:[%s1057 + $0x50] sm:$0xff]
      %v1069 = vld [vmem:[%s1057 + $0x58] sm:$0xff]
      %v1070 = vld [vmem:[%s1057 + $0x60] sm:$0xff]
      %v1071 = vld [vmem:[%s1057 + $0x68] sm:$0xff]
      %v1072 = vld [vmem:[%s1057 + $0x70] sm:$0xff]
      %v1073 = vld [vmem:[%s1057 + $0x78] sm:$0xff]
      %v1074 = vld [vmem:[%s1057 + $0x80] sm:$0xff]
      %v1075 = vld [vmem:[%s1057 + $0x88] sm:$0xff]
      %v1076 = vld [vmem:[%s1057 + $0x90] sm:$0xff]
      %v1077 = vld [vmem:[%s1057 + $0x98] sm:$0xff]
      %v1078 = vld [vmem:[%s1057 + $0xa0] sm:$0xff]
      %v1079 = vld [vmem:[%s1057 + $0xa8] sm:$0xff]
      %v1080 = vld [vmem:[%s1057 + $0xb0] sm:$0xff]
      %v1081 = vld [vmem:[%s1057 + $0xb8] sm:$0xff]
      %v1082 = vld [vmem:[%s1057 + $0xc0] sm:$0xff]
      %v1083 = vld [vmem:[%s1057 + $0xc8] sm:$0xff]
      %v1084 = vld [vmem:[%s1057 + $0xd0] sm:$0xff]
      %v1085 = vld [vmem:[%s1057 + $0xd8] sm:$0xff]
      %v1086 = vld [vmem:[%s1057 + $0xe0] sm:$0xff]
      %v1087 = vld [vmem:[%s1057 + $0xe8] sm:$0xff]
      %v1088 = vld [vmem:[%s1057 + $0xf0] sm:$0xff]
      %v1089 = vld [vmem:[%s1057 + $0xf8] sm:$0xff]
      %s1090 = scalar_lea.vmem %s2, 256
      %v1091 = vld [vmem:[%s1090] sm:$0xff]
      %v1092 = vld [vmem:[%s1090 + $0x8] sm:$0xff]
      %v1093 = vld [vmem:[%s1090 + $0x10] sm:$0xff]
      %v1094 = vld [vmem:[%s1090 + $0x18] sm:$0xff]
      %v1095 = vld [vmem:[%s1090 + $0x20] sm:$0xff]
      %v1096 = vld [vmem:[%s1090 + $0x28] sm:$0xff]
      %v1097 = vld [vmem:[%s1090 + $0x30] sm:$0xff]
      %v1098 = vld [vmem:[%s1090 + $0x38] sm:$0xff]
      %v1099 = vld [vmem:[%s1090 + $0x40] sm:$0xff]
      %v1100 = vld [vmem:[%s1090 + $0x48] sm:$0xff]
      %v1101 = vld [vmem:[%s1090 + $0x50] sm:$0xff]
      %v1102 = vld [vmem:[%s1090 + $0x58] sm:$0xff]
      %v1103 = vld [vmem:[%s1090 + $0x60] sm:$0xff]
      %v1104 = vld [vmem:[%s1090 + $0x68] sm:$0xff]
      %v1105 = vld [vmem:[%s1090 + $0x70] sm:$0xff]
      %v1106 = vld [vmem:[%s1090 + $0x78] sm:$0xff]
      %v1107 = vld [vmem:[%s1090 + $0x80] sm:$0xff]
      %v1108 = vld [vmem:[%s1090 + $0x88] sm:$0xff]
      %v1109 = vld [vmem:[%s1090 + $0x90] sm:$0xff]
      %v1110 = vld [vmem:[%s1090 + $0x98] sm:$0xff]
      %v1111 = vld [vmem:[%s1090 + $0xa0] sm:$0xff]
      %v1112 = vld [vmem:[%s1090 + $0xa8] sm:$0xff]
      %v1113 = vld [vmem:[%s1090 + $0xb0] sm:$0xff]
      %v1114 = vld [vmem:[%s1090 + $0xb8] sm:$0xff]
      %v1115 = vld [vmem:[%s1090 + $0xc0] sm:$0xff]
      %v1116 = vld [vmem:[%s1090 + $0xc8] sm:$0xff]
      %v1117 = vld [vmem:[%s1090 + $0xd0] sm:$0xff]
      %v1118 = vld [vmem:[%s1090 + $0xd8] sm:$0xff]
      %v1119 = vld [vmem:[%s1090 + $0xe0] sm:$0xff]
      %v1120 = vld [vmem:[%s1090 + $0xe8] sm:$0xff]
      %v1121 = vld [vmem:[%s1090 + $0xf0] sm:$0xff]
      %v1122 = vld [vmem:[%s1090 + $0xf8] sm:$0xff]
      %v1155 = vunpack.c.l.b16 %v1091
      %v1156 = vunpack.c.h.b16 %v1091
      %v1157 = vunpack.c.l.b16 %v1092
      %v1158 = vunpack.c.h.b16 %v1092
      %v1159 = vunpack.c.l.b16 %v1093
      %v1160 = vunpack.c.h.b16 %v1093
      %v1161 = vunpack.c.l.b16 %v1094
      %v1162 = vunpack.c.h.b16 %v1094
      %v1163 = vunpack.c.l.b16 %v1095
      %v1164 = vunpack.c.h.b16 %v1095
      %v1165 = vunpack.c.l.b16 %v1096
      %v1166 = vunpack.c.h.b16 %v1096
      %v1167 = vunpack.c.l.b16 %v1097
      %v1168 = vunpack.c.h.b16 %v1097
      %v1169 = vunpack.c.l.b16 %v1098
      %v1170 = vunpack.c.h.b16 %v1098
      %v1171 = vunpack.c.l.b16 %v1099
      %v1172 = vunpack.c.h.b16 %v1099
      %v1173 = vunpack.c.l.b16 %v1100
      %v1174 = vunpack.c.h.b16 %v1100
      %v1175 = vunpack.c.l.b16 %v1101
      %v1176 = vunpack.c.h.b16 %v1101
      %v1177 = vunpack.c.l.b16 %v1102
      %v1178 = vunpack.c.h.b16 %v1102
      %v1179 = vunpack.c.l.b16 %v1103
      %v1180 = vunpack.c.h.b16 %v1103
      %v1181 = vunpack.c.l.b16 %v1104
      %v1182 = vunpack.c.h.b16 %v1104
      %v1183 = vunpack.c.l.b16 %v1105
      %v1184 = vunpack.c.h.b16 %v1105
      %v1185 = vunpack.c.l.b16 %v1106
      %v1186 = vunpack.c.h.b16 %v1106
      %v1187 = vunpack.c.l.b16 %v1107
      %v1188 = vunpack.c.h.b16 %v1107
      %v1189 = vunpack.c.l.b16 %v1108
      %v1190 = vunpack.c.h.b16 %v1108
      %v1191 = vunpack.c.l.b16 %v1109
      %v1192 = vunpack.c.h.b16 %v1109
      %v1193 = vunpack.c.l.b16 %v1110
      %v1194 = vunpack.c.h.b16 %v1110
      %v1195 = vunpack.c.l.b16 %v1111
      %v1196 = vunpack.c.h.b16 %v1111
      %v1197 = vunpack.c.l.b16 %v1112
      %v1198 = vunpack.c.h.b16 %v1112
      %v1199 = vunpack.c.l.b16 %v1113
      %v1200 = vunpack.c.h.b16 %v1113
      %v1201 = vunpack.c.l.b16 %v1114
      %v1202 = vunpack.c.h.b16 %v1114
      %v1203 = vunpack.c.l.b16 %v1115
      %v1204 = vunpack.c.h.b16 %v1115
      %v1205 = vunpack.c.l.b16 %v1116
      %v1206 = vunpack.c.h.b16 %v1116
      %v1207 = vunpack.c.l.b16 %v1117
      %v1208 = vunpack.c.h.b16 %v1117
      %v1209 = vunpack.c.l.b16 %v1118
      %v1210 = vunpack.c.h.b16 %v1118
      %v1211 = vunpack.c.l.b16 %v1119
      %v1212 = vunpack.c.h.b16 %v1119
      %v1213 = vunpack.c.l.b16 %v1120
      %v1214 = vunpack.c.h.b16 %v1120
      %v1215 = vunpack.c.l.b16 %v1121
      %v1216 = vunpack.c.h.b16 %v1121
      %v1217 = vunpack.c.l.b16 %v1122
      %v1218 = vunpack.c.h.b16 %v1122
      %v1219 = vpack.c.b16 %v1159, %v1155
      %v1220 = vpack.c.b16 %v1160, %v1156
      %v1221 = vpack.c.b16 %v1161, %v1157
      %v1222 = vpack.c.b16 %v1162, %v1158
      %v1223 = vpack.c.b16 %v1167, %v1163
      %v1224 = vpack.c.b16 %v1168, %v1164
      %v1225 = vpack.c.b16 %v1169, %v1165
      %v1226 = vpack.c.b16 %v1170, %v1166
      %v1227 = vpack.c.b16 %v1175, %v1171
      %v1228 = vpack.c.b16 %v1176, %v1172
      %v1229 = vpack.c.b16 %v1177, %v1173
      %v1230 = vpack.c.b16 %v1178, %v1174
      %v1231 = vpack.c.b16 %v1183, %v1179
      %v1232 = vpack.c.b16 %v1184, %v1180
      %v1233 = vpack.c.b16 %v1185, %v1181
      %v1234 = vpack.c.b16 %v1186, %v1182
      %v1235 = vpack.c.b16 %v1191, %v1187
      %v1236 = vpack.c.b16 %v1192, %v1188
      %v1237 = vpack.c.b16 %v1193, %v1189
      %v1238 = vpack.c.b16 %v1194, %v1190
      %v1239 = vpack.c.b16 %v1199, %v1195
      %v1240 = vpack.c.b16 %v1200, %v1196
      %v1241 = vpack.c.b16 %v1201, %v1197
      %v1242 = vpack.c.b16 %v1202, %v1198
      %v1243 = vpack.c.b16 %v1207, %v1203
      %v1244 = vpack.c.b16 %v1208, %v1204
      %v1245 = vpack.c.b16 %v1209, %v1205
      %v1246 = vpack.c.b16 %v1210, %v1206
      %v1247 = vpack.c.b16 %v1215, %v1211
      %v1248 = vpack.c.b16 %v1216, %v1212
      %v1249 = vpack.c.b16 %v1217, %v1213
      %v1250 = vpack.c.b16 %v1218, %v1214
      %1283 = vmatpush.bf16.msra.mxu0 %v1247
      %1284 = vmatpush.bf16.msra.mxu0 %v1243
      %1285 = vmatpush.bf16.msra.mxu0 %v1239
      %1286 = vmatpush.bf16.msra.mxu0 %v1235
      %1287 = vmatpush.bf16.msra.mxu0 %v1231
      %1288 = vmatpush.bf16.msra.mxu0 %v1227
      %1289 = vmatpush.bf16.msra.mxu0 %v1223
      %1290 = vmatpush.bf16.msra.mxu0 %v1219
      %1291 = vmatmul.bf16.gmra.mxu0 %v170
      %v1292 = vpop.f32.mrf.mxu0
      %v1293 = vadd.f32 0.0, %v1292
      %v1294 = vpop.f32.mrf.mxu0
      %v1295 = vadd.f32 0.0, %v1294
      %1296 = vmatmul.bf16.gmra.mxu0 %v171
      %v1297 = vpop.f32.mrf.mxu0
      %v1298 = vadd.f32 0.0, %v1297
      %v1299 = vpop.f32.mrf.mxu0
      %v1300 = vadd.f32 0.0, %v1299
      %1301 = vdwg.mxu0
      %1302 = vmatpush.bf16.msra.mxu0 %v1248
      %1303 = vmatpush.bf16.msra.mxu0 %v1244
      %1304 = vmatpush.bf16.msra.mxu0 %v1240
      %1305 = vmatpush.bf16.msra.mxu0 %v1236
      %1306 = vmatpush.bf16.msra.mxu0 %v1232
      %1307 = vmatpush.bf16.msra.mxu0 %v1228
      %1308 = vmatpush.bf16.msra.mxu0 %v1224
      %1309 = vmatpush.bf16.msra.mxu0 %v1220
      %1310 = vmatmul.bf16.gmra.mxu0 %v170
      %v1311 = vpop.f32.mrf.mxu0
      %v1312 = vadd.f32 0.0, %v1311
      %v1313 = vpop.f32.mrf.mxu0
      %v1314 = vadd.f32 0.0, %v1313
      %1315 = vmatmul.bf16.gmra.mxu0 %v171
      %v1316 = vpop.f32.mrf.mxu0
      %v1317 = vadd.f32 0.0, %v1316
      %v1318 = vpop.f32.mrf.mxu0
      %v1319 = vadd.f32 0.0, %v1318
      %1320 = vdwg.mxu0
      %1321 = vmatpush.bf16.msra.mxu0 %v1249
      %1322 = vmatpush.bf16.msra.mxu0 %v1245
      %1323 = vmatpush.bf16.msra.mxu0 %v1241
      %1324 = vmatpush.bf16.msra.mxu0 %v1237
      %1325 = vmatpush.bf16.msra.mxu0 %v1233
      %1326 = vmatpush.bf16.msra.mxu0 %v1229
      %1327 = vmatpush.bf16.msra.mxu0 %v1225
      %1328 = vmatpush.bf16.msra.mxu0 %v1221
      %1329 = vmatmul.bf16.gmra.mxu0 %v170
      %v1330 = vpop.f32.mrf.mxu0
      %v1331 = vadd.f32 0.0, %v1330
      %v1332 = vpop.f32.mrf.mxu0
      %v1333 = vadd.f32 0.0, %v1332
      %1334 = vmatmul.bf16.gmra.mxu0 %v171
      %v1335 = vpop.f32.mrf.mxu0
      %v1336 = vadd.f32 0.0, %v1335
      %v1337 = vpop.f32.mrf.mxu0
      %v1338 = vadd.f32 0.0, %v1337
      %1339 = vdwg.mxu0
      %1340 = vmatpush.bf16.msra.mxu0 %v1250
      %1341 = vmatpush.bf16.msra.mxu0 %v1246
      %1342 = vmatpush.bf16.msra.mxu0 %v1242
      %1343 = vmatpush.bf16.msra.mxu0 %v1238
      %1344 = vmatpush.bf16.msra.mxu0 %v1234
      %1345 = vmatpush.bf16.msra.mxu0 %v1230
      %1346 = vmatpush.bf16.msra.mxu0 %v1226
      %1347 = vmatpush.bf16.msra.mxu0 %v1222
      %1348 = vmatmul.bf16.gmra.mxu0 %v170
      %v1349 = vpop.f32.mrf.mxu0
      %v1350 = vadd.f32 0.0, %v1349
      %v1351 = vpop.f32.mrf.mxu0
      %v1352 = vadd.f32 0.0, %v1351
      %1353 = vmatmul.bf16.gmra.mxu0 %v171
      %v1354 = vpop.f32.mrf.mxu0
      %v1355 = vadd.f32 0.0, %v1354
      %v1356 = vpop.f32.mrf.mxu0
      %v1357 = vadd.f32 0.0, %v1356
      %1358 = vdwg.mxu0
      %v1391 = vunpack.c.l.b16 %v1058
      %v1392 = vunpack.c.h.b16 %v1058
      %v1393 = vunpack.c.l.b16 %v1059
      %v1394 = vunpack.c.h.b16 %v1059
      %v1395 = vunpack.c.l.b16 %v1060
      %v1396 = vunpack.c.h.b16 %v1060
      %v1397 = vunpack.c.l.b16 %v1061
      %v1398 = vunpack.c.h.b16 %v1061
      %v1399 = vunpack.c.l.b16 %v1062
      %v1400 = vunpack.c.h.b16 %v1062
      %v1401 = vunpack.c.l.b16 %v1063
      %v1402 = vunpack.c.h.b16 %v1063
      %v1403 = vunpack.c.l.b16 %v1064
      %v1404 = vunpack.c.h.b16 %v1064
      %v1405 = vunpack.c.l.b16 %v1065
      %v1406 = vunpack.c.h.b16 %v1065
      %v1407 = vunpack.c.l.b16 %v1066
      %v1408 = vunpack.c.h.b16 %v1066
      %v1409 = vunpack.c.l.b16 %v1067
      %v1410 = vunpack.c.h.b16 %v1067
      %v1411 = vunpack.c.l.b16 %v1068
      %v1412 = vunpack.c.h.b16 %v1068
      %v1413 = vunpack.c.l.b16 %v1069
      %v1414 = vunpack.c.h.b16 %v1069
      %v1415 = vunpack.c.l.b16 %v1070
      %v1416 = vunpack.c.h.b16 %v1070
      %v1417 = vunpack.c.l.b16 %v1071
      %v1418 = vunpack.c.h.b16 %v1071
      %v1419 = vunpack.c.l.b16 %v1072
      %v1420 = vunpack.c.h.b16 %v1072
      %v1421 = vunpack.c.l.b16 %v1073
      %v1422 = vunpack.c.h.b16 %v1073
      %v1423 = vunpack.c.l.b16 %v1074
      %v1424 = vunpack.c.h.b16 %v1074
      %v1425 = vunpack.c.l.b16 %v1075
      %v1426 = vunpack.c.h.b16 %v1075
      %v1427 = vunpack.c.l.b16 %v1076
      %v1428 = vunpack.c.h.b16 %v1076
      %v1429 = vunpack.c.l.b16 %v1077
      %v1430 = vunpack.c.h.b16 %v1077
      %v1431 = vunpack.c.l.b16 %v1078
      %v1432 = vunpack.c.h.b16 %v1078
      %v1433 = vunpack.c.l.b16 %v1079
      %v1434 = vunpack.c.h.b16 %v1079
      %v1435 = vunpack.c.l.b16 %v1080
      %v1436 = vunpack.c.h.b16 %v1080
      %v1437 = vunpack.c.l.b16 %v1081
      %v1438 = vunpack.c.h.b16 %v1081
      %v1439 = vunpack.c.l.b16 %v1082
      %v1440 = vunpack.c.h.b16 %v1082
      %v1441 = vunpack.c.l.b16 %v1083
      %v1442 = vunpack.c.h.b16 %v1083
      %v1443 = vunpack.c.l.b16 %v1084
      %v1444 = vunpack.c.h.b16 %v1084
      %v1445 = vunpack.c.l.b16 %v1085
      %v1446 = vunpack.c.h.b16 %v1085
      %v1447 = vunpack.c.l.b16 %v1086
      %v1448 = vunpack.c.h.b16 %v1086
      %v1449 = vunpack.c.l.b16 %v1087
      %v1450 = vunpack.c.h.b16 %v1087
      %v1451 = vunpack.c.l.b16 %v1088
      %v1452 = vunpack.c.h.b16 %v1088
      %v1453 = vunpack.c.l.b16 %v1089
      %v1454 = vunpack.c.h.b16 %v1089
      %v1455 = vpack.c.b16 %v1395, %v1391
      %v1456 = vpack.c.b16 %v1396, %v1392
      %v1457 = vpack.c.b16 %v1397, %v1393
      %v1458 = vpack.c.b16 %v1398, %v1394
      %v1459 = vpack.c.b16 %v1403, %v1399
      %v1460 = vpack.c.b16 %v1404, %v1400
      %v1461 = vpack.c.b16 %v1405, %v1401
      %v1462 = vpack.c.b16 %v1406, %v1402
      %v1463 = vpack.c.b16 %v1411, %v1407
      %v1464 = vpack.c.b16 %v1412, %v1408
      %v1465 = vpack.c.b16 %v1413, %v1409
      %v1466 = vpack.c.b16 %v1414, %v1410
      %v1467 = vpack.c.b16 %v1419, %v1415
      %v1468 = vpack.c.b16 %v1420, %v1416
      %v1469 = vpack.c.b16 %v1421, %v1417
      %v1470 = vpack.c.b16 %v1422, %v1418
      %v1471 = vpack.c.b16 %v1427, %v1423
      %v1472 = vpack.c.b16 %v1428, %v1424
      %v1473 = vpack.c.b16 %v1429, %v1425
      %v1474 = vpack.c.b16 %v1430, %v1426
      %v1475 = vpack.c.b16 %v1435, %v1431
      %v1476 = vpack.c.b16 %v1436, %v1432
      %v1477 = vpack.c.b16 %v1437, %v1433
      %v1478 = vpack.c.b16 %v1438, %v1434
      %v1479 = vpack.c.b16 %v1443, %v1439
      %v1480 = vpack.c.b16 %v1444, %v1440
      %v1481 = vpack.c.b16 %v1445, %v1441
      %v1482 = vpack.c.b16 %v1446, %v1442
      %v1483 = vpack.c.b16 %v1451, %v1447
      %v1484 = vpack.c.b16 %v1452, %v1448
      %v1485 = vpack.c.b16 %v1453, %v1449
      %v1486 = vpack.c.b16 %v1454, %v1450
      %1519 = vmatpush.bf16.msra.mxu0 %v1483
      %1520 = vmatpush.bf16.msra.mxu0 %v1479
      %1521 = vmatpush.bf16.msra.mxu0 %v1475
      %1522 = vmatpush.bf16.msra.mxu0 %v1471
      %1523 = vmatpush.bf16.msra.mxu0 %v1467
      %1524 = vmatpush.bf16.msra.mxu0 %v1463
      %1525 = vmatpush.bf16.msra.mxu0 %v1459
      %1526 = vmatpush.bf16.msra.mxu0 %v1455
      %1527 = vmatmul.bf16.gmra.mxu0 %v168
      %v1528 = vpop.f32.mrf.mxu0
      %v1529 = vadd.f32 %v1293, %v1528
      %v1530 = vpop.f32.mrf.mxu0
      %v1531 = vadd.f32 %v1295, %v1530
      %1532 = vmatmul.bf16.gmra.mxu0 %v169
      %v1533 = vpop.f32.mrf.mxu0
      %v1534 = vadd.f32 %v1298, %v1533
      %v1535 = vpop.f32.mrf.mxu0
      %v1536 = vadd.f32 %v1300, %v1535
      %1537 = vdwg.mxu0
      %1538 = vmatpush.bf16.msra.mxu0 %v1484
      %1539 = vmatpush.bf16.msra.mxu0 %v1480
      %1540 = vmatpush.bf16.msra.mxu0 %v1476
      %1541 = vmatpush.bf16.msra.mxu0 %v1472
      %1542 = vmatpush.bf16.msra.mxu0 %v1468
      %1543 = vmatpush.bf16.msra.mxu0 %v1464
      %1544 = vmatpush.bf16.msra.mxu0 %v1460
      %1545 = vmatpush.bf16.msra.mxu0 %v1456
      %1546 = vmatmul.bf16.gmra.mxu0 %v168
      %v1547 = vpop.f32.mrf.mxu0
      %v1548 = vadd.f32 %v1312, %v1547
      %v1549 = vpop.f32.mrf.mxu0
      %v1550 = vadd.f32 %v1314, %v1549
      %1551 = vmatmul.bf16.gmra.mxu0 %v169
      %v1552 = vpop.f32.mrf.mxu0
      %v1553 = vadd.f32 %v1317, %v1552
      %v1554 = vpop.f32.mrf.mxu0
      %v1555 = vadd.f32 %v1319, %v1554
      %1556 = vdwg.mxu0
      %1557 = vmatpush.bf16.msra.mxu0 %v1485
      %1558 = vmatpush.bf16.msra.mxu0 %v1481
      %1559 = vmatpush.bf16.msra.mxu0 %v1477
      %1560 = vmatpush.bf16.msra.mxu0 %v1473
      %1561 = vmatpush.bf16.msra.mxu0 %v1469
      %1562 = vmatpush.bf16.msra.mxu0 %v1465
      %1563 = vmatpush.bf16.msra.mxu0 %v1461
      %1564 = vmatpush.bf16.msra.mxu0 %v1457
      %1565 = vmatmul.bf16.gmra.mxu0 %v168
      %v1566 = vpop.f32.mrf.mxu0
      %v1567 = vadd.f32 %v1331, %v1566
      %v1568 = vpop.f32.mrf.mxu0
      %v1569 = vadd.f32 %v1333, %v1568
      %1570 = vmatmul.bf16.gmra.mxu0 %v169
      %v1571 = vpop.f32.mrf.mxu0
      %v1572 = vadd.f32 %v1336, %v1571
      %v1573 = vpop.f32.mrf.mxu0
      %v1574 = vadd.f32 %v1338, %v1573
      %1575 = vdwg.mxu0
      %1576 = vmatpush.bf16.msra.mxu0 %v1486
      %1577 = vmatpush.bf16.msra.mxu0 %v1482
      %1578 = vmatpush.bf16.msra.mxu0 %v1478
      %1579 = vmatpush.bf16.msra.mxu0 %v1474
      %1580 = vmatpush.bf16.msra.mxu0 %v1470
      %1581 = vmatpush.bf16.msra.mxu0 %v1466
      %1582 = vmatpush.bf16.msra.mxu0 %v1462
      %1583 = vmatpush.bf16.msra.mxu0 %v1458
      %1584 = vmatmul.bf16.gmra.mxu0 %v168
      %v1585 = vpop.f32.mrf.mxu0
      %v1586 = vadd.f32 %v1350, %v1585
      %v1587 = vpop.f32.mrf.mxu0
      %v1588 = vadd.f32 %v1352, %v1587
      %1589 = vmatmul.bf16.gmra.mxu0 %v169
      %v1590 = vpop.f32.mrf.mxu0
      %v1591 = vadd.f32 %v1355, %v1590
      %v1592 = vpop.f32.mrf.mxu0
      %v1593 = vadd.f32 %v1357, %v1592
      %1594 = vdwg.mxu0
      %s1595 = scalar_lea.vmem %s3, 4
      %v1596 = vld [vmem:[%s1595] sm:$0xf]
      %v1598 = vperm.slane %v1596, 0
      %v1599 = vperm.slane %v1596, 1
      %v1600 = vperm.slane %v1596, 2
      %v1601 = vperm.slane %v1596, 3
      %v1606 = vadd.f32 %v1529, %v1598
      %v1607 = vadd.f32 %v1548, %v1599
      %v1608 = vadd.f32 %v1567, %v1600
      %v1609 = vadd.f32 %v1586, %v1601
      %v1610 = vadd.f32 %v1531, %v1598
      %v1611 = vadd.f32 %v1550, %v1599
      %v1612 = vadd.f32 %v1569, %v1600
      %v1613 = vadd.f32 %v1588, %v1601
      %v1614 = vadd.f32 %v1534, %v1598
      %v1615 = vadd.f32 %v1553, %v1599
      %v1616 = vadd.f32 %v1572, %v1600
      %v1617 = vadd.f32 %v1591, %v1601
      %v1618 = vadd.f32 %v1536, %v1598
      %v1619 = vadd.f32 %v1555, %v1599
      %v1620 = vadd.f32 %v1574, %v1600
      %v1621 = vadd.f32 %v1593, %v1601
      %v1622 = vxor.u32 %v1606, 2147483648
      %v1623 = vxor.u32 %v1610, 2147483648
      %v1624 = vxor.u32 %v1614, 2147483648
      %v1625 = vxor.u32 %v1618, 2147483648
      %v1626 = vmul.f32 %v1622, 1.442695
      %v1627 = vpow.pop %v1626
      %v1628 = vmul.f32 %v1623, 1.442695
      %v1629 = vpow.pop %v1628
      %v1630 = vmul.f32 %v1624, 1.442695
      %v1631 = vpow.pop %v1630
      %v1632 = vmul.f32 %v1625, 1.442695
      %v1633 = vpow.pop %v1632
      %v1634 = vadd.f32 %v1627, 1.0
      %v1635 = vadd.f32 %v1629, 1.0
      %v1636 = vadd.f32 %v1631, 1.0
      %v1637 = vadd.f32 %v1633, 1.0
      %v1638 = vrcp.pop %v1634
      %v1639 = vmul.f32 %v1634, %v1638
      %v1640 = vsub.f32 1.0, %v1639
      %v1641 = vmul.f32 %v1638, %v1640
      %v1642 = vadd.f32 %v1638, %v1641
      %vm1643 = vweird.f32 %v1634
      %vm1644 = vweird.f32 %v1638
      %vm1645 = vmor %vm1643, %vm1644
      %v1646 = vsel %vm1645, %v1638, %v1642
      %v1647 = vand.u32 2147483647, %v1634
      %vm1648 = vcmp.eq.f32.partialorder %v1647, 8.507059e+37
      %v1649 = vand.u32 %v1634, 2147483648
      %v1650 = vor.u32 1.1754944e-38, %v1649
      %v1651 = vsel %vm1648, %v1650, %v1646
      %v1652 = vmul.f32 1.0, %v1651
      %v1653 = vrcp.pop %v1635
      %v1654 = vmul.f32 %v1635, %v1653
      %v1655 = vsub.f32 1.0, %v1654
      %v1656 = vmul.f32 %v1653, %v1655
      %v1657 = vadd.f32 %v1653, %v1656
      %vm1658 = vweird.f32 %v1635
      %vm1659 = vweird.f32 %v1653
      %vm1660 = vmor %vm1658, %vm1659
      %v1661 = vsel %vm1660, %v1653, %v1657
      %v1662 = vand.u32 2147483647, %v1635
      %vm1663 = vcmp.eq.f32.partialorder %v1662, 8.507059e+37
      %v1664 = vand.u32 %v1635, 2147483648
      %v1665 = vor.u32 1.1754944e-38, %v1664
      %v1666 = vsel %vm1663, %v1665, %v1661
      %v1667 = vmul.f32 1.0, %v1666
      %v1668 = vrcp.pop %v1636
      %v1669 = vmul.f32 %v1636, %v1668
      %v1670 = vsub.f32 1.0, %v1669
      %v1671 = vmul.f32 %v1668, %v1670
      %v1672 = vadd.f32 %v1668, %v1671
      %vm1673 = vweird.f32 %v1636
      %vm1674 = vweird.f32 %v1668
      %vm1675 = vmor %vm1673, %vm1674
      %v1676 = vsel %vm1675, %v1668, %v1672
      %v1677 = vand.u32 2147483647, %v1636
      %vm1678 = vcmp.eq.f32.partialorder %v1677, 8.507059e+37
      %v1679 = vand.u32 %v1636, 2147483648
      %v1680 = vor.u32 1.1754944e-38, %v1679
      %v1681 = vsel %vm1678, %v1680, %v1676
      %v1682 = vmul.f32 1.0, %v1681
      %v1683 = vrcp.pop %v1637
      %v1684 = vmul.f32 %v1637, %v1683
      %v1685 = vsub.f32 1.0, %v1684
      %v1686 = vmul.f32 %v1683, %v1685
      %v1687 = vadd.f32 %v1683, %v1686
      %vm1688 = vweird.f32 %v1637
      %vm1689 = vweird.f32 %v1683
      %vm1690 = vmor %vm1688, %vm1689
      %v1691 = vsel %vm1690, %v1683, %v1687
      %v1692 = vand.u32 2147483647, %v1637
      %vm1693 = vcmp.eq.f32.partialorder %v1692, 8.507059e+37
      %v1694 = vand.u32 %v1637, 2147483648
      %v1695 = vor.u32 1.1754944e-38, %v1694
      %v1696 = vsel %vm1693, %v1695, %v1691
      %v1697 = vmul.f32 1.0, %v1696
      %v1698 = vxor.u32 %v1607, 2147483648
      %v1699 = vxor.u32 %v1611, 2147483648
      %v1700 = vxor.u32 %v1615, 2147483648
      %v1701 = vxor.u32 %v1619, 2147483648
      %v1702 = vmul.f32 %v1698, 1.442695
      %v1703 = vpow.pop %v1702
      %v1704 = vmul.f32 %v1699, 1.442695
      %v1705 = vpow.pop %v1704
      %v1706 = vmul.f32 %v1700, 1.442695
      %v1707 = vpow.pop %v1706
      %v1708 = vmul.f32 %v1701, 1.442695
      %v1709 = vpow.pop %v1708
      %v1710 = vadd.f32 %v1703, 1.0
      %v1711 = vadd.f32 %v1705, 1.0
      %v1712 = vadd.f32 %v1707, 1.0
      %v1713 = vadd.f32 %v1709, 1.0
      %v1714 = vrcp.pop %v1710
      %v1715 = vmul.f32 %v1710, %v1714
      %v1716 = vsub.f32 1.0, %v1715
      %v1717 = vmul.f32 %v1714, %v1716
      %v1718 = vadd.f32 %v1714, %v1717
      %vm1719 = vweird.f32 %v1710
      %vm1720 = vweird.f32 %v1714
      %vm1721 = vmor %vm1719, %vm1720
      %v1722 = vsel %vm1721, %v1714, %v1718
      %v1723 = vand.u32 2147483647, %v1710
      %vm1724 = vcmp.eq.f32.partialorder %v1723, 8.507059e+37
      %v1725 = vand.u32 %v1710, 2147483648
      %v1726 = vor.u32 1.1754944e-38, %v1725
      %v1727 = vsel %vm1724, %v1726, %v1722
      %v1728 = vmul.f32 1.0, %v1727
      %v1729 = vrcp.pop %v1711
      %v1730 = vmul.f32 %v1711, %v1729
      %v1731 = vsub.f32 1.0, %v1730
      %v1732 = vmul.f32 %v1729, %v1731
      %v1733 = vadd.f32 %v1729, %v1732
      %vm1734 = vweird.f32 %v1711
      %vm1735 = vweird.f32 %v1729
      %vm1736 = vmor %vm1734, %vm1735
      %v1737 = vsel %vm1736, %v1729, %v1733
      %v1738 = vand.u32 2147483647, %v1711
      %vm1739 = vcmp.eq.f32.partialorder %v1738, 8.507059e+37
      %v1740 = vand.u32 %v1711, 2147483648
      %v1741 = vor.u32 1.1754944e-38, %v1740
      %v1742 = vsel %vm1739, %v1741, %v1737
      %v1743 = vmul.f32 1.0, %v1742
      %v1744 = vrcp.pop %v1712
      %v1745 = vmul.f32 %v1712, %v1744
      %v1746 = vsub.f32 1.0, %v1745
      %v1747 = vmul.f32 %v1744, %v1746
      %v1748 = vadd.f32 %v1744, %v1747
      %vm1749 = vweird.f32 %v1712
      %vm1750 = vweird.f32 %v1744
      %vm1751 = vmor %vm1749, %vm1750
      %v1752 = vsel %vm1751, %v1744, %v1748
      %v1753 = vand.u32 2147483647, %v1712
      %vm1754 = vcmp.eq.f32.partialorder %v1753, 8.507059e+37
      %v1755 = vand.u32 %v1712, 2147483648
      %v1756 = vor.u32 1.1754944e-38, %v1755
      %v1757 = vsel %vm1754, %v1756, %v1752
      %v1758 = vmul.f32 1.0, %v1757
      %v1759 = vrcp.pop %v1713
      %v1760 = vmul.f32 %v1713, %v1759
      %v1761 = vsub.f32 1.0, %v1760
      %v1762 = vmul.f32 %v1759, %v1761
      %v1763 = vadd.f32 %v1759, %v1762
      %vm1764 = vweird.f32 %v1713
      %vm1765 = vweird.f32 %v1759
      %vm1766 = vmor %vm1764, %vm1765
      %v1767 = vsel %vm1766, %v1759, %v1763
      %v1768 = vand.u32 2147483647, %v1713
      %vm1769 = vcmp.eq.f32.partialorder %v1768, 8.507059e+37
      %v1770 = vand.u32 %v1713, 2147483648
      %v1771 = vor.u32 1.1754944e-38, %v1770
      %v1772 = vsel %vm1769, %v1771, %v1767
      %v1773 = vmul.f32 1.0, %v1772
      %v1774 = vtanh.pop %v1608
      %v1775 = vtanh.pop %v1612
      %v1776 = vtanh.pop %v1616
      %v1777 = vtanh.pop %v1620
      %v1778 = vxor.u32 %v1609, 2147483648
      %v1779 = vxor.u32 %v1613, 2147483648
      %v1780 = vxor.u32 %v1617, 2147483648
      %v1781 = vxor.u32 %v1621, 2147483648
      %v1782 = vmul.f32 %v1778, 1.442695
      %v1783 = vpow.pop %v1782
      %v1784 = vmul.f32 %v1779, 1.442695
      %v1785 = vpow.pop %v1784
      %v1786 = vmul.f32 %v1780, 1.442695
      %v1787 = vpow.pop %v1786
      %v1788 = vmul.f32 %v1781, 1.442695
      %v1789 = vpow.pop %v1788
      %v1790 = vadd.f32 %v1783, 1.0
      %v1791 = vadd.f32 %v1785, 1.0
      %v1792 = vadd.f32 %v1787, 1.0
      %v1793 = vadd.f32 %v1789, 1.0
      %v1794 = vrcp.pop %v1790
      %v1795 = vmul.f32 %v1790, %v1794
      %v1796 = vsub.f32 1.0, %v1795
      %v1797 = vmul.f32 %v1794, %v1796
      %v1798 = vadd.f32 %v1794, %v1797
      %vm1799 = vweird.f32 %v1790
      %vm1800 = vweird.f32 %v1794
      %vm1801 = vmor %vm1799, %vm1800
      %v1802 = vsel %vm1801, %v1794, %v1798
      %v1803 = vand.u32 2147483647, %v1790
      %vm1804 = vcmp.eq.f32.partialorder %v1803, 8.507059e+37
      %v1805 = vand.u32 %v1790, 2147483648
      %v1806 = vor.u32 1.1754944e-38, %v1805
      %v1807 = vsel %vm1804, %v1806, %v1802
      %v1808 = vmul.f32 1.0, %v1807
      %v1809 = vrcp.pop %v1791
      %v1810 = vmul.f32 %v1791, %v1809
      %v1811 = vsub.f32 1.0, %v1810
      %v1812 = vmul.f32 %v1809, %v1811
      %v1813 = vadd.f32 %v1809, %v1812
      %vm1814 = vweird.f32 %v1791
      %vm1815 = vweird.f32 %v1809
      %vm1816 = vmor %vm1814, %vm1815
      %v1817 = vsel %vm1816, %v1809, %v1813
      %v1818 = vand.u32 2147483647, %v1791
      %vm1819 = vcmp.eq.f32.partialorder %v1818, 8.507059e+37
      %v1820 = vand.u32 %v1791, 2147483648
      %v1821 = vor.u32 1.1754944e-38, %v1820
      %v1822 = vsel %vm1819, %v1821, %v1817
      %v1823 = vmul.f32 1.0, %v1822
      %v1824 = vrcp.pop %v1792
      %v1825 = vmul.f32 %v1792, %v1824
      %v1826 = vsub.f32 1.0, %v1825
      %v1827 = vmul.f32 %v1824, %v1826
      %v1828 = vadd.f32 %v1824, %v1827
      %vm1829 = vweird.f32 %v1792
      %vm1830 = vweird.f32 %v1824
      %vm1831 = vmor %vm1829, %vm1830
      %v1832 = vsel %vm1831, %v1824, %v1828
      %v1833 = vand.u32 2147483647, %v1792
      %vm1834 = vcmp.eq.f32.partialorder %v1833, 8.507059e+37
      %v1835 = vand.u32 %v1792, 2147483648
      %v1836 = vor.u32 1.1754944e-38, %v1835
      %v1837 = vsel %vm1834, %v1836, %v1832
      %v1838 = vmul.f32 1.0, %v1837
      %v1839 = vrcp.pop %v1793
      %v1840 = vmul.f32 %v1793, %v1839
      %v1841 = vsub.f32 1.0, %v1840
      %v1842 = vmul.f32 %v1839, %v1841
      %v1843 = vadd.f32 %v1839, %v1842
      %vm1844 = vweird.f32 %v1793
      %vm1845 = vweird.f32 %v1839
      %vm1846 = vmor %vm1844, %vm1845
      %v1847 = vsel %vm1846, %v1839, %v1843
      %v1848 = vand.u32 2147483647, %v1793
      %vm1849 = vcmp.eq.f32.partialorder %v1848, 8.507059e+37
      %v1850 = vand.u32 %v1793, 2147483648
      %v1851 = vor.u32 1.1754944e-38, %v1850
      %v1852 = vsel %vm1849, %v1851, %v1847
      %v1853 = vmul.f32 1.0, %v1852
      %v1854 = vmul.f32 %v1728, %v1053
      %v1855 = vmul.f32 %v1743, %v1054
      %v1856 = vmul.f32 %v1758, %v1055
      %v1857 = vmul.f32 %v1773, %v1056
      %v1858 = vmul.f32 %v1652, %v1774
      %v1859 = vmul.f32 %v1667, %v1775
      %v1860 = vmul.f32 %v1682, %v1776
      %v1861 = vmul.f32 %v1697, %v1777
      %v1862 = vadd.f32 %v1854, %v1858
      %v1863 = vadd.f32 %v1855, %v1859
      %v1864 = vadd.f32 %v1856, %v1860
      %v1865 = vadd.f32 %v1857, %v1861
      %v1866 = vtanh.pop %v1862
      %v1867 = vtanh.pop %v1863
      %v1868 = vtanh.pop %v1864
      %v1869 = vtanh.pop %v1865
      %v1870 = vmul.f32 %v1808, %v1866
      %v1871 = vmul.f32 %v1823, %v1867
      %v1872 = vmul.f32 %v1838, %v1868
      %v1873 = vmul.f32 %v1853, %v1869
      %p1874 = scmp.ge.s32.totalorder %s1051, 0
      %p1875 = scmp.lt.s32.totalorder %s1051, 2
      %p1876 = pnand %p1874, %p1875
      %p1877 = pneg %p1876
      %s1878 = scalar_select %p1877, 1, 0
      %s1879 = scvt.s32.f32 %s1878
      %v1880 = vstv %s1879
      %v1881 = vmul.f32 %v1880, %v1870
      %v1882 = vmul.f32 %v1880, %v1871
      %v1883 = vmul.f32 %v1880, %v1872
      %v1884 = vmul.f32 %v1880, %v1873
      %s1885 = ssub.f32 1.0, %s1879
      %v1886 = vstv %s1885
      %v1887 = vmul.f32 %v1886, %v124
      %v1888 = vmul.f32 %v1886, %v125
      %v1889 = vmul.f32 %v1886, %v126
      %v1890 = vmul.f32 %v1886, %v127
      %v1891 = vadd.f32 %v1881, %v1887
      %v1892 = vadd.f32 %v1882, %v1888
      %v1893 = vadd.f32 %v1883, %v1889
      %v1894 = vadd.f32 %v1884, %v1890
      %v1895 = vmul.f32 %v1880, %v1862
      %v1896 = vmul.f32 %v1880, %v1863
      %v1897 = vmul.f32 %v1880, %v1864
      %v1898 = vmul.f32 %v1880, %v1865
      %v1899 = vmul.f32 %v1886, %v1053
      %v1900 = vmul.f32 %v1886, %v1054
      %v1901 = vmul.f32 %v1886, %v1055
      %v1902 = vmul.f32 %v1886, %v1056
      %v1903 = vadd.f32 %v1895, %v1899
      %v1904 = vadd.f32 %v1896, %v1900
      %v1905 = vadd.f32 %v1897, %v1901
      %v1906 = vadd.f32 %v1898, %v1902
      %s1907 = ssub.s32 %s105, 2
      %s1908 = scalar_lea.vmem [#allocation3], 64
      %v1909 = vld [vmem:[%s1908] sm:$0xff]
      %v1910 = vld [vmem:[%s1908 + $0x8] sm:$0xff]
      %v1911 = vld [vmem:[%s1908 + $0x10] sm:$0xff]
      %v1912 = vld [vmem:[%s1908 + $0x18] sm:$0xff]
      %s1913 = scalar_lea.vmem %s1, 512
      %v1914 = vld [vmem:[%s1913] sm:$0xff]
      %v1915 = vld [vmem:[%s1913 + $0x8] sm:$0xff]
      %v1916 = vld [vmem:[%s1913 + $0x10] sm:$0xff]
      %v1917 = vld [vmem:[%s1913 + $0x18] sm:$0xff]
      %v1918 = vld [vmem:[%s1913 + $0x20] sm:$0xff]
      %v1919 = vld [vmem:[%s1913 + $0x28] sm:$0xff]
      %v1920 = vld [vmem:[%s1913 + $0x30] sm:$0xff]
      %v1921 = vld [vmem:[%s1913 + $0x38] sm:$0xff]
      %v1922 = vld [vmem:[%s1913 + $0x40] sm:$0xff]
      %v1923 = vld [vmem:[%s1913 + $0x48] sm:$0xff]
      %v1924 = vld [vmem:[%s1913 + $0x50] sm:$0xff]
      %v1925 = vld [vmem:[%s1913 + $0x58] sm:$0xff]
      %v1926 = vld [vmem:[%s1913 + $0x60] sm:$0xff]
      %v1927 = vld [vmem:[%s1913 + $0x68] sm:$0xff]
      %v1928 = vld [vmem:[%s1913 + $0x70] sm:$0xff]
      %v1929 = vld [vmem:[%s1913 + $0x78] sm:$0xff]
      %v1930 = vld [vmem:[%s1913 + $0x80] sm:$0xff]
      %v1931 = vld [vmem:[%s1913 + $0x88] sm:$0xff]
      %v1932 = vld [vmem:[%s1913 + $0x90] sm:$0xff]
      %v1933 = vld [vmem:[%s1913 + $0x98] sm:$0xff]
      %v1934 = vld [vmem:[%s1913 + $0xa0] sm:$0xff]
      %v1935 = vld [vmem:[%s1913 + $0xa8] sm:$0xff]
      %v1936 = vld [vmem:[%s1913 + $0xb0] sm:$0xff]
      %v1937 = vld [vmem:[%s1913 + $0xb8] sm:$0xff]
      %v1938 = vld [vmem:[%s1913 + $0xc0] sm:$0xff]
      %v1939 = vld [vmem:[%s1913 + $0xc8] sm:$0xff]
      %v1940 = vld [vmem:[%s1913 + $0xd0] sm:$0xff]
      %v1941 = vld [vmem:[%s1913 + $0xd8] sm:$0xff]
      %v1942 = vld [vmem:[%s1913 + $0xe0] sm:$0xff]
      %v1943 = vld [vmem:[%s1913 + $0xe8] sm:$0xff]
      %v1944 = vld [vmem:[%s1913 + $0xf0] sm:$0xff]
      %v1945 = vld [vmem:[%s1913 + $0xf8] sm:$0xff]
      %s1946 = scalar_lea.vmem %s2, 512
      %v1947 = vld [vmem:[%s1946] sm:$0xff]
      %v1948 = vld [vmem:[%s1946 + $0x8] sm:$0xff]
      %v1949 = vld [vmem:[%s1946 + $0x10] sm:$0xff]
      %v1950 = vld [vmem:[%s1946 + $0x18] sm:$0xff]
      %v1951 = vld [vmem:[%s1946 + $0x20] sm:$0xff]
      %v1952 = vld [vmem:[%s1946 + $0x28] sm:$0xff]
      %v1953 = vld [vmem:[%s1946 + $0x30] sm:$0xff]
      %v1954 = vld [vmem:[%s1946 + $0x38] sm:$0xff]
      %v1955 = vld [vmem:[%s1946 + $0x40] sm:$0xff]
      %v1956 = vld [vmem:[%s1946 + $0x48] sm:$0xff]
      %v1957 = vld [vmem:[%s1946 + $0x50] sm:$0xff]
      %v1958 = vld [vmem:[%s1946 + $0x58] sm:$0xff]
      %v1959 = vld [vmem:[%s1946 + $0x60] sm:$0xff]
      %v1960 = vld [vmem:[%s1946 + $0x68] sm:$0xff]
      %v1961 = vld [vmem:[%s1946 + $0x70] sm:$0xff]
      %v1962 = vld [vmem:[%s1946 + $0x78] sm:$0xff]
      %v1963 = vld [vmem:[%s1946 + $0x80] sm:$0xff]
      %v1964 = vld [vmem:[%s1946 + $0x88] sm:$0xff]
      %v1965 = vld [vmem:[%s1946 + $0x90] sm:$0xff]
      %v1966 = vld [vmem:[%s1946 + $0x98] sm:$0xff]
      %v1967 = vld [vmem:[%s1946 + $0xa0] sm:$0xff]
      %v1968 = vld [vmem:[%s1946 + $0xa8] sm:$0xff]
      %v1969 = vld [vmem:[%s1946 + $0xb0] sm:$0xff]
      %v1970 = vld [vmem:[%s1946 + $0xb8] sm:$0xff]
      %v1971 = vld [vmem:[%s1946 + $0xc0] sm:$0xff]
      %v1972 = vld [vmem:[%s1946 + $0xc8] sm:$0xff]
      %v1973 = vld [vmem:[%s1946 + $0xd0] sm:$0xff]
      %v1974 = vld [vmem:[%s1946 + $0xd8] sm:$0xff]
      %v1975 = vld [vmem:[%s1946 + $0xe0] sm:$0xff]
      %v1976 = vld [vmem:[%s1946 + $0xe8] sm:$0xff]
      %v1977 = vld [vmem:[%s1946 + $0xf0] sm:$0xff]
      %v1978 = vld [vmem:[%s1946 + $0xf8] sm:$0xff]
      %v2011 = vunpack.c.l.b16 %v1947
      %v2012 = vunpack.c.h.b16 %v1947
      %v2013 = vunpack.c.l.b16 %v1948
      %v2014 = vunpack.c.h.b16 %v1948
      %v2015 = vunpack.c.l.b16 %v1949
      %v2016 = vunpack.c.h.b16 %v1949
      %v2017 = vunpack.c.l.b16 %v1950
      %v2018 = vunpack.c.h.b16 %v1950
      %v2019 = vunpack.c.l.b16 %v1951
      %v2020 = vunpack.c.h.b16 %v1951
      %v2021 = vunpack.c.l.b16 %v1952
      %v2022 = vunpack.c.h.b16 %v1952
      %v2023 = vunpack.c.l.b16 %v1953
      %v2024 = vunpack.c.h.b16 %v1953
      %v2025 = vunpack.c.l.b16 %v1954
      %v2026 = vunpack.c.h.b16 %v1954
      %v2027 = vunpack.c.l.b16 %v1955
      %v2028 = vunpack.c.h.b16 %v1955
      %v2029 = vunpack.c.l.b16 %v1956
      %v2030 = vunpack.c.h.b16 %v1956
      %v2031 = vunpack.c.l.b16 %v1957
      %v2032 = vunpack.c.h.b16 %v1957
      %v2033 = vunpack.c.l.b16 %v1958
      %v2034 = vunpack.c.h.b16 %v1958
      %v2035 = vunpack.c.l.b16 %v1959
      %v2036 = vunpack.c.h.b16 %v1959
      %v2037 = vunpack.c.l.b16 %v1960
      %v2038 = vunpack.c.h.b16 %v1960
      %v2039 = vunpack.c.l.b16 %v1961
      %v2040 = vunpack.c.h.b16 %v1961
      %v2041 = vunpack.c.l.b16 %v1962
      %v2042 = vunpack.c.h.b16 %v1962
      %v2043 = vunpack.c.l.b16 %v1963
      %v2044 = vunpack.c.h.b16 %v1963
      %v2045 = vunpack.c.l.b16 %v1964
      %v2046 = vunpack.c.h.b16 %v1964
      %v2047 = vunpack.c.l.b16 %v1965
      %v2048 = vunpack.c.h.b16 %v1965
      %v2049 = vunpack.c.l.b16 %v1966
      %v2050 = vunpack.c.h.b16 %v1966
      %v2051 = vunpack.c.l.b16 %v1967
      %v2052 = vunpack.c.h.b16 %v1967
      %v2053 = vunpack.c.l.b16 %v1968
      %v2054 = vunpack.c.h.b16 %v1968
      %v2055 = vunpack.c.l.b16 %v1969
      %v2056 = vunpack.c.h.b16 %v1969
      %v2057 = vunpack.c.l.b16 %v1970
      %v2058 = vunpack.c.h.b16 %v1970
      %v2059 = vunpack.c.l.b16 %v1971
      %v2060 = vunpack.c.h.b16 %v1971
      %v2061 = vunpack.c.l.b16 %v1972
      %v2062 = vunpack.c.h.b16 %v1972
      %v2063 = vunpack.c.l.b16 %v1973
      %v2064 = vunpack.c.h.b16 %v1973
      %v2065 = vunpack.c.l.b16 %v1974
      %v2066 = vunpack.c.h.b16 %v1974
      %v2067 = vunpack.c.l.b16 %v1975
      %v2068 = vunpack.c.h.b16 %v1975
      %v2069 = vunpack.c.l.b16 %v1976
      %v2070 = vunpack.c.h.b16 %v1976
      %v2071 = vunpack.c.l.b16 %v1977
      %v2072 = vunpack.c.h.b16 %v1977
      %v2073 = vunpack.c.l.b16 %v1978
      %v2074 = vunpack.c.h.b16 %v1978
      %v2075 = vpack.c.b16 %v2015, %v2011
      %v2076 = vpack.c.b16 %v2016, %v2012
      %v2077 = vpack.c.b16 %v2017, %v2013
      %v2078 = vpack.c.b16 %v2018, %v2014
      %v2079 = vpack.c.b16 %v2023, %v2019
      %v2080 = vpack.c.b16 %v2024, %v2020
      %v2081 = vpack.c.b16 %v2025, %v2021
      %v2082 = vpack.c.b16 %v2026, %v2022
      %v2083 = vpack.c.b16 %v2031, %v2027
      %v2084 = vpack.c.b16 %v2032, %v2028
      %v2085 = vpack.c.b16 %v2033, %v2029
      %v2086 = vpack.c.b16 %v2034, %v2030
      %v2087 = vpack.c.b16 %v2039, %v2035
      %v2088 = vpack.c.b16 %v2040, %v2036
      %v2089 = vpack.c.b16 %v2041, %v2037
      %v2090 = vpack.c.b16 %v2042, %v2038
      %v2091 = vpack.c.b16 %v2047, %v2043
      %v2092 = vpack.c.b16 %v2048, %v2044
      %v2093 = vpack.c.b16 %v2049, %v2045
      %v2094 = vpack.c.b16 %v2050, %v2046
      %v2095 = vpack.c.b16 %v2055, %v2051
      %v2096 = vpack.c.b16 %v2056, %v2052
      %v2097 = vpack.c.b16 %v2057, %v2053
      %v2098 = vpack.c.b16 %v2058, %v2054
      %v2099 = vpack.c.b16 %v2063, %v2059
      %v2100 = vpack.c.b16 %v2064, %v2060
      %v2101 = vpack.c.b16 %v2065, %v2061
      %v2102 = vpack.c.b16 %v2066, %v2062
      %v2103 = vpack.c.b16 %v2071, %v2067
      %v2104 = vpack.c.b16 %v2072, %v2068
      %v2105 = vpack.c.b16 %v2073, %v2069
      %v2106 = vpack.c.b16 %v2074, %v2070
      %2139 = vmatpush.bf16.msra.mxu0 %v2103
      %2140 = vmatpush.bf16.msra.mxu0 %v2099
      %2141 = vmatpush.bf16.msra.mxu0 %v2095
      %2142 = vmatpush.bf16.msra.mxu0 %v2091
      %2143 = vmatpush.bf16.msra.mxu0 %v2087
      %2144 = vmatpush.bf16.msra.mxu0 %v2083
      %2145 = vmatpush.bf16.msra.mxu0 %v2079
      %2146 = vmatpush.bf16.msra.mxu0 %v2075
      %2147 = vmatmul.bf16.gmra.mxu0 %v172
      %v2148 = vpop.f32.mrf.mxu0
      %v2149 = vadd.f32 0.0, %v2148
      %v2150 = vpop.f32.mrf.mxu0
      %v2151 = vadd.f32 0.0, %v2150
      %2152 = vmatmul.bf16.gmra.mxu0 %v173
      %v2153 = vpop.f32.mrf.mxu0
      %v2154 = vadd.f32 0.0, %v2153
      %v2155 = vpop.f32.mrf.mxu0
      %v2156 = vadd.f32 0.0, %v2155
      %2157 = vdwg.mxu0
      %2158 = vmatpush.bf16.msra.mxu0 %v2104
      %2159 = vmatpush.bf16.msra.mxu0 %v2100
      %2160 = vmatpush.bf16.msra.mxu0 %v2096
      %2161 = vmatpush.bf16.msra.mxu0 %v2092
      %2162 = vmatpush.bf16.msra.mxu0 %v2088
      %2163 = vmatpush.bf16.msra.mxu0 %v2084
      %2164 = vmatpush.bf16.msra.mxu0 %v2080
      %2165 = vmatpush.bf16.msra.mxu0 %v2076
      %2166 = vmatmul.bf16.gmra.mxu0 %v172
      %v2167 = vpop.f32.mrf.mxu0
      %v2168 = vadd.f32 0.0, %v2167
      %v2169 = vpop.f32.mrf.mxu0
      %v2170 = vadd.f32 0.0, %v2169
      %2171 = vmatmul.bf16.gmra.mxu0 %v173
      %v2172 = vpop.f32.mrf.mxu0
      %v2173 = vadd.f32 0.0, %v2172
      %v2174 = vpop.f32.mrf.mxu0
      %v2175 = vadd.f32 0.0, %v2174
      %2176 = vdwg.mxu0
      %2177 = vmatpush.bf16.msra.mxu0 %v2105
      %2178 = vmatpush.bf16.msra.mxu0 %v2101
      %2179 = vmatpush.bf16.msra.mxu0 %v2097
      %2180 = vmatpush.bf16.msra.mxu0 %v2093
      %2181 = vmatpush.bf16.msra.mxu0 %v2089
      %2182 = vmatpush.bf16.msra.mxu0 %v2085
      %2183 = vmatpush.bf16.msra.mxu0 %v2081
      %2184 = vmatpush.bf16.msra.mxu0 %v2077
      %2185 = vmatmul.bf16.gmra.mxu0 %v172
      %v2186 = vpop.f32.mrf.mxu0
      %v2187 = vadd.f32 0.0, %v2186
      %v2188 = vpop.f32.mrf.mxu0
      %v2189 = vadd.f32 0.0, %v2188
      %2190 = vmatmul.bf16.gmra.mxu0 %v173
      %v2191 = vpop.f32.mrf.mxu0
      %v2192 = vadd.f32 0.0, %v2191
      %v2193 = vpop.f32.mrf.mxu0
      %v2194 = vadd.f32 0.0, %v2193
      %2195 = vdwg.mxu0
      %2196 = vmatpush.bf16.msra.mxu0 %v2106
      %2197 = vmatpush.bf16.msra.mxu0 %v2102
      %2198 = vmatpush.bf16.msra.mxu0 %v2098
      %2199 = vmatpush.bf16.msra.mxu0 %v2094
      %2200 = vmatpush.bf16.msra.mxu0 %v2090
      %2201 = vmatpush.bf16.msra.mxu0 %v2086
      %2202 = vmatpush.bf16.msra.mxu0 %v2082
      %2203 = vmatpush.bf16.msra.mxu0 %v2078
      %2204 = vmatmul.bf16.gmra.mxu0 %v172
      %v2205 = vpop.f32.mrf.mxu0
      %v2206 = vadd.f32 0.0, %v2205
      %v2207 = vpop.f32.mrf.mxu0
      %v2208 = vadd.f32 0.0, %v2207
      %2209 = vmatmul.bf16.gmra.mxu0 %v173
      %v2210 = vpop.f32.mrf.mxu0
      %v2211 = vadd.f32 0.0, %v2210
      %v2212 = vpop.f32.mrf.mxu0
      %v2213 = vadd.f32 0.0, %v2212
      %2214 = vdwg.mxu0
      %v2247 = vunpack.c.l.b16 %v1914
      %v2248 = vunpack.c.h.b16 %v1914
      %v2249 = vunpack.c.l.b16 %v1915
      %v2250 = vunpack.c.h.b16 %v1915
      %v2251 = vunpack.c.l.b16 %v1916
      %v2252 = vunpack.c.h.b16 %v1916
      %v2253 = vunpack.c.l.b16 %v1917
      %v2254 = vunpack.c.h.b16 %v1917
      %v2255 = vunpack.c.l.b16 %v1918
      %v2256 = vunpack.c.h.b16 %v1918
      %v2257 = vunpack.c.l.b16 %v1919
      %v2258 = vunpack.c.h.b16 %v1919
      %v2259 = vunpack.c.l.b16 %v1920
      %v2260 = vunpack.c.h.b16 %v1920
      %v2261 = vunpack.c.l.b16 %v1921
      %v2262 = vunpack.c.h.b16 %v1921
      %v2263 = vunpack.c.l.b16 %v1922
      %v2264 = vunpack.c.h.b16 %v1922
      %v2265 = vunpack.c.l.b16 %v1923
      %v2266 = vunpack.c.h.b16 %v1923
      %v2267 = vunpack.c.l.b16 %v1924
      %v2268 = vunpack.c.h.b16 %v1924
      %v2269 = vunpack.c.l.b16 %v1925
      %v2270 = vunpack.c.h.b16 %v1925
      %v2271 = vunpack.c.l.b16 %v1926
      %v2272 = vunpack.c.h.b16 %v1926
      %v2273 = vunpack.c.l.b16 %v1927
      %v2274 = vunpack.c.h.b16 %v1927
      %v2275 = vunpack.c.l.b16 %v1928
      %v2276 = vunpack.c.h.b16 %v1928
      %v2277 = vunpack.c.l.b16 %v1929
      %v2278 = vunpack.c.h.b16 %v1929
      %v2279 = vunpack.c.l.b16 %v1930
      %v2280 = vunpack.c.h.b16 %v1930
      %v2281 = vunpack.c.l.b16 %v1931
      %v2282 = vunpack.c.h.b16 %v1931
      %v2283 = vunpack.c.l.b16 %v1932
      %v2284 = vunpack.c.h.b16 %v1932
      %v2285 = vunpack.c.l.b16 %v1933
      %v2286 = vunpack.c.h.b16 %v1933
      %v2287 = vunpack.c.l.b16 %v1934
      %v2288 = vunpack.c.h.b16 %v1934
      %v2289 = vunpack.c.l.b16 %v1935
      %v2290 = vunpack.c.h.b16 %v1935
      %v2291 = vunpack.c.l.b16 %v1936
      %v2292 = vunpack.c.h.b16 %v1936
      %v2293 = vunpack.c.l.b16 %v1937
      %v2294 = vunpack.c.h.b16 %v1937
      %v2295 = vunpack.c.l.b16 %v1938
      %v2296 = vunpack.c.h.b16 %v1938
      %v2297 = vunpack.c.l.b16 %v1939
      %v2298 = vunpack.c.h.b16 %v1939
      %v2299 = vunpack.c.l.b16 %v1940
      %v2300 = vunpack.c.h.b16 %v1940
      %v2301 = vunpack.c.l.b16 %v1941
      %v2302 = vunpack.c.h.b16 %v1941
      %v2303 = vunpack.c.l.b16 %v1942
      %v2304 = vunpack.c.h.b16 %v1942
      %v2305 = vunpack.c.l.b16 %v1943
      %v2306 = vunpack.c.h.b16 %v1943
      %v2307 = vunpack.c.l.b16 %v1944
      %v2308 = vunpack.c.h.b16 %v1944
      %v2309 = vunpack.c.l.b16 %v1945
      %v2310 = vunpack.c.h.b16 %v1945
      %v2311 = vpack.c.b16 %v2251, %v2247
      %v2312 = vpack.c.b16 %v2252, %v2248
      %v2313 = vpack.c.b16 %v2253, %v2249
      %v2314 = vpack.c.b16 %v2254, %v2250
      %v2315 = vpack.c.b16 %v2259, %v2255
      %v2316 = vpack.c.b16 %v2260, %v2256
      %v2317 = vpack.c.b16 %v2261, %v2257
      %v2318 = vpack.c.b16 %v2262, %v2258
      %v2319 = vpack.c.b16 %v2267, %v2263
      %v2320 = vpack.c.b16 %v2268, %v2264
      %v2321 = vpack.c.b16 %v2269, %v2265
      %v2322 = vpack.c.b16 %v2270, %v2266
      %v2323 = vpack.c.b16 %v2275, %v2271
      %v2324 = vpack.c.b16 %v2276, %v2272
      %v2325 = vpack.c.b16 %v2277, %v2273
      %v2326 = vpack.c.b16 %v2278, %v2274
      %v2327 = vpack.c.b16 %v2283, %v2279
      %v2328 = vpack.c.b16 %v2284, %v2280
      %v2329 = vpack.c.b16 %v2285, %v2281
      %v2330 = vpack.c.b16 %v2286, %v2282
      %v2331 = vpack.c.b16 %v2291, %v2287
      %v2332 = vpack.c.b16 %v2292, %v2288
      %v2333 = vpack.c.b16 %v2293, %v2289
      %v2334 = vpack.c.b16 %v2294, %v2290
      %v2335 = vpack.c.b16 %v2299, %v2295
      %v2336 = vpack.c.b16 %v2300, %v2296
      %v2337 = vpack.c.b16 %v2301, %v2297
      %v2338 = vpack.c.b16 %v2302, %v2298
      %v2339 = vpack.c.b16 %v2307, %v2303
      %v2340 = vpack.c.b16 %v2308, %v2304
      %v2341 = vpack.c.b16 %v2309, %v2305
      %v2342 = vpack.c.b16 %v2310, %v2306
      %2375 = vmatpush.bf16.msra.mxu0 %v2339
      %2376 = vmatpush.bf16.msra.mxu0 %v2335
      %2377 = vmatpush.bf16.msra.mxu0 %v2331
      %2378 = vmatpush.bf16.msra.mxu0 %v2327
      %2379 = vmatpush.bf16.msra.mxu0 %v2323
      %2380 = vmatpush.bf16.msra.mxu0 %v2319
      %2381 = vmatpush.bf16.msra.mxu0 %v2315
      %2382 = vmatpush.bf16.msra.mxu0 %v2311
      %2383 = vmatmul.bf16.gmra.mxu0 %v170
      %v2384 = vpop.f32.mrf.mxu0
      %v2385 = vadd.f32 %v2149, %v2384
      %v2386 = vpop.f32.mrf.mxu0
      %v2387 = vadd.f32 %v2151, %v2386
      %2388 = vmatmul.bf16.gmra.mxu0 %v171
      %v2389 = vpop.f32.mrf.mxu0
      %v2390 = vadd.f32 %v2154, %v2389
      %v2391 = vpop.f32.mrf.mxu0
      %v2392 = vadd.f32 %v2156, %v2391
      %2393 = vdwg.mxu0
      %2394 = vmatpush.bf16.msra.mxu0 %v2340
      %2395 = vmatpush.bf16.msra.mxu0 %v2336
      %2396 = vmatpush.bf16.msra.mxu0 %v2332
      %2397 = vmatpush.bf16.msra.mxu0 %v2328
      %2398 = vmatpush.bf16.msra.mxu0 %v2324
      %2399 = vmatpush.bf16.msra.mxu0 %v2320
      %2400 = vmatpush.bf16.msra.mxu0 %v2316
      %2401 = vmatpush.bf16.msra.mxu0 %v2312
      %2402 = vmatmul.bf16.gmra.mxu0 %v170
      %v2403 = vpop.f32.mrf.mxu0
      %v2404 = vadd.f32 %v2168, %v2403
      %v2405 = vpop.f32.mrf.mxu0
      %v2406 = vadd.f32 %v2170, %v2405
      %2407 = vmatmul.bf16.gmra.mxu0 %v171
      %v2408 = vpop.f32.mrf.mxu0
      %v2409 = vadd.f32 %v2173, %v2408
      %v2410 = vpop.f32.mrf.mxu0
      %v2411 = vadd.f32 %v2175, %v2410
      %2412 = vdwg.mxu0
      %2413 = vmatpush.bf16.msra.mxu0 %v2341
      %2414 = vmatpush.bf16.msra.mxu0 %v2337
      %2415 = vmatpush.bf16.msra.mxu0 %v2333
      %2416 = vmatpush.bf16.msra.mxu0 %v2329
      %2417 = vmatpush.bf16.msra.mxu0 %v2325
      %2418 = vmatpush.bf16.msra.mxu0 %v2321
      %2419 = vmatpush.bf16.msra.mxu0 %v2317
      %2420 = vmatpush.bf16.msra.mxu0 %v2313
      %2421 = vmatmul.bf16.gmra.mxu0 %v170
      %v2422 = vpop.f32.mrf.mxu0
      %v2423 = vadd.f32 %v2187, %v2422
      %v2424 = vpop.f32.mrf.mxu0
      %v2425 = vadd.f32 %v2189, %v2424
      %2426 = vmatmul.bf16.gmra.mxu0 %v171
      %v2427 = vpop.f32.mrf.mxu0
      %v2428 = vadd.f32 %v2192, %v2427
      %v2429 = vpop.f32.mrf.mxu0
      %v2430 = vadd.f32 %v2194, %v2429
      %2431 = vdwg.mxu0
      %2432 = vmatpush.bf16.msra.mxu0 %v2342
      %2433 = vmatpush.bf16.msra.mxu0 %v2338
      %2434 = vmatpush.bf16.msra.mxu0 %v2334
      %2435 = vmatpush.bf16.msra.mxu0 %v2330
      %2436 = vmatpush.bf16.msra.mxu0 %v2326
      %2437 = vmatpush.bf16.msra.mxu0 %v2322
      %2438 = vmatpush.bf16.msra.mxu0 %v2318
      %2439 = vmatpush.bf16.msra.mxu0 %v2314
      %2440 = vmatmul.bf16.gmra.mxu0 %v170
      %v2441 = vpop.f32.mrf.mxu0
      %v2442 = vadd.f32 %v2206, %v2441
      %v2443 = vpop.f32.mrf.mxu0
      %v2444 = vadd.f32 %v2208, %v2443
      %2445 = vmatmul.bf16.gmra.mxu0 %v171
      %v2446 = vpop.f32.mrf.mxu0
      %v2447 = vadd.f32 %v2211, %v2446
      %v2448 = vpop.f32.mrf.mxu0
      %v2449 = vadd.f32 %v2213, %v2448
      %2450 = vdwg.mxu0
      %s2451 = scalar_lea.vmem %s3, 8
      %v2452 = vld [vmem:[%s2451] sm:$0xf]
      %v2454 = vperm.slane %v2452, 0
      %v2455 = vperm.slane %v2452, 1
      %v2456 = vperm.slane %v2452, 2
      %v2457 = vperm.slane %v2452, 3
      %v2462 = vadd.f32 %v2385, %v2454
      %v2463 = vadd.f32 %v2404, %v2455
      %v2464 = vadd.f32 %v2423, %v2456
      %v2465 = vadd.f32 %v2442, %v2457
      %v2466 = vadd.f32 %v2387, %v2454
      %v2467 = vadd.f32 %v2406, %v2455
      %v2468 = vadd.f32 %v2425, %v2456
      %v2469 = vadd.f32 %v2444, %v2457
      %v2470 = vadd.f32 %v2390, %v2454
      %v2471 = vadd.f32 %v2409, %v2455
      %v2472 = vadd.f32 %v2428, %v2456
      %v2473 = vadd.f32 %v2447, %v2457
      %v2474 = vadd.f32 %v2392, %v2454
      %v2475 = vadd.f32 %v2411, %v2455
      %v2476 = vadd.f32 %v2430, %v2456
      %v2477 = vadd.f32 %v2449, %v2457
      %v2478 = vxor.u32 %v2462, 2147483648
      %v2479 = vxor.u32 %v2466, 2147483648
      %v2480 = vxor.u32 %v2470, 2147483648
      %v2481 = vxor.u32 %v2474, 2147483648
      %v2482 = vmul.f32 %v2478, 1.442695
      %v2483 = vpow.pop %v2482
      %v2484 = vmul.f32 %v2479, 1.442695
      %v2485 = vpow.pop %v2484
      %v2486 = vmul.f32 %v2480, 1.442695
      %v2487 = vpow.pop %v2486
      %v2488 = vmul.f32 %v2481, 1.442695
      %v2489 = vpow.pop %v2488
      %v2490 = vadd.f32 %v2483, 1.0
      %v2491 = vadd.f32 %v2485, 1.0
      %v2492 = vadd.f32 %v2487, 1.0
      %v2493 = vadd.f32 %v2489, 1.0
      %v2494 = vrcp.pop %v2490
      %v2495 = vmul.f32 %v2490, %v2494
      %v2496 = vsub.f32 1.0, %v2495
      %v2497 = vmul.f32 %v2494, %v2496
      %v2498 = vadd.f32 %v2494, %v2497
      %vm2499 = vweird.f32 %v2490
      %vm2500 = vweird.f32 %v2494
      %vm2501 = vmor %vm2499, %vm2500
      %v2502 = vsel %vm2501, %v2494, %v2498
      %v2503 = vand.u32 2147483647, %v2490
      %vm2504 = vcmp.eq.f32.partialorder %v2503, 8.507059e+37
      %v2505 = vand.u32 %v2490, 2147483648
      %v2506 = vor.u32 1.1754944e-38, %v2505
      %v2507 = vsel %vm2504, %v2506, %v2502
      %v2508 = vmul.f32 1.0, %v2507
      %v2509 = vrcp.pop %v2491
      %v2510 = vmul.f32 %v2491, %v2509
      %v2511 = vsub.f32 1.0, %v2510
      %v2512 = vmul.f32 %v2509, %v2511
      %v2513 = vadd.f32 %v2509, %v2512
      %vm2514 = vweird.f32 %v2491
      %vm2515 = vweird.f32 %v2509
      %vm2516 = vmor %vm2514, %vm2515
      %v2517 = vsel %vm2516, %v2509, %v2513
      %v2518 = vand.u32 2147483647, %v2491
      %vm2519 = vcmp.eq.f32.partialorder %v2518, 8.507059e+37
      %v2520 = vand.u32 %v2491, 2147483648
      %v2521 = vor.u32 1.1754944e-38, %v2520
      %v2522 = vsel %vm2519, %v2521, %v2517
      %v2523 = vmul.f32 1.0, %v2522
      %v2524 = vrcp.pop %v2492
      %v2525 = vmul.f32 %v2492, %v2524
      %v2526 = vsub.f32 1.0, %v2525
      %v2527 = vmul.f32 %v2524, %v2526
      %v2528 = vadd.f32 %v2524, %v2527
      %vm2529 = vweird.f32 %v2492
      %vm2530 = vweird.f32 %v2524
      %vm2531 = vmor %vm2529, %vm2530
      %v2532 = vsel %vm2531, %v2524, %v2528
      %v2533 = vand.u32 2147483647, %v2492
      %vm2534 = vcmp.eq.f32.partialorder %v2533, 8.507059e+37
      %v2535 = vand.u32 %v2492, 2147483648
      %v2536 = vor.u32 1.1754944e-38, %v2535
      %v2537 = vsel %vm2534, %v2536, %v2532
      %v2538 = vmul.f32 1.0, %v2537
      %v2539 = vrcp.pop %v2493
      %v2540 = vmul.f32 %v2493, %v2539
      %v2541 = vsub.f32 1.0, %v2540
      %v2542 = vmul.f32 %v2539, %v2541
      %v2543 = vadd.f32 %v2539, %v2542
      %vm2544 = vweird.f32 %v2493
      %vm2545 = vweird.f32 %v2539
      %vm2546 = vmor %vm2544, %vm2545
      %v2547 = vsel %vm2546, %v2539, %v2543
      %v2548 = vand.u32 2147483647, %v2493
      %vm2549 = vcmp.eq.f32.partialorder %v2548, 8.507059e+37
      %v2550 = vand.u32 %v2493, 2147483648
      %v2551 = vor.u32 1.1754944e-38, %v2550
      %v2552 = vsel %vm2549, %v2551, %v2547
      %v2553 = vmul.f32 1.0, %v2552
      %v2554 = vxor.u32 %v2463, 2147483648
      %v2555 = vxor.u32 %v2467, 2147483648
      %v2556 = vxor.u32 %v2471, 2147483648
      %v2557 = vxor.u32 %v2475, 2147483648
      %v2558 = vmul.f32 %v2554, 1.442695
      %v2559 = vpow.pop %v2558
      %v2560 = vmul.f32 %v2555, 1.442695
      %v2561 = vpow.pop %v2560
      %v2562 = vmul.f32 %v2556, 1.442695
      %v2563 = vpow.pop %v2562
      %v2564 = vmul.f32 %v2557, 1.442695
      %v2565 = vpow.pop %v2564
      %v2566 = vadd.f32 %v2559, 1.0
      %v2567 = vadd.f32 %v2561, 1.0
      %v2568 = vadd.f32 %v2563, 1.0
      %v2569 = vadd.f32 %v2565, 1.0
      %v2570 = vrcp.pop %v2566
      %v2571 = vmul.f32 %v2566, %v2570
      %v2572 = vsub.f32 1.0, %v2571
      %v2573 = vmul.f32 %v2570, %v2572
      %v2574 = vadd.f32 %v2570, %v2573
      %vm2575 = vweird.f32 %v2566
      %vm2576 = vweird.f32 %v2570
      %vm2577 = vmor %vm2575, %vm2576
      %v2578 = vsel %vm2577, %v2570, %v2574
      %v2579 = vand.u32 2147483647, %v2566
      %vm2580 = vcmp.eq.f32.partialorder %v2579, 8.507059e+37
      %v2581 = vand.u32 %v2566, 2147483648
      %v2582 = vor.u32 1.1754944e-38, %v2581
      %v2583 = vsel %vm2580, %v2582, %v2578
      %v2584 = vmul.f32 1.0, %v2583
      %v2585 = vrcp.pop %v2567
      %v2586 = vmul.f32 %v2567, %v2585
      %v2587 = vsub.f32 1.0, %v2586
      %v2588 = vmul.f32 %v2585, %v2587
      %v2589 = vadd.f32 %v2585, %v2588
      %vm2590 = vweird.f32 %v2567
      %vm2591 = vweird.f32 %v2585
      %vm2592 = vmor %vm2590, %vm2591
      %v2593 = vsel %vm2592, %v2585, %v2589
      %v2594 = vand.u32 2147483647, %v2567
      %vm2595 = vcmp.eq.f32.partialorder %v2594, 8.507059e+37
      %v2596 = vand.u32 %v2567, 2147483648
      %v2597 = vor.u32 1.1754944e-38, %v2596
      %v2598 = vsel %vm2595, %v2597, %v2593
      %v2599 = vmul.f32 1.0, %v2598
      %v2600 = vrcp.pop %v2568
      %v2601 = vmul.f32 %v2568, %v2600
      %v2602 = vsub.f32 1.0, %v2601
      %v2603 = vmul.f32 %v2600, %v2602
      %v2604 = vadd.f32 %v2600, %v2603
      %vm2605 = vweird.f32 %v2568
      %vm2606 = vweird.f32 %v2600
      %vm2607 = vmor %vm2605, %vm2606
      %v2608 = vsel %vm2607, %v2600, %v2604
      %v2609 = vand.u32 2147483647, %v2568
      %vm2610 = vcmp.eq.f32.partialorder %v2609, 8.507059e+37
      %v2611 = vand.u32 %v2568, 2147483648
      %v2612 = vor.u32 1.1754944e-38, %v2611
      %v2613 = vsel %vm2610, %v2612, %v2608
      %v2614 = vmul.f32 1.0, %v2613
      %v2615 = vrcp.pop %v2569
      %v2616 = vmul.f32 %v2569, %v2615
      %v2617 = vsub.f32 1.0, %v2616
      %v2618 = vmul.f32 %v2615, %v2617
      %v2619 = vadd.f32 %v2615, %v2618
      %vm2620 = vweird.f32 %v2569
      %vm2621 = vweird.f32 %v2615
      %vm2622 = vmor %vm2620, %vm2621
      %v2623 = vsel %vm2622, %v2615, %v2619
      %v2624 = vand.u32 2147483647, %v2569
      %vm2625 = vcmp.eq.f32.partialorder %v2624, 8.507059e+37
      %v2626 = vand.u32 %v2569, 2147483648
      %v2627 = vor.u32 1.1754944e-38, %v2626
      %v2628 = vsel %vm2625, %v2627, %v2623
      %v2629 = vmul.f32 1.0, %v2628
      %v2630 = vtanh.pop %v2464
      %v2631 = vtanh.pop %v2468
      %v2632 = vtanh.pop %v2472
      %v2633 = vtanh.pop %v2476
      %v2634 = vxor.u32 %v2465, 2147483648
      %v2635 = vxor.u32 %v2469, 2147483648
      %v2636 = vxor.u32 %v2473, 2147483648
      %v2637 = vxor.u32 %v2477, 2147483648
      %v2638 = vmul.f32 %v2634, 1.442695
      %v2639 = vpow.pop %v2638
      %v2640 = vmul.f32 %v2635, 1.442695
      %v2641 = vpow.pop %v2640
      %v2642 = vmul.f32 %v2636, 1.442695
      %v2643 = vpow.pop %v2642
      %v2644 = vmul.f32 %v2637, 1.442695
      %v2645 = vpow.pop %v2644
      %v2646 = vadd.f32 %v2639, 1.0
      %v2647 = vadd.f32 %v2641, 1.0
      %v2648 = vadd.f32 %v2643, 1.0
      %v2649 = vadd.f32 %v2645, 1.0
      %v2650 = vrcp.pop %v2646
      %v2651 = vmul.f32 %v2646, %v2650
      %v2652 = vsub.f32 1.0, %v2651
      %v2653 = vmul.f32 %v2650, %v2652
      %v2654 = vadd.f32 %v2650, %v2653
      %vm2655 = vweird.f32 %v2646
      %vm2656 = vweird.f32 %v2650
      %vm2657 = vmor %vm2655, %vm2656
      %v2658 = vsel %vm2657, %v2650, %v2654
      %v2659 = vand.u32 2147483647, %v2646
      %vm2660 = vcmp.eq.f32.partialorder %v2659, 8.507059e+37
      %v2661 = vand.u32 %v2646, 2147483648
      %v2662 = vor.u32 1.1754944e-38, %v2661
      %v2663 = vsel %vm2660, %v2662, %v2658
      %v2664 = vmul.f32 1.0, %v2663
      %v2665 = vrcp.pop %v2647
      %v2666 = vmul.f32 %v2647, %v2665
      %v2667 = vsub.f32 1.0, %v2666
      %v2668 = vmul.f32 %v2665, %v2667
      %v2669 = vadd.f32 %v2665, %v2668
      %vm2670 = vweird.f32 %v2647
      %vm2671 = vweird.f32 %v2665
      %vm2672 = vmor %vm2670, %vm2671
      %v2673 = vsel %vm2672, %v2665, %v2669
      %v2674 = vand.u32 2147483647, %v2647
      %vm2675 = vcmp.eq.f32.partialorder %v2674, 8.507059e+37
      %v2676 = vand.u32 %v2647, 2147483648
      %v2677 = vor.u32 1.1754944e-38, %v2676
      %v2678 = vsel %vm2675, %v2677, %v2673
      %v2679 = vmul.f32 1.0, %v2678
      %v2680 = vrcp.pop %v2648
      %v2681 = vmul.f32 %v2648, %v2680
      %v2682 = vsub.f32 1.0, %v2681
      %v2683 = vmul.f32 %v2680, %v2682
      %v2684 = vadd.f32 %v2680, %v2683
      %vm2685 = vweird.f32 %v2648
      %vm2686 = vweird.f32 %v2680
      %vm2687 = vmor %vm2685, %vm2686
      %v2688 = vsel %vm2687, %v2680, %v2684
      %v2689 = vand.u32 2147483647, %v2648
      %vm2690 = vcmp.eq.f32.partialorder %v2689, 8.507059e+37
      %v2691 = vand.u32 %v2648, 2147483648
      %v2692 = vor.u32 1.1754944e-38, %v2691
      %v2693 = vsel %vm2690, %v2692, %v2688
      %v2694 = vmul.f32 1.0, %v2693
      %v2695 = vrcp.pop %v2649
      %v2696 = vmul.f32 %v2649, %v2695
      %v2697 = vsub.f32 1.0, %v2696
      %v2698 = vmul.f32 %v2695, %v2697
      %v2699 = vadd.f32 %v2695, %v2698
      %vm2700 = vweird.f32 %v2649
      %vm2701 = vweird.f32 %v2695
      %vm2702 = vmor %vm2700, %vm2701
      %v2703 = vsel %vm2702, %v2695, %v2699
      %v2704 = vand.u32 2147483647, %v2649
      %vm2705 = vcmp.eq.f32.partialorder %v2704, 8.507059e+37
      %v2706 = vand.u32 %v2649, 2147483648
      %v2707 = vor.u32 1.1754944e-38, %v2706
      %v2708 = vsel %vm2705, %v2707, %v2703
      %v2709 = vmul.f32 1.0, %v2708
      %v2710 = vmul.f32 %v2584, %v1909
      %v2711 = vmul.f32 %v2599, %v1910
      %v2712 = vmul.f32 %v2614, %v1911
      %v2713 = vmul.f32 %v2629, %v1912
      %v2714 = vmul.f32 %v2508, %v2630
      %v2715 = vmul.f32 %v2523, %v2631
      %v2716 = vmul.f32 %v2538, %v2632
      %v2717 = vmul.f32 %v2553, %v2633
      %v2718 = vadd.f32 %v2710, %v2714
      %v2719 = vadd.f32 %v2711, %v2715
      %v2720 = vadd.f32 %v2712, %v2716
      %v2721 = vadd.f32 %v2713, %v2717
      %v2722 = vtanh.pop %v2718
      %v2723 = vtanh.pop %v2719
      %v2724 = vtanh.pop %v2720
      %v2725 = vtanh.pop %v2721
      %v2726 = vmul.f32 %v2664, %v2722
      %v2727 = vmul.f32 %v2679, %v2723
      %v2728 = vmul.f32 %v2694, %v2724
      %v2729 = vmul.f32 %v2709, %v2725
      %p2730 = scmp.ge.s32.totalorder %s1907, 0
      %p2731 = scmp.lt.s32.totalorder %s1907, 2
      %p2732 = pnand %p2730, %p2731
      %p2733 = pneg %p2732
      %s2734 = scalar_select %p2733, 1, 0
      %s2735 = scvt.s32.f32 %s2734
      %v2736 = vstv %s2735
      %v2737 = vmul.f32 %v2736, %v2726
      %v2738 = vmul.f32 %v2736, %v2727
      %v2739 = vmul.f32 %v2736, %v2728
      %v2740 = vmul.f32 %v2736, %v2729
      %s2741 = ssub.f32 1.0, %s2735
      %v2742 = vstv %s2741
      %v2743 = vmul.f32 %v2742, %v129
      %v2744 = vmul.f32 %v2742, %v130
      %v2745 = vmul.f32 %v2742, %v131
      %v2746 = vmul.f32 %v2742, %v132
      %v2747 = vadd.f32 %v2737, %v2743
      %v2748 = vadd.f32 %v2738, %v2744
      %v2749 = vadd.f32 %v2739, %v2745
      %v2750 = vadd.f32 %v2740, %v2746
      %v2751 = vmul.f32 %v2736, %v2718
      %v2752 = vmul.f32 %v2736, %v2719
      %v2753 = vmul.f32 %v2736, %v2720
      %v2754 = vmul.f32 %v2736, %v2721
      %v2755 = vmul.f32 %v2742, %v1909
      %v2756 = vmul.f32 %v2742, %v1910
      %v2757 = vmul.f32 %v2742, %v1911
      %v2758 = vmul.f32 %v2742, %v1912
      %v2759 = vadd.f32 %v2751, %v2755
      %v2760 = vadd.f32 %v2752, %v2756
      %v2761 = vadd.f32 %v2753, %v2757
      %v2762 = vadd.f32 %v2754, %v2758
      %s2763 = ssub.s32 %s105, 3
      %s2764 = scalar_lea.vmem [#allocation3], 96
      %v2765 = vld [vmem:[%s2764] sm:$0xff]
      %v2766 = vld [vmem:[%s2764 + $0x8] sm:$0xff]
      %v2767 = vld [vmem:[%s2764 + $0x10] sm:$0xff]
      %v2768 = vld [vmem:[%s2764 + $0x18] sm:$0xff]
      %s2769 = scalar_lea.vmem %s1, 768
      %v2770 = vld [vmem:[%s2769] sm:$0xff]
      %v2771 = vld [vmem:[%s2769 + $0x8] sm:$0xff]
      %v2772 = vld [vmem:[%s2769 + $0x10] sm:$0xff]
      %v2773 = vld [vmem:[%s2769 + $0x18] sm:$0xff]
      %v2774 = vld [vmem:[%s2769 + $0x20] sm:$0xff]
      %v2775 = vld [vmem:[%s2769 + $0x28] sm:$0xff]
      %v2776 = vld [vmem:[%s2769 + $0x30] sm:$0xff]
      %v2777 = vld [vmem:[%s2769 + $0x38] sm:$0xff]
      %v2778 = vld [vmem:[%s2769 + $0x40] sm:$0xff]
      %v2779 = vld [vmem:[%s2769 + $0x48] sm:$0xff]
      %v2780 = vld [vmem:[%s2769 + $0x50] sm:$0xff]
      %v2781 = vld [vmem:[%s2769 + $0x58] sm:$0xff]
      %v2782 = vld [vmem:[%s2769 + $0x60] sm:$0xff]
      %v2783 = vld [vmem:[%s2769 + $0x68] sm:$0xff]
      %v2784 = vld [vmem:[%s2769 + $0x70] sm:$0xff]
      %v2785 = vld [vmem:[%s2769 + $0x78] sm:$0xff]
      %v2786 = vld [vmem:[%s2769 + $0x80] sm:$0xff]
      %v2787 = vld [vmem:[%s2769 + $0x88] sm:$0xff]
      %v2788 = vld [vmem:[%s2769 + $0x90] sm:$0xff]
      %v2789 = vld [vmem:[%s2769 + $0x98] sm:$0xff]
      %v2790 = vld [vmem:[%s2769 + $0xa0] sm:$0xff]
      %v2791 = vld [vmem:[%s2769 + $0xa8] sm:$0xff]
      %v2792 = vld [vmem:[%s2769 + $0xb0] sm:$0xff]
      %v2793 = vld [vmem:[%s2769 + $0xb8] sm:$0xff]
      %v2794 = vld [vmem:[%s2769 + $0xc0] sm:$0xff]
      %v2795 = vld [vmem:[%s2769 + $0xc8] sm:$0xff]
      %v2796 = vld [vmem:[%s2769 + $0xd0] sm:$0xff]
      %v2797 = vld [vmem:[%s2769 + $0xd8] sm:$0xff]
      %v2798 = vld [vmem:[%s2769 + $0xe0] sm:$0xff]
      %v2799 = vld [vmem:[%s2769 + $0xe8] sm:$0xff]
      %v2800 = vld [vmem:[%s2769 + $0xf0] sm:$0xff]
      %v2801 = vld [vmem:[%s2769 + $0xf8] sm:$0xff]
      %s2802 = scalar_lea.vmem %s2, 768
      %v2803 = vld [vmem:[%s2802] sm:$0xff]
      %v2804 = vld [vmem:[%s2802 + $0x8] sm:$0xff]
      %v2805 = vld [vmem:[%s2802 + $0x10] sm:$0xff]
      %v2806 = vld [vmem:[%s2802 + $0x18] sm:$0xff]
      %v2807 = vld [vmem:[%s2802 + $0x20] sm:$0xff]
      %v2808 = vld [vmem:[%s2802 + $0x28] sm:$0xff]
      %v2809 = vld [vmem:[%s2802 + $0x30] sm:$0xff]
      %v2810 = vld [vmem:[%s2802 + $0x38] sm:$0xff]
      %v2811 = vld [vmem:[%s2802 + $0x40] sm:$0xff]
      %v2812 = vld [vmem:[%s2802 + $0x48] sm:$0xff]
      %v2813 = vld [vmem:[%s2802 + $0x50] sm:$0xff]
      %v2814 = vld [vmem:[%s2802 + $0x58] sm:$0xff]
      %v2815 = vld [vmem:[%s2802 + $0x60] sm:$0xff]
      %v2816 = vld [vmem:[%s2802 + $0x68] sm:$0xff]
      %v2817 = vld [vmem:[%s2802 + $0x70] sm:$0xff]
      %v2818 = vld [vmem:[%s2802 + $0x78] sm:$0xff]
      %v2819 = vld [vmem:[%s2802 + $0x80] sm:$0xff]
      %v2820 = vld [vmem:[%s2802 + $0x88] sm:$0xff]
      %v2821 = vld [vmem:[%s2802 + $0x90] sm:$0xff]
      %v2822 = vld [vmem:[%s2802 + $0x98] sm:$0xff]
      %v2823 = vld [vmem:[%s2802 + $0xa0] sm:$0xff]
      %v2824 = vld [vmem:[%s2802 + $0xa8] sm:$0xff]
      %v2825 = vld [vmem:[%s2802 + $0xb0] sm:$0xff]
      %v2826 = vld [vmem:[%s2802 + $0xb8] sm:$0xff]
      %v2827 = vld [vmem:[%s2802 + $0xc0] sm:$0xff]
      %v2828 = vld [vmem:[%s2802 + $0xc8] sm:$0xff]
      %v2829 = vld [vmem:[%s2802 + $0xd0] sm:$0xff]
      %v2830 = vld [vmem:[%s2802 + $0xd8] sm:$0xff]
      %v2831 = vld [vmem:[%s2802 + $0xe0] sm:$0xff]
      %v2832 = vld [vmem:[%s2802 + $0xe8] sm:$0xff]
      %v2833 = vld [vmem:[%s2802 + $0xf0] sm:$0xff]
      %v2834 = vld [vmem:[%s2802 + $0xf8] sm:$0xff]
      %v2867 = vunpack.c.l.b16 %v2803
      %v2868 = vunpack.c.h.b16 %v2803
      %v2869 = vunpack.c.l.b16 %v2804
      %v2870 = vunpack.c.h.b16 %v2804
      %v2871 = vunpack.c.l.b16 %v2805
      %v2872 = vunpack.c.h.b16 %v2805
      %v2873 = vunpack.c.l.b16 %v2806
      %v2874 = vunpack.c.h.b16 %v2806
      %v2875 = vunpack.c.l.b16 %v2807
      %v2876 = vunpack.c.h.b16 %v2807
      %v2877 = vunpack.c.l.b16 %v2808
      %v2878 = vunpack.c.h.b16 %v2808
      %v2879 = vunpack.c.l.b16 %v2809
      %v2880 = vunpack.c.h.b16 %v2809
      %v2881 = vunpack.c.l.b16 %v2810
      %v2882 = vunpack.c.h.b16 %v2810
      %v2883 = vunpack.c.l.b16 %v2811
      %v2884 = vunpack.c.h.b16 %v2811
      %v2885 = vunpack.c.l.b16 %v2812
      %v2886 = vunpack.c.h.b16 %v2812
      %v2887 = vunpack.c.l.b16 %v2813
      %v2888 = vunpack.c.h.b16 %v2813
      %v2889 = vunpack.c.l.b16 %v2814
      %v2890 = vunpack.c.h.b16 %v2814
      %v2891 = vunpack.c.l.b16 %v2815
      %v2892 = vunpack.c.h.b16 %v2815
      %v2893 = vunpack.c.l.b16 %v2816
      %v2894 = vunpack.c.h.b16 %v2816
      %v2895 = vunpack.c.l.b16 %v2817
      %v2896 = vunpack.c.h.b16 %v2817
      %v2897 = vunpack.c.l.b16 %v2818
      %v2898 = vunpack.c.h.b16 %v2818
      %v2899 = vunpack.c.l.b16 %v2819
      %v2900 = vunpack.c.h.b16 %v2819
      %v2901 = vunpack.c.l.b16 %v2820
      %v2902 = vunpack.c.h.b16 %v2820
      %v2903 = vunpack.c.l.b16 %v2821
      %v2904 = vunpack.c.h.b16 %v2821
      %v2905 = vunpack.c.l.b16 %v2822
      %v2906 = vunpack.c.h.b16 %v2822
      %v2907 = vunpack.c.l.b16 %v2823
      %v2908 = vunpack.c.h.b16 %v2823
      %v2909 = vunpack.c.l.b16 %v2824
      %v2910 = vunpack.c.h.b16 %v2824
      %v2911 = vunpack.c.l.b16 %v2825
      %v2912 = vunpack.c.h.b16 %v2825
      %v2913 = vunpack.c.l.b16 %v2826
      %v2914 = vunpack.c.h.b16 %v2826
      %v2915 = vunpack.c.l.b16 %v2827
      %v2916 = vunpack.c.h.b16 %v2827
      %v2917 = vunpack.c.l.b16 %v2828
      %v2918 = vunpack.c.h.b16 %v2828
      %v2919 = vunpack.c.l.b16 %v2829
      %v2920 = vunpack.c.h.b16 %v2829
      %v2921 = vunpack.c.l.b16 %v2830
      %v2922 = vunpack.c.h.b16 %v2830
      %v2923 = vunpack.c.l.b16 %v2831
      %v2924 = vunpack.c.h.b16 %v2831
      %v2925 = vunpack.c.l.b16 %v2832
      %v2926 = vunpack.c.h.b16 %v2832
      %v2927 = vunpack.c.l.b16 %v2833
      %v2928 = vunpack.c.h.b16 %v2833
      %v2929 = vunpack.c.l.b16 %v2834
      %v2930 = vunpack.c.h.b16 %v2834
      %v2931 = vpack.c.b16 %v2871, %v2867
      %v2932 = vpack.c.b16 %v2872, %v2868
      %v2933 = vpack.c.b16 %v2873, %v2869
      %v2934 = vpack.c.b16 %v2874, %v2870
      %v2935 = vpack.c.b16 %v2879, %v2875
      %v2936 = vpack.c.b16 %v2880, %v2876
      %v2937 = vpack.c.b16 %v2881, %v2877
      %v2938 = vpack.c.b16 %v2882, %v2878
      %v2939 = vpack.c.b16 %v2887, %v2883
      %v2940 = vpack.c.b16 %v2888, %v2884
      %v2941 = vpack.c.b16 %v2889, %v2885
      %v2942 = vpack.c.b16 %v2890, %v2886
      %v2943 = vpack.c.b16 %v2895, %v2891
      %v2944 = vpack.c.b16 %v2896, %v2892
      %v2945 = vpack.c.b16 %v2897, %v2893
      %v2946 = vpack.c.b16 %v2898, %v2894
      %v2947 = vpack.c.b16 %v2903, %v2899
      %v2948 = vpack.c.b16 %v2904, %v2900
      %v2949 = vpack.c.b16 %v2905, %v2901
      %v2950 = vpack.c.b16 %v2906, %v2902
      %v2951 = vpack.c.b16 %v2911, %v2907
      %v2952 = vpack.c.b16 %v2912, %v2908
      %v2953 = vpack.c.b16 %v2913, %v2909
      %v2954 = vpack.c.b16 %v2914, %v2910
      %v2955 = vpack.c.b16 %v2919, %v2915
      %v2956 = vpack.c.b16 %v2920, %v2916
      %v2957 = vpack.c.b16 %v2921, %v2917
      %v2958 = vpack.c.b16 %v2922, %v2918
      %v2959 = vpack.c.b16 %v2927, %v2923
      %v2960 = vpack.c.b16 %v2928, %v2924
      %v2961 = vpack.c.b16 %v2929, %v2925
      %v2962 = vpack.c.b16 %v2930, %v2926
      %2995 = vmatpush.bf16.msra.mxu0 %v2959
      %2996 = vmatpush.bf16.msra.mxu0 %v2955
      %2997 = vmatpush.bf16.msra.mxu0 %v2951
      %2998 = vmatpush.bf16.msra.mxu0 %v2947
      %2999 = vmatpush.bf16.msra.mxu0 %v2943
      %3000 = vmatpush.bf16.msra.mxu0 %v2939
      %3001 = vmatpush.bf16.msra.mxu0 %v2935
      %3002 = vmatpush.bf16.msra.mxu0 %v2931
      %3003 = vmatmul.bf16.gmra.mxu0 %v174
      %v3004 = vpop.f32.mrf.mxu0
      %v3005 = vadd.f32 0.0, %v3004
      %v3006 = vpop.f32.mrf.mxu0
      %v3007 = vadd.f32 0.0, %v3006
      %3008 = vmatmul.bf16.gmra.mxu0 %v175
      %v3009 = vpop.f32.mrf.mxu0
      %v3010 = vadd.f32 0.0, %v3009
      %v3011 = vpop.f32.mrf.mxu0
      %v3012 = vadd.f32 0.0, %v3011
      %3013 = vdwg.mxu0
      %3014 = vmatpush.bf16.msra.mxu0 %v2960
      %3015 = vmatpush.bf16.msra.mxu0 %v2956
      %3016 = vmatpush.bf16.msra.mxu0 %v2952
      %3017 = vmatpush.bf16.msra.mxu0 %v2948
      %3018 = vmatpush.bf16.msra.mxu0 %v2944
      %3019 = vmatpush.bf16.msra.mxu0 %v2940
      %3020 = vmatpush.bf16.msra.mxu0 %v2936
      %3021 = vmatpush.bf16.msra.mxu0 %v2932
      %3022 = vmatmul.bf16.gmra.mxu0 %v174
      %v3023 = vpop.f32.mrf.mxu0
      %v3024 = vadd.f32 0.0, %v3023
      %v3025 = vpop.f32.mrf.mxu0
      %v3026 = vadd.f32 0.0, %v3025
      %3027 = vmatmul.bf16.gmra.mxu0 %v175
      %v3028 = vpop.f32.mrf.mxu0
      %v3029 = vadd.f32 0.0, %v3028
      %v3030 = vpop.f32.mrf.mxu0
      %v3031 = vadd.f32 0.0, %v3030
      %3032 = vdwg.mxu0
      %3033 = vmatpush.bf16.msra.mxu0 %v2961
      %3034 = vmatpush.bf16.msra.mxu0 %v2957
      %3035 = vmatpush.bf16.msra.mxu0 %v2953
      %3036 = vmatpush.bf16.msra.mxu0 %v2949
      %3037 = vmatpush.bf16.msra.mxu0 %v2945
      %3038 = vmatpush.bf16.msra.mxu0 %v2941
      %3039 = vmatpush.bf16.msra.mxu0 %v2937
      %3040 = vmatpush.bf16.msra.mxu0 %v2933
      %3041 = vmatmul.bf16.gmra.mxu0 %v174
      %v3042 = vpop.f32.mrf.mxu0
      %v3043 = vadd.f32 0.0, %v3042
      %v3044 = vpop.f32.mrf.mxu0
      %v3045 = vadd.f32 0.0, %v3044
      %3046 = vmatmul.bf16.gmra.mxu0 %v175
      %v3047 = vpop.f32.mrf.mxu0
      %v3048 = vadd.f32 0.0, %v3047
      %v3049 = vpop.f32.mrf.mxu0
      %v3050 = vadd.f32 0.0, %v3049
      %3051 = vdwg.mxu0
      %3052 = vmatpush.bf16.msra.mxu0 %v2962
      %3053 = vmatpush.bf16.msra.mxu0 %v2958
      %3054 = vmatpush.bf16.msra.mxu0 %v2954
      %3055 = vmatpush.bf16.msra.mxu0 %v2950
      %3056 = vmatpush.bf16.msra.mxu0 %v2946
      %3057 = vmatpush.bf16.msra.mxu0 %v2942
      %3058 = vmatpush.bf16.msra.mxu0 %v2938
      %3059 = vmatpush.bf16.msra.mxu0 %v2934
      %3060 = vmatmul.bf16.gmra.mxu0 %v174
      %v3061 = vpop.f32.mrf.mxu0
      %v3062 = vadd.f32 0.0, %v3061
      %v3063 = vpop.f32.mrf.mxu0
      %v3064 = vadd.f32 0.0, %v3063
      %3065 = vmatmul.bf16.gmra.mxu0 %v175
      %v3066 = vpop.f32.mrf.mxu0
      %v3067 = vadd.f32 0.0, %v3066
      %v3068 = vpop.f32.mrf.mxu0
      %v3069 = vadd.f32 0.0, %v3068
      %3070 = vdwg.mxu0
      %v3103 = vunpack.c.l.b16 %v2770
      %v3104 = vunpack.c.h.b16 %v2770
      %v3105 = vunpack.c.l.b16 %v2771
      %v3106 = vunpack.c.h.b16 %v2771
      %v3107 = vunpack.c.l.b16 %v2772
      %v3108 = vunpack.c.h.b16 %v2772
      %v3109 = vunpack.c.l.b16 %v2773
      %v3110 = vunpack.c.h.b16 %v2773
      %v3111 = vunpack.c.l.b16 %v2774
      %v3112 = vunpack.c.h.b16 %v2774
      %v3113 = vunpack.c.l.b16 %v2775
      %v3114 = vunpack.c.h.b16 %v2775
      %v3115 = vunpack.c.l.b16 %v2776
      %v3116 = vunpack.c.h.b16 %v2776
      %v3117 = vunpack.c.l.b16 %v2777
      %v3118 = vunpack.c.h.b16 %v2777
      %v3119 = vunpack.c.l.b16 %v2778
      %v3120 = vunpack.c.h.b16 %v2778
      %v3121 = vunpack.c.l.b16 %v2779
      %v3122 = vunpack.c.h.b16 %v2779
      %v3123 = vunpack.c.l.b16 %v2780
      %v3124 = vunpack.c.h.b16 %v2780
      %v3125 = vunpack.c.l.b16 %v2781
      %v3126 = vunpack.c.h.b16 %v2781
      %v3127 = vunpack.c.l.b16 %v2782
      %v3128 = vunpack.c.h.b16 %v2782
      %v3129 = vunpack.c.l.b16 %v2783
      %v3130 = vunpack.c.h.b16 %v2783
      %v3131 = vunpack.c.l.b16 %v2784
      %v3132 = vunpack.c.h.b16 %v2784
      %v3133 = vunpack.c.l.b16 %v2785
      %v3134 = vunpack.c.h.b16 %v2785
      %v3135 = vunpack.c.l.b16 %v2786
      %v3136 = vunpack.c.h.b16 %v2786
      %v3137 = vunpack.c.l.b16 %v2787
      %v3138 = vunpack.c.h.b16 %v2787
      %v3139 = vunpack.c.l.b16 %v2788
      %v3140 = vunpack.c.h.b16 %v2788
      %v3141 = vunpack.c.l.b16 %v2789
      %v3142 = vunpack.c.h.b16 %v2789
      %v3143 = vunpack.c.l.b16 %v2790
      %v3144 = vunpack.c.h.b16 %v2790
      %v3145 = vunpack.c.l.b16 %v2791
      %v3146 = vunpack.c.h.b16 %v2791
      %v3147 = vunpack.c.l.b16 %v2792
      %v3148 = vunpack.c.h.b16 %v2792
      %v3149 = vunpack.c.l.b16 %v2793
      %v3150 = vunpack.c.h.b16 %v2793
      %v3151 = vunpack.c.l.b16 %v2794
      %v3152 = vunpack.c.h.b16 %v2794
      %v3153 = vunpack.c.l.b16 %v2795
      %v3154 = vunpack.c.h.b16 %v2795
      %v3155 = vunpack.c.l.b16 %v2796
      %v3156 = vunpack.c.h.b16 %v2796
      %v3157 = vunpack.c.l.b16 %v2797
      %v3158 = vunpack.c.h.b16 %v2797
      %v3159 = vunpack.c.l.b16 %v2798
      %v3160 = vunpack.c.h.b16 %v2798
      %v3161 = vunpack.c.l.b16 %v2799
      %v3162 = vunpack.c.h.b16 %v2799
      %v3163 = vunpack.c.l.b16 %v2800
      %v3164 = vunpack.c.h.b16 %v2800
      %v3165 = vunpack.c.l.b16 %v2801
      %v3166 = vunpack.c.h.b16 %v2801
      %v3167 = vpack.c.b16 %v3107, %v3103
      %v3168 = vpack.c.b16 %v3108, %v3104
      %v3169 = vpack.c.b16 %v3109, %v3105
      %v3170 = vpack.c.b16 %v3110, %v3106
      %v3171 = vpack.c.b16 %v3115, %v3111
      %v3172 = vpack.c.b16 %v3116, %v3112
      %v3173 = vpack.c.b16 %v3117, %v3113
      %v3174 = vpack.c.b16 %v3118, %v3114
      %v3175 = vpack.c.b16 %v3123, %v3119
      %v3176 = vpack.c.b16 %v3124, %v3120
      %v3177 = vpack.c.b16 %v3125, %v3121
      %v3178 = vpack.c.b16 %v3126, %v3122
      %v3179 = vpack.c.b16 %v3131, %v3127
      %v3180 = vpack.c.b16 %v3132, %v3128
      %v3181 = vpack.c.b16 %v3133, %v3129
      %v3182 = vpack.c.b16 %v3134, %v3130
      %v3183 = vpack.c.b16 %v3139, %v3135
      %v3184 = vpack.c.b16 %v3140, %v3136
      %v3185 = vpack.c.b16 %v3141, %v3137
      %v3186 = vpack.c.b16 %v3142, %v3138
      %v3187 = vpack.c.b16 %v3147, %v3143
      %v3188 = vpack.c.b16 %v3148, %v3144
      %v3189 = vpack.c.b16 %v3149, %v3145
      %v3190 = vpack.c.b16 %v3150, %v3146
      %v3191 = vpack.c.b16 %v3155, %v3151
      %v3192 = vpack.c.b16 %v3156, %v3152
      %v3193 = vpack.c.b16 %v3157, %v3153
      %v3194 = vpack.c.b16 %v3158, %v3154
      %v3195 = vpack.c.b16 %v3163, %v3159
      %v3196 = vpack.c.b16 %v3164, %v3160
      %v3197 = vpack.c.b16 %v3165, %v3161
      %v3198 = vpack.c.b16 %v3166, %v3162
      %3231 = vmatpush.bf16.msra.mxu0 %v3195
      %3232 = vmatpush.bf16.msra.mxu0 %v3191
      %3233 = vmatpush.bf16.msra.mxu0 %v3187
      %3234 = vmatpush.bf16.msra.mxu0 %v3183
      %3235 = vmatpush.bf16.msra.mxu0 %v3179
      %3236 = vmatpush.bf16.msra.mxu0 %v3175
      %3237 = vmatpush.bf16.msra.mxu0 %v3171
      %3238 = vmatpush.bf16.msra.mxu0 %v3167
      %3239 = vmatmul.bf16.gmra.mxu0 %v172
      %v3240 = vpop.f32.mrf.mxu0
      %v3241 = vadd.f32 %v3005, %v3240
      %v3242 = vpop.f32.mrf.mxu0
      %v3243 = vadd.f32 %v3007, %v3242
      %3244 = vmatmul.bf16.gmra.mxu0 %v173
      %v3245 = vpop.f32.mrf.mxu0
      %v3246 = vadd.f32 %v3010, %v3245
      %v3247 = vpop.f32.mrf.mxu0
      %v3248 = vadd.f32 %v3012, %v3247
      %3249 = vdwg.mxu0
      %3250 = vmatpush.bf16.msra.mxu0 %v3196
      %3251 = vmatpush.bf16.msra.mxu0 %v3192
      %3252 = vmatpush.bf16.msra.mxu0 %v3188
      %3253 = vmatpush.bf16.msra.mxu0 %v3184
      %3254 = vmatpush.bf16.msra.mxu0 %v3180
      %3255 = vmatpush.bf16.msra.mxu0 %v3176
      %3256 = vmatpush.bf16.msra.mxu0 %v3172
      %3257 = vmatpush.bf16.msra.mxu0 %v3168
      %3258 = vmatmul.bf16.gmra.mxu0 %v172
      %v3259 = vpop.f32.mrf.mxu0
      %v3260 = vadd.f32 %v3024, %v3259
      %v3261 = vpop.f32.mrf.mxu0
      %v3262 = vadd.f32 %v3026, %v3261
      %3263 = vmatmul.bf16.gmra.mxu0 %v173
      %v3264 = vpop.f32.mrf.mxu0
      %v3265 = vadd.f32 %v3029, %v3264
      %v3266 = vpop.f32.mrf.mxu0
      %v3267 = vadd.f32 %v3031, %v3266
      %3268 = vdwg.mxu0
      %3269 = vmatpush.bf16.msra.mxu0 %v3197
      %3270 = vmatpush.bf16.msra.mxu0 %v3193
      %3271 = vmatpush.bf16.msra.mxu0 %v3189
      %3272 = vmatpush.bf16.msra.mxu0 %v3185
      %3273 = vmatpush.bf16.msra.mxu0 %v3181
      %3274 = vmatpush.bf16.msra.mxu0 %v3177
      %3275 = vmatpush.bf16.msra.mxu0 %v3173
      %3276 = vmatpush.bf16.msra.mxu0 %v3169
      %3277 = vmatmul.bf16.gmra.mxu0 %v172
      %v3278 = vpop.f32.mrf.mxu0
      %v3279 = vadd.f32 %v3043, %v3278
      %v3280 = vpop.f32.mrf.mxu0
      %v3281 = vadd.f32 %v3045, %v3280
      %3282 = vmatmul.bf16.gmra.mxu0 %v173
      %v3283 = vpop.f32.mrf.mxu0
      %v3284 = vadd.f32 %v3048, %v3283
      %v3285 = vpop.f32.mrf.mxu0
      %v3286 = vadd.f32 %v3050, %v3285
      %3287 = vdwg.mxu0
      %3288 = vmatpush.bf16.msra.mxu0 %v3198
      %3289 = vmatpush.bf16.msra.mxu0 %v3194
      %3290 = vmatpush.bf16.msra.mxu0 %v3190
      %3291 = vmatpush.bf16.msra.mxu0 %v3186
      %3292 = vmatpush.bf16.msra.mxu0 %v3182
      %3293 = vmatpush.bf16.msra.mxu0 %v3178
      %3294 = vmatpush.bf16.msra.mxu0 %v3174
      %3295 = vmatpush.bf16.msra.mxu0 %v3170
      %3296 = vmatmul.bf16.gmra.mxu0 %v172
      %v3297 = vpop.f32.mrf.mxu0
      %v3298 = vadd.f32 %v3062, %v3297
      %v3299 = vpop.f32.mrf.mxu0
      %v3300 = vadd.f32 %v3064, %v3299
      %3301 = vmatmul.bf16.gmra.mxu0 %v173
      %v3302 = vpop.f32.mrf.mxu0
      %v3303 = vadd.f32 %v3067, %v3302
      %v3304 = vpop.f32.mrf.mxu0
      %v3305 = vadd.f32 %v3069, %v3304
      %3306 = vdwg.mxu0
      %s3307 = scalar_lea.vmem %s3, 12
      %v3308 = vld [vmem:[%s3307] sm:$0xf]
      %v3310 = vperm.slane %v3308, 0
      %v3311 = vperm.slane %v3308, 1
      %v3312 = vperm.slane %v3308, 2
      %v3313 = vperm.slane %v3308, 3
      %v3318 = vadd.f32 %v3241, %v3310
      %v3319 = vadd.f32 %v3260, %v3311
      %v3320 = vadd.f32 %v3279, %v3312
      %v3321 = vadd.f32 %v3298, %v3313
      %v3322 = vadd.f32 %v3243, %v3310
      %v3323 = vadd.f32 %v3262, %v3311
      %v3324 = vadd.f32 %v3281, %v3312
      %v3325 = vadd.f32 %v3300, %v3313
      %v3326 = vadd.f32 %v3246, %v3310
      %v3327 = vadd.f32 %v3265, %v3311
      %v3328 = vadd.f32 %v3284, %v3312
      %v3329 = vadd.f32 %v3303, %v3313
      %v3330 = vadd.f32 %v3248, %v3310
      %v3331 = vadd.f32 %v3267, %v3311
      %v3332 = vadd.f32 %v3286, %v3312
      %v3333 = vadd.f32 %v3305, %v3313
      %v3334 = vxor.u32 %v3318, 2147483648
      %v3335 = vxor.u32 %v3322, 2147483648
      %v3336 = vxor.u32 %v3326, 2147483648
      %v3337 = vxor.u32 %v3330, 2147483648
      %v3338 = vmul.f32 %v3334, 1.442695
      %v3339 = vpow.pop %v3338
      %v3340 = vmul.f32 %v3335, 1.442695
      %v3341 = vpow.pop %v3340
      %v3342 = vmul.f32 %v3336, 1.442695
      %v3343 = vpow.pop %v3342
      %v3344 = vmul.f32 %v3337, 1.442695
      %v3345 = vpow.pop %v3344
      %v3346 = vadd.f32 %v3339, 1.0
      %v3347 = vadd.f32 %v3341, 1.0
      %v3348 = vadd.f32 %v3343, 1.0
      %v3349 = vadd.f32 %v3345, 1.0
      %v3350 = vrcp.pop %v3346
      %v3351 = vmul.f32 %v3346, %v3350
      %v3352 = vsub.f32 1.0, %v3351
      %v3353 = vmul.f32 %v3350, %v3352
      %v3354 = vadd.f32 %v3350, %v3353
      %vm3355 = vweird.f32 %v3346
      %vm3356 = vweird.f32 %v3350
      %vm3357 = vmor %vm3355, %vm3356
      %v3358 = vsel %vm3357, %v3350, %v3354
      %v3359 = vand.u32 2147483647, %v3346
      %vm3360 = vcmp.eq.f32.partialorder %v3359, 8.507059e+37
      %v3361 = vand.u32 %v3346, 2147483648
      %v3362 = vor.u32 1.1754944e-38, %v3361
      %v3363 = vsel %vm3360, %v3362, %v3358
      %v3364 = vmul.f32 1.0, %v3363
      %v3365 = vrcp.pop %v3347
      %v3366 = vmul.f32 %v3347, %v3365
      %v3367 = vsub.f32 1.0, %v3366
      %v3368 = vmul.f32 %v3365, %v3367
      %v3369 = vadd.f32 %v3365, %v3368
      %vm3370 = vweird.f32 %v3347
      %vm3371 = vweird.f32 %v3365
      %vm3372 = vmor %vm3370, %vm3371
      %v3373 = vsel %vm3372, %v3365, %v3369
      %v3374 = vand.u32 2147483647, %v3347
      %vm3375 = vcmp.eq.f32.partialorder %v3374, 8.507059e+37
      %v3376 = vand.u32 %v3347, 2147483648
      %v3377 = vor.u32 1.1754944e-38, %v3376
      %v3378 = vsel %vm3375, %v3377, %v3373
      %v3379 = vmul.f32 1.0, %v3378
      %v3380 = vrcp.pop %v3348
      %v3381 = vmul.f32 %v3348, %v3380
      %v3382 = vsub.f32 1.0, %v3381
      %v3383 = vmul.f32 %v3380, %v3382
      %v3384 = vadd.f32 %v3380, %v3383
      %vm3385 = vweird.f32 %v3348
      %vm3386 = vweird.f32 %v3380
      %vm3387 = vmor %vm3385, %vm3386
      %v3388 = vsel %vm3387, %v3380, %v3384
      %v3389 = vand.u32 2147483647, %v3348
      %vm3390 = vcmp.eq.f32.partialorder %v3389, 8.507059e+37
      %v3391 = vand.u32 %v3348, 2147483648
      %v3392 = vor.u32 1.1754944e-38, %v3391
      %v3393 = vsel %vm3390, %v3392, %v3388
      %v3394 = vmul.f32 1.0, %v3393
      %v3395 = vrcp.pop %v3349
      %v3396 = vmul.f32 %v3349, %v3395
      %v3397 = vsub.f32 1.0, %v3396
      %v3398 = vmul.f32 %v3395, %v3397
      %v3399 = vadd.f32 %v3395, %v3398
      %vm3400 = vweird.f32 %v3349
      %vm3401 = vweird.f32 %v3395
      %vm3402 = vmor %vm3400, %vm3401
      %v3403 = vsel %vm3402, %v3395, %v3399
      %v3404 = vand.u32 2147483647, %v3349
      %vm3405 = vcmp.eq.f32.partialorder %v3404, 8.507059e+37
      %v3406 = vand.u32 %v3349, 2147483648
      %v3407 = vor.u32 1.1754944e-38, %v3406
      %v3408 = vsel %vm3405, %v3407, %v3403
      %v3409 = vmul.f32 1.0, %v3408
      %v3410 = vxor.u32 %v3319, 2147483648
      %v3411 = vxor.u32 %v3323, 2147483648
      %v3412 = vxor.u32 %v3327, 2147483648
      %v3413 = vxor.u32 %v3331, 2147483648
      %v3414 = vmul.f32 %v3410, 1.442695
      %v3415 = vpow.pop %v3414
      %v3416 = vmul.f32 %v3411, 1.442695
      %v3417 = vpow.pop %v3416
      %v3418 = vmul.f32 %v3412, 1.442695
      %v3419 = vpow.pop %v3418
      %v3420 = vmul.f32 %v3413, 1.442695
      %v3421 = vpow.pop %v3420
      %v3422 = vadd.f32 %v3415, 1.0
      %v3423 = vadd.f32 %v3417, 1.0
      %v3424 = vadd.f32 %v3419, 1.0
      %v3425 = vadd.f32 %v3421, 1.0
      %v3426 = vrcp.pop %v3422
      %v3427 = vmul.f32 %v3422, %v3426
      %v3428 = vsub.f32 1.0, %v3427
      %v3429 = vmul.f32 %v3426, %v3428
      %v3430 = vadd.f32 %v3426, %v3429
      %vm3431 = vweird.f32 %v3422
      %vm3432 = vweird.f32 %v3426
      %vm3433 = vmor %vm3431, %vm3432
      %v3434 = vsel %vm3433, %v3426, %v3430
      %v3435 = vand.u32 2147483647, %v3422
      %vm3436 = vcmp.eq.f32.partialorder %v3435, 8.507059e+37
      %v3437 = vand.u32 %v3422, 2147483648
      %v3438 = vor.u32 1.1754944e-38, %v3437
      %v3439 = vsel %vm3436, %v3438, %v3434
      %v3440 = vmul.f32 1.0, %v3439
      %v3441 = vrcp.pop %v3423
      %v3442 = vmul.f32 %v3423, %v3441
      %v3443 = vsub.f32 1.0, %v3442
      %v3444 = vmul.f32 %v3441, %v3443
      %v3445 = vadd.f32 %v3441, %v3444
      %vm3446 = vweird.f32 %v3423
      %vm3447 = vweird.f32 %v3441
      %vm3448 = vmor %vm3446, %vm3447
      %v3449 = vsel %vm3448, %v3441, %v3445
      %v3450 = vand.u32 2147483647, %v3423
      %vm3451 = vcmp.eq.f32.partialorder %v3450, 8.507059e+37
      %v3452 = vand.u32 %v3423, 2147483648
      %v3453 = vor.u32 1.1754944e-38, %v3452
      %v3454 = vsel %vm3451, %v3453, %v3449
      %v3455 = vmul.f32 1.0, %v3454
      %v3456 = vrcp.pop %v3424
      %v3457 = vmul.f32 %v3424, %v3456
      %v3458 = vsub.f32 1.0, %v3457
      %v3459 = vmul.f32 %v3456, %v3458
      %v3460 = vadd.f32 %v3456, %v3459
      %vm3461 = vweird.f32 %v3424
      %vm3462 = vweird.f32 %v3456
      %vm3463 = vmor %vm3461, %vm3462
      %v3464 = vsel %vm3463, %v3456, %v3460
      %v3465 = vand.u32 2147483647, %v3424
      %vm3466 = vcmp.eq.f32.partialorder %v3465, 8.507059e+37
      %v3467 = vand.u32 %v3424, 2147483648
      %v3468 = vor.u32 1.1754944e-38, %v3467
      %v3469 = vsel %vm3466, %v3468, %v3464
      %v3470 = vmul.f32 1.0, %v3469
      %v3471 = vrcp.pop %v3425
      %v3472 = vmul.f32 %v3425, %v3471
      %v3473 = vsub.f32 1.0, %v3472
      %v3474 = vmul.f32 %v3471, %v3473
      %v3475 = vadd.f32 %v3471, %v3474
      %vm3476 = vweird.f32 %v3425
      %vm3477 = vweird.f32 %v3471
      %vm3478 = vmor %vm3476, %vm3477
      %v3479 = vsel %vm3478, %v3471, %v3475
      %v3480 = vand.u32 2147483647, %v3425
      %vm3481 = vcmp.eq.f32.partialorder %v3480, 8.507059e+37
      %v3482 = vand.u32 %v3425, 2147483648
      %v3483 = vor.u32 1.1754944e-38, %v3482
      %v3484 = vsel %vm3481, %v3483, %v3479
      %v3485 = vmul.f32 1.0, %v3484
      %v3486 = vtanh.pop %v3320
      %v3487 = vtanh.pop %v3324
      %v3488 = vtanh.pop %v3328
      %v3489 = vtanh.pop %v3332
      %v3490 = vxor.u32 %v3321, 2147483648
      %v3491 = vxor.u32 %v3325, 2147483648
      %v3492 = vxor.u32 %v3329, 2147483648
      %v3493 = vxor.u32 %v3333, 2147483648
      %v3494 = vmul.f32 %v3490, 1.442695
      %v3495 = vpow.pop %v3494
      %v3496 = vmul.f32 %v3491, 1.442695
      %v3497 = vpow.pop %v3496
      %v3498 = vmul.f32 %v3492, 1.442695
      %v3499 = vpow.pop %v3498
      %v3500 = vmul.f32 %v3493, 1.442695
      %v3501 = vpow.pop %v3500
      %v3502 = vadd.f32 %v3495, 1.0
      %v3503 = vadd.f32 %v3497, 1.0
      %v3504 = vadd.f32 %v3499, 1.0
      %v3505 = vadd.f32 %v3501, 1.0
      %v3506 = vrcp.pop %v3502
      %v3507 = vmul.f32 %v3502, %v3506
      %v3508 = vsub.f32 1.0, %v3507
      %v3509 = vmul.f32 %v3506, %v3508
      %v3510 = vadd.f32 %v3506, %v3509
      %vm3511 = vweird.f32 %v3502
      %vm3512 = vweird.f32 %v3506
      %vm3513 = vmor %vm3511, %vm3512
      %v3514 = vsel %vm3513, %v3506, %v3510
      %v3515 = vand.u32 2147483647, %v3502
      %vm3516 = vcmp.eq.f32.partialorder %v3515, 8.507059e+37
      %v3517 = vand.u32 %v3502, 2147483648
      %v3518 = vor.u32 1.1754944e-38, %v3517
      %v3519 = vsel %vm3516, %v3518, %v3514
      %v3520 = vmul.f32 1.0, %v3519
      %v3521 = vrcp.pop %v3503
      %v3522 = vmul.f32 %v3503, %v3521
      %v3523 = vsub.f32 1.0, %v3522
      %v3524 = vmul.f32 %v3521, %v3523
      %v3525 = vadd.f32 %v3521, %v3524
      %vm3526 = vweird.f32 %v3503
      %vm3527 = vweird.f32 %v3521
      %vm3528 = vmor %vm3526, %vm3527
      %v3529 = vsel %vm3528, %v3521, %v3525
      %v3530 = vand.u32 2147483647, %v3503
      %vm3531 = vcmp.eq.f32.partialorder %v3530, 8.507059e+37
      %v3532 = vand.u32 %v3503, 2147483648
      %v3533 = vor.u32 1.1754944e-38, %v3532
      %v3534 = vsel %vm3531, %v3533, %v3529
      %v3535 = vmul.f32 1.0, %v3534
      %v3536 = vrcp.pop %v3504
      %v3537 = vmul.f32 %v3504, %v3536
      %v3538 = vsub.f32 1.0, %v3537
      %v3539 = vmul.f32 %v3536, %v3538
      %v3540 = vadd.f32 %v3536, %v3539
      %vm3541 = vweird.f32 %v3504
      %vm3542 = vweird.f32 %v3536
      %vm3543 = vmor %vm3541, %vm3542
      %v3544 = vsel %vm3543, %v3536, %v3540
      %v3545 = vand.u32 2147483647, %v3504
      %vm3546 = vcmp.eq.f32.partialorder %v3545, 8.507059e+37
      %v3547 = vand.u32 %v3504, 2147483648
      %v3548 = vor.u32 1.1754944e-38, %v3547
      %v3549 = vsel %vm3546, %v3548, %v3544
      %v3550 = vmul.f32 1.0, %v3549
      %v3551 = vrcp.pop %v3505
      %v3552 = vmul.f32 %v3505, %v3551
      %v3553 = vsub.f32 1.0, %v3552
      %v3554 = vmul.f32 %v3551, %v3553
      %v3555 = vadd.f32 %v3551, %v3554
      %vm3556 = vweird.f32 %v3505
      %vm3557 = vweird.f32 %v3551
      %vm3558 = vmor %vm3556, %vm3557
      %v3559 = vsel %vm3558, %v3551, %v3555
      %v3560 = vand.u32 2147483647, %v3505
      %vm3561 = vcmp.eq.f32.partialorder %v3560, 8.507059e+37
      %v3562 = vand.u32 %v3505, 2147483648
      %v3563 = vor.u32 1.1754944e-38, %v3562
      %v3564 = vsel %vm3561, %v3563, %v3559
      %v3565 = vmul.f32 1.0, %v3564
      %v3566 = vmul.f32 %v3440, %v2765
      %v3567 = vmul.f32 %v3455, %v2766
      %v3568 = vmul.f32 %v3470, %v2767
      %v3569 = vmul.f32 %v3485, %v2768
      %v3570 = vmul.f32 %v3364, %v3486
      %v3571 = vmul.f32 %v3379, %v3487
      %v3572 = vmul.f32 %v3394, %v3488
      %v3573 = vmul.f32 %v3409, %v3489
      %v3574 = vadd.f32 %v3566, %v3570
      %v3575 = vadd.f32 %v3567, %v3571
      %v3576 = vadd.f32 %v3568, %v3572
      %v3577 = vadd.f32 %v3569, %v3573
      %v3578 = vtanh.pop %v3574
      %v3579 = vtanh.pop %v3575
      %v3580 = vtanh.pop %v3576
      %v3581 = vtanh.pop %v3577
      %v3582 = vmul.f32 %v3520, %v3578
      %v3583 = vmul.f32 %v3535, %v3579
      %v3584 = vmul.f32 %v3550, %v3580
      %v3585 = vmul.f32 %v3565, %v3581
      %p3586 = scmp.ge.s32.totalorder %s2763, 0
      %p3587 = scmp.lt.s32.totalorder %s2763, 2
      %p3588 = pnand %p3586, %p3587
      %p3589 = pneg %p3588
      %s3590 = scalar_select %p3589, 1, 0
      %s3591 = scvt.s32.f32 %s3590
      %v3592 = vstv %s3591
      %v3593 = vmul.f32 %v3592, %v3582
      %v3594 = vmul.f32 %v3592, %v3583
      %v3595 = vmul.f32 %v3592, %v3584
      %v3596 = vmul.f32 %v3592, %v3585
      %s3597 = ssub.f32 1.0, %s3591
      %v3598 = vstv %s3597
      %v3599 = vmul.f32 %v3598, %v134
      %v3600 = vmul.f32 %v3598, %v135
      %v3601 = vmul.f32 %v3598, %v136
      %v3602 = vmul.f32 %v3598, %v137
      %v3603 = vadd.f32 %v3593, %v3599
      %v3604 = vadd.f32 %v3594, %v3600
      %v3605 = vadd.f32 %v3595, %v3601
      %v3606 = vadd.f32 %v3596, %v3602
      %v3607 = vmul.f32 %v3592, %v3574
      %v3608 = vmul.f32 %v3592, %v3575
      %v3609 = vmul.f32 %v3592, %v3576
      %v3610 = vmul.f32 %v3592, %v3577
      %v3611 = vmul.f32 %v3598, %v2765
      %v3612 = vmul.f32 %v3598, %v2766
      %v3613 = vmul.f32 %v3598, %v2767
      %v3614 = vmul.f32 %v3598, %v2768
      %v3615 = vadd.f32 %v3607, %v3611
      %v3616 = vadd.f32 %v3608, %v3612
      %v3617 = vadd.f32 %v3609, %v3613
      %v3618 = vadd.f32 %v3610, %v3614
      %s3619 = ssub.s32 %s105, 4
      %s3620 = scalar_lea.vmem [#allocation3], 128
      %v3621 = vld [vmem:[%s3620] sm:$0xff]
      %v3622 = vld [vmem:[%s3620 + $0x8] sm:$0xff]
      %v3623 = vld [vmem:[%s3620 + $0x10] sm:$0xff]
      %v3624 = vld [vmem:[%s3620 + $0x18] sm:$0xff]
      %s3625 = scalar_lea.vmem %s1, 1024
      %v3626 = vld [vmem:[%s3625] sm:$0xff]
      %v3627 = vld [vmem:[%s3625 + $0x8] sm:$0xff]
      %v3628 = vld [vmem:[%s3625 + $0x10] sm:$0xff]
      %v3629 = vld [vmem:[%s3625 + $0x18] sm:$0xff]
      %v3630 = vld [vmem:[%s3625 + $0x20] sm:$0xff]
      %v3631 = vld [vmem:[%s3625 + $0x28] sm:$0xff]
      %v3632 = vld [vmem:[%s3625 + $0x30] sm:$0xff]
      %v3633 = vld [vmem:[%s3625 + $0x38] sm:$0xff]
      %v3634 = vld [vmem:[%s3625 + $0x40] sm:$0xff]
      %v3635 = vld [vmem:[%s3625 + $0x48] sm:$0xff]
      %v3636 = vld [vmem:[%s3625 + $0x50] sm:$0xff]
      %v3637 = vld [vmem:[%s3625 + $0x58] sm:$0xff]
      %v3638 = vld [vmem:[%s3625 + $0x60] sm:$0xff]
      %v3639 = vld [vmem:[%s3625 + $0x68] sm:$0xff]
      %v3640 = vld [vmem:[%s3625 + $0x70] sm:$0xff]
      %v3641 = vld [vmem:[%s3625 + $0x78] sm:$0xff]
      %v3642 = vld [vmem:[%s3625 + $0x80] sm:$0xff]
      %v3643 = vld [vmem:[%s3625 + $0x88] sm:$0xff]
      %v3644 = vld [vmem:[%s3625 + $0x90] sm:$0xff]
      %v3645 = vld [vmem:[%s3625 + $0x98] sm:$0xff]
      %v3646 = vld [vmem:[%s3625 + $0xa0] sm:$0xff]
      %v3647 = vld [vmem:[%s3625 + $0xa8] sm:$0xff]
      %v3648 = vld [vmem:[%s3625 + $0xb0] sm:$0xff]
      %v3649 = vld [vmem:[%s3625 + $0xb8] sm:$0xff]
      %v3650 = vld [vmem:[%s3625 + $0xc0] sm:$0xff]
      %v3651 = vld [vmem:[%s3625 + $0xc8] sm:$0xff]
      %v3652 = vld [vmem:[%s3625 + $0xd0] sm:$0xff]
      %v3653 = vld [vmem:[%s3625 + $0xd8] sm:$0xff]
      %v3654 = vld [vmem:[%s3625 + $0xe0] sm:$0xff]
      %v3655 = vld [vmem:[%s3625 + $0xe8] sm:$0xff]
      %v3656 = vld [vmem:[%s3625 + $0xf0] sm:$0xff]
      %v3657 = vld [vmem:[%s3625 + $0xf8] sm:$0xff]
      %s3658 = scalar_lea.vmem %s2, 1024
      %v3659 = vld [vmem:[%s3658] sm:$0xff]
      %v3660 = vld [vmem:[%s3658 + $0x8] sm:$0xff]
      %v3661 = vld [vmem:[%s3658 + $0x10] sm:$0xff]
      %v3662 = vld [vmem:[%s3658 + $0x18] sm:$0xff]
      %v3663 = vld [vmem:[%s3658 + $0x20] sm:$0xff]
      %v3664 = vld [vmem:[%s3658 + $0x28] sm:$0xff]
      %v3665 = vld [vmem:[%s3658 + $0x30] sm:$0xff]
      %v3666 = vld [vmem:[%s3658 + $0x38] sm:$0xff]
      %v3667 = vld [vmem:[%s3658 + $0x40] sm:$0xff]
      %v3668 = vld [vmem:[%s3658 + $0x48] sm:$0xff]
      %v3669 = vld [vmem:[%s3658 + $0x50] sm:$0xff]
      %v3670 = vld [vmem:[%s3658 + $0x58] sm:$0xff]
      %v3671 = vld [vmem:[%s3658 + $0x60] sm:$0xff]
      %v3672 = vld [vmem:[%s3658 + $0x68] sm:$0xff]
      %v3673 = vld [vmem:[%s3658 + $0x70] sm:$0xff]
      %v3674 = vld [vmem:[%s3658 + $0x78] sm:$0xff]
      %v3675 = vld [vmem:[%s3658 + $0x80] sm:$0xff]
      %v3676 = vld [vmem:[%s3658 + $0x88] sm:$0xff]
      %v3677 = vld [vmem:[%s3658 + $0x90] sm:$0xff]
      %v3678 = vld [vmem:[%s3658 + $0x98] sm:$0xff]
      %v3679 = vld [vmem:[%s3658 + $0xa0] sm:$0xff]
      %v3680 = vld [vmem:[%s3658 + $0xa8] sm:$0xff]
      %v3681 = vld [vmem:[%s3658 + $0xb0] sm:$0xff]
      %v3682 = vld [vmem:[%s3658 + $0xb8] sm:$0xff]
      %v3683 = vld [vmem:[%s3658 + $0xc0] sm:$0xff]
      %v3684 = vld [vmem:[%s3658 + $0xc8] sm:$0xff]
      %v3685 = vld [vmem:[%s3658 + $0xd0] sm:$0xff]
      %v3686 = vld [vmem:[%s3658 + $0xd8] sm:$0xff]
      %v3687 = vld [vmem:[%s3658 + $0xe0] sm:$0xff]
      %v3688 = vld [vmem:[%s3658 + $0xe8] sm:$0xff]
      %v3689 = vld [vmem:[%s3658 + $0xf0] sm:$0xff]
      %v3690 = vld [vmem:[%s3658 + $0xf8] sm:$0xff]
      %v3723 = vunpack.c.l.b16 %v3659
      %v3724 = vunpack.c.h.b16 %v3659
      %v3725 = vunpack.c.l.b16 %v3660
      %v3726 = vunpack.c.h.b16 %v3660
      %v3727 = vunpack.c.l.b16 %v3661
      %v3728 = vunpack.c.h.b16 %v3661
      %v3729 = vunpack.c.l.b16 %v3662
      %v3730 = vunpack.c.h.b16 %v3662
      %v3731 = vunpack.c.l.b16 %v3663
      %v3732 = vunpack.c.h.b16 %v3663
      %v3733 = vunpack.c.l.b16 %v3664
      %v3734 = vunpack.c.h.b16 %v3664
      %v3735 = vunpack.c.l.b16 %v3665
      %v3736 = vunpack.c.h.b16 %v3665
      %v3737 = vunpack.c.l.b16 %v3666
      %v3738 = vunpack.c.h.b16 %v3666
      %v3739 = vunpack.c.l.b16 %v3667
      %v3740 = vunpack.c.h.b16 %v3667
      %v3741 = vunpack.c.l.b16 %v3668
      %v3742 = vunpack.c.h.b16 %v3668
      %v3743 = vunpack.c.l.b16 %v3669
      %v3744 = vunpack.c.h.b16 %v3669
      %v3745 = vunpack.c.l.b16 %v3670
      %v3746 = vunpack.c.h.b16 %v3670
      %v3747 = vunpack.c.l.b16 %v3671
      %v3748 = vunpack.c.h.b16 %v3671
      %v3749 = vunpack.c.l.b16 %v3672
      %v3750 = vunpack.c.h.b16 %v3672
      %v3751 = vunpack.c.l.b16 %v3673
      %v3752 = vunpack.c.h.b16 %v3673
      %v3753 = vunpack.c.l.b16 %v3674
      %v3754 = vunpack.c.h.b16 %v3674
      %v3755 = vunpack.c.l.b16 %v3675
      %v3756 = vunpack.c.h.b16 %v3675
      %v3757 = vunpack.c.l.b16 %v3676
      %v3758 = vunpack.c.h.b16 %v3676
      %v3759 = vunpack.c.l.b16 %v3677
      %v3760 = vunpack.c.h.b16 %v3677
      %v3761 = vunpack.c.l.b16 %v3678
      %v3762 = vunpack.c.h.b16 %v3678
      %v3763 = vunpack.c.l.b16 %v3679
      %v3764 = vunpack.c.h.b16 %v3679
      %v3765 = vunpack.c.l.b16 %v3680
      %v3766 = vunpack.c.h.b16 %v3680
      %v3767 = vunpack.c.l.b16 %v3681
      %v3768 = vunpack.c.h.b16 %v3681
      %v3769 = vunpack.c.l.b16 %v3682
      %v3770 = vunpack.c.h.b16 %v3682
      %v3771 = vunpack.c.l.b16 %v3683
      %v3772 = vunpack.c.h.b16 %v3683
      %v3773 = vunpack.c.l.b16 %v3684
      %v3774 = vunpack.c.h.b16 %v3684
      %v3775 = vunpack.c.l.b16 %v3685
      %v3776 = vunpack.c.h.b16 %v3685
      %v3777 = vunpack.c.l.b16 %v3686
      %v3778 = vunpack.c.h.b16 %v3686
      %v3779 = vunpack.c.l.b16 %v3687
      %v3780 = vunpack.c.h.b16 %v3687
      %v3781 = vunpack.c.l.b16 %v3688
      %v3782 = vunpack.c.h.b16 %v3688
      %v3783 = vunpack.c.l.b16 %v3689
      %v3784 = vunpack.c.h.b16 %v3689
      %v3785 = vunpack.c.l.b16 %v3690
      %v3786 = vunpack.c.h.b16 %v3690
      %v3787 = vpack.c.b16 %v3727, %v3723
      %v3788 = vpack.c.b16 %v3728, %v3724
      %v3789 = vpack.c.b16 %v3729, %v3725
      %v3790 = vpack.c.b16 %v3730, %v3726
      %v3791 = vpack.c.b16 %v3735, %v3731
      %v3792 = vpack.c.b16 %v3736, %v3732
      %v3793 = vpack.c.b16 %v3737, %v3733
      %v3794 = vpack.c.b16 %v3738, %v3734
      %v3795 = vpack.c.b16 %v3743, %v3739
      %v3796 = vpack.c.b16 %v3744, %v3740
      %v3797 = vpack.c.b16 %v3745, %v3741
      %v3798 = vpack.c.b16 %v3746, %v3742
      %v3799 = vpack.c.b16 %v3751, %v3747
      %v3800 = vpack.c.b16 %v3752, %v3748
      %v3801 = vpack.c.b16 %v3753, %v3749
      %v3802 = vpack.c.b16 %v3754, %v3750
      %v3803 = vpack.c.b16 %v3759, %v3755
      %v3804 = vpack.c.b16 %v3760, %v3756
      %v3805 = vpack.c.b16 %v3761, %v3757
      %v3806 = vpack.c.b16 %v3762, %v3758
      %v3807 = vpack.c.b16 %v3767, %v3763
      %v3808 = vpack.c.b16 %v3768, %v3764
      %v3809 = vpack.c.b16 %v3769, %v3765
      %v3810 = vpack.c.b16 %v3770, %v3766
      %v3811 = vpack.c.b16 %v3775, %v3771
      %v3812 = vpack.c.b16 %v3776, %v3772
      %v3813 = vpack.c.b16 %v3777, %v3773
      %v3814 = vpack.c.b16 %v3778, %v3774
      %v3815 = vpack.c.b16 %v3783, %v3779
      %v3816 = vpack.c.b16 %v3784, %v3780
      %v3817 = vpack.c.b16 %v3785, %v3781
      %v3818 = vpack.c.b16 %v3786, %v3782
      %3851 = vmatpush.bf16.msra.mxu0 %v3815
      %3852 = vmatpush.bf16.msra.mxu0 %v3811
      %3853 = vmatpush.bf16.msra.mxu0 %v3807
      %3854 = vmatpush.bf16.msra.mxu0 %v3803
      %3855 = vmatpush.bf16.msra.mxu0 %v3799
      %3856 = vmatpush.bf16.msra.mxu0 %v3795
      %3857 = vmatpush.bf16.msra.mxu0 %v3791
      %3858 = vmatpush.bf16.msra.mxu0 %v3787
      %3859 = vmatmul.bf16.gmra.mxu0 %v176
      %v3860 = vpop.f32.mrf.mxu0
      %v3861 = vadd.f32 0.0, %v3860
      %v3862 = vpop.f32.mrf.mxu0
      %v3863 = vadd.f32 0.0, %v3862
      %3864 = vmatmul.bf16.gmra.mxu0 %v177
      %v3865 = vpop.f32.mrf.mxu0
      %v3866 = vadd.f32 0.0, %v3865
      %v3867 = vpop.f32.mrf.mxu0
      %v3868 = vadd.f32 0.0, %v3867
      %3869 = vdwg.mxu0
      %3870 = vmatpush.bf16.msra.mxu0 %v3816
      %3871 = vmatpush.bf16.msra.mxu0 %v3812
      %3872 = vmatpush.bf16.msra.mxu0 %v3808
      %3873 = vmatpush.bf16.msra.mxu0 %v3804
      %3874 = vmatpush.bf16.msra.mxu0 %v3800
      %3875 = vmatpush.bf16.msra.mxu0 %v3796
      %3876 = vmatpush.bf16.msra.mxu0 %v3792
      %3877 = vmatpush.bf16.msra.mxu0 %v3788
      %3878 = vmatmul.bf16.gmra.mxu0 %v176
      %v3879 = vpop.f32.mrf.mxu0
      %v3880 = vadd.f32 0.0, %v3879
      %v3881 = vpop.f32.mrf.mxu0
      %v3882 = vadd.f32 0.0, %v3881
      %3883 = vmatmul.bf16.gmra.mxu0 %v177
      %v3884 = vpop.f32.mrf.mxu0
      %v3885 = vadd.f32 0.0, %v3884
      %v3886 = vpop.f32.mrf.mxu0
      %v3887 = vadd.f32 0.0, %v3886
      %3888 = vdwg.mxu0
      %3889 = vmatpush.bf16.msra.mxu0 %v3817
      %3890 = vmatpush.bf16.msra.mxu0 %v3813
      %3891 = vmatpush.bf16.msra.mxu0 %v3809
      %3892 = vmatpush.bf16.msra.mxu0 %v3805
      %3893 = vmatpush.bf16.msra.mxu0 %v3801
      %3894 = vmatpush.bf16.msra.mxu0 %v3797
      %3895 = vmatpush.bf16.msra.mxu0 %v3793
      %3896 = vmatpush.bf16.msra.mxu0 %v3789
      %3897 = vmatmul.bf16.gmra.mxu0 %v176
      %v3898 = vpop.f32.mrf.mxu0
      %v3899 = vadd.f32 0.0, %v3898
      %v3900 = vpop.f32.mrf.mxu0
      %v3901 = vadd.f32 0.0, %v3900
      %3902 = vmatmul.bf16.gmra.mxu0 %v177
      %v3903 = vpop.f32.mrf.mxu0
      %v3904 = vadd.f32 0.0, %v3903
      %v3905 = vpop.f32.mrf.mxu0
      %v3906 = vadd.f32 0.0, %v3905
      %3907 = vdwg.mxu0
      %3908 = vmatpush.bf16.msra.mxu0 %v3818
      %3909 = vmatpush.bf16.msra.mxu0 %v3814
      %3910 = vmatpush.bf16.msra.mxu0 %v3810
      %3911 = vmatpush.bf16.msra.mxu0 %v3806
      %3912 = vmatpush.bf16.msra.mxu0 %v3802
      %3913 = vmatpush.bf16.msra.mxu0 %v3798
      %3914 = vmatpush.bf16.msra.mxu0 %v3794
      %3915 = vmatpush.bf16.msra.mxu0 %v3790
      %3916 = vmatmul.bf16.gmra.mxu0 %v176
      %v3917 = vpop.f32.mrf.mxu0
      %v3918 = vadd.f32 0.0, %v3917
      %v3919 = vpop.f32.mrf.mxu0
      %v3920 = vadd.f32 0.0, %v3919
      %3921 = vmatmul.bf16.gmra.mxu0 %v177
      %v3922 = vpop.f32.mrf.mxu0
      %v3923 = vadd.f32 0.0, %v3922
      %v3924 = vpop.f32.mrf.mxu0
      %v3925 = vadd.f32 0.0, %v3924
      %3926 = vdwg.mxu0
      %v3959 = vunpack.c.l.b16 %v3626
      %v3960 = vunpack.c.h.b16 %v3626
      %v3961 = vunpack.c.l.b16 %v3627
      %v3962 = vunpack.c.h.b16 %v3627
      %v3963 = vunpack.c.l.b16 %v3628
      %v3964 = vunpack.c.h.b16 %v3628
      %v3965 = vunpack.c.l.b16 %v3629
      %v3966 = vunpack.c.h.b16 %v3629
      %v3967 = vunpack.c.l.b16 %v3630
      %v3968 = vunpack.c.h.b16 %v3630
      %v3969 = vunpack.c.l.b16 %v3631
      %v3970 = vunpack.c.h.b16 %v3631
      %v3971 = vunpack.c.l.b16 %v3632
      %v3972 = vunpack.c.h.b16 %v3632
      %v3973 = vunpack.c.l.b16 %v3633
      %v3974 = vunpack.c.h.b16 %v3633
      %v3975 = vunpack.c.l.b16 %v3634
      %v3976 = vunpack.c.h.b16 %v3634
      %v3977 = vunpack.c.l.b16 %v3635
      %v3978 = vunpack.c.h.b16 %v3635
      %v3979 = vunpack.c.l.b16 %v3636
      %v3980 = vunpack.c.h.b16 %v3636
      %v3981 = vunpack.c.l.b16 %v3637
      %v3982 = vunpack.c.h.b16 %v3637
      %v3983 = vunpack.c.l.b16 %v3638
      %v3984 = vunpack.c.h.b16 %v3638
      %v3985 = vunpack.c.l.b16 %v3639
      %v3986 = vunpack.c.h.b16 %v3639
      %v3987 = vunpack.c.l.b16 %v3640
      %v3988 = vunpack.c.h.b16 %v3640
      %v3989 = vunpack.c.l.b16 %v3641
      %v3990 = vunpack.c.h.b16 %v3641
      %v3991 = vunpack.c.l.b16 %v3642
      %v3992 = vunpack.c.h.b16 %v3642
      %v3993 = vunpack.c.l.b16 %v3643
      %v3994 = vunpack.c.h.b16 %v3643
      %v3995 = vunpack.c.l.b16 %v3644
      %v3996 = vunpack.c.h.b16 %v3644
      %v3997 = vunpack.c.l.b16 %v3645
      %v3998 = vunpack.c.h.b16 %v3645
      %v3999 = vunpack.c.l.b16 %v3646
      %v4000 = vunpack.c.h.b16 %v3646
      %v4001 = vunpack.c.l.b16 %v3647
      %v4002 = vunpack.c.h.b16 %v3647
      %v4003 = vunpack.c.l.b16 %v3648
      %v4004 = vunpack.c.h.b16 %v3648
      %v4005 = vunpack.c.l.b16 %v3649
      %v4006 = vunpack.c.h.b16 %v3649
      %v4007 = vunpack.c.l.b16 %v3650
      %v4008 = vunpack.c.h.b16 %v3650
      %v4009 = vunpack.c.l.b16 %v3651
      %v4010 = vunpack.c.h.b16 %v3651
      %v4011 = vunpack.c.l.b16 %v3652
      %v4012 = vunpack.c.h.b16 %v3652
      %v4013 = vunpack.c.l.b16 %v3653
      %v4014 = vunpack.c.h.b16 %v3653
      %v4015 = vunpack.c.l.b16 %v3654
      %v4016 = vunpack.c.h.b16 %v3654
      %v4017 = vunpack.c.l.b16 %v3655
      %v4018 = vunpack.c.h.b16 %v3655
      %v4019 = vunpack.c.l.b16 %v3656
      %v4020 = vunpack.c.h.b16 %v3656
      %v4021 = vunpack.c.l.b16 %v3657
      %v4022 = vunpack.c.h.b16 %v3657
      %v4023 = vpack.c.b16 %v3963, %v3959
      %v4024 = vpack.c.b16 %v3964, %v3960
      %v4025 = vpack.c.b16 %v3965, %v3961
      %v4026 = vpack.c.b16 %v3966, %v3962
      %v4027 = vpack.c.b16 %v3971, %v3967
      %v4028 = vpack.c.b16 %v3972, %v3968
      %v4029 = vpack.c.b16 %v3973, %v3969
      %v4030 = vpack.c.b16 %v3974, %v3970
      %v4031 = vpack.c.b16 %v3979, %v3975
      %v4032 = vpack.c.b16 %v3980, %v3976
      %v4033 = vpack.c.b16 %v3981, %v3977
      %v4034 = vpack.c.b16 %v3982, %v3978
      %v4035 = vpack.c.b16 %v3987, %v3983
      %v4036 = vpack.c.b16 %v3988, %v3984
      %v4037 = vpack.c.b16 %v3989, %v3985
      %v4038 = vpack.c.b16 %v3990, %v3986
      %v4039 = vpack.c.b16 %v3995, %v3991
      %v4040 = vpack.c.b16 %v3996, %v3992
      %v4041 = vpack.c.b16 %v3997, %v3993
      %v4042 = vpack.c.b16 %v3998, %v3994
      %v4043 = vpack.c.b16 %v4003, %v3999
      %v4044 = vpack.c.b16 %v4004, %v4000
      %v4045 = vpack.c.b16 %v4005, %v4001
      %v4046 = vpack.c.b16 %v4006, %v4002
      %v4047 = vpack.c.b16 %v4011, %v4007
      %v4048 = vpack.c.b16 %v4012, %v4008
      %v4049 = vpack.c.b16 %v4013, %v4009
      %v4050 = vpack.c.b16 %v4014, %v4010
      %v4051 = vpack.c.b16 %v4019, %v4015
      %v4052 = vpack.c.b16 %v4020, %v4016
      %v4053 = vpack.c.b16 %v4021, %v4017
      %v4054 = vpack.c.b16 %v4022, %v4018
      %4087 = vmatpush.bf16.msra.mxu0 %v4051
      %4088 = vmatpush.bf16.msra.mxu0 %v4047
      %4089 = vmatpush.bf16.msra.mxu0 %v4043
      %4090 = vmatpush.bf16.msra.mxu0 %v4039
      %4091 = vmatpush.bf16.msra.mxu0 %v4035
      %4092 = vmatpush.bf16.msra.mxu0 %v4031
      %4093 = vmatpush.bf16.msra.mxu0 %v4027
      %4094 = vmatpush.bf16.msra.mxu0 %v4023
      %4095 = vmatmul.bf16.gmra.mxu0 %v174
      %v4096 = vpop.f32.mrf.mxu0
      %v4097 = vadd.f32 %v3861, %v4096
      %v4098 = vpop.f32.mrf.mxu0
      %v4099 = vadd.f32 %v3863, %v4098
      %4100 = vmatmul.bf16.gmra.mxu0 %v175
      %v4101 = vpop.f32.mrf.mxu0
      %v4102 = vadd.f32 %v3866, %v4101
      %v4103 = vpop.f32.mrf.mxu0
      %v4104 = vadd.f32 %v3868, %v4103
      %4105 = vdwg.mxu0
      %4106 = vmatpush.bf16.msra.mxu0 %v4052
      %4107 = vmatpush.bf16.msra.mxu0 %v4048
      %4108 = vmatpush.bf16.msra.mxu0 %v4044
      %4109 = vmatpush.bf16.msra.mxu0 %v4040
      %4110 = vmatpush.bf16.msra.mxu0 %v4036
      %4111 = vmatpush.bf16.msra.mxu0 %v4032
      %4112 = vmatpush.bf16.msra.mxu0 %v4028
      %4113 = vmatpush.bf16.msra.mxu0 %v4024
      %4114 = vmatmul.bf16.gmra.mxu0 %v174
      %v4115 = vpop.f32.mrf.mxu0
      %v4116 = vadd.f32 %v3880, %v4115
      %v4117 = vpop.f32.mrf.mxu0
      %v4118 = vadd.f32 %v3882, %v4117
      %4119 = vmatmul.bf16.gmra.mxu0 %v175
      %v4120 = vpop.f32.mrf.mxu0
      %v4121 = vadd.f32 %v3885, %v4120
      %v4122 = vpop.f32.mrf.mxu0
      %v4123 = vadd.f32 %v3887, %v4122
      %4124 = vdwg.mxu0
      %4125 = vmatpush.bf16.msra.mxu0 %v4053
      %4126 = vmatpush.bf16.msra.mxu0 %v4049
      %4127 = vmatpush.bf16.msra.mxu0 %v4045
      %4128 = vmatpush.bf16.msra.mxu0 %v4041
      %4129 = vmatpush.bf16.msra.mxu0 %v4037
      %4130 = vmatpush.bf16.msra.mxu0 %v4033
      %4131 = vmatpush.bf16.msra.mxu0 %v4029
      %4132 = vmatpush.bf16.msra.mxu0 %v4025
      %4133 = vmatmul.bf16.gmra.mxu0 %v174
      %v4134 = vpop.f32.mrf.mxu0
      %v4135 = vadd.f32 %v3899, %v4134
      %v4136 = vpop.f32.mrf.mxu0
      %v4137 = vadd.f32 %v3901, %v4136
      %4138 = vmatmul.bf16.gmra.mxu0 %v175
      %v4139 = vpop.f32.mrf.mxu0
      %v4140 = vadd.f32 %v3904, %v4139
      %v4141 = vpop.f32.mrf.mxu0
      %v4142 = vadd.f32 %v3906, %v4141
      %4143 = vdwg.mxu0
      %4144 = vmatpush.bf16.msra.mxu0 %v4054
      %4145 = vmatpush.bf16.msra.mxu0 %v4050
      %4146 = vmatpush.bf16.msra.mxu0 %v4046
      %4147 = vmatpush.bf16.msra.mxu0 %v4042
      %4148 = vmatpush.bf16.msra.mxu0 %v4038
      %4149 = vmatpush.bf16.msra.mxu0 %v4034
      %4150 = vmatpush.bf16.msra.mxu0 %v4030
      %4151 = vmatpush.bf16.msra.mxu0 %v4026
      %4152 = vmatmul.bf16.gmra.mxu0 %v174
      %v4153 = vpop.f32.mrf.mxu0
      %v4154 = vadd.f32 %v3918, %v4153
      %v4155 = vpop.f32.mrf.mxu0
      %v4156 = vadd.f32 %v3920, %v4155
      %4157 = vmatmul.bf16.gmra.mxu0 %v175
      %v4158 = vpop.f32.mrf.mxu0
      %v4159 = vadd.f32 %v3923, %v4158
      %v4160 = vpop.f32.mrf.mxu0
      %v4161 = vadd.f32 %v3925, %v4160
      %4162 = vdwg.mxu0
      %s4163 = scalar_lea.vmem %s3, 16
      %v4164 = vld [vmem:[%s4163] sm:$0xf]
      %v4166 = vperm.slane %v4164, 0
      %v4167 = vperm.slane %v4164, 1
      %v4168 = vperm.slane %v4164, 2
      %v4169 = vperm.slane %v4164, 3
      %v4174 = vadd.f32 %v4097, %v4166
      %v4175 = vadd.f32 %v4116, %v4167
      %v4176 = vadd.f32 %v4135, %v4168
      %v4177 = vadd.f32 %v4154, %v4169
      %v4178 = vadd.f32 %v4099, %v4166
      %v4179 = vadd.f32 %v4118, %v4167
      %v4180 = vadd.f32 %v4137, %v4168
      %v4181 = vadd.f32 %v4156, %v4169
      %v4182 = vadd.f32 %v4102, %v4166
      %v4183 = vadd.f32 %v4121, %v4167
      %v4184 = vadd.f32 %v4140, %v4168
      %v4185 = vadd.f32 %v4159, %v4169
      %v4186 = vadd.f32 %v4104, %v4166
      %v4187 = vadd.f32 %v4123, %v4167
      %v4188 = vadd.f32 %v4142, %v4168
      %v4189 = vadd.f32 %v4161, %v4169
      %v4190 = vxor.u32 %v4174, 2147483648
      %v4191 = vxor.u32 %v4178, 2147483648
      %v4192 = vxor.u32 %v4182, 2147483648
      %v4193 = vxor.u32 %v4186, 2147483648
      %v4194 = vmul.f32 %v4190, 1.442695
      %v4195 = vpow.pop %v4194
      %v4196 = vmul.f32 %v4191, 1.442695
      %v4197 = vpow.pop %v4196
      %v4198 = vmul.f32 %v4192, 1.442695
      %v4199 = vpow.pop %v4198
      %v4200 = vmul.f32 %v4193, 1.442695
      %v4201 = vpow.pop %v4200
      %v4202 = vadd.f32 %v4195, 1.0
      %v4203 = vadd.f32 %v4197, 1.0
      %v4204 = vadd.f32 %v4199, 1.0
      %v4205 = vadd.f32 %v4201, 1.0
      %v4206 = vrcp.pop %v4202
      %v4207 = vmul.f32 %v4202, %v4206
      %v4208 = vsub.f32 1.0, %v4207
      %v4209 = vmul.f32 %v4206, %v4208
      %v4210 = vadd.f32 %v4206, %v4209
      %vm4211 = vweird.f32 %v4202
      %vm4212 = vweird.f32 %v4206
      %vm4213 = vmor %vm4211, %vm4212
      %v4214 = vsel %vm4213, %v4206, %v4210
      %v4215 = vand.u32 2147483647, %v4202
      %vm4216 = vcmp.eq.f32.partialorder %v4215, 8.507059e+37
      %v4217 = vand.u32 %v4202, 2147483648
      %v4218 = vor.u32 1.1754944e-38, %v4217
      %v4219 = vsel %vm4216, %v4218, %v4214
      %v4220 = vmul.f32 1.0, %v4219
      %v4221 = vrcp.pop %v4203
      %v4222 = vmul.f32 %v4203, %v4221
      %v4223 = vsub.f32 1.0, %v4222
      %v4224 = vmul.f32 %v4221, %v4223
      %v4225 = vadd.f32 %v4221, %v4224
      %vm4226 = vweird.f32 %v4203
      %vm4227 = vweird.f32 %v4221
      %vm4228 = vmor %vm4226, %vm4227
      %v4229 = vsel %vm4228, %v4221, %v4225
      %v4230 = vand.u32 2147483647, %v4203
      %vm4231 = vcmp.eq.f32.partialorder %v4230, 8.507059e+37
      %v4232 = vand.u32 %v4203, 2147483648
      %v4233 = vor.u32 1.1754944e-38, %v4232
      %v4234 = vsel %vm4231, %v4233, %v4229
      %v4235 = vmul.f32 1.0, %v4234
      %v4236 = vrcp.pop %v4204
      %v4237 = vmul.f32 %v4204, %v4236
      %v4238 = vsub.f32 1.0, %v4237
      %v4239 = vmul.f32 %v4236, %v4238
      %v4240 = vadd.f32 %v4236, %v4239
      %vm4241 = vweird.f32 %v4204
      %vm4242 = vweird.f32 %v4236
      %vm4243 = vmor %vm4241, %vm4242
      %v4244 = vsel %vm4243, %v4236, %v4240
      %v4245 = vand.u32 2147483647, %v4204
      %vm4246 = vcmp.eq.f32.partialorder %v4245, 8.507059e+37
      %v4247 = vand.u32 %v4204, 2147483648
      %v4248 = vor.u32 1.1754944e-38, %v4247
      %v4249 = vsel %vm4246, %v4248, %v4244
      %v4250 = vmul.f32 1.0, %v4249
      %v4251 = vrcp.pop %v4205
      %v4252 = vmul.f32 %v4205, %v4251
      %v4253 = vsub.f32 1.0, %v4252
      %v4254 = vmul.f32 %v4251, %v4253
      %v4255 = vadd.f32 %v4251, %v4254
      %vm4256 = vweird.f32 %v4205
      %vm4257 = vweird.f32 %v4251
      %vm4258 = vmor %vm4256, %vm4257
      %v4259 = vsel %vm4258, %v4251, %v4255
      %v4260 = vand.u32 2147483647, %v4205
      %vm4261 = vcmp.eq.f32.partialorder %v4260, 8.507059e+37
      %v4262 = vand.u32 %v4205, 2147483648
      %v4263 = vor.u32 1.1754944e-38, %v4262
      %v4264 = vsel %vm4261, %v4263, %v4259
      %v4265 = vmul.f32 1.0, %v4264
      %v4266 = vxor.u32 %v4175, 2147483648
      %v4267 = vxor.u32 %v4179, 2147483648
      %v4268 = vxor.u32 %v4183, 2147483648
      %v4269 = vxor.u32 %v4187, 2147483648
      %v4270 = vmul.f32 %v4266, 1.442695
      %v4271 = vpow.pop %v4270
      %v4272 = vmul.f32 %v4267, 1.442695
      %v4273 = vpow.pop %v4272
      %v4274 = vmul.f32 %v4268, 1.442695
      %v4275 = vpow.pop %v4274
      %v4276 = vmul.f32 %v4269, 1.442695
      %v4277 = vpow.pop %v4276
      %v4278 = vadd.f32 %v4271, 1.0
      %v4279 = vadd.f32 %v4273, 1.0
      %v4280 = vadd.f32 %v4275, 1.0
      %v4281 = vadd.f32 %v4277, 1.0
      %v4282 = vrcp.pop %v4278
      %v4283 = vmul.f32 %v4278, %v4282
      %v4284 = vsub.f32 1.0, %v4283
      %v4285 = vmul.f32 %v4282, %v4284
      %v4286 = vadd.f32 %v4282, %v4285
      %vm4287 = vweird.f32 %v4278
      %vm4288 = vweird.f32 %v4282
      %vm4289 = vmor %vm4287, %vm4288
      %v4290 = vsel %vm4289, %v4282, %v4286
      %v4291 = vand.u32 2147483647, %v4278
      %vm4292 = vcmp.eq.f32.partialorder %v4291, 8.507059e+37
      %v4293 = vand.u32 %v4278, 2147483648
      %v4294 = vor.u32 1.1754944e-38, %v4293
      %v4295 = vsel %vm4292, %v4294, %v4290
      %v4296 = vmul.f32 1.0, %v4295
      %v4297 = vrcp.pop %v4279
      %v4298 = vmul.f32 %v4279, %v4297
      %v4299 = vsub.f32 1.0, %v4298
      %v4300 = vmul.f32 %v4297, %v4299
      %v4301 = vadd.f32 %v4297, %v4300
      %vm4302 = vweird.f32 %v4279
      %vm4303 = vweird.f32 %v4297
      %vm4304 = vmor %vm4302, %vm4303
      %v4305 = vsel %vm4304, %v4297, %v4301
      %v4306 = vand.u32 2147483647, %v4279
      %vm4307 = vcmp.eq.f32.partialorder %v4306, 8.507059e+37
      %v4308 = vand.u32 %v4279, 2147483648
      %v4309 = vor.u32 1.1754944e-38, %v4308
      %v4310 = vsel %vm4307, %v4309, %v4305
      %v4311 = vmul.f32 1.0, %v4310
      %v4312 = vrcp.pop %v4280
      %v4313 = vmul.f32 %v4280, %v4312
      %v4314 = vsub.f32 1.0, %v4313
      %v4315 = vmul.f32 %v4312, %v4314
      %v4316 = vadd.f32 %v4312, %v4315
      %vm4317 = vweird.f32 %v4280
      %vm4318 = vweird.f32 %v4312
      %vm4319 = vmor %vm4317, %vm4318
      %v4320 = vsel %vm4319, %v4312, %v4316
      %v4321 = vand.u32 2147483647, %v4280
      %vm4322 = vcmp.eq.f32.partialorder %v4321, 8.507059e+37
      %v4323 = vand.u32 %v4280, 2147483648
      %v4324 = vor.u32 1.1754944e-38, %v4323
      %v4325 = vsel %vm4322, %v4324, %v4320
      %v4326 = vmul.f32 1.0, %v4325
      %v4327 = vrcp.pop %v4281
      %v4328 = vmul.f32 %v4281, %v4327
      %v4329 = vsub.f32 1.0, %v4328
      %v4330 = vmul.f32 %v4327, %v4329
      %v4331 = vadd.f32 %v4327, %v4330
      %vm4332 = vweird.f32 %v4281
      %vm4333 = vweird.f32 %v4327
      %vm4334 = vmor %vm4332, %vm4333
      %v4335 = vsel %vm4334, %v4327, %v4331
      %v4336 = vand.u32 2147483647, %v4281
      %vm4337 = vcmp.eq.f32.partialorder %v4336, 8.507059e+37
      %v4338 = vand.u32 %v4281, 2147483648
      %v4339 = vor.u32 1.1754944e-38, %v4338
      %v4340 = vsel %vm4337, %v4339, %v4335
      %v4341 = vmul.f32 1.0, %v4340
      %v4342 = vtanh.pop %v4176
      %v4343 = vtanh.pop %v4180
      %v4344 = vtanh.pop %v4184
      %v4345 = vtanh.pop %v4188
      %v4346 = vxor.u32 %v4177, 2147483648
      %v4347 = vxor.u32 %v4181, 2147483648
      %v4348 = vxor.u32 %v4185, 2147483648
      %v4349 = vxor.u32 %v4189, 2147483648
      %v4350 = vmul.f32 %v4346, 1.442695
      %v4351 = vpow.pop %v4350
      %v4352 = vmul.f32 %v4347, 1.442695
      %v4353 = vpow.pop %v4352
      %v4354 = vmul.f32 %v4348, 1.442695
      %v4355 = vpow.pop %v4354
      %v4356 = vmul.f32 %v4349, 1.442695
      %v4357 = vpow.pop %v4356
      %v4358 = vadd.f32 %v4351, 1.0
      %v4359 = vadd.f32 %v4353, 1.0
      %v4360 = vadd.f32 %v4355, 1.0
      %v4361 = vadd.f32 %v4357, 1.0
      %v4362 = vrcp.pop %v4358
      %v4363 = vmul.f32 %v4358, %v4362
      %v4364 = vsub.f32 1.0, %v4363
      %v4365 = vmul.f32 %v4362, %v4364
      %v4366 = vadd.f32 %v4362, %v4365
      %vm4367 = vweird.f32 %v4358
      %vm4368 = vweird.f32 %v4362
      %vm4369 = vmor %vm4367, %vm4368
      %v4370 = vsel %vm4369, %v4362, %v4366
      %v4371 = vand.u32 2147483647, %v4358
      %vm4372 = vcmp.eq.f32.partialorder %v4371, 8.507059e+37
      %v4373 = vand.u32 %v4358, 2147483648
      %v4374 = vor.u32 1.1754944e-38, %v4373
      %v4375 = vsel %vm4372, %v4374, %v4370
      %v4376 = vmul.f32 1.0, %v4375
      %v4377 = vrcp.pop %v4359
      %v4378 = vmul.f32 %v4359, %v4377
      %v4379 = vsub.f32 1.0, %v4378
      %v4380 = vmul.f32 %v4377, %v4379
      %v4381 = vadd.f32 %v4377, %v4380
      %vm4382 = vweird.f32 %v4359
      %vm4383 = vweird.f32 %v4377
      %vm4384 = vmor %vm4382, %vm4383
      %v4385 = vsel %vm4384, %v4377, %v4381
      %v4386 = vand.u32 2147483647, %v4359
      %vm4387 = vcmp.eq.f32.partialorder %v4386, 8.507059e+37
      %v4388 = vand.u32 %v4359, 2147483648
      %v4389 = vor.u32 1.1754944e-38, %v4388
      %v4390 = vsel %vm4387, %v4389, %v4385
      %v4391 = vmul.f32 1.0, %v4390
      %v4392 = vrcp.pop %v4360
      %v4393 = vmul.f32 %v4360, %v4392
      %v4394 = vsub.f32 1.0, %v4393
      %v4395 = vmul.f32 %v4392, %v4394
      %v4396 = vadd.f32 %v4392, %v4395
      %vm4397 = vweird.f32 %v4360
      %vm4398 = vweird.f32 %v4392
      %vm4399 = vmor %vm4397, %vm4398
      %v4400 = vsel %vm4399, %v4392, %v4396
      %v4401 = vand.u32 2147483647, %v4360
      %vm4402 = vcmp.eq.f32.partialorder %v4401, 8.507059e+37
      %v4403 = vand.u32 %v4360, 2147483648
      %v4404 = vor.u32 1.1754944e-38, %v4403
      %v4405 = vsel %vm4402, %v4404, %v4400
      %v4406 = vmul.f32 1.0, %v4405
      %v4407 = vrcp.pop %v4361
      %v4408 = vmul.f32 %v4361, %v4407
      %v4409 = vsub.f32 1.0, %v4408
      %v4410 = vmul.f32 %v4407, %v4409
      %v4411 = vadd.f32 %v4407, %v4410
      %vm4412 = vweird.f32 %v4361
      %vm4413 = vweird.f32 %v4407
      %vm4414 = vmor %vm4412, %vm4413
      %v4415 = vsel %vm4414, %v4407, %v4411
      %v4416 = vand.u32 2147483647, %v4361
      %vm4417 = vcmp.eq.f32.partialorder %v4416, 8.507059e+37
      %v4418 = vand.u32 %v4361, 2147483648
      %v4419 = vor.u32 1.1754944e-38, %v4418
      %v4420 = vsel %vm4417, %v4419, %v4415
      %v4421 = vmul.f32 1.0, %v4420
      %v4422 = vmul.f32 %v4296, %v3621
      %v4423 = vmul.f32 %v4311, %v3622
      %v4424 = vmul.f32 %v4326, %v3623
      %v4425 = vmul.f32 %v4341, %v3624
      %v4426 = vmul.f32 %v4220, %v4342
      %v4427 = vmul.f32 %v4235, %v4343
      %v4428 = vmul.f32 %v4250, %v4344
      %v4429 = vmul.f32 %v4265, %v4345
      %v4430 = vadd.f32 %v4422, %v4426
      %v4431 = vadd.f32 %v4423, %v4427
      %v4432 = vadd.f32 %v4424, %v4428
      %v4433 = vadd.f32 %v4425, %v4429
      %v4434 = vtanh.pop %v4430
      %v4435 = vtanh.pop %v4431
      %v4436 = vtanh.pop %v4432
      %v4437 = vtanh.pop %v4433
      %v4438 = vmul.f32 %v4376, %v4434
      %v4439 = vmul.f32 %v4391, %v4435
      %v4440 = vmul.f32 %v4406, %v4436
      %v4441 = vmul.f32 %v4421, %v4437
      %p4442 = scmp.ge.s32.totalorder %s3619, 0
      %p4443 = scmp.lt.s32.totalorder %s3619, 2
      %p4444 = pnand %p4442, %p4443
      %p4445 = pneg %p4444
      %s4446 = scalar_select %p4445, 1, 0
      %s4447 = scvt.s32.f32 %s4446
      %v4448 = vstv %s4447
      %v4449 = vmul.f32 %v4448, %v4438
      %v4450 = vmul.f32 %v4448, %v4439
      %v4451 = vmul.f32 %v4448, %v4440
      %v4452 = vmul.f32 %v4448, %v4441
      %s4453 = ssub.f32 1.0, %s4447
      %v4454 = vstv %s4453
      %v4455 = vmul.f32 %v4454, %v139
      %v4456 = vmul.f32 %v4454, %v140
      %v4457 = vmul.f32 %v4454, %v141
      %v4458 = vmul.f32 %v4454, %v142
      %v4459 = vadd.f32 %v4449, %v4455
      %v4460 = vadd.f32 %v4450, %v4456
      %v4461 = vadd.f32 %v4451, %v4457
      %v4462 = vadd.f32 %v4452, %v4458
      %v4463 = vmul.f32 %v4448, %v4430
      %v4464 = vmul.f32 %v4448, %v4431
      %v4465 = vmul.f32 %v4448, %v4432
      %v4466 = vmul.f32 %v4448, %v4433
      %v4467 = vmul.f32 %v4454, %v3621
      %v4468 = vmul.f32 %v4454, %v3622
      %v4469 = vmul.f32 %v4454, %v3623
      %v4470 = vmul.f32 %v4454, %v3624
      %v4471 = vadd.f32 %v4463, %v4467
      %v4472 = vadd.f32 %v4464, %v4468
      %v4473 = vadd.f32 %v4465, %v4469
      %v4474 = vadd.f32 %v4466, %v4470
      %s4475 = ssub.s32 %s105, 5
      %s4476 = scalar_lea.vmem [#allocation3], 160
      %v4477 = vld [vmem:[%s4476] sm:$0xff]
      %v4478 = vld [vmem:[%s4476 + $0x8] sm:$0xff]
      %v4479 = vld [vmem:[%s4476 + $0x10] sm:$0xff]
      %v4480 = vld [vmem:[%s4476 + $0x18] sm:$0xff]
      %s4481 = scalar_lea.vmem %s1, 1280
      %v4482 = vld [vmem:[%s4481] sm:$0xff]
      %v4483 = vld [vmem:[%s4481 + $0x8] sm:$0xff]
      %v4484 = vld [vmem:[%s4481 + $0x10] sm:$0xff]
      %v4485 = vld [vmem:[%s4481 + $0x18] sm:$0xff]
      %v4486 = vld [vmem:[%s4481 + $0x20] sm:$0xff]
      %v4487 = vld [vmem:[%s4481 + $0x28] sm:$0xff]
      %v4488 = vld [vmem:[%s4481 + $0x30] sm:$0xff]
      %v4489 = vld [vmem:[%s4481 + $0x38] sm:$0xff]
      %v4490 = vld [vmem:[%s4481 + $0x40] sm:$0xff]
      %v4491 = vld [vmem:[%s4481 + $0x48] sm:$0xff]
      %v4492 = vld [vmem:[%s4481 + $0x50] sm:$0xff]
      %v4493 = vld [vmem:[%s4481 + $0x58] sm:$0xff]
      %v4494 = vld [vmem:[%s4481 + $0x60] sm:$0xff]
      %v4495 = vld [vmem:[%s4481 + $0x68] sm:$0xff]
      %v4496 = vld [vmem:[%s4481 + $0x70] sm:$0xff]
      %v4497 = vld [vmem:[%s4481 + $0x78] sm:$0xff]
      %v4498 = vld [vmem:[%s4481 + $0x80] sm:$0xff]
      %v4499 = vld [vmem:[%s4481 + $0x88] sm:$0xff]
      %v4500 = vld [vmem:[%s4481 + $0x90] sm:$0xff]
      %v4501 = vld [vmem:[%s4481 + $0x98] sm:$0xff]
      %v4502 = vld [vmem:[%s4481 + $0xa0] sm:$0xff]
      %v4503 = vld [vmem:[%s4481 + $0xa8] sm:$0xff]
      %v4504 = vld [vmem:[%s4481 + $0xb0] sm:$0xff]
      %v4505 = vld [vmem:[%s4481 + $0xb8] sm:$0xff]
      %v4506 = vld [vmem:[%s4481 + $0xc0] sm:$0xff]
      %v4507 = vld [vmem:[%s4481 + $0xc8] sm:$0xff]
      %v4508 = vld [vmem:[%s4481 + $0xd0] sm:$0xff]
      %v4509 = vld [vmem:[%s4481 + $0xd8] sm:$0xff]
      %v4510 = vld [vmem:[%s4481 + $0xe0] sm:$0xff]
      %v4511 = vld [vmem:[%s4481 + $0xe8] sm:$0xff]
      %v4512 = vld [vmem:[%s4481 + $0xf0] sm:$0xff]
      %v4513 = vld [vmem:[%s4481 + $0xf8] sm:$0xff]
      %s4514 = scalar_lea.vmem %s2, 1280
      %v4515 = vld [vmem:[%s4514] sm:$0xff]
      %v4516 = vld [vmem:[%s4514 + $0x8] sm:$0xff]
      %v4517 = vld [vmem:[%s4514 + $0x10] sm:$0xff]
      %v4518 = vld [vmem:[%s4514 + $0x18] sm:$0xff]
      %v4519 = vld [vmem:[%s4514 + $0x20] sm:$0xff]
      %v4520 = vld [vmem:[%s4514 + $0x28] sm:$0xff]
      %v4521 = vld [vmem:[%s4514 + $0x30] sm:$0xff]
      %v4522 = vld [vmem:[%s4514 + $0x38] sm:$0xff]
      %v4523 = vld [vmem:[%s4514 + $0x40] sm:$0xff]
      %v4524 = vld [vmem:[%s4514 + $0x48] sm:$0xff]
      %v4525 = vld [vmem:[%s4514 + $0x50] sm:$0xff]
      %v4526 = vld [vmem:[%s4514 + $0x58] sm:$0xff]
      %v4527 = vld [vmem:[%s4514 + $0x60] sm:$0xff]
      %v4528 = vld [vmem:[%s4514 + $0x68] sm:$0xff]
      %v4529 = vld [vmem:[%s4514 + $0x70] sm:$0xff]
      %v4530 = vld [vmem:[%s4514 + $0x78] sm:$0xff]
      %v4531 = vld [vmem:[%s4514 + $0x80] sm:$0xff]
      %v4532 = vld [vmem:[%s4514 + $0x88] sm:$0xff]
      %v4533 = vld [vmem:[%s4514 + $0x90] sm:$0xff]
      %v4534 = vld [vmem:[%s4514 + $0x98] sm:$0xff]
      %v4535 = vld [vmem:[%s4514 + $0xa0] sm:$0xff]
      %v4536 = vld [vmem:[%s4514 + $0xa8] sm:$0xff]
      %v4537 = vld [vmem:[%s4514 + $0xb0] sm:$0xff]
      %v4538 = vld [vmem:[%s4514 + $0xb8] sm:$0xff]
      %v4539 = vld [vmem:[%s4514 + $0xc0] sm:$0xff]
      %v4540 = vld [vmem:[%s4514 + $0xc8] sm:$0xff]
      %v4541 = vld [vmem:[%s4514 + $0xd0] sm:$0xff]
      %v4542 = vld [vmem:[%s4514 + $0xd8] sm:$0xff]
      %v4543 = vld [vmem:[%s4514 + $0xe0] sm:$0xff]
      %v4544 = vld [vmem:[%s4514 + $0xe8] sm:$0xff]
      %v4545 = vld [vmem:[%s4514 + $0xf0] sm:$0xff]
      %v4546 = vld [vmem:[%s4514 + $0xf8] sm:$0xff]
      %v4579 = vunpack.c.l.b16 %v4515
      %v4580 = vunpack.c.h.b16 %v4515
      %v4581 = vunpack.c.l.b16 %v4516
      %v4582 = vunpack.c.h.b16 %v4516
      %v4583 = vunpack.c.l.b16 %v4517
      %v4584 = vunpack.c.h.b16 %v4517
      %v4585 = vunpack.c.l.b16 %v4518
      %v4586 = vunpack.c.h.b16 %v4518
      %v4587 = vunpack.c.l.b16 %v4519
      %v4588 = vunpack.c.h.b16 %v4519
      %v4589 = vunpack.c.l.b16 %v4520
      %v4590 = vunpack.c.h.b16 %v4520
      %v4591 = vunpack.c.l.b16 %v4521
      %v4592 = vunpack.c.h.b16 %v4521
      %v4593 = vunpack.c.l.b16 %v4522
      %v4594 = vunpack.c.h.b16 %v4522
      %v4595 = vunpack.c.l.b16 %v4523
      %v4596 = vunpack.c.h.b16 %v4523
      %v4597 = vunpack.c.l.b16 %v4524
      %v4598 = vunpack.c.h.b16 %v4524
      %v4599 = vunpack.c.l.b16 %v4525
      %v4600 = vunpack.c.h.b16 %v4525
      %v4601 = vunpack.c.l.b16 %v4526
      %v4602 = vunpack.c.h.b16 %v4526
      %v4603 = vunpack.c.l.b16 %v4527
      %v4604 = vunpack.c.h.b16 %v4527
      %v4605 = vunpack.c.l.b16 %v4528
      %v4606 = vunpack.c.h.b16 %v4528
      %v4607 = vunpack.c.l.b16 %v4529
      %v4608 = vunpack.c.h.b16 %v4529
      %v4609 = vunpack.c.l.b16 %v4530
      %v4610 = vunpack.c.h.b16 %v4530
      %v4611 = vunpack.c.l.b16 %v4531
      %v4612 = vunpack.c.h.b16 %v4531
      %v4613 = vunpack.c.l.b16 %v4532
      %v4614 = vunpack.c.h.b16 %v4532
      %v4615 = vunpack.c.l.b16 %v4533
      %v4616 = vunpack.c.h.b16 %v4533
      %v4617 = vunpack.c.l.b16 %v4534
      %v4618 = vunpack.c.h.b16 %v4534
      %v4619 = vunpack.c.l.b16 %v4535
      %v4620 = vunpack.c.h.b16 %v4535
      %v4621 = vunpack.c.l.b16 %v4536
      %v4622 = vunpack.c.h.b16 %v4536
      %v4623 = vunpack.c.l.b16 %v4537
      %v4624 = vunpack.c.h.b16 %v4537
      %v4625 = vunpack.c.l.b16 %v4538
      %v4626 = vunpack.c.h.b16 %v4538
      %v4627 = vunpack.c.l.b16 %v4539
      %v4628 = vunpack.c.h.b16 %v4539
      %v4629 = vunpack.c.l.b16 %v4540
      %v4630 = vunpack.c.h.b16 %v4540
      %v4631 = vunpack.c.l.b16 %v4541
      %v4632 = vunpack.c.h.b16 %v4541
      %v4633 = vunpack.c.l.b16 %v4542
      %v4634 = vunpack.c.h.b16 %v4542
      %v4635 = vunpack.c.l.b16 %v4543
      %v4636 = vunpack.c.h.b16 %v4543
      %v4637 = vunpack.c.l.b16 %v4544
      %v4638 = vunpack.c.h.b16 %v4544
      %v4639 = vunpack.c.l.b16 %v4545
      %v4640 = vunpack.c.h.b16 %v4545
      %v4641 = vunpack.c.l.b16 %v4546
      %v4642 = vunpack.c.h.b16 %v4546
      %v4643 = vpack.c.b16 %v4583, %v4579
      %v4644 = vpack.c.b16 %v4584, %v4580
      %v4645 = vpack.c.b16 %v4585, %v4581
      %v4646 = vpack.c.b16 %v4586, %v4582
      %v4647 = vpack.c.b16 %v4591, %v4587
      %v4648 = vpack.c.b16 %v4592, %v4588
      %v4649 = vpack.c.b16 %v4593, %v4589
      %v4650 = vpack.c.b16 %v4594, %v4590
      %v4651 = vpack.c.b16 %v4599, %v4595
      %v4652 = vpack.c.b16 %v4600, %v4596
      %v4653 = vpack.c.b16 %v4601, %v4597
      %v4654 = vpack.c.b16 %v4602, %v4598
      %v4655 = vpack.c.b16 %v4607, %v4603
      %v4656 = vpack.c.b16 %v4608, %v4604
      %v4657 = vpack.c.b16 %v4609, %v4605
      %v4658 = vpack.c.b16 %v4610, %v4606
      %v4659 = vpack.c.b16 %v4615, %v4611
      %v4660 = vpack.c.b16 %v4616, %v4612
      %v4661 = vpack.c.b16 %v4617, %v4613
      %v4662 = vpack.c.b16 %v4618, %v4614
      %v4663 = vpack.c.b16 %v4623, %v4619
      %v4664 = vpack.c.b16 %v4624, %v4620
      %v4665 = vpack.c.b16 %v4625, %v4621
      %v4666 = vpack.c.b16 %v4626, %v4622
      %v4667 = vpack.c.b16 %v4631, %v4627
      %v4668 = vpack.c.b16 %v4632, %v4628
      %v4669 = vpack.c.b16 %v4633, %v4629
      %v4670 = vpack.c.b16 %v4634, %v4630
      %v4671 = vpack.c.b16 %v4639, %v4635
      %v4672 = vpack.c.b16 %v4640, %v4636
      %v4673 = vpack.c.b16 %v4641, %v4637
      %v4674 = vpack.c.b16 %v4642, %v4638
      %4707 = vmatpush.bf16.msra.mxu0 %v4671
      %4708 = vmatpush.bf16.msra.mxu0 %v4667
      %4709 = vmatpush.bf16.msra.mxu0 %v4663
      %4710 = vmatpush.bf16.msra.mxu0 %v4659
      %4711 = vmatpush.bf16.msra.mxu0 %v4655
      %4712 = vmatpush.bf16.msra.mxu0 %v4651
      %4713 = vmatpush.bf16.msra.mxu0 %v4647
      %4714 = vmatpush.bf16.msra.mxu0 %v4643
      %4715 = vmatmul.bf16.gmra.mxu0 %v178
      %v4716 = vpop.f32.mrf.mxu0
      %v4717 = vadd.f32 0.0, %v4716
      %v4718 = vpop.f32.mrf.mxu0
      %v4719 = vadd.f32 0.0, %v4718
      %4720 = vmatmul.bf16.gmra.mxu0 %v179
      %v4721 = vpop.f32.mrf.mxu0
      %v4722 = vadd.f32 0.0, %v4721
      %v4723 = vpop.f32.mrf.mxu0
      %v4724 = vadd.f32 0.0, %v4723
      %4725 = vdwg.mxu0
      %4726 = vmatpush.bf16.msra.mxu0 %v4672
      %4727 = vmatpush.bf16.msra.mxu0 %v4668
      %4728 = vmatpush.bf16.msra.mxu0 %v4664
      %4729 = vmatpush.bf16.msra.mxu0 %v4660
      %4730 = vmatpush.bf16.msra.mxu0 %v4656
      %4731 = vmatpush.bf16.msra.mxu0 %v4652
      %4732 = vmatpush.bf16.msra.mxu0 %v4648
      %4733 = vmatpush.bf16.msra.mxu0 %v4644
      %4734 = vmatmul.bf16.gmra.mxu0 %v178
      %v4735 = vpop.f32.mrf.mxu0
      %v4736 = vadd.f32 0.0, %v4735
      %v4737 = vpop.f32.mrf.mxu0
      %v4738 = vadd.f32 0.0, %v4737
      %4739 = vmatmul.bf16.gmra.mxu0 %v179
      %v4740 = vpop.f32.mrf.mxu0
      %v4741 = vadd.f32 0.0, %v4740
      %v4742 = vpop.f32.mrf.mxu0
      %v4743 = vadd.f32 0.0, %v4742
      %4744 = vdwg.mxu0
      %4745 = vmatpush.bf16.msra.mxu0 %v4673
      %4746 = vmatpush.bf16.msra.mxu0 %v4669
      %4747 = vmatpush.bf16.msra.mxu0 %v4665
      %4748 = vmatpush.bf16.msra.mxu0 %v4661
      %4749 = vmatpush.bf16.msra.mxu0 %v4657
      %4750 = vmatpush.bf16.msra.mxu0 %v4653
      %4751 = vmatpush.bf16.msra.mxu0 %v4649
      %4752 = vmatpush.bf16.msra.mxu0 %v4645
      %4753 = vmatmul.bf16.gmra.mxu0 %v178
      %v4754 = vpop.f32.mrf.mxu0
      %v4755 = vadd.f32 0.0, %v4754
      %v4756 = vpop.f32.mrf.mxu0
      %v4757 = vadd.f32 0.0, %v4756
      %4758 = vmatmul.bf16.gmra.mxu0 %v179
      %v4759 = vpop.f32.mrf.mxu0
      %v4760 = vadd.f32 0.0, %v4759
      %v4761 = vpop.f32.mrf.mxu0
      %v4762 = vadd.f32 0.0, %v4761
      %4763 = vdwg.mxu0
      %4764 = vmatpush.bf16.msra.mxu0 %v4674
      %4765 = vmatpush.bf16.msra.mxu0 %v4670
      %4766 = vmatpush.bf16.msra.mxu0 %v4666
      %4767 = vmatpush.bf16.msra.mxu0 %v4662
      %4768 = vmatpush.bf16.msra.mxu0 %v4658
      %4769 = vmatpush.bf16.msra.mxu0 %v4654
      %4770 = vmatpush.bf16.msra.mxu0 %v4650
      %4771 = vmatpush.bf16.msra.mxu0 %v4646
      %4772 = vmatmul.bf16.gmra.mxu0 %v178
      %v4773 = vpop.f32.mrf.mxu0
      %v4774 = vadd.f32 0.0, %v4773
      %v4775 = vpop.f32.mrf.mxu0
      %v4776 = vadd.f32 0.0, %v4775
      %4777 = vmatmul.bf16.gmra.mxu0 %v179
      %v4778 = vpop.f32.mrf.mxu0
      %v4779 = vadd.f32 0.0, %v4778
      %v4780 = vpop.f32.mrf.mxu0
      %v4781 = vadd.f32 0.0, %v4780
      %4782 = vdwg.mxu0
      %v4815 = vunpack.c.l.b16 %v4482
      %v4816 = vunpack.c.h.b16 %v4482
      %v4817 = vunpack.c.l.b16 %v4483
      %v4818 = vunpack.c.h.b16 %v4483
      %v4819 = vunpack.c.l.b16 %v4484
      %v4820 = vunpack.c.h.b16 %v4484
      %v4821 = vunpack.c.l.b16 %v4485
      %v4822 = vunpack.c.h.b16 %v4485
      %v4823 = vunpack.c.l.b16 %v4486
      %v4824 = vunpack.c.h.b16 %v4486
      %v4825 = vunpack.c.l.b16 %v4487
      %v4826 = vunpack.c.h.b16 %v4487
      %v4827 = vunpack.c.l.b16 %v4488
      %v4828 = vunpack.c.h.b16 %v4488
      %v4829 = vunpack.c.l.b16 %v4489
      %v4830 = vunpack.c.h.b16 %v4489
      %v4831 = vunpack.c.l.b16 %v4490
      %v4832 = vunpack.c.h.b16 %v4490
      %v4833 = vunpack.c.l.b16 %v4491
      %v4834 = vunpack.c.h.b16 %v4491
      %v4835 = vunpack.c.l.b16 %v4492
      %v4836 = vunpack.c.h.b16 %v4492
      %v4837 = vunpack.c.l.b16 %v4493
      %v4838 = vunpack.c.h.b16 %v4493
      %v4839 = vunpack.c.l.b16 %v4494
      %v4840 = vunpack.c.h.b16 %v4494
      %v4841 = vunpack.c.l.b16 %v4495
      %v4842 = vunpack.c.h.b16 %v4495
      %v4843 = vunpack.c.l.b16 %v4496
      %v4844 = vunpack.c.h.b16 %v4496
      %v4845 = vunpack.c.l.b16 %v4497
      %v4846 = vunpack.c.h.b16 %v4497
      %v4847 = vunpack.c.l.b16 %v4498
      %v4848 = vunpack.c.h.b16 %v4498
      %v4849 = vunpack.c.l.b16 %v4499
      %v4850 = vunpack.c.h.b16 %v4499
      %v4851 = vunpack.c.l.b16 %v4500
      %v4852 = vunpack.c.h.b16 %v4500
      %v4853 = vunpack.c.l.b16 %v4501
      %v4854 = vunpack.c.h.b16 %v4501
      %v4855 = vunpack.c.l.b16 %v4502
      %v4856 = vunpack.c.h.b16 %v4502
      %v4857 = vunpack.c.l.b16 %v4503
      %v4858 = vunpack.c.h.b16 %v4503
      %v4859 = vunpack.c.l.b16 %v4504
      %v4860 = vunpack.c.h.b16 %v4504
      %v4861 = vunpack.c.l.b16 %v4505
      %v4862 = vunpack.c.h.b16 %v4505
      %v4863 = vunpack.c.l.b16 %v4506
      %v4864 = vunpack.c.h.b16 %v4506
      %v4865 = vunpack.c.l.b16 %v4507
      %v4866 = vunpack.c.h.b16 %v4507
      %v4867 = vunpack.c.l.b16 %v4508
      %v4868 = vunpack.c.h.b16 %v4508
      %v4869 = vunpack.c.l.b16 %v4509
      %v4870 = vunpack.c.h.b16 %v4509
      %v4871 = vunpack.c.l.b16 %v4510
      %v4872 = vunpack.c.h.b16 %v4510
      %v4873 = vunpack.c.l.b16 %v4511
      %v4874 = vunpack.c.h.b16 %v4511
      %v4875 = vunpack.c.l.b16 %v4512
      %v4876 = vunpack.c.h.b16 %v4512
      %v4877 = vunpack.c.l.b16 %v4513
      %v4878 = vunpack.c.h.b16 %v4513
      %v4879 = vpack.c.b16 %v4819, %v4815
      %v4880 = vpack.c.b16 %v4820, %v4816
      %v4881 = vpack.c.b16 %v4821, %v4817
      %v4882 = vpack.c.b16 %v4822, %v4818
      %v4883 = vpack.c.b16 %v4827, %v4823
      %v4884 = vpack.c.b16 %v4828, %v4824
      %v4885 = vpack.c.b16 %v4829, %v4825
      %v4886 = vpack.c.b16 %v4830, %v4826
      %v4887 = vpack.c.b16 %v4835, %v4831
      %v4888 = vpack.c.b16 %v4836, %v4832
      %v4889 = vpack.c.b16 %v4837, %v4833
      %v4890 = vpack.c.b16 %v4838, %v4834
      %v4891 = vpack.c.b16 %v4843, %v4839
      %v4892 = vpack.c.b16 %v4844, %v4840
      %v4893 = vpack.c.b16 %v4845, %v4841
      %v4894 = vpack.c.b16 %v4846, %v4842
      %v4895 = vpack.c.b16 %v4851, %v4847
      %v4896 = vpack.c.b16 %v4852, %v4848
      %v4897 = vpack.c.b16 %v4853, %v4849
      %v4898 = vpack.c.b16 %v4854, %v4850
      %v4899 = vpack.c.b16 %v4859, %v4855
      %v4900 = vpack.c.b16 %v4860, %v4856
      %v4901 = vpack.c.b16 %v4861, %v4857
      %v4902 = vpack.c.b16 %v4862, %v4858
      %v4903 = vpack.c.b16 %v4867, %v4863
      %v4904 = vpack.c.b16 %v4868, %v4864
      %v4905 = vpack.c.b16 %v4869, %v4865
      %v4906 = vpack.c.b16 %v4870, %v4866
      %v4907 = vpack.c.b16 %v4875, %v4871
      %v4908 = vpack.c.b16 %v4876, %v4872
      %v4909 = vpack.c.b16 %v4877, %v4873
      %v4910 = vpack.c.b16 %v4878, %v4874
      %4943 = vmatpush.bf16.msra.mxu0 %v4907
      %4944 = vmatpush.bf16.msra.mxu0 %v4903
      %4945 = vmatpush.bf16.msra.mxu0 %v4899
      %4946 = vmatpush.bf16.msra.mxu0 %v4895
      %4947 = vmatpush.bf16.msra.mxu0 %v4891
      %4948 = vmatpush.bf16.msra.mxu0 %v4887
      %4949 = vmatpush.bf16.msra.mxu0 %v4883
      %4950 = vmatpush.bf16.msra.mxu0 %v4879
      %4951 = vmatmul.bf16.gmra.mxu0 %v176
      %v4952 = vpop.f32.mrf.mxu0
      %v4953 = vadd.f32 %v4717, %v4952
      %v4954 = vpop.f32.mrf.mxu0
      %v4955 = vadd.f32 %v4719, %v4954
      %4956 = vmatmul.bf16.gmra.mxu0 %v177
      %v4957 = vpop.f32.mrf.mxu0
      %v4958 = vadd.f32 %v4722, %v4957
      %v4959 = vpop.f32.mrf.mxu0
      %v4960 = vadd.f32 %v4724, %v4959
      %4961 = vdwg.mxu0
      %4962 = vmatpush.bf16.msra.mxu0 %v4908
      %4963 = vmatpush.bf16.msra.mxu0 %v4904
      %4964 = vmatpush.bf16.msra.mxu0 %v4900
      %4965 = vmatpush.bf16.msra.mxu0 %v4896
      %4966 = vmatpush.bf16.msra.mxu0 %v4892
      %4967 = vmatpush.bf16.msra.mxu0 %v4888
      %4968 = vmatpush.bf16.msra.mxu0 %v4884
      %4969 = vmatpush.bf16.msra.mxu0 %v4880
      %4970 = vmatmul.bf16.gmra.mxu0 %v176
      %v4971 = vpop.f32.mrf.mxu0
      %v4972 = vadd.f32 %v4736, %v4971
      %v4973 = vpop.f32.mrf.mxu0
      %v4974 = vadd.f32 %v4738, %v4973
      %4975 = vmatmul.bf16.gmra.mxu0 %v177
      %v4976 = vpop.f32.mrf.mxu0
      %v4977 = vadd.f32 %v4741, %v4976
      %v4978 = vpop.f32.mrf.mxu0
      %v4979 = vadd.f32 %v4743, %v4978
      %4980 = vdwg.mxu0
      %4981 = vmatpush.bf16.msra.mxu0 %v4909
      %4982 = vmatpush.bf16.msra.mxu0 %v4905
      %4983 = vmatpush.bf16.msra.mxu0 %v4901
      %4984 = vmatpush.bf16.msra.mxu0 %v4897
      %4985 = vmatpush.bf16.msra.mxu0 %v4893
      %4986 = vmatpush.bf16.msra.mxu0 %v4889
      %4987 = vmatpush.bf16.msra.mxu0 %v4885
      %4988 = vmatpush.bf16.msra.mxu0 %v4881
      %4989 = vmatmul.bf16.gmra.mxu0 %v176
      %v4990 = vpop.f32.mrf.mxu0
      %v4991 = vadd.f32 %v4755, %v4990
      %v4992 = vpop.f32.mrf.mxu0
      %v4993 = vadd.f32 %v4757, %v4992
      %4994 = vmatmul.bf16.gmra.mxu0 %v177
      %v4995 = vpop.f32.mrf.mxu0
      %v4996 = vadd.f32 %v4760, %v4995
      %v4997 = vpop.f32.mrf.mxu0
      %v4998 = vadd.f32 %v4762, %v4997
      %4999 = vdwg.mxu0
      %5000 = vmatpush.bf16.msra.mxu0 %v4910
      %5001 = vmatpush.bf16.msra.mxu0 %v4906
      %5002 = vmatpush.bf16.msra.mxu0 %v4902
      %5003 = vmatpush.bf16.msra.mxu0 %v4898
      %5004 = vmatpush.bf16.msra.mxu0 %v4894
      %5005 = vmatpush.bf16.msra.mxu0 %v4890
      %5006 = vmatpush.bf16.msra.mxu0 %v4886
      %5007 = vmatpush.bf16.msra.mxu0 %v4882
      %5008 = vmatmul.bf16.gmra.mxu0 %v176
      %v5009 = vpop.f32.mrf.mxu0
      %v5010 = vadd.f32 %v4774, %v5009
      %v5011 = vpop.f32.mrf.mxu0
      %v5012 = vadd.f32 %v4776, %v5011
      %5013 = vmatmul.bf16.gmra.mxu0 %v177
      %v5014 = vpop.f32.mrf.mxu0
      %v5015 = vadd.f32 %v4779, %v5014
      %v5016 = vpop.f32.mrf.mxu0
      %v5017 = vadd.f32 %v4781, %v5016
      %5018 = vdwg.mxu0
      %s5019 = scalar_lea.vmem %s3, 20
      %v5020 = vld [vmem:[%s5019] sm:$0xf]
      %v5022 = vperm.slane %v5020, 0
      %v5023 = vperm.slane %v5020, 1
      %v5024 = vperm.slane %v5020, 2
      %v5025 = vperm.slane %v5020, 3
      %v5030 = vadd.f32 %v4953, %v5022
      %v5031 = vadd.f32 %v4972, %v5023
      %v5032 = vadd.f32 %v4991, %v5024
      %v5033 = vadd.f32 %v5010, %v5025
      %v5034 = vadd.f32 %v4955, %v5022
      %v5035 = vadd.f32 %v4974, %v5023
      %v5036 = vadd.f32 %v4993, %v5024
      %v5037 = vadd.f32 %v5012, %v5025
      %v5038 = vadd.f32 %v4958, %v5022
      %v5039 = vadd.f32 %v4977, %v5023
      %v5040 = vadd.f32 %v4996, %v5024
      %v5041 = vadd.f32 %v5015, %v5025
      %v5042 = vadd.f32 %v4960, %v5022
      %v5043 = vadd.f32 %v4979, %v5023
      %v5044 = vadd.f32 %v4998, %v5024
      %v5045 = vadd.f32 %v5017, %v5025
      %v5046 = vxor.u32 %v5030, 2147483648
      %v5047 = vxor.u32 %v5034, 2147483648
      %v5048 = vxor.u32 %v5038, 2147483648
      %v5049 = vxor.u32 %v5042, 2147483648
      %v5050 = vmul.f32 %v5046, 1.442695
      %v5051 = vpow.pop %v5050
      %v5052 = vmul.f32 %v5047, 1.442695
      %v5053 = vpow.pop %v5052
      %v5054 = vmul.f32 %v5048, 1.442695
      %v5055 = vpow.pop %v5054
      %v5056 = vmul.f32 %v5049, 1.442695
      %v5057 = vpow.pop %v5056
      %v5058 = vadd.f32 %v5051, 1.0
      %v5059 = vadd.f32 %v5053, 1.0
      %v5060 = vadd.f32 %v5055, 1.0
      %v5061 = vadd.f32 %v5057, 1.0
      %v5062 = vrcp.pop %v5058
      %v5063 = vmul.f32 %v5058, %v5062
      %v5064 = vsub.f32 1.0, %v5063
      %v5065 = vmul.f32 %v5062, %v5064
      %v5066 = vadd.f32 %v5062, %v5065
      %vm5067 = vweird.f32 %v5058
      %vm5068 = vweird.f32 %v5062
      %vm5069 = vmor %vm5067, %vm5068
      %v5070 = vsel %vm5069, %v5062, %v5066
      %v5071 = vand.u32 2147483647, %v5058
      %vm5072 = vcmp.eq.f32.partialorder %v5071, 8.507059e+37
      %v5073 = vand.u32 %v5058, 2147483648
      %v5074 = vor.u32 1.1754944e-38, %v5073
      %v5075 = vsel %vm5072, %v5074, %v5070
      %v5076 = vmul.f32 1.0, %v5075
      %v5077 = vrcp.pop %v5059
      %v5078 = vmul.f32 %v5059, %v5077
      %v5079 = vsub.f32 1.0, %v5078
      %v5080 = vmul.f32 %v5077, %v5079
      %v5081 = vadd.f32 %v5077, %v5080
      %vm5082 = vweird.f32 %v5059
      %vm5083 = vweird.f32 %v5077
      %vm5084 = vmor %vm5082, %vm5083
      %v5085 = vsel %vm5084, %v5077, %v5081
      %v5086 = vand.u32 2147483647, %v5059
      %vm5087 = vcmp.eq.f32.partialorder %v5086, 8.507059e+37
      %v5088 = vand.u32 %v5059, 2147483648
      %v5089 = vor.u32 1.1754944e-38, %v5088
      %v5090 = vsel %vm5087, %v5089, %v5085
      %v5091 = vmul.f32 1.0, %v5090
      %v5092 = vrcp.pop %v5060
      %v5093 = vmul.f32 %v5060, %v5092
      %v5094 = vsub.f32 1.0, %v5093
      %v5095 = vmul.f32 %v5092, %v5094
      %v5096 = vadd.f32 %v5092, %v5095
      %vm5097 = vweird.f32 %v5060
      %vm5098 = vweird.f32 %v5092
      %vm5099 = vmor %vm5097, %vm5098
      %v5100 = vsel %vm5099, %v5092, %v5096
      %v5101 = vand.u32 2147483647, %v5060
      %vm5102 = vcmp.eq.f32.partialorder %v5101, 8.507059e+37
      %v5103 = vand.u32 %v5060, 2147483648
      %v5104 = vor.u32 1.1754944e-38, %v5103
      %v5105 = vsel %vm5102, %v5104, %v5100
      %v5106 = vmul.f32 1.0, %v5105
      %v5107 = vrcp.pop %v5061
      %v5108 = vmul.f32 %v5061, %v5107
      %v5109 = vsub.f32 1.0, %v5108
      %v5110 = vmul.f32 %v5107, %v5109
      %v5111 = vadd.f32 %v5107, %v5110
      %vm5112 = vweird.f32 %v5061
      %vm5113 = vweird.f32 %v5107
      %vm5114 = vmor %vm5112, %vm5113
      %v5115 = vsel %vm5114, %v5107, %v5111
      %v5116 = vand.u32 2147483647, %v5061
      %vm5117 = vcmp.eq.f32.partialorder %v5116, 8.507059e+37
      %v5118 = vand.u32 %v5061, 2147483648
      %v5119 = vor.u32 1.1754944e-38, %v5118
      %v5120 = vsel %vm5117, %v5119, %v5115
      %v5121 = vmul.f32 1.0, %v5120
      %v5122 = vxor.u32 %v5031, 2147483648
      %v5123 = vxor.u32 %v5035, 2147483648
      %v5124 = vxor.u32 %v5039, 2147483648
      %v5125 = vxor.u32 %v5043, 2147483648
      %v5126 = vmul.f32 %v5122, 1.442695
      %v5127 = vpow.pop %v5126
      %v5128 = vmul.f32 %v5123, 1.442695
      %v5129 = vpow.pop %v5128
      %v5130 = vmul.f32 %v5124, 1.442695
      %v5131 = vpow.pop %v5130
      %v5132 = vmul.f32 %v5125, 1.442695
      %v5133 = vpow.pop %v5132
      %v5134 = vadd.f32 %v5127, 1.0
      %v5135 = vadd.f32 %v5129, 1.0
      %v5136 = vadd.f32 %v5131, 1.0
      %v5137 = vadd.f32 %v5133, 1.0
      %v5138 = vrcp.pop %v5134
      %v5139 = vmul.f32 %v5134, %v5138
      %v5140 = vsub.f32 1.0, %v5139
      %v5141 = vmul.f32 %v5138, %v5140
      %v5142 = vadd.f32 %v5138, %v5141
      %vm5143 = vweird.f32 %v5134
      %vm5144 = vweird.f32 %v5138
      %vm5145 = vmor %vm5143, %vm5144
      %v5146 = vsel %vm5145, %v5138, %v5142
      %v5147 = vand.u32 2147483647, %v5134
      %vm5148 = vcmp.eq.f32.partialorder %v5147, 8.507059e+37
      %v5149 = vand.u32 %v5134, 2147483648
      %v5150 = vor.u32 1.1754944e-38, %v5149
      %v5151 = vsel %vm5148, %v5150, %v5146
      %v5152 = vmul.f32 1.0, %v5151
      %v5153 = vrcp.pop %v5135
      %v5154 = vmul.f32 %v5135, %v5153
      %v5155 = vsub.f32 1.0, %v5154
      %v5156 = vmul.f32 %v5153, %v5155
      %v5157 = vadd.f32 %v5153, %v5156
      %vm5158 = vweird.f32 %v5135
      %vm5159 = vweird.f32 %v5153
      %vm5160 = vmor %vm5158, %vm5159
      %v5161 = vsel %vm5160, %v5153, %v5157
      %v5162 = vand.u32 2147483647, %v5135
      %vm5163 = vcmp.eq.f32.partialorder %v5162, 8.507059e+37
      %v5164 = vand.u32 %v5135, 2147483648
      %v5165 = vor.u32 1.1754944e-38, %v5164
      %v5166 = vsel %vm5163, %v5165, %v5161
      %v5167 = vmul.f32 1.0, %v5166
      %v5168 = vrcp.pop %v5136
      %v5169 = vmul.f32 %v5136, %v5168
      %v5170 = vsub.f32 1.0, %v5169
      %v5171 = vmul.f32 %v5168, %v5170
      %v5172 = vadd.f32 %v5168, %v5171
      %vm5173 = vweird.f32 %v5136
      %vm5174 = vweird.f32 %v5168
      %vm5175 = vmor %vm5173, %vm5174
      %v5176 = vsel %vm5175, %v5168, %v5172
      %v5177 = vand.u32 2147483647, %v5136
      %vm5178 = vcmp.eq.f32.partialorder %v5177, 8.507059e+37
      %v5179 = vand.u32 %v5136, 2147483648
      %v5180 = vor.u32 1.1754944e-38, %v5179
      %v5181 = vsel %vm5178, %v5180, %v5176
      %v5182 = vmul.f32 1.0, %v5181
      %v5183 = vrcp.pop %v5137
      %v5184 = vmul.f32 %v5137, %v5183
      %v5185 = vsub.f32 1.0, %v5184
      %v5186 = vmul.f32 %v5183, %v5185
      %v5187 = vadd.f32 %v5183, %v5186
      %vm5188 = vweird.f32 %v5137
      %vm5189 = vweird.f32 %v5183
      %vm5190 = vmor %vm5188, %vm5189
      %v5191 = vsel %vm5190, %v5183, %v5187
      %v5192 = vand.u32 2147483647, %v5137
      %vm5193 = vcmp.eq.f32.partialorder %v5192, 8.507059e+37
      %v5194 = vand.u32 %v5137, 2147483648
      %v5195 = vor.u32 1.1754944e-38, %v5194
      %v5196 = vsel %vm5193, %v5195, %v5191
      %v5197 = vmul.f32 1.0, %v5196
      %v5198 = vtanh.pop %v5032
      %v5199 = vtanh.pop %v5036
      %v5200 = vtanh.pop %v5040
      %v5201 = vtanh.pop %v5044
      %v5202 = vxor.u32 %v5033, 2147483648
      %v5203 = vxor.u32 %v5037, 2147483648
      %v5204 = vxor.u32 %v5041, 2147483648
      %v5205 = vxor.u32 %v5045, 2147483648
      %v5206 = vmul.f32 %v5202, 1.442695
      %v5207 = vpow.pop %v5206
      %v5208 = vmul.f32 %v5203, 1.442695
      %v5209 = vpow.pop %v5208
      %v5210 = vmul.f32 %v5204, 1.442695
      %v5211 = vpow.pop %v5210
      %v5212 = vmul.f32 %v5205, 1.442695
      %v5213 = vpow.pop %v5212
      %v5214 = vadd.f32 %v5207, 1.0
      %v5215 = vadd.f32 %v5209, 1.0
      %v5216 = vadd.f32 %v5211, 1.0
      %v5217 = vadd.f32 %v5213, 1.0
      %v5218 = vrcp.pop %v5214
      %v5219 = vmul.f32 %v5214, %v5218
      %v5220 = vsub.f32 1.0, %v5219
      %v5221 = vmul.f32 %v5218, %v5220
      %v5222 = vadd.f32 %v5218, %v5221
      %vm5223 = vweird.f32 %v5214
      %vm5224 = vweird.f32 %v5218
      %vm5225 = vmor %vm5223, %vm5224
      %v5226 = vsel %vm5225, %v5218, %v5222
      %v5227 = vand.u32 2147483647, %v5214
      %vm5228 = vcmp.eq.f32.partialorder %v5227, 8.507059e+37
      %v5229 = vand.u32 %v5214, 2147483648
      %v5230 = vor.u32 1.1754944e-38, %v5229
      %v5231 = vsel %vm5228, %v5230, %v5226
      %v5232 = vmul.f32 1.0, %v5231
      %v5233 = vrcp.pop %v5215
      %v5234 = vmul.f32 %v5215, %v5233
      %v5235 = vsub.f32 1.0, %v5234
      %v5236 = vmul.f32 %v5233, %v5235
      %v5237 = vadd.f32 %v5233, %v5236
      %vm5238 = vweird.f32 %v5215
      %vm5239 = vweird.f32 %v5233
      %vm5240 = vmor %vm5238, %vm5239
      %v5241 = vsel %vm5240, %v5233, %v5237
      %v5242 = vand.u32 2147483647, %v5215
      %vm5243 = vcmp.eq.f32.partialorder %v5242, 8.507059e+37
      %v5244 = vand.u32 %v5215, 2147483648
      %v5245 = vor.u32 1.1754944e-38, %v5244
      %v5246 = vsel %vm5243, %v5245, %v5241
      %v5247 = vmul.f32 1.0, %v5246
      %v5248 = vrcp.pop %v5216
      %v5249 = vmul.f32 %v5216, %v5248
      %v5250 = vsub.f32 1.0, %v5249
      %v5251 = vmul.f32 %v5248, %v5250
      %v5252 = vadd.f32 %v5248, %v5251
      %vm5253 = vweird.f32 %v5216
      %vm5254 = vweird.f32 %v5248
      %vm5255 = vmor %vm5253, %vm5254
      %v5256 = vsel %vm5255, %v5248, %v5252
      %v5257 = vand.u32 2147483647, %v5216
      %vm5258 = vcmp.eq.f32.partialorder %v5257, 8.507059e+37
      %v5259 = vand.u32 %v5216, 2147483648
      %v5260 = vor.u32 1.1754944e-38, %v5259
      %v5261 = vsel %vm5258, %v5260, %v5256
      %v5262 = vmul.f32 1.0, %v5261
      %v5263 = vrcp.pop %v5217
      %v5264 = vmul.f32 %v5217, %v5263
      %v5265 = vsub.f32 1.0, %v5264
      %v5266 = vmul.f32 %v5263, %v5265
      %v5267 = vadd.f32 %v5263, %v5266
      %vm5268 = vweird.f32 %v5217
      %vm5269 = vweird.f32 %v5263
      %vm5270 = vmor %vm5268, %vm5269
      %v5271 = vsel %vm5270, %v5263, %v5267
      %v5272 = vand.u32 2147483647, %v5217
      %vm5273 = vcmp.eq.f32.partialorder %v5272, 8.507059e+37
      %v5274 = vand.u32 %v5217, 2147483648
      %v5275 = vor.u32 1.1754944e-38, %v5274
      %v5276 = vsel %vm5273, %v5275, %v5271
      %v5277 = vmul.f32 1.0, %v5276
      %v5278 = vmul.f32 %v5152, %v4477
      %v5279 = vmul.f32 %v5167, %v4478
      %v5280 = vmul.f32 %v5182, %v4479
      %v5281 = vmul.f32 %v5197, %v4480
      %v5282 = vmul.f32 %v5076, %v5198
      %v5283 = vmul.f32 %v5091, %v5199
      %v5284 = vmul.f32 %v5106, %v5200
      %v5285 = vmul.f32 %v5121, %v5201
      %v5286 = vadd.f32 %v5278, %v5282
      %v5287 = vadd.f32 %v5279, %v5283
      %v5288 = vadd.f32 %v5280, %v5284
      %v5289 = vadd.f32 %v5281, %v5285
      %v5290 = vtanh.pop %v5286
      %v5291 = vtanh.pop %v5287
      %v5292 = vtanh.pop %v5288
      %v5293 = vtanh.pop %v5289
      %v5294 = vmul.f32 %v5232, %v5290
      %v5295 = vmul.f32 %v5247, %v5291
      %v5296 = vmul.f32 %v5262, %v5292
      %v5297 = vmul.f32 %v5277, %v5293
      %p5298 = scmp.ge.s32.totalorder %s4475, 0
      %p5299 = scmp.lt.s32.totalorder %s4475, 2
      %p5300 = pnand %p5298, %p5299
      %p5301 = pneg %p5300
      %s5302 = scalar_select %p5301, 1, 0
      %s5303 = scvt.s32.f32 %s5302
      %v5304 = vstv %s5303
      %v5305 = vmul.f32 %v5304, %v5294
      %v5306 = vmul.f32 %v5304, %v5295
      %v5307 = vmul.f32 %v5304, %v5296
      %v5308 = vmul.f32 %v5304, %v5297
      %s5309 = ssub.f32 1.0, %s5303
      %v5310 = vstv %s5309
      %v5311 = vmul.f32 %v5310, %v144
      %v5312 = vmul.f32 %v5310, %v145
      %v5313 = vmul.f32 %v5310, %v146
      %v5314 = vmul.f32 %v5310, %v147
      %v5315 = vadd.f32 %v5305, %v5311
      %v5316 = vadd.f32 %v5306, %v5312
      %v5317 = vadd.f32 %v5307, %v5313
      %v5318 = vadd.f32 %v5308, %v5314
      %v5319 = vmul.f32 %v5304, %v5286
      %v5320 = vmul.f32 %v5304, %v5287
      %v5321 = vmul.f32 %v5304, %v5288
      %v5322 = vmul.f32 %v5304, %v5289
      %v5323 = vmul.f32 %v5310, %v4477
      %v5324 = vmul.f32 %v5310, %v4478
      %v5325 = vmul.f32 %v5310, %v4479
      %v5326 = vmul.f32 %v5310, %v4480
      %v5327 = vadd.f32 %v5319, %v5323
      %v5328 = vadd.f32 %v5320, %v5324
      %v5329 = vadd.f32 %v5321, %v5325
      %v5330 = vadd.f32 %v5322, %v5326
      %s5331 = ssub.s32 %s105, 6
      %s5332 = scalar_lea.vmem [#allocation3], 192
      %v5333 = vld [vmem:[%s5332] sm:$0xff]
      %v5334 = vld [vmem:[%s5332 + $0x8] sm:$0xff]
      %v5335 = vld [vmem:[%s5332 + $0x10] sm:$0xff]
      %v5336 = vld [vmem:[%s5332 + $0x18] sm:$0xff]
      %s5337 = scalar_lea.vmem %s1, 1536
      %v5338 = vld [vmem:[%s5337] sm:$0xff]
      %v5339 = vld [vmem:[%s5337 + $0x8] sm:$0xff]
      %v5340 = vld [vmem:[%s5337 + $0x10] sm:$0xff]
      %v5341 = vld [vmem:[%s5337 + $0x18] sm:$0xff]
      %v5342 = vld [vmem:[%s5337 + $0x20] sm:$0xff]
      %v5343 = vld [vmem:[%s5337 + $0x28] sm:$0xff]
      %v5344 = vld [vmem:[%s5337 + $0x30] sm:$0xff]
      %v5345 = vld [vmem:[%s5337 + $0x38] sm:$0xff]
      %v5346 = vld [vmem:[%s5337 + $0x40] sm:$0xff]
      %v5347 = vld [vmem:[%s5337 + $0x48] sm:$0xff]
      %v5348 = vld [vmem:[%s5337 + $0x50] sm:$0xff]
      %v5349 = vld [vmem:[%s5337 + $0x58] sm:$0xff]
      %v5350 = vld [vmem:[%s5337 + $0x60] sm:$0xff]
      %v5351 = vld [vmem:[%s5337 + $0x68] sm:$0xff]
      %v5352 = vld [vmem:[%s5337 + $0x70] sm:$0xff]
      %v5353 = vld [vmem:[%s5337 + $0x78] sm:$0xff]
      %v5354 = vld [vmem:[%s5337 + $0x80] sm:$0xff]
      %v5355 = vld [vmem:[%s5337 + $0x88] sm:$0xff]
      %v5356 = vld [vmem:[%s5337 + $0x90] sm:$0xff]
      %v5357 = vld [vmem:[%s5337 + $0x98] sm:$0xff]
      %v5358 = vld [vmem:[%s5337 + $0xa0] sm:$0xff]
      %v5359 = vld [vmem:[%s5337 + $0xa8] sm:$0xff]
      %v5360 = vld [vmem:[%s5337 + $0xb0] sm:$0xff]
      %v5361 = vld [vmem:[%s5337 + $0xb8] sm:$0xff]
      %v5362 = vld [vmem:[%s5337 + $0xc0] sm:$0xff]
      %v5363 = vld [vmem:[%s5337 + $0xc8] sm:$0xff]
      %v5364 = vld [vmem:[%s5337 + $0xd0] sm:$0xff]
      %v5365 = vld [vmem:[%s5337 + $0xd8] sm:$0xff]
      %v5366 = vld [vmem:[%s5337 + $0xe0] sm:$0xff]
      %v5367 = vld [vmem:[%s5337 + $0xe8] sm:$0xff]
      %v5368 = vld [vmem:[%s5337 + $0xf0] sm:$0xff]
      %v5369 = vld [vmem:[%s5337 + $0xf8] sm:$0xff]
      %s5370 = scalar_lea.vmem %s2, 1536
      %v5371 = vld [vmem:[%s5370] sm:$0xff]
      %v5372 = vld [vmem:[%s5370 + $0x8] sm:$0xff]
      %v5373 = vld [vmem:[%s5370 + $0x10] sm:$0xff]
      %v5374 = vld [vmem:[%s5370 + $0x18] sm:$0xff]
      %v5375 = vld [vmem:[%s5370 + $0x20] sm:$0xff]
      %v5376 = vld [vmem:[%s5370 + $0x28] sm:$0xff]
      %v5377 = vld [vmem:[%s5370 + $0x30] sm:$0xff]
      %v5378 = vld [vmem:[%s5370 + $0x38] sm:$0xff]
      %v5379 = vld [vmem:[%s5370 + $0x40] sm:$0xff]
      %v5380 = vld [vmem:[%s5370 + $0x48] sm:$0xff]
      %v5381 = vld [vmem:[%s5370 + $0x50] sm:$0xff]
      %v5382 = vld [vmem:[%s5370 + $0x58] sm:$0xff]
      %v5383 = vld [vmem:[%s5370 + $0x60] sm:$0xff]
      %v5384 = vld [vmem:[%s5370 + $0x68] sm:$0xff]
      %v5385 = vld [vmem:[%s5370 + $0x70] sm:$0xff]
      %v5386 = vld [vmem:[%s5370 + $0x78] sm:$0xff]
      %v5387 = vld [vmem:[%s5370 + $0x80] sm:$0xff]
      %v5388 = vld [vmem:[%s5370 + $0x88] sm:$0xff]
      %v5389 = vld [vmem:[%s5370 + $0x90] sm:$0xff]
      %v5390 = vld [vmem:[%s5370 + $0x98] sm:$0xff]
      %v5391 = vld [vmem:[%s5370 + $0xa0] sm:$0xff]
      %v5392 = vld [vmem:[%s5370 + $0xa8] sm:$0xff]
      %v5393 = vld [vmem:[%s5370 + $0xb0] sm:$0xff]
      %v5394 = vld [vmem:[%s5370 + $0xb8] sm:$0xff]
      %v5395 = vld [vmem:[%s5370 + $0xc0] sm:$0xff]
      %v5396 = vld [vmem:[%s5370 + $0xc8] sm:$0xff]
      %v5397 = vld [vmem:[%s5370 + $0xd0] sm:$0xff]
      %v5398 = vld [vmem:[%s5370 + $0xd8] sm:$0xff]
      %v5399 = vld [vmem:[%s5370 + $0xe0] sm:$0xff]
      %v5400 = vld [vmem:[%s5370 + $0xe8] sm:$0xff]
      %v5401 = vld [vmem:[%s5370 + $0xf0] sm:$0xff]
      %v5402 = vld [vmem:[%s5370 + $0xf8] sm:$0xff]
      %v5435 = vunpack.c.l.b16 %v5371
      %v5436 = vunpack.c.h.b16 %v5371
      %v5437 = vunpack.c.l.b16 %v5372
      %v5438 = vunpack.c.h.b16 %v5372
      %v5439 = vunpack.c.l.b16 %v5373
      %v5440 = vunpack.c.h.b16 %v5373
      %v5441 = vunpack.c.l.b16 %v5374
      %v5442 = vunpack.c.h.b16 %v5374
      %v5443 = vunpack.c.l.b16 %v5375
      %v5444 = vunpack.c.h.b16 %v5375
      %v5445 = vunpack.c.l.b16 %v5376
      %v5446 = vunpack.c.h.b16 %v5376
      %v5447 = vunpack.c.l.b16 %v5377
      %v5448 = vunpack.c.h.b16 %v5377
      %v5449 = vunpack.c.l.b16 %v5378
      %v5450 = vunpack.c.h.b16 %v5378
      %v5451 = vunpack.c.l.b16 %v5379
      %v5452 = vunpack.c.h.b16 %v5379
      %v5453 = vunpack.c.l.b16 %v5380
      %v5454 = vunpack.c.h.b16 %v5380
      %v5455 = vunpack.c.l.b16 %v5381
      %v5456 = vunpack.c.h.b16 %v5381
      %v5457 = vunpack.c.l.b16 %v5382
      %v5458 = vunpack.c.h.b16 %v5382
      %v5459 = vunpack.c.l.b16 %v5383
      %v5460 = vunpack.c.h.b16 %v5383
      %v5461 = vunpack.c.l.b16 %v5384
      %v5462 = vunpack.c.h.b16 %v5384
      %v5463 = vunpack.c.l.b16 %v5385
      %v5464 = vunpack.c.h.b16 %v5385
      %v5465 = vunpack.c.l.b16 %v5386
      %v5466 = vunpack.c.h.b16 %v5386
      %v5467 = vunpack.c.l.b16 %v5387
      %v5468 = vunpack.c.h.b16 %v5387
      %v5469 = vunpack.c.l.b16 %v5388
      %v5470 = vunpack.c.h.b16 %v5388
      %v5471 = vunpack.c.l.b16 %v5389
      %v5472 = vunpack.c.h.b16 %v5389
      %v5473 = vunpack.c.l.b16 %v5390
      %v5474 = vunpack.c.h.b16 %v5390
      %v5475 = vunpack.c.l.b16 %v5391
      %v5476 = vunpack.c.h.b16 %v5391
      %v5477 = vunpack.c.l.b16 %v5392
      %v5478 = vunpack.c.h.b16 %v5392
      %v5479 = vunpack.c.l.b16 %v5393
      %v5480 = vunpack.c.h.b16 %v5393
      %v5481 = vunpack.c.l.b16 %v5394
      %v5482 = vunpack.c.h.b16 %v5394
      %v5483 = vunpack.c.l.b16 %v5395
      %v5484 = vunpack.c.h.b16 %v5395
      %v5485 = vunpack.c.l.b16 %v5396
      %v5486 = vunpack.c.h.b16 %v5396
      %v5487 = vunpack.c.l.b16 %v5397
      %v5488 = vunpack.c.h.b16 %v5397
      %v5489 = vunpack.c.l.b16 %v5398
      %v5490 = vunpack.c.h.b16 %v5398
      %v5491 = vunpack.c.l.b16 %v5399
      %v5492 = vunpack.c.h.b16 %v5399
      %v5493 = vunpack.c.l.b16 %v5400
      %v5494 = vunpack.c.h.b16 %v5400
      %v5495 = vunpack.c.l.b16 %v5401
      %v5496 = vunpack.c.h.b16 %v5401
      %v5497 = vunpack.c.l.b16 %v5402
      %v5498 = vunpack.c.h.b16 %v5402
      %v5499 = vpack.c.b16 %v5439, %v5435
      %v5500 = vpack.c.b16 %v5440, %v5436
      %v5501 = vpack.c.b16 %v5441, %v5437
      %v5502 = vpack.c.b16 %v5442, %v5438
      %v5503 = vpack.c.b16 %v5447, %v5443
      %v5504 = vpack.c.b16 %v5448, %v5444
      %v5505 = vpack.c.b16 %v5449, %v5445
      %v5506 = vpack.c.b16 %v5450, %v5446
      %v5507 = vpack.c.b16 %v5455, %v5451
      %v5508 = vpack.c.b16 %v5456, %v5452
      %v5509 = vpack.c.b16 %v5457, %v5453
      %v5510 = vpack.c.b16 %v5458, %v5454
      %v5511 = vpack.c.b16 %v5463, %v5459
      %v5512 = vpack.c.b16 %v5464, %v5460
      %v5513 = vpack.c.b16 %v5465, %v5461
      %v5514 = vpack.c.b16 %v5466, %v5462
      %v5515 = vpack.c.b16 %v5471, %v5467
      %v5516 = vpack.c.b16 %v5472, %v5468
      %v5517 = vpack.c.b16 %v5473, %v5469
      %v5518 = vpack.c.b16 %v5474, %v5470
      %v5519 = vpack.c.b16 %v5479, %v5475
      %v5520 = vpack.c.b16 %v5480, %v5476
      %v5521 = vpack.c.b16 %v5481, %v5477
      %v5522 = vpack.c.b16 %v5482, %v5478
      %v5523 = vpack.c.b16 %v5487, %v5483
      %v5524 = vpack.c.b16 %v5488, %v5484
      %v5525 = vpack.c.b16 %v5489, %v5485
      %v5526 = vpack.c.b16 %v5490, %v5486
      %v5527 = vpack.c.b16 %v5495, %v5491
      %v5528 = vpack.c.b16 %v5496, %v5492
      %v5529 = vpack.c.b16 %v5497, %v5493
      %v5530 = vpack.c.b16 %v5498, %v5494
      %5563 = vmatpush.bf16.msra.mxu0 %v5527
      %5564 = vmatpush.bf16.msra.mxu0 %v5523
      %5565 = vmatpush.bf16.msra.mxu0 %v5519
      %5566 = vmatpush.bf16.msra.mxu0 %v5515
      %5567 = vmatpush.bf16.msra.mxu0 %v5511
      %5568 = vmatpush.bf16.msra.mxu0 %v5507
      %5569 = vmatpush.bf16.msra.mxu0 %v5503
      %5570 = vmatpush.bf16.msra.mxu0 %v5499
      %5571 = vmatmul.bf16.gmra.mxu0 %v180
      %v5572 = vpop.f32.mrf.mxu0
      %v5573 = vadd.f32 0.0, %v5572
      %v5574 = vpop.f32.mrf.mxu0
      %v5575 = vadd.f32 0.0, %v5574
      %5576 = vmatmul.bf16.gmra.mxu0 %v181
      %v5577 = vpop.f32.mrf.mxu0
      %v5578 = vadd.f32 0.0, %v5577
      %v5579 = vpop.f32.mrf.mxu0
      %v5580 = vadd.f32 0.0, %v5579
      %5581 = vdwg.mxu0
      %5582 = vmatpush.bf16.msra.mxu0 %v5528
      %5583 = vmatpush.bf16.msra.mxu0 %v5524
      %5584 = vmatpush.bf16.msra.mxu0 %v5520
      %5585 = vmatpush.bf16.msra.mxu0 %v5516
      %5586 = vmatpush.bf16.msra.mxu0 %v5512
      %5587 = vmatpush.bf16.msra.mxu0 %v5508
      %5588 = vmatpush.bf16.msra.mxu0 %v5504
      %5589 = vmatpush.bf16.msra.mxu0 %v5500
      %5590 = vmatmul.bf16.gmra.mxu0 %v180
      %v5591 = vpop.f32.mrf.mxu0
      %v5592 = vadd.f32 0.0, %v5591
      %v5593 = vpop.f32.mrf.mxu0
      %v5594 = vadd.f32 0.0, %v5593
      %5595 = vmatmul.bf16.gmra.mxu0 %v181
      %v5596 = vpop.f32.mrf.mxu0
      %v5597 = vadd.f32 0.0, %v5596
      %v5598 = vpop.f32.mrf.mxu0
      %v5599 = vadd.f32 0.0, %v5598
      %5600 = vdwg.mxu0
      %5601 = vmatpush.bf16.msra.mxu0 %v5529
      %5602 = vmatpush.bf16.msra.mxu0 %v5525
      %5603 = vmatpush.bf16.msra.mxu0 %v5521
      %5604 = vmatpush.bf16.msra.mxu0 %v5517
      %5605 = vmatpush.bf16.msra.mxu0 %v5513
      %5606 = vmatpush.bf16.msra.mxu0 %v5509
      %5607 = vmatpush.bf16.msra.mxu0 %v5505
      %5608 = vmatpush.bf16.msra.mxu0 %v5501
      %5609 = vmatmul.bf16.gmra.mxu0 %v180
      %v5610 = vpop.f32.mrf.mxu0
      %v5611 = vadd.f32 0.0, %v5610
      %v5612 = vpop.f32.mrf.mxu0
      %v5613 = vadd.f32 0.0, %v5612
      %5614 = vmatmul.bf16.gmra.mxu0 %v181
      %v5615 = vpop.f32.mrf.mxu0
      %v5616 = vadd.f32 0.0, %v5615
      %v5617 = vpop.f32.mrf.mxu0
      %v5618 = vadd.f32 0.0, %v5617
      %5619 = vdwg.mxu0
      %5620 = vmatpush.bf16.msra.mxu0 %v5530
      %5621 = vmatpush.bf16.msra.mxu0 %v5526
      %5622 = vmatpush.bf16.msra.mxu0 %v5522
      %5623 = vmatpush.bf16.msra.mxu0 %v5518
      %5624 = vmatpush.bf16.msra.mxu0 %v5514
      %5625 = vmatpush.bf16.msra.mxu0 %v5510
      %5626 = vmatpush.bf16.msra.mxu0 %v5506
      %5627 = vmatpush.bf16.msra.mxu0 %v5502
      %5628 = vmatmul.bf16.gmra.mxu0 %v180
      %v5629 = vpop.f32.mrf.mxu0
      %v5630 = vadd.f32 0.0, %v5629
      %v5631 = vpop.f32.mrf.mxu0
      %v5632 = vadd.f32 0.0, %v5631
      %5633 = vmatmul.bf16.gmra.mxu0 %v181
      %v5634 = vpop.f32.mrf.mxu0
      %v5635 = vadd.f32 0.0, %v5634
      %v5636 = vpop.f32.mrf.mxu0
      %v5637 = vadd.f32 0.0, %v5636
      %5638 = vdwg.mxu0
      %v5671 = vunpack.c.l.b16 %v5338
      %v5672 = vunpack.c.h.b16 %v5338
      %v5673 = vunpack.c.l.b16 %v5339
      %v5674 = vunpack.c.h.b16 %v5339
      %v5675 = vunpack.c.l.b16 %v5340
      %v5676 = vunpack.c.h.b16 %v5340
      %v5677 = vunpack.c.l.b16 %v5341
      %v5678 = vunpack.c.h.b16 %v5341
      %v5679 = vunpack.c.l.b16 %v5342
      %v5680 = vunpack.c.h.b16 %v5342
      %v5681 = vunpack.c.l.b16 %v5343
      %v5682 = vunpack.c.h.b16 %v5343
      %v5683 = vunpack.c.l.b16 %v5344
      %v5684 = vunpack.c.h.b16 %v5344
      %v5685 = vunpack.c.l.b16 %v5345
      %v5686 = vunpack.c.h.b16 %v5345
      %v5687 = vunpack.c.l.b16 %v5346
      %v5688 = vunpack.c.h.b16 %v5346
      %v5689 = vunpack.c.l.b16 %v5347
      %v5690 = vunpack.c.h.b16 %v5347
      %v5691 = vunpack.c.l.b16 %v5348
      %v5692 = vunpack.c.h.b16 %v5348
      %v5693 = vunpack.c.l.b16 %v5349
      %v5694 = vunpack.c.h.b16 %v5349
      %v5695 = vunpack.c.l.b16 %v5350
      %v5696 = vunpack.c.h.b16 %v5350
      %v5697 = vunpack.c.l.b16 %v5351
      %v5698 = vunpack.c.h.b16 %v5351
      %v5699 = vunpack.c.l.b16 %v5352
      %v5700 = vunpack.c.h.b16 %v5352
      %v5701 = vunpack.c.l.b16 %v5353
      %v5702 = vunpack.c.h.b16 %v5353
      %v5703 = vunpack.c.l.b16 %v5354
      %v5704 = vunpack.c.h.b16 %v5354
      %v5705 = vunpack.c.l.b16 %v5355
      %v5706 = vunpack.c.h.b16 %v5355
      %v5707 = vunpack.c.l.b16 %v5356
      %v5708 = vunpack.c.h.b16 %v5356
      %v5709 = vunpack.c.l.b16 %v5357
      %v5710 = vunpack.c.h.b16 %v5357
      %v5711 = vunpack.c.l.b16 %v5358
      %v5712 = vunpack.c.h.b16 %v5358
      %v5713 = vunpack.c.l.b16 %v5359
      %v5714 = vunpack.c.h.b16 %v5359
      %v5715 = vunpack.c.l.b16 %v5360
      %v5716 = vunpack.c.h.b16 %v5360
      %v5717 = vunpack.c.l.b16 %v5361
      %v5718 = vunpack.c.h.b16 %v5361
      %v5719 = vunpack.c.l.b16 %v5362
      %v5720 = vunpack.c.h.b16 %v5362
      %v5721 = vunpack.c.l.b16 %v5363
      %v5722 = vunpack.c.h.b16 %v5363
      %v5723 = vunpack.c.l.b16 %v5364
      %v5724 = vunpack.c.h.b16 %v5364
      %v5725 = vunpack.c.l.b16 %v5365
      %v5726 = vunpack.c.h.b16 %v5365
      %v5727 = vunpack.c.l.b16 %v5366
      %v5728 = vunpack.c.h.b16 %v5366
      %v5729 = vunpack.c.l.b16 %v5367
      %v5730 = vunpack.c.h.b16 %v5367
      %v5731 = vunpack.c.l.b16 %v5368
      %v5732 = vunpack.c.h.b16 %v5368
      %v5733 = vunpack.c.l.b16 %v5369
      %v5734 = vunpack.c.h.b16 %v5369
      %v5735 = vpack.c.b16 %v5675, %v5671
      %v5736 = vpack.c.b16 %v5676, %v5672
      %v5737 = vpack.c.b16 %v5677, %v5673
      %v5738 = vpack.c.b16 %v5678, %v5674
      %v5739 = vpack.c.b16 %v5683, %v5679
      %v5740 = vpack.c.b16 %v5684, %v5680
      %v5741 = vpack.c.b16 %v5685, %v5681
      %v5742 = vpack.c.b16 %v5686, %v5682
      %v5743 = vpack.c.b16 %v5691, %v5687
      %v5744 = vpack.c.b16 %v5692, %v5688
      %v5745 = vpack.c.b16 %v5693, %v5689
      %v5746 = vpack.c.b16 %v5694, %v5690
      %v5747 = vpack.c.b16 %v5699, %v5695
      %v5748 = vpack.c.b16 %v5700, %v5696
      %v5749 = vpack.c.b16 %v5701, %v5697
      %v5750 = vpack.c.b16 %v5702, %v5698
      %v5751 = vpack.c.b16 %v5707, %v5703
      %v5752 = vpack.c.b16 %v5708, %v5704
      %v5753 = vpack.c.b16 %v5709, %v5705
      %v5754 = vpack.c.b16 %v5710, %v5706
      %v5755 = vpack.c.b16 %v5715, %v5711
      %v5756 = vpack.c.b16 %v5716, %v5712
      %v5757 = vpack.c.b16 %v5717, %v5713
      %v5758 = vpack.c.b16 %v5718, %v5714
      %v5759 = vpack.c.b16 %v5723, %v5719
      %v5760 = vpack.c.b16 %v5724, %v5720
      %v5761 = vpack.c.b16 %v5725, %v5721
      %v5762 = vpack.c.b16 %v5726, %v5722
      %v5763 = vpack.c.b16 %v5731, %v5727
      %v5764 = vpack.c.b16 %v5732, %v5728
      %v5765 = vpack.c.b16 %v5733, %v5729
      %v5766 = vpack.c.b16 %v5734, %v5730
      %5799 = vmatpush.bf16.msra.mxu0 %v5763
      %5800 = vmatpush.bf16.msra.mxu0 %v5759
      %5801 = vmatpush.bf16.msra.mxu0 %v5755
      %5802 = vmatpush.bf16.msra.mxu0 %v5751
      %5803 = vmatpush.bf16.msra.mxu0 %v5747
      %5804 = vmatpush.bf16.msra.mxu0 %v5743
      %5805 = vmatpush.bf16.msra.mxu0 %v5739
      %5806 = vmatpush.bf16.msra.mxu0 %v5735
      %5807 = vmatmul.bf16.gmra.mxu0 %v178
      %v5808 = vpop.f32.mrf.mxu0
      %v5809 = vadd.f32 %v5573, %v5808
      %v5810 = vpop.f32.mrf.mxu0
      %v5811 = vadd.f32 %v5575, %v5810
      %5812 = vmatmul.bf16.gmra.mxu0 %v179
      %v5813 = vpop.f32.mrf.mxu0
      %v5814 = vadd.f32 %v5578, %v5813
      %v5815 = vpop.f32.mrf.mxu0
      %v5816 = vadd.f32 %v5580, %v5815
      %5817 = vdwg.mxu0
      %5818 = vmatpush.bf16.msra.mxu0 %v5764
      %5819 = vmatpush.bf16.msra.mxu0 %v5760
      %5820 = vmatpush.bf16.msra.mxu0 %v5756
      %5821 = vmatpush.bf16.msra.mxu0 %v5752
      %5822 = vmatpush.bf16.msra.mxu0 %v5748
      %5823 = vmatpush.bf16.msra.mxu0 %v5744
      %5824 = vmatpush.bf16.msra.mxu0 %v5740
      %5825 = vmatpush.bf16.msra.mxu0 %v5736
      %5826 = vmatmul.bf16.gmra.mxu0 %v178
      %v5827 = vpop.f32.mrf.mxu0
      %v5828 = vadd.f32 %v5592, %v5827
      %v5829 = vpop.f32.mrf.mxu0
      %v5830 = vadd.f32 %v5594, %v5829
      %5831 = vmatmul.bf16.gmra.mxu0 %v179
      %v5832 = vpop.f32.mrf.mxu0
      %v5833 = vadd.f32 %v5597, %v5832
      %v5834 = vpop.f32.mrf.mxu0
      %v5835 = vadd.f32 %v5599, %v5834
      %5836 = vdwg.mxu0
      %5837 = vmatpush.bf16.msra.mxu0 %v5765
      %5838 = vmatpush.bf16.msra.mxu0 %v5761
      %5839 = vmatpush.bf16.msra.mxu0 %v5757
      %5840 = vmatpush.bf16.msra.mxu0 %v5753
      %5841 = vmatpush.bf16.msra.mxu0 %v5749
      %5842 = vmatpush.bf16.msra.mxu0 %v5745
      %5843 = vmatpush.bf16.msra.mxu0 %v5741
      %5844 = vmatpush.bf16.msra.mxu0 %v5737
      %5845 = vmatmul.bf16.gmra.mxu0 %v178
      %v5846 = vpop.f32.mrf.mxu0
      %v5847 = vadd.f32 %v5611, %v5846
      %v5848 = vpop.f32.mrf.mxu0
      %v5849 = vadd.f32 %v5613, %v5848
      %5850 = vmatmul.bf16.gmra.mxu0 %v179
      %v5851 = vpop.f32.mrf.mxu0
      %v5852 = vadd.f32 %v5616, %v5851
      %v5853 = vpop.f32.mrf.mxu0
      %v5854 = vadd.f32 %v5618, %v5853
      %5855 = vdwg.mxu0
      %5856 = vmatpush.bf16.msra.mxu0 %v5766
      %5857 = vmatpush.bf16.msra.mxu0 %v5762
      %5858 = vmatpush.bf16.msra.mxu0 %v5758
      %5859 = vmatpush.bf16.msra.mxu0 %v5754
      %5860 = vmatpush.bf16.msra.mxu0 %v5750
      %5861 = vmatpush.bf16.msra.mxu0 %v5746
      %5862 = vmatpush.bf16.msra.mxu0 %v5742
      %5863 = vmatpush.bf16.msra.mxu0 %v5738
      %5864 = vmatmul.bf16.gmra.mxu0 %v178
      %v5865 = vpop.f32.mrf.mxu0
      %v5866 = vadd.f32 %v5630, %v5865
      %v5867 = vpop.f32.mrf.mxu0
      %v5868 = vadd.f32 %v5632, %v5867
      %5869 = vmatmul.bf16.gmra.mxu0 %v179
      %v5870 = vpop.f32.mrf.mxu0
      %v5871 = vadd.f32 %v5635, %v5870
      %v5872 = vpop.f32.mrf.mxu0
      %v5873 = vadd.f32 %v5637, %v5872
      %5874 = vdwg.mxu0
      %s5875 = scalar_lea.vmem %s3, 24
      %v5876 = vld [vmem:[%s5875] sm:$0xf]
      %v5878 = vperm.slane %v5876, 0
      %v5879 = vperm.slane %v5876, 1
      %v5880 = vperm.slane %v5876, 2
      %v5881 = vperm.slane %v5876, 3
      %v5886 = vadd.f32 %v5809, %v5878
      %v5887 = vadd.f32 %v5828, %v5879
      %v5888 = vadd.f32 %v5847, %v5880
      %v5889 = vadd.f32 %v5866, %v5881
      %v5890 = vadd.f32 %v5811, %v5878
      %v5891 = vadd.f32 %v5830, %v5879
      %v5892 = vadd.f32 %v5849, %v5880
      %v5893 = vadd.f32 %v5868, %v5881
      %v5894 = vadd.f32 %v5814, %v5878
      %v5895 = vadd.f32 %v5833, %v5879
      %v5896 = vadd.f32 %v5852, %v5880
      %v5897 = vadd.f32 %v5871, %v5881
      %v5898 = vadd.f32 %v5816, %v5878
      %v5899 = vadd.f32 %v5835, %v5879
      %v5900 = vadd.f32 %v5854, %v5880
      %v5901 = vadd.f32 %v5873, %v5881
      %v5902 = vxor.u32 %v5886, 2147483648
      %v5903 = vxor.u32 %v5890, 2147483648
      %v5904 = vxor.u32 %v5894, 2147483648
      %v5905 = vxor.u32 %v5898, 2147483648
      %v5906 = vmul.f32 %v5902, 1.442695
      %v5907 = vpow.pop %v5906
      %v5908 = vmul.f32 %v5903, 1.442695
      %v5909 = vpow.pop %v5908
      %v5910 = vmul.f32 %v5904, 1.442695
      %v5911 = vpow.pop %v5910
      %v5912 = vmul.f32 %v5905, 1.442695
      %v5913 = vpow.pop %v5912
      %v5914 = vadd.f32 %v5907, 1.0
      %v5915 = vadd.f32 %v5909, 1.0
      %v5916 = vadd.f32 %v5911, 1.0
      %v5917 = vadd.f32 %v5913, 1.0
      %v5918 = vrcp.pop %v5914
      %v5919 = vmul.f32 %v5914, %v5918
      %v5920 = vsub.f32 1.0, %v5919
      %v5921 = vmul.f32 %v5918, %v5920
      %v5922 = vadd.f32 %v5918, %v5921
      %vm5923 = vweird.f32 %v5914
      %vm5924 = vweird.f32 %v5918
      %vm5925 = vmor %vm5923, %vm5924
      %v5926 = vsel %vm5925, %v5918, %v5922
      %v5927 = vand.u32 2147483647, %v5914
      %vm5928 = vcmp.eq.f32.partialorder %v5927, 8.507059e+37
      %v5929 = vand.u32 %v5914, 2147483648
      %v5930 = vor.u32 1.1754944e-38, %v5929
      %v5931 = vsel %vm5928, %v5930, %v5926
      %v5932 = vmul.f32 1.0, %v5931
      %v5933 = vrcp.pop %v5915
      %v5934 = vmul.f32 %v5915, %v5933
      %v5935 = vsub.f32 1.0, %v5934
      %v5936 = vmul.f32 %v5933, %v5935
      %v5937 = vadd.f32 %v5933, %v5936
      %vm5938 = vweird.f32 %v5915
      %vm5939 = vweird.f32 %v5933
      %vm5940 = vmor %vm5938, %vm5939
      %v5941 = vsel %vm5940, %v5933, %v5937
      %v5942 = vand.u32 2147483647, %v5915
      %vm5943 = vcmp.eq.f32.partialorder %v5942, 8.507059e+37
      %v5944 = vand.u32 %v5915, 2147483648
      %v5945 = vor.u32 1.1754944e-38, %v5944
      %v5946 = vsel %vm5943, %v5945, %v5941
      %v5947 = vmul.f32 1.0, %v5946
      %v5948 = vrcp.pop %v5916
      %v5949 = vmul.f32 %v5916, %v5948
      %v5950 = vsub.f32 1.0, %v5949
      %v5951 = vmul.f32 %v5948, %v5950
      %v5952 = vadd.f32 %v5948, %v5951
      %vm5953 = vweird.f32 %v5916
      %vm5954 = vweird.f32 %v5948
      %vm5955 = vmor %vm5953, %vm5954
      %v5956 = vsel %vm5955, %v5948, %v5952
      %v5957 = vand.u32 2147483647, %v5916
      %vm5958 = vcmp.eq.f32.partialorder %v5957, 8.507059e+37
      %v5959 = vand.u32 %v5916, 2147483648
      %v5960 = vor.u32 1.1754944e-38, %v5959
      %v5961 = vsel %vm5958, %v5960, %v5956
      %v5962 = vmul.f32 1.0, %v5961
      %v5963 = vrcp.pop %v5917
      %v5964 = vmul.f32 %v5917, %v5963
      %v5965 = vsub.f32 1.0, %v5964
      %v5966 = vmul.f32 %v5963, %v5965
      %v5967 = vadd.f32 %v5963, %v5966
      %vm5968 = vweird.f32 %v5917
      %vm5969 = vweird.f32 %v5963
      %vm5970 = vmor %vm5968, %vm5969
      %v5971 = vsel %vm5970, %v5963, %v5967
      %v5972 = vand.u32 2147483647, %v5917
      %vm5973 = vcmp.eq.f32.partialorder %v5972, 8.507059e+37
      %v5974 = vand.u32 %v5917, 2147483648
      %v5975 = vor.u32 1.1754944e-38, %v5974
      %v5976 = vsel %vm5973, %v5975, %v5971
      %v5977 = vmul.f32 1.0, %v5976
      %v5978 = vxor.u32 %v5887, 2147483648
      %v5979 = vxor.u32 %v5891, 2147483648
      %v5980 = vxor.u32 %v5895, 2147483648
      %v5981 = vxor.u32 %v5899, 2147483648
      %v5982 = vmul.f32 %v5978, 1.442695
      %v5983 = vpow.pop %v5982
      %v5984 = vmul.f32 %v5979, 1.442695
      %v5985 = vpow.pop %v5984
      %v5986 = vmul.f32 %v5980, 1.442695
      %v5987 = vpow.pop %v5986
      %v5988 = vmul.f32 %v5981, 1.442695
      %v5989 = vpow.pop %v5988
      %v5990 = vadd.f32 %v5983, 1.0
      %v5991 = vadd.f32 %v5985, 1.0
      %v5992 = vadd.f32 %v5987, 1.0
      %v5993 = vadd.f32 %v5989, 1.0
      %v5994 = vrcp.pop %v5990
      %v5995 = vmul.f32 %v5990, %v5994
      %v5996 = vsub.f32 1.0, %v5995
      %v5997 = vmul.f32 %v5994, %v5996
      %v5998 = vadd.f32 %v5994, %v5997
      %vm5999 = vweird.f32 %v5990
      %vm6000 = vweird.f32 %v5994
      %vm6001 = vmor %vm5999, %vm6000
      %v6002 = vsel %vm6001, %v5994, %v5998
      %v6003 = vand.u32 2147483647, %v5990
      %vm6004 = vcmp.eq.f32.partialorder %v6003, 8.507059e+37
      %v6005 = vand.u32 %v5990, 2147483648
      %v6006 = vor.u32 1.1754944e-38, %v6005
      %v6007 = vsel %vm6004, %v6006, %v6002
      %v6008 = vmul.f32 1.0, %v6007
      %v6009 = vrcp.pop %v5991
      %v6010 = vmul.f32 %v5991, %v6009
      %v6011 = vsub.f32 1.0, %v6010
      %v6012 = vmul.f32 %v6009, %v6011
      %v6013 = vadd.f32 %v6009, %v6012
      %vm6014 = vweird.f32 %v5991
      %vm6015 = vweird.f32 %v6009
      %vm6016 = vmor %vm6014, %vm6015
      %v6017 = vsel %vm6016, %v6009, %v6013
      %v6018 = vand.u32 2147483647, %v5991
      %vm6019 = vcmp.eq.f32.partialorder %v6018, 8.507059e+37
      %v6020 = vand.u32 %v5991, 2147483648
      %v6021 = vor.u32 1.1754944e-38, %v6020
      %v6022 = vsel %vm6019, %v6021, %v6017
      %v6023 = vmul.f32 1.0, %v6022
      %v6024 = vrcp.pop %v5992
      %v6025 = vmul.f32 %v5992, %v6024
      %v6026 = vsub.f32 1.0, %v6025
      %v6027 = vmul.f32 %v6024, %v6026
      %v6028 = vadd.f32 %v6024, %v6027
      %vm6029 = vweird.f32 %v5992
      %vm6030 = vweird.f32 %v6024
      %vm6031 = vmor %vm6029, %vm6030
      %v6032 = vsel %vm6031, %v6024, %v6028
      %v6033 = vand.u32 2147483647, %v5992
      %vm6034 = vcmp.eq.f32.partialorder %v6033, 8.507059e+37
      %v6035 = vand.u32 %v5992, 2147483648
      %v6036 = vor.u32 1.1754944e-38, %v6035
      %v6037 = vsel %vm6034, %v6036, %v6032
      %v6038 = vmul.f32 1.0, %v6037
      %v6039 = vrcp.pop %v5993
      %v6040 = vmul.f32 %v5993, %v6039
      %v6041 = vsub.f32 1.0, %v6040
      %v6042 = vmul.f32 %v6039, %v6041
      %v6043 = vadd.f32 %v6039, %v6042
      %vm6044 = vweird.f32 %v5993
      %vm6045 = vweird.f32 %v6039
      %vm6046 = vmor %vm6044, %vm6045
      %v6047 = vsel %vm6046, %v6039, %v6043
      %v6048 = vand.u32 2147483647, %v5993
      %vm6049 = vcmp.eq.f32.partialorder %v6048, 8.507059e+37
      %v6050 = vand.u32 %v5993, 2147483648
      %v6051 = vor.u32 1.1754944e-38, %v6050
      %v6052 = vsel %vm6049, %v6051, %v6047
      %v6053 = vmul.f32 1.0, %v6052
      %v6054 = vtanh.pop %v5888
      %v6055 = vtanh.pop %v5892
      %v6056 = vtanh.pop %v5896
      %v6057 = vtanh.pop %v5900
      %v6058 = vxor.u32 %v5889, 2147483648
      %v6059 = vxor.u32 %v5893, 2147483648
      %v6060 = vxor.u32 %v5897, 2147483648
      %v6061 = vxor.u32 %v5901, 2147483648
      %v6062 = vmul.f32 %v6058, 1.442695
      %v6063 = vpow.pop %v6062
      %v6064 = vmul.f32 %v6059, 1.442695
      %v6065 = vpow.pop %v6064
      %v6066 = vmul.f32 %v6060, 1.442695
      %v6067 = vpow.pop %v6066
      %v6068 = vmul.f32 %v6061, 1.442695
      %v6069 = vpow.pop %v6068
      %v6070 = vadd.f32 %v6063, 1.0
      %v6071 = vadd.f32 %v6065, 1.0
      %v6072 = vadd.f32 %v6067, 1.0
      %v6073 = vadd.f32 %v6069, 1.0
      %v6074 = vrcp.pop %v6070
      %v6075 = vmul.f32 %v6070, %v6074
      %v6076 = vsub.f32 1.0, %v6075
      %v6077 = vmul.f32 %v6074, %v6076
      %v6078 = vadd.f32 %v6074, %v6077
      %vm6079 = vweird.f32 %v6070
      %vm6080 = vweird.f32 %v6074
      %vm6081 = vmor %vm6079, %vm6080
      %v6082 = vsel %vm6081, %v6074, %v6078
      %v6083 = vand.u32 2147483647, %v6070
      %vm6084 = vcmp.eq.f32.partialorder %v6083, 8.507059e+37
      %v6085 = vand.u32 %v6070, 2147483648
      %v6086 = vor.u32 1.1754944e-38, %v6085
      %v6087 = vsel %vm6084, %v6086, %v6082
      %v6088 = vmul.f32 1.0, %v6087
      %v6089 = vrcp.pop %v6071
      %v6090 = vmul.f32 %v6071, %v6089
      %v6091 = vsub.f32 1.0, %v6090
      %v6092 = vmul.f32 %v6089, %v6091
      %v6093 = vadd.f32 %v6089, %v6092
      %vm6094 = vweird.f32 %v6071
      %vm6095 = vweird.f32 %v6089
      %vm6096 = vmor %vm6094, %vm6095
      %v6097 = vsel %vm6096, %v6089, %v6093
      %v6098 = vand.u32 2147483647, %v6071
      %vm6099 = vcmp.eq.f32.partialorder %v6098, 8.507059e+37
      %v6100 = vand.u32 %v6071, 2147483648
      %v6101 = vor.u32 1.1754944e-38, %v6100
      %v6102 = vsel %vm6099, %v6101, %v6097
      %v6103 = vmul.f32 1.0, %v6102
      %v6104 = vrcp.pop %v6072
      %v6105 = vmul.f32 %v6072, %v6104
      %v6106 = vsub.f32 1.0, %v6105
      %v6107 = vmul.f32 %v6104, %v6106
      %v6108 = vadd.f32 %v6104, %v6107
      %vm6109 = vweird.f32 %v6072
      %vm6110 = vweird.f32 %v6104
      %vm6111 = vmor %vm6109, %vm6110
      %v6112 = vsel %vm6111, %v6104, %v6108
      %v6113 = vand.u32 2147483647, %v6072
      %vm6114 = vcmp.eq.f32.partialorder %v6113, 8.507059e+37
      %v6115 = vand.u32 %v6072, 2147483648
      %v6116 = vor.u32 1.1754944e-38, %v6115
      %v6117 = vsel %vm6114, %v6116, %v6112
      %v6118 = vmul.f32 1.0, %v6117
      %v6119 = vrcp.pop %v6073
      %v6120 = vmul.f32 %v6073, %v6119
      %v6121 = vsub.f32 1.0, %v6120
      %v6122 = vmul.f32 %v6119, %v6121
      %v6123 = vadd.f32 %v6119, %v6122
      %vm6124 = vweird.f32 %v6073
      %vm6125 = vweird.f32 %v6119
      %vm6126 = vmor %vm6124, %vm6125
      %v6127 = vsel %vm6126, %v6119, %v6123
      %v6128 = vand.u32 2147483647, %v6073
      %vm6129 = vcmp.eq.f32.partialorder %v6128, 8.507059e+37
      %v6130 = vand.u32 %v6073, 2147483648
      %v6131 = vor.u32 1.1754944e-38, %v6130
      %v6132 = vsel %vm6129, %v6131, %v6127
      %v6133 = vmul.f32 1.0, %v6132
      %v6134 = vmul.f32 %v6008, %v5333
      %v6135 = vmul.f32 %v6023, %v5334
      %v6136 = vmul.f32 %v6038, %v5335
      %v6137 = vmul.f32 %v6053, %v5336
      %v6138 = vmul.f32 %v5932, %v6054
      %v6139 = vmul.f32 %v5947, %v6055
      %v6140 = vmul.f32 %v5962, %v6056
      %v6141 = vmul.f32 %v5977, %v6057
      %v6142 = vadd.f32 %v6134, %v6138
      %v6143 = vadd.f32 %v6135, %v6139
      %v6144 = vadd.f32 %v6136, %v6140
      %v6145 = vadd.f32 %v6137, %v6141
      %v6146 = vtanh.pop %v6142
      %v6147 = vtanh.pop %v6143
      %v6148 = vtanh.pop %v6144
      %v6149 = vtanh.pop %v6145
      %v6150 = vmul.f32 %v6088, %v6146
      %v6151 = vmul.f32 %v6103, %v6147
      %v6152 = vmul.f32 %v6118, %v6148
      %v6153 = vmul.f32 %v6133, %v6149
      %p6154 = scmp.ge.s32.totalorder %s5331, 0
      %p6155 = scmp.lt.s32.totalorder %s5331, 2
      %p6156 = pnand %p6154, %p6155
      %p6157 = pneg %p6156
      %s6158 = scalar_select %p6157, 1, 0
      %s6159 = scvt.s32.f32 %s6158
      %v6160 = vstv %s6159
      %v6161 = vmul.f32 %v6160, %v6150
      %v6162 = vmul.f32 %v6160, %v6151
      %v6163 = vmul.f32 %v6160, %v6152
      %v6164 = vmul.f32 %v6160, %v6153
      %s6165 = ssub.f32 1.0, %s6159
      %v6166 = vstv %s6165
      %v6167 = vmul.f32 %v6166, %v149
      %v6168 = vmul.f32 %v6166, %v150
      %v6169 = vmul.f32 %v6166, %v151
      %v6170 = vmul.f32 %v6166, %v152
      %v6171 = vadd.f32 %v6161, %v6167
      %v6172 = vadd.f32 %v6162, %v6168
      %v6173 = vadd.f32 %v6163, %v6169
      %v6174 = vadd.f32 %v6164, %v6170
      %v6175 = vmul.f32 %v6160, %v6142
      %v6176 = vmul.f32 %v6160, %v6143
      %v6177 = vmul.f32 %v6160, %v6144
      %v6178 = vmul.f32 %v6160, %v6145
      %v6179 = vmul.f32 %v6166, %v5333
      %v6180 = vmul.f32 %v6166, %v5334
      %v6181 = vmul.f32 %v6166, %v5335
      %v6182 = vmul.f32 %v6166, %v5336
      %v6183 = vadd.f32 %v6175, %v6179
      %v6184 = vadd.f32 %v6176, %v6180
      %v6185 = vadd.f32 %v6177, %v6181
      %v6186 = vadd.f32 %v6178, %v6182
      %s6187 = ssub.s32 %s105, 7
      %s6188 = scalar_lea.vmem [#allocation3], 224
      %v6189 = vld [vmem:[%s6188] sm:$0xff]
      %v6190 = vld [vmem:[%s6188 + $0x8] sm:$0xff]
      %v6191 = vld [vmem:[%s6188 + $0x10] sm:$0xff]
      %v6192 = vld [vmem:[%s6188 + $0x18] sm:$0xff]
      %s6193 = scalar_lea.vmem %s1, 1792
      %v6194 = vld [vmem:[%s6193] sm:$0xff]
      %v6195 = vld [vmem:[%s6193 + $0x8] sm:$0xff]
      %v6196 = vld [vmem:[%s6193 + $0x10] sm:$0xff]
      %v6197 = vld [vmem:[%s6193 + $0x18] sm:$0xff]
      %v6198 = vld [vmem:[%s6193 + $0x20] sm:$0xff]
      %v6199 = vld [vmem:[%s6193 + $0x28] sm:$0xff]
      %v6200 = vld [vmem:[%s6193 + $0x30] sm:$0xff]
      %v6201 = vld [vmem:[%s6193 + $0x38] sm:$0xff]
      %v6202 = vld [vmem:[%s6193 + $0x40] sm:$0xff]
      %v6203 = vld [vmem:[%s6193 + $0x48] sm:$0xff]
      %v6204 = vld [vmem:[%s6193 + $0x50] sm:$0xff]
      %v6205 = vld [vmem:[%s6193 + $0x58] sm:$0xff]
      %v6206 = vld [vmem:[%s6193 + $0x60] sm:$0xff]
      %v6207 = vld [vmem:[%s6193 + $0x68] sm:$0xff]
      %v6208 = vld [vmem:[%s6193 + $0x70] sm:$0xff]
      %v6209 = vld [vmem:[%s6193 + $0x78] sm:$0xff]
      %v6210 = vld [vmem:[%s6193 + $0x80] sm:$0xff]
      %v6211 = vld [vmem:[%s6193 + $0x88] sm:$0xff]
      %v6212 = vld [vmem:[%s6193 + $0x90] sm:$0xff]
      %v6213 = vld [vmem:[%s6193 + $0x98] sm:$0xff]
      %v6214 = vld [vmem:[%s6193 + $0xa0] sm:$0xff]
      %v6215 = vld [vmem:[%s6193 + $0xa8] sm:$0xff]
      %v6216 = vld [vmem:[%s6193 + $0xb0] sm:$0xff]
      %v6217 = vld [vmem:[%s6193 + $0xb8] sm:$0xff]
      %v6218 = vld [vmem:[%s6193 + $0xc0] sm:$0xff]
      %v6219 = vld [vmem:[%s6193 + $0xc8] sm:$0xff]
      %v6220 = vld [vmem:[%s6193 + $0xd0] sm:$0xff]
      %v6221 = vld [vmem:[%s6193 + $0xd8] sm:$0xff]
      %v6222 = vld [vmem:[%s6193 + $0xe0] sm:$0xff]
      %v6223 = vld [vmem:[%s6193 + $0xe8] sm:$0xff]
      %v6224 = vld [vmem:[%s6193 + $0xf0] sm:$0xff]
      %v6225 = vld [vmem:[%s6193 + $0xf8] sm:$0xff]
      %s6226 = scalar_lea.vmem %s2, 1792
      %v6227 = vld [vmem:[%s6226] sm:$0xff]
      %v6228 = vld [vmem:[%s6226 + $0x8] sm:$0xff]
      %v6229 = vld [vmem:[%s6226 + $0x10] sm:$0xff]
      %v6230 = vld [vmem:[%s6226 + $0x18] sm:$0xff]
      %v6231 = vld [vmem:[%s6226 + $0x20] sm:$0xff]
      %v6232 = vld [vmem:[%s6226 + $0x28] sm:$0xff]
      %v6233 = vld [vmem:[%s6226 + $0x30] sm:$0xff]
      %v6234 = vld [vmem:[%s6226 + $0x38] sm:$0xff]
      %v6235 = vld [vmem:[%s6226 + $0x40] sm:$0xff]
      %v6236 = vld [vmem:[%s6226 + $0x48] sm:$0xff]
      %v6237 = vld [vmem:[%s6226 + $0x50] sm:$0xff]
      %v6238 = vld [vmem:[%s6226 + $0x58] sm:$0xff]
      %v6239 = vld [vmem:[%s6226 + $0x60] sm:$0xff]
      %v6240 = vld [vmem:[%s6226 + $0x68] sm:$0xff]
      %v6241 = vld [vmem:[%s6226 + $0x70] sm:$0xff]
      %v6242 = vld [vmem:[%s6226 + $0x78] sm:$0xff]
      %v6243 = vld [vmem:[%s6226 + $0x80] sm:$0xff]
      %v6244 = vld [vmem:[%s6226 + $0x88] sm:$0xff]
      %v6245 = vld [vmem:[%s6226 + $0x90] sm:$0xff]
      %v6246 = vld [vmem:[%s6226 + $0x98] sm:$0xff]
      %v6247 = vld [vmem:[%s6226 + $0xa0] sm:$0xff]
      %v6248 = vld [vmem:[%s6226 + $0xa8] sm:$0xff]
      %v6249 = vld [vmem:[%s6226 + $0xb0] sm:$0xff]
      %v6250 = vld [vmem:[%s6226 + $0xb8] sm:$0xff]
      %v6251 = vld [vmem:[%s6226 + $0xc0] sm:$0xff]
      %v6252 = vld [vmem:[%s6226 + $0xc8] sm:$0xff]
      %v6253 = vld [vmem:[%s6226 + $0xd0] sm:$0xff]
      %v6254 = vld [vmem:[%s6226 + $0xd8] sm:$0xff]
      %v6255 = vld [vmem:[%s6226 + $0xe0] sm:$0xff]
      %v6256 = vld [vmem:[%s6226 + $0xe8] sm:$0xff]
      %v6257 = vld [vmem:[%s6226 + $0xf0] sm:$0xff]
      %v6258 = vld [vmem:[%s6226 + $0xf8] sm:$0xff]
      %v6291 = vunpack.c.l.b16 %v6227
      %v6292 = vunpack.c.h.b16 %v6227
      %v6293 = vunpack.c.l.b16 %v6228
      %v6294 = vunpack.c.h.b16 %v6228
      %v6295 = vunpack.c.l.b16 %v6229
      %v6296 = vunpack.c.h.b16 %v6229
      %v6297 = vunpack.c.l.b16 %v6230
      %v6298 = vunpack.c.h.b16 %v6230
      %v6299 = vunpack.c.l.b16 %v6231
      %v6300 = vunpack.c.h.b16 %v6231
      %v6301 = vunpack.c.l.b16 %v6232
      %v6302 = vunpack.c.h.b16 %v6232
      %v6303 = vunpack.c.l.b16 %v6233
      %v6304 = vunpack.c.h.b16 %v6233
      %v6305 = vunpack.c.l.b16 %v6234
      %v6306 = vunpack.c.h.b16 %v6234
      %v6307 = vunpack.c.l.b16 %v6235
      %v6308 = vunpack.c.h.b16 %v6235
      %v6309 = vunpack.c.l.b16 %v6236
      %v6310 = vunpack.c.h.b16 %v6236
      %v6311 = vunpack.c.l.b16 %v6237
      %v6312 = vunpack.c.h.b16 %v6237
      %v6313 = vunpack.c.l.b16 %v6238
      %v6314 = vunpack.c.h.b16 %v6238
      %v6315 = vunpack.c.l.b16 %v6239
      %v6316 = vunpack.c.h.b16 %v6239
      %v6317 = vunpack.c.l.b16 %v6240
      %v6318 = vunpack.c.h.b16 %v6240
      %v6319 = vunpack.c.l.b16 %v6241
      %v6320 = vunpack.c.h.b16 %v6241
      %v6321 = vunpack.c.l.b16 %v6242
      %v6322 = vunpack.c.h.b16 %v6242
      %v6323 = vunpack.c.l.b16 %v6243
      %v6324 = vunpack.c.h.b16 %v6243
      %v6325 = vunpack.c.l.b16 %v6244
      %v6326 = vunpack.c.h.b16 %v6244
      %v6327 = vunpack.c.l.b16 %v6245
      %v6328 = vunpack.c.h.b16 %v6245
      %v6329 = vunpack.c.l.b16 %v6246
      %v6330 = vunpack.c.h.b16 %v6246
      %v6331 = vunpack.c.l.b16 %v6247
      %v6332 = vunpack.c.h.b16 %v6247
      %v6333 = vunpack.c.l.b16 %v6248
      %v6334 = vunpack.c.h.b16 %v6248
      %v6335 = vunpack.c.l.b16 %v6249
      %v6336 = vunpack.c.h.b16 %v6249
      %v6337 = vunpack.c.l.b16 %v6250
      %v6338 = vunpack.c.h.b16 %v6250
      %v6339 = vunpack.c.l.b16 %v6251
      %v6340 = vunpack.c.h.b16 %v6251
      %v6341 = vunpack.c.l.b16 %v6252
      %v6342 = vunpack.c.h.b16 %v6252
      %v6343 = vunpack.c.l.b16 %v6253
      %v6344 = vunpack.c.h.b16 %v6253
      %v6345 = vunpack.c.l.b16 %v6254
      %v6346 = vunpack.c.h.b16 %v6254
      %v6347 = vunpack.c.l.b16 %v6255
      %v6348 = vunpack.c.h.b16 %v6255
      %v6349 = vunpack.c.l.b16 %v6256
      %v6350 = vunpack.c.h.b16 %v6256
      %v6351 = vunpack.c.l.b16 %v6257
      %v6352 = vunpack.c.h.b16 %v6257
      %v6353 = vunpack.c.l.b16 %v6258
      %v6354 = vunpack.c.h.b16 %v6258
      %v6355 = vpack.c.b16 %v6295, %v6291
      %v6356 = vpack.c.b16 %v6296, %v6292
      %v6357 = vpack.c.b16 %v6297, %v6293
      %v6358 = vpack.c.b16 %v6298, %v6294
      %v6359 = vpack.c.b16 %v6303, %v6299
      %v6360 = vpack.c.b16 %v6304, %v6300
      %v6361 = vpack.c.b16 %v6305, %v6301
      %v6362 = vpack.c.b16 %v6306, %v6302
      %v6363 = vpack.c.b16 %v6311, %v6307
      %v6364 = vpack.c.b16 %v6312, %v6308
      %v6365 = vpack.c.b16 %v6313, %v6309
      %v6366 = vpack.c.b16 %v6314, %v6310
      %v6367 = vpack.c.b16 %v6319, %v6315
      %v6368 = vpack.c.b16 %v6320, %v6316
      %v6369 = vpack.c.b16 %v6321, %v6317
      %v6370 = vpack.c.b16 %v6322, %v6318
      %v6371 = vpack.c.b16 %v6327, %v6323
      %v6372 = vpack.c.b16 %v6328, %v6324
      %v6373 = vpack.c.b16 %v6329, %v6325
      %v6374 = vpack.c.b16 %v6330, %v6326
      %v6375 = vpack.c.b16 %v6335, %v6331
      %v6376 = vpack.c.b16 %v6336, %v6332
      %v6377 = vpack.c.b16 %v6337, %v6333
      %v6378 = vpack.c.b16 %v6338, %v6334
      %v6379 = vpack.c.b16 %v6343, %v6339
      %v6380 = vpack.c.b16 %v6344, %v6340
      %v6381 = vpack.c.b16 %v6345, %v6341
      %v6382 = vpack.c.b16 %v6346, %v6342
      %v6383 = vpack.c.b16 %v6351, %v6347
      %v6384 = vpack.c.b16 %v6352, %v6348
      %v6385 = vpack.c.b16 %v6353, %v6349
      %v6386 = vpack.c.b16 %v6354, %v6350
      %6419 = vmatpush.bf16.msra.mxu0 %v6383
      %6420 = vmatpush.bf16.msra.mxu0 %v6379
      %6421 = vmatpush.bf16.msra.mxu0 %v6375
      %6422 = vmatpush.bf16.msra.mxu0 %v6371
      %6423 = vmatpush.bf16.msra.mxu0 %v6367
      %6424 = vmatpush.bf16.msra.mxu0 %v6363
      %6425 = vmatpush.bf16.msra.mxu0 %v6359
      %6426 = vmatpush.bf16.msra.mxu0 %v6355
      %6427 = vmatmul.bf16.gmra.mxu0 %v182
      %v6428 = vpop.f32.mrf.mxu0
      %v6429 = vadd.f32 0.0, %v6428
      %v6430 = vpop.f32.mrf.mxu0
      %v6431 = vadd.f32 0.0, %v6430
      %6432 = vmatmul.bf16.gmra.mxu0 %v183
      %v6433 = vpop.f32.mrf.mxu0
      %v6434 = vadd.f32 0.0, %v6433
      %v6435 = vpop.f32.mrf.mxu0
      %v6436 = vadd.f32 0.0, %v6435
      %6437 = vdwg.mxu0
      %6438 = vmatpush.bf16.msra.mxu0 %v6384
      %6439 = vmatpush.bf16.msra.mxu0 %v6380
      %6440 = vmatpush.bf16.msra.mxu0 %v6376
      %6441 = vmatpush.bf16.msra.mxu0 %v6372
      %6442 = vmatpush.bf16.msra.mxu0 %v6368
      %6443 = vmatpush.bf16.msra.mxu0 %v6364
      %6444 = vmatpush.bf16.msra.mxu0 %v6360
      %6445 = vmatpush.bf16.msra.mxu0 %v6356
      %6446 = vmatmul.bf16.gmra.mxu0 %v182
      %v6447 = vpop.f32.mrf.mxu0
      %v6448 = vadd.f32 0.0, %v6447
      %v6449 = vpop.f32.mrf.mxu0
      %v6450 = vadd.f32 0.0, %v6449
      %6451 = vmatmul.bf16.gmra.mxu0 %v183
      %v6452 = vpop.f32.mrf.mxu0
      %v6453 = vadd.f32 0.0, %v6452
      %v6454 = vpop.f32.mrf.mxu0
      %v6455 = vadd.f32 0.0, %v6454
      %6456 = vdwg.mxu0
      %6457 = vmatpush.bf16.msra.mxu0 %v6385
      %6458 = vmatpush.bf16.msra.mxu0 %v6381
      %6459 = vmatpush.bf16.msra.mxu0 %v6377
      %6460 = vmatpush.bf16.msra.mxu0 %v6373
      %6461 = vmatpush.bf16.msra.mxu0 %v6369
      %6462 = vmatpush.bf16.msra.mxu0 %v6365
      %6463 = vmatpush.bf16.msra.mxu0 %v6361
      %6464 = vmatpush.bf16.msra.mxu0 %v6357
      %6465 = vmatmul.bf16.gmra.mxu0 %v182
      %v6466 = vpop.f32.mrf.mxu0
      %v6467 = vadd.f32 0.0, %v6466
      %v6468 = vpop.f32.mrf.mxu0
      %v6469 = vadd.f32 0.0, %v6468
      %6470 = vmatmul.bf16.gmra.mxu0 %v183
      %v6471 = vpop.f32.mrf.mxu0
      %v6472 = vadd.f32 0.0, %v6471
      %v6473 = vpop.f32.mrf.mxu0
      %v6474 = vadd.f32 0.0, %v6473
      %6475 = vdwg.mxu0
      %6476 = vmatpush.bf16.msra.mxu0 %v6386
      %6477 = vmatpush.bf16.msra.mxu0 %v6382
      %6478 = vmatpush.bf16.msra.mxu0 %v6378
      %6479 = vmatpush.bf16.msra.mxu0 %v6374
      %6480 = vmatpush.bf16.msra.mxu0 %v6370
      %6481 = vmatpush.bf16.msra.mxu0 %v6366
      %6482 = vmatpush.bf16.msra.mxu0 %v6362
      %6483 = vmatpush.bf16.msra.mxu0 %v6358
      %6484 = vmatmul.bf16.gmra.mxu0 %v182
      %v6485 = vpop.f32.mrf.mxu0
      %v6486 = vadd.f32 0.0, %v6485
      %v6487 = vpop.f32.mrf.mxu0
      %v6488 = vadd.f32 0.0, %v6487
      %6489 = vmatmul.bf16.gmra.mxu0 %v183
      %v6490 = vpop.f32.mrf.mxu0
      %v6491 = vadd.f32 0.0, %v6490
      %v6492 = vpop.f32.mrf.mxu0
      %v6493 = vadd.f32 0.0, %v6492
      %6494 = vdwg.mxu0
      %v6527 = vunpack.c.l.b16 %v6194
      %v6528 = vunpack.c.h.b16 %v6194
      %v6529 = vunpack.c.l.b16 %v6195
      %v6530 = vunpack.c.h.b16 %v6195
      %v6531 = vunpack.c.l.b16 %v6196
      %v6532 = vunpack.c.h.b16 %v6196
      %v6533 = vunpack.c.l.b16 %v6197
      %v6534 = vunpack.c.h.b16 %v6197
      %v6535 = vunpack.c.l.b16 %v6198
      %v6536 = vunpack.c.h.b16 %v6198
      %v6537 = vunpack.c.l.b16 %v6199
      %v6538 = vunpack.c.h.b16 %v6199
      %v6539 = vunpack.c.l.b16 %v6200
      %v6540 = vunpack.c.h.b16 %v6200
      %v6541 = vunpack.c.l.b16 %v6201
      %v6542 = vunpack.c.h.b16 %v6201
      %v6543 = vunpack.c.l.b16 %v6202
      %v6544 = vunpack.c.h.b16 %v6202
      %v6545 = vunpack.c.l.b16 %v6203
      %v6546 = vunpack.c.h.b16 %v6203
      %v6547 = vunpack.c.l.b16 %v6204
      %v6548 = vunpack.c.h.b16 %v6204
      %v6549 = vunpack.c.l.b16 %v6205
      %v6550 = vunpack.c.h.b16 %v6205
      %v6551 = vunpack.c.l.b16 %v6206
      %v6552 = vunpack.c.h.b16 %v6206
      %v6553 = vunpack.c.l.b16 %v6207
      %v6554 = vunpack.c.h.b16 %v6207
      %v6555 = vunpack.c.l.b16 %v6208
      %v6556 = vunpack.c.h.b16 %v6208
      %v6557 = vunpack.c.l.b16 %v6209
      %v6558 = vunpack.c.h.b16 %v6209
      %v6559 = vunpack.c.l.b16 %v6210
      %v6560 = vunpack.c.h.b16 %v6210
      %v6561 = vunpack.c.l.b16 %v6211
      %v6562 = vunpack.c.h.b16 %v6211
      %v6563 = vunpack.c.l.b16 %v6212
      %v6564 = vunpack.c.h.b16 %v6212
      %v6565 = vunpack.c.l.b16 %v6213
      %v6566 = vunpack.c.h.b16 %v6213
      %v6567 = vunpack.c.l.b16 %v6214
      %v6568 = vunpack.c.h.b16 %v6214
      %v6569 = vunpack.c.l.b16 %v6215
      %v6570 = vunpack.c.h.b16 %v6215
      %v6571 = vunpack.c.l.b16 %v6216
      %v6572 = vunpack.c.h.b16 %v6216
      %v6573 = vunpack.c.l.b16 %v6217
      %v6574 = vunpack.c.h.b16 %v6217
      %v6575 = vunpack.c.l.b16 %v6218
      %v6576 = vunpack.c.h.b16 %v6218
      %v6577 = vunpack.c.l.b16 %v6219
      %v6578 = vunpack.c.h.b16 %v6219
      %v6579 = vunpack.c.l.b16 %v6220
      %v6580 = vunpack.c.h.b16 %v6220
      %v6581 = vunpack.c.l.b16 %v6221
      %v6582 = vunpack.c.h.b16 %v6221
      %v6583 = vunpack.c.l.b16 %v6222
      %v6584 = vunpack.c.h.b16 %v6222
      %v6585 = vunpack.c.l.b16 %v6223
      %v6586 = vunpack.c.h.b16 %v6223
      %v6587 = vunpack.c.l.b16 %v6224
      %v6588 = vunpack.c.h.b16 %v6224
      %v6589 = vunpack.c.l.b16 %v6225
      %v6590 = vunpack.c.h.b16 %v6225
      %v6591 = vpack.c.b16 %v6531, %v6527
      %v6592 = vpack.c.b16 %v6532, %v6528
      %v6593 = vpack.c.b16 %v6533, %v6529
      %v6594 = vpack.c.b16 %v6534, %v6530
      %v6595 = vpack.c.b16 %v6539, %v6535
      %v6596 = vpack.c.b16 %v6540, %v6536
      %v6597 = vpack.c.b16 %v6541, %v6537
      %v6598 = vpack.c.b16 %v6542, %v6538
      %v6599 = vpack.c.b16 %v6547, %v6543
      %v6600 = vpack.c.b16 %v6548, %v6544
      %v6601 = vpack.c.b16 %v6549, %v6545
      %v6602 = vpack.c.b16 %v6550, %v6546
      %v6603 = vpack.c.b16 %v6555, %v6551
      %v6604 = vpack.c.b16 %v6556, %v6552
      %v6605 = vpack.c.b16 %v6557, %v6553
      %v6606 = vpack.c.b16 %v6558, %v6554
      %v6607 = vpack.c.b16 %v6563, %v6559
      %v6608 = vpack.c.b16 %v6564, %v6560
      %v6609 = vpack.c.b16 %v6565, %v6561
      %v6610 = vpack.c.b16 %v6566, %v6562
      %v6611 = vpack.c.b16 %v6571, %v6567
      %v6612 = vpack.c.b16 %v6572, %v6568
      %v6613 = vpack.c.b16 %v6573, %v6569
      %v6614 = vpack.c.b16 %v6574, %v6570
      %v6615 = vpack.c.b16 %v6579, %v6575
      %v6616 = vpack.c.b16 %v6580, %v6576
      %v6617 = vpack.c.b16 %v6581, %v6577
      %v6618 = vpack.c.b16 %v6582, %v6578
      %v6619 = vpack.c.b16 %v6587, %v6583
      %v6620 = vpack.c.b16 %v6588, %v6584
      %v6621 = vpack.c.b16 %v6589, %v6585
      %v6622 = vpack.c.b16 %v6590, %v6586
      %6655 = vmatpush.bf16.msra.mxu0 %v6619
      %6656 = vmatpush.bf16.msra.mxu0 %v6615
      %6657 = vmatpush.bf16.msra.mxu0 %v6611
      %6658 = vmatpush.bf16.msra.mxu0 %v6607
      %6659 = vmatpush.bf16.msra.mxu0 %v6603
      %6660 = vmatpush.bf16.msra.mxu0 %v6599
      %6661 = vmatpush.bf16.msra.mxu0 %v6595
      %6662 = vmatpush.bf16.msra.mxu0 %v6591
      %6663 = vmatmul.bf16.gmra.mxu0 %v180
      %v6664 = vpop.f32.mrf.mxu0
      %v6665 = vadd.f32 %v6429, %v6664
      %v6666 = vpop.f32.mrf.mxu0
      %v6667 = vadd.f32 %v6431, %v6666
      %6668 = vmatmul.bf16.gmra.mxu0 %v181
      %v6669 = vpop.f32.mrf.mxu0
      %v6670 = vadd.f32 %v6434, %v6669
      %v6671 = vpop.f32.mrf.mxu0
      %v6672 = vadd.f32 %v6436, %v6671
      %6673 = vdwg.mxu0
      %6674 = vmatpush.bf16.msra.mxu0 %v6620
      %6675 = vmatpush.bf16.msra.mxu0 %v6616
      %6676 = vmatpush.bf16.msra.mxu0 %v6612
      %6677 = vmatpush.bf16.msra.mxu0 %v6608
      %6678 = vmatpush.bf16.msra.mxu0 %v6604
      %6679 = vmatpush.bf16.msra.mxu0 %v6600
      %6680 = vmatpush.bf16.msra.mxu0 %v6596
      %6681 = vmatpush.bf16.msra.mxu0 %v6592
      %6682 = vmatmul.bf16.gmra.mxu0 %v180
      %v6683 = vpop.f32.mrf.mxu0
      %v6684 = vadd.f32 %v6448, %v6683
      %v6685 = vpop.f32.mrf.mxu0
      %v6686 = vadd.f32 %v6450, %v6685
      %6687 = vmatmul.bf16.gmra.mxu0 %v181
      %v6688 = vpop.f32.mrf.mxu0
      %v6689 = vadd.f32 %v6453, %v6688
      %v6690 = vpop.f32.mrf.mxu0
      %v6691 = vadd.f32 %v6455, %v6690
      %6692 = vdwg.mxu0
      %6693 = vmatpush.bf16.msra.mxu0 %v6621
      %6694 = vmatpush.bf16.msra.mxu0 %v6617
      %6695 = vmatpush.bf16.msra.mxu0 %v6613
      %6696 = vmatpush.bf16.msra.mxu0 %v6609
      %6697 = vmatpush.bf16.msra.mxu0 %v6605
      %6698 = vmatpush.bf16.msra.mxu0 %v6601
      %6699 = vmatpush.bf16.msra.mxu0 %v6597
      %6700 = vmatpush.bf16.msra.mxu0 %v6593
      %6701 = vmatmul.bf16.gmra.mxu0 %v180
      %v6702 = vpop.f32.mrf.mxu0
      %v6703 = vadd.f32 %v6467, %v6702
      %v6704 = vpop.f32.mrf.mxu0
      %v6705 = vadd.f32 %v6469, %v6704
      %6706 = vmatmul.bf16.gmra.mxu0 %v181
      %v6707 = vpop.f32.mrf.mxu0
      %v6708 = vadd.f32 %v6472, %v6707
      %v6709 = vpop.f32.mrf.mxu0
      %v6710 = vadd.f32 %v6474, %v6709
      %6711 = vdwg.mxu0
      %6712 = vmatpush.bf16.msra.mxu0 %v6622
      %6713 = vmatpush.bf16.msra.mxu0 %v6618
      %6714 = vmatpush.bf16.msra.mxu0 %v6614
      %6715 = vmatpush.bf16.msra.mxu0 %v6610
      %6716 = vmatpush.bf16.msra.mxu0 %v6606
      %6717 = vmatpush.bf16.msra.mxu0 %v6602
      %6718 = vmatpush.bf16.msra.mxu0 %v6598
      %6719 = vmatpush.bf16.msra.mxu0 %v6594
      %6720 = vmatmul.bf16.gmra.mxu0 %v180
      %v6721 = vpop.f32.mrf.mxu0
      %v6722 = vadd.f32 %v6486, %v6721
      %v6723 = vpop.f32.mrf.mxu0
      %v6724 = vadd.f32 %v6488, %v6723
      %6725 = vmatmul.bf16.gmra.mxu0 %v181
      %v6726 = vpop.f32.mrf.mxu0
      %v6727 = vadd.f32 %v6491, %v6726
      %v6728 = vpop.f32.mrf.mxu0
      %v6729 = vadd.f32 %v6493, %v6728
      %6730 = vdwg.mxu0
      %s6731 = scalar_lea.vmem %s3, 28
      %v6732 = vld [vmem:[%s6731] sm:$0xf]
      %v6734 = vperm.slane %v6732, 0
      %v6735 = vperm.slane %v6732, 1
      %v6736 = vperm.slane %v6732, 2
      %v6737 = vperm.slane %v6732, 3
      %v6742 = vadd.f32 %v6665, %v6734
      %v6743 = vadd.f32 %v6684, %v6735
      %v6744 = vadd.f32 %v6703, %v6736
      %v6745 = vadd.f32 %v6722, %v6737
      %v6746 = vadd.f32 %v6667, %v6734
      %v6747 = vadd.f32 %v6686, %v6735
      %v6748 = vadd.f32 %v6705, %v6736
      %v6749 = vadd.f32 %v6724, %v6737
      %v6750 = vadd.f32 %v6670, %v6734
      %v6751 = vadd.f32 %v6689, %v6735
      %v6752 = vadd.f32 %v6708, %v6736
      %v6753 = vadd.f32 %v6727, %v6737
      %v6754 = vadd.f32 %v6672, %v6734
      %v6755 = vadd.f32 %v6691, %v6735
      %v6756 = vadd.f32 %v6710, %v6736
      %v6757 = vadd.f32 %v6729, %v6737
      %v6758 = vxor.u32 %v6742, 2147483648
      %v6759 = vxor.u32 %v6746, 2147483648
      %v6760 = vxor.u32 %v6750, 2147483648
      %v6761 = vxor.u32 %v6754, 2147483648
      %v6762 = vmul.f32 %v6758, 1.442695
      %v6763 = vpow.pop %v6762
      %v6764 = vmul.f32 %v6759, 1.442695
      %v6765 = vpow.pop %v6764
      %v6766 = vmul.f32 %v6760, 1.442695
      %v6767 = vpow.pop %v6766
      %v6768 = vmul.f32 %v6761, 1.442695
      %v6769 = vpow.pop %v6768
      %v6770 = vadd.f32 %v6763, 1.0
      %v6771 = vadd.f32 %v6765, 1.0
      %v6772 = vadd.f32 %v6767, 1.0
      %v6773 = vadd.f32 %v6769, 1.0
      %v6774 = vrcp.pop %v6770
      %v6775 = vmul.f32 %v6770, %v6774
      %v6776 = vsub.f32 1.0, %v6775
      %v6777 = vmul.f32 %v6774, %v6776
      %v6778 = vadd.f32 %v6774, %v6777
      %vm6779 = vweird.f32 %v6770
      %vm6780 = vweird.f32 %v6774
      %vm6781 = vmor %vm6779, %vm6780
      %v6782 = vsel %vm6781, %v6774, %v6778
      %v6783 = vand.u32 2147483647, %v6770
      %vm6784 = vcmp.eq.f32.partialorder %v6783, 8.507059e+37
      %v6785 = vand.u32 %v6770, 2147483648
      %v6786 = vor.u32 1.1754944e-38, %v6785
      %v6787 = vsel %vm6784, %v6786, %v6782
      %v6788 = vmul.f32 1.0, %v6787
      %v6789 = vrcp.pop %v6771
      %v6790 = vmul.f32 %v6771, %v6789
      %v6791 = vsub.f32 1.0, %v6790
      %v6792 = vmul.f32 %v6789, %v6791
      %v6793 = vadd.f32 %v6789, %v6792
      %vm6794 = vweird.f32 %v6771
      %vm6795 = vweird.f32 %v6789
      %vm6796 = vmor %vm6794, %vm6795
      %v6797 = vsel %vm6796, %v6789, %v6793
      %v6798 = vand.u32 2147483647, %v6771
      %vm6799 = vcmp.eq.f32.partialorder %v6798, 8.507059e+37
      %v6800 = vand.u32 %v6771, 2147483648
      %v6801 = vor.u32 1.1754944e-38, %v6800
      %v6802 = vsel %vm6799, %v6801, %v6797
      %v6803 = vmul.f32 1.0, %v6802
      %v6804 = vrcp.pop %v6772
      %v6805 = vmul.f32 %v6772, %v6804
      %v6806 = vsub.f32 1.0, %v6805
      %v6807 = vmul.f32 %v6804, %v6806
      %v6808 = vadd.f32 %v6804, %v6807
      %vm6809 = vweird.f32 %v6772
      %vm6810 = vweird.f32 %v6804
      %vm6811 = vmor %vm6809, %vm6810
      %v6812 = vsel %vm6811, %v6804, %v6808
      %v6813 = vand.u32 2147483647, %v6772
      %vm6814 = vcmp.eq.f32.partialorder %v6813, 8.507059e+37
      %v6815 = vand.u32 %v6772, 2147483648
      %v6816 = vor.u32 1.1754944e-38, %v6815
      %v6817 = vsel %vm6814, %v6816, %v6812
      %v6818 = vmul.f32 1.0, %v6817
      %v6819 = vrcp.pop %v6773
      %v6820 = vmul.f32 %v6773, %v6819
      %v6821 = vsub.f32 1.0, %v6820
      %v6822 = vmul.f32 %v6819, %v6821
      %v6823 = vadd.f32 %v6819, %v6822
      %vm6824 = vweird.f32 %v6773
      %vm6825 = vweird.f32 %v6819
      %vm6826 = vmor %vm6824, %vm6825
      %v6827 = vsel %vm6826, %v6819, %v6823
      %v6828 = vand.u32 2147483647, %v6773
      %vm6829 = vcmp.eq.f32.partialorder %v6828, 8.507059e+37
      %v6830 = vand.u32 %v6773, 2147483648
      %v6831 = vor.u32 1.1754944e-38, %v6830
      %v6832 = vsel %vm6829, %v6831, %v6827
      %v6833 = vmul.f32 1.0, %v6832
      %v6834 = vxor.u32 %v6743, 2147483648
      %v6835 = vxor.u32 %v6747, 2147483648
      %v6836 = vxor.u32 %v6751, 2147483648
      %v6837 = vxor.u32 %v6755, 2147483648
      %v6838 = vmul.f32 %v6834, 1.442695
      %v6839 = vpow.pop %v6838
      %v6840 = vmul.f32 %v6835, 1.442695
      %v6841 = vpow.pop %v6840
      %v6842 = vmul.f32 %v6836, 1.442695
      %v6843 = vpow.pop %v6842
      %v6844 = vmul.f32 %v6837, 1.442695
      %v6845 = vpow.pop %v6844
      %v6846 = vadd.f32 %v6839, 1.0
      %v6847 = vadd.f32 %v6841, 1.0
      %v6848 = vadd.f32 %v6843, 1.0
      %v6849 = vadd.f32 %v6845, 1.0
      %v6850 = vrcp.pop %v6846
      %v6851 = vmul.f32 %v6846, %v6850
      %v6852 = vsub.f32 1.0, %v6851
      %v6853 = vmul.f32 %v6850, %v6852
      %v6854 = vadd.f32 %v6850, %v6853
      %vm6855 = vweird.f32 %v6846
      %vm6856 = vweird.f32 %v6850
      %vm6857 = vmor %vm6855, %vm6856
      %v6858 = vsel %vm6857, %v6850, %v6854
      %v6859 = vand.u32 2147483647, %v6846
      %vm6860 = vcmp.eq.f32.partialorder %v6859, 8.507059e+37
      %v6861 = vand.u32 %v6846, 2147483648
      %v6862 = vor.u32 1.1754944e-38, %v6861
      %v6863 = vsel %vm6860, %v6862, %v6858
      %v6864 = vmul.f32 1.0, %v6863
      %v6865 = vrcp.pop %v6847
      %v6866 = vmul.f32 %v6847, %v6865
      %v6867 = vsub.f32 1.0, %v6866
      %v6868 = vmul.f32 %v6865, %v6867
      %v6869 = vadd.f32 %v6865, %v6868
      %vm6870 = vweird.f32 %v6847
      %vm6871 = vweird.f32 %v6865
      %vm6872 = vmor %vm6870, %vm6871
      %v6873 = vsel %vm6872, %v6865, %v6869
      %v6874 = vand.u32 2147483647, %v6847
      %vm6875 = vcmp.eq.f32.partialorder %v6874, 8.507059e+37
      %v6876 = vand.u32 %v6847, 2147483648
      %v6877 = vor.u32 1.1754944e-38, %v6876
      %v6878 = vsel %vm6875, %v6877, %v6873
      %v6879 = vmul.f32 1.0, %v6878
      %v6880 = vrcp.pop %v6848
      %v6881 = vmul.f32 %v6848, %v6880
      %v6882 = vsub.f32 1.0, %v6881
      %v6883 = vmul.f32 %v6880, %v6882
      %v6884 = vadd.f32 %v6880, %v6883
      %vm6885 = vweird.f32 %v6848
      %vm6886 = vweird.f32 %v6880
      %vm6887 = vmor %vm6885, %vm6886
      %v6888 = vsel %vm6887, %v6880, %v6884
      %v6889 = vand.u32 2147483647, %v6848
      %vm6890 = vcmp.eq.f32.partialorder %v6889, 8.507059e+37
      %v6891 = vand.u32 %v6848, 2147483648
      %v6892 = vor.u32 1.1754944e-38, %v6891
      %v6893 = vsel %vm6890, %v6892, %v6888
      %v6894 = vmul.f32 1.0, %v6893
      %v6895 = vrcp.pop %v6849
      %v6896 = vmul.f32 %v6849, %v6895
      %v6897 = vsub.f32 1.0, %v6896
      %v6898 = vmul.f32 %v6895, %v6897
      %v6899 = vadd.f32 %v6895, %v6898
      %vm6900 = vweird.f32 %v6849
      %vm6901 = vweird.f32 %v6895
      %vm6902 = vmor %vm6900, %vm6901
      %v6903 = vsel %vm6902, %v6895, %v6899
      %v6904 = vand.u32 2147483647, %v6849
      %vm6905 = vcmp.eq.f32.partialorder %v6904, 8.507059e+37
      %v6906 = vand.u32 %v6849, 2147483648
      %v6907 = vor.u32 1.1754944e-38, %v6906
      %v6908 = vsel %vm6905, %v6907, %v6903
      %v6909 = vmul.f32 1.0, %v6908
      %v6910 = vtanh.pop %v6744
      %v6911 = vtanh.pop %v6748
      %v6912 = vtanh.pop %v6752
      %v6913 = vtanh.pop %v6756
      %v6914 = vxor.u32 %v6745, 2147483648
      %v6915 = vxor.u32 %v6749, 2147483648
      %v6916 = vxor.u32 %v6753, 2147483648
      %v6917 = vxor.u32 %v6757, 2147483648
      %v6918 = vmul.f32 %v6914, 1.442695
      %v6919 = vpow.pop %v6918
      %v6920 = vmul.f32 %v6915, 1.442695
      %v6921 = vpow.pop %v6920
      %v6922 = vmul.f32 %v6916, 1.442695
      %v6923 = vpow.pop %v6922
      %v6924 = vmul.f32 %v6917, 1.442695
      %v6925 = vpow.pop %v6924
      %v6926 = vadd.f32 %v6919, 1.0
      %v6927 = vadd.f32 %v6921, 1.0
      %v6928 = vadd.f32 %v6923, 1.0
      %v6929 = vadd.f32 %v6925, 1.0
      %v6930 = vrcp.pop %v6926
      %v6931 = vmul.f32 %v6926, %v6930
      %v6932 = vsub.f32 1.0, %v6931
      %v6933 = vmul.f32 %v6930, %v6932
      %v6934 = vadd.f32 %v6930, %v6933
      %vm6935 = vweird.f32 %v6926
      %vm6936 = vweird.f32 %v6930
      %vm6937 = vmor %vm6935, %vm6936
      %v6938 = vsel %vm6937, %v6930, %v6934
      %v6939 = vand.u32 2147483647, %v6926
      %vm6940 = vcmp.eq.f32.partialorder %v6939, 8.507059e+37
      %v6941 = vand.u32 %v6926, 2147483648
      %v6942 = vor.u32 1.1754944e-38, %v6941
      %v6943 = vsel %vm6940, %v6942, %v6938
      %v6944 = vmul.f32 1.0, %v6943
      %v6945 = vrcp.pop %v6927
      %v6946 = vmul.f32 %v6927, %v6945
      %v6947 = vsub.f32 1.0, %v6946
      %v6948 = vmul.f32 %v6945, %v6947
      %v6949 = vadd.f32 %v6945, %v6948
      %vm6950 = vweird.f32 %v6927
      %vm6951 = vweird.f32 %v6945
      %vm6952 = vmor %vm6950, %vm6951
      %v6953 = vsel %vm6952, %v6945, %v6949
      %v6954 = vand.u32 2147483647, %v6927
      %vm6955 = vcmp.eq.f32.partialorder %v6954, 8.507059e+37
      %v6956 = vand.u32 %v6927, 2147483648
      %v6957 = vor.u32 1.1754944e-38, %v6956
      %v6958 = vsel %vm6955, %v6957, %v6953
      %v6959 = vmul.f32 1.0, %v6958
      %v6960 = vrcp.pop %v6928
      %v6961 = vmul.f32 %v6928, %v6960
      %v6962 = vsub.f32 1.0, %v6961
      %v6963 = vmul.f32 %v6960, %v6962
      %v6964 = vadd.f32 %v6960, %v6963
      %vm6965 = vweird.f32 %v6928
      %vm6966 = vweird.f32 %v6960
      %vm6967 = vmor %vm6965, %vm6966
      %v6968 = vsel %vm6967, %v6960, %v6964
      %v6969 = vand.u32 2147483647, %v6928
      %vm6970 = vcmp.eq.f32.partialorder %v6969, 8.507059e+37
      %v6971 = vand.u32 %v6928, 2147483648
      %v6972 = vor.u32 1.1754944e-38, %v6971
      %v6973 = vsel %vm6970, %v6972, %v6968
      %v6974 = vmul.f32 1.0, %v6973
      %v6975 = vrcp.pop %v6929
      %v6976 = vmul.f32 %v6929, %v6975
      %v6977 = vsub.f32 1.0, %v6976
      %v6978 = vmul.f32 %v6975, %v6977
      %v6979 = vadd.f32 %v6975, %v6978
      %vm6980 = vweird.f32 %v6929
      %vm6981 = vweird.f32 %v6975
      %vm6982 = vmor %vm6980, %vm6981
      %v6983 = vsel %vm6982, %v6975, %v6979
      %v6984 = vand.u32 2147483647, %v6929
      %vm6985 = vcmp.eq.f32.partialorder %v6984, 8.507059e+37
      %v6986 = vand.u32 %v6929, 2147483648
      %v6987 = vor.u32 1.1754944e-38, %v6986
      %v6988 = vsel %vm6985, %v6987, %v6983
      %v6989 = vmul.f32 1.0, %v6988
      %v6990 = vmul.f32 %v6864, %v6189
      %v6991 = vmul.f32 %v6879, %v6190
      %v6992 = vmul.f32 %v6894, %v6191
      %v6993 = vmul.f32 %v6909, %v6192
      %v6994 = vmul.f32 %v6788, %v6910
      %v6995 = vmul.f32 %v6803, %v6911
      %v6996 = vmul.f32 %v6818, %v6912
      %v6997 = vmul.f32 %v6833, %v6913
      %v6998 = vadd.f32 %v6990, %v6994
      %v6999 = vadd.f32 %v6991, %v6995
      %v7000 = vadd.f32 %v6992, %v6996
      %v7001 = vadd.f32 %v6993, %v6997
      %v7002 = vtanh.pop %v6998
      %v7003 = vtanh.pop %v6999
      %v7004 = vtanh.pop %v7000
      %v7005 = vtanh.pop %v7001
      %v7006 = vmul.f32 %v6944, %v7002
      %v7007 = vmul.f32 %v6959, %v7003
      %v7008 = vmul.f32 %v6974, %v7004
      %v7009 = vmul.f32 %v6989, %v7005
      %p7010 = scmp.ge.s32.totalorder %s6187, 0
      %p7011 = scmp.lt.s32.totalorder %s6187, 2
      %p7012 = pnand %p7010, %p7011
      %p7013 = pneg %p7012
      %s7014 = scalar_select %p7013, 1, 0
      %s7015 = scvt.s32.f32 %s7014
      %v7016 = vstv %s7015
      %v7017 = vmul.f32 %v7016, %v7006
      %v7018 = vmul.f32 %v7016, %v7007
      %v7019 = vmul.f32 %v7016, %v7008
      %v7020 = vmul.f32 %v7016, %v7009
      %s7021 = ssub.f32 1.0, %s7015
      %v7022 = vstv %s7021
      %v7023 = vmul.f32 %v7022, %v154
      %v7024 = vmul.f32 %v7022, %v155
      %v7025 = vmul.f32 %v7022, %v156
      %v7026 = vmul.f32 %v7022, %v157
      %v7027 = vadd.f32 %v7017, %v7023
      %v7028 = vadd.f32 %v7018, %v7024
      %v7029 = vadd.f32 %v7019, %v7025
      %v7030 = vadd.f32 %v7020, %v7026
      %v7031 = vmul.f32 %v7016, %v6998
      %v7032 = vmul.f32 %v7016, %v6999
      %v7033 = vmul.f32 %v7016, %v7000
      %v7034 = vmul.f32 %v7016, %v7001
      %v7035 = vmul.f32 %v7022, %v6189
      %v7036 = vmul.f32 %v7022, %v6190
      %v7037 = vmul.f32 %v7022, %v6191
      %v7038 = vmul.f32 %v7022, %v6192
      %v7039 = vadd.f32 %v7031, %v7035
      %v7040 = vadd.f32 %v7032, %v7036
      %v7041 = vadd.f32 %v7033, %v7037
      %v7042 = vadd.f32 %v7034, %v7038
      %s7043 = ssub.s32 %s105, 8
      %s7044 = scalar_lea.vmem [#allocation3], 256
      %v7045 = vld [vmem:[%s7044] sm:$0xff]
      %v7046 = vld [vmem:[%s7044 + $0x8] sm:$0xff]
      %v7047 = vld [vmem:[%s7044 + $0x10] sm:$0xff]
      %v7048 = vld [vmem:[%s7044 + $0x18] sm:$0xff]
      %s7049 = scalar_lea.vmem %s1, 2048
      %v7050 = vld [vmem:[%s7049] sm:$0xff]
      %v7051 = vld [vmem:[%s7049 + $0x8] sm:$0xff]
      %v7052 = vld [vmem:[%s7049 + $0x10] sm:$0xff]
      %v7053 = vld [vmem:[%s7049 + $0x18] sm:$0xff]
      %v7054 = vld [vmem:[%s7049 + $0x20] sm:$0xff]
      %v7055 = vld [vmem:[%s7049 + $0x28] sm:$0xff]
      %v7056 = vld [vmem:[%s7049 + $0x30] sm:$0xff]
      %v7057 = vld [vmem:[%s7049 + $0x38] sm:$0xff]
      %v7058 = vld [vmem:[%s7049 + $0x40] sm:$0xff]
      %v7059 = vld [vmem:[%s7049 + $0x48] sm:$0xff]
      %v7060 = vld [vmem:[%s7049 + $0x50] sm:$0xff]
      %v7061 = vld [vmem:[%s7049 + $0x58] sm:$0xff]
      %v7062 = vld [vmem:[%s7049 + $0x60] sm:$0xff]
      %v7063 = vld [vmem:[%s7049 + $0x68] sm:$0xff]
      %v7064 = vld [vmem:[%s7049 + $0x70] sm:$0xff]
      %v7065 = vld [vmem:[%s7049 + $0x78] sm:$0xff]
      %v7066 = vld [vmem:[%s7049 + $0x80] sm:$0xff]
      %v7067 = vld [vmem:[%s7049 + $0x88] sm:$0xff]
      %v7068 = vld [vmem:[%s7049 + $0x90] sm:$0xff]
      %v7069 = vld [vmem:[%s7049 + $0x98] sm:$0xff]
      %v7070 = vld [vmem:[%s7049 + $0xa0] sm:$0xff]
      %v7071 = vld [vmem:[%s7049 + $0xa8] sm:$0xff]
      %v7072 = vld [vmem:[%s7049 + $0xb0] sm:$0xff]
      %v7073 = vld [vmem:[%s7049 + $0xb8] sm:$0xff]
      %v7074 = vld [vmem:[%s7049 + $0xc0] sm:$0xff]
      %v7075 = vld [vmem:[%s7049 + $0xc8] sm:$0xff]
      %v7076 = vld [vmem:[%s7049 + $0xd0] sm:$0xff]
      %v7077 = vld [vmem:[%s7049 + $0xd8] sm:$0xff]
      %v7078 = vld [vmem:[%s7049 + $0xe0] sm:$0xff]
      %v7079 = vld [vmem:[%s7049 + $0xe8] sm:$0xff]
      %v7080 = vld [vmem:[%s7049 + $0xf0] sm:$0xff]
      %v7081 = vld [vmem:[%s7049 + $0xf8] sm:$0xff]
      %s7082 = scalar_lea.vmem %s2, 2048
      %v7083 = vld [vmem:[%s7082] sm:$0xff]
      %v7084 = vld [vmem:[%s7082 + $0x8] sm:$0xff]
      %v7085 = vld [vmem:[%s7082 + $0x10] sm:$0xff]
      %v7086 = vld [vmem:[%s7082 + $0x18] sm:$0xff]
      %v7087 = vld [vmem:[%s7082 + $0x20] sm:$0xff]
      %v7088 = vld [vmem:[%s7082 + $0x28] sm:$0xff]
      %v7089 = vld [vmem:[%s7082 + $0x30] sm:$0xff]
      %v7090 = vld [vmem:[%s7082 + $0x38] sm:$0xff]
      %v7091 = vld [vmem:[%s7082 + $0x40] sm:$0xff]
      %v7092 = vld [vmem:[%s7082 + $0x48] sm:$0xff]
      %v7093 = vld [vmem:[%s7082 + $0x50] sm:$0xff]
      %v7094 = vld [vmem:[%s7082 + $0x58] sm:$0xff]
      %v7095 = vld [vmem:[%s7082 + $0x60] sm:$0xff]
      %v7096 = vld [vmem:[%s7082 + $0x68] sm:$0xff]
      %v7097 = vld [vmem:[%s7082 + $0x70] sm:$0xff]
      %v7098 = vld [vmem:[%s7082 + $0x78] sm:$0xff]
      %v7099 = vld [vmem:[%s7082 + $0x80] sm:$0xff]
      %v7100 = vld [vmem:[%s7082 + $0x88] sm:$0xff]
      %v7101 = vld [vmem:[%s7082 + $0x90] sm:$0xff]
      %v7102 = vld [vmem:[%s7082 + $0x98] sm:$0xff]
      %v7103 = vld [vmem:[%s7082 + $0xa0] sm:$0xff]
      %v7104 = vld [vmem:[%s7082 + $0xa8] sm:$0xff]
      %v7105 = vld [vmem:[%s7082 + $0xb0] sm:$0xff]
      %v7106 = vld [vmem:[%s7082 + $0xb8] sm:$0xff]
      %v7107 = vld [vmem:[%s7082 + $0xc0] sm:$0xff]
      %v7108 = vld [vmem:[%s7082 + $0xc8] sm:$0xff]
      %v7109 = vld [vmem:[%s7082 + $0xd0] sm:$0xff]
      %v7110 = vld [vmem:[%s7082 + $0xd8] sm:$0xff]
      %v7111 = vld [vmem:[%s7082 + $0xe0] sm:$0xff]
      %v7112 = vld [vmem:[%s7082 + $0xe8] sm:$0xff]
      %v7113 = vld [vmem:[%s7082 + $0xf0] sm:$0xff]
      %v7114 = vld [vmem:[%s7082 + $0xf8] sm:$0xff]
      %v7147 = vunpack.c.l.b16 %v7083
      %v7148 = vunpack.c.h.b16 %v7083
      %v7149 = vunpack.c.l.b16 %v7084
      %v7150 = vunpack.c.h.b16 %v7084
      %v7151 = vunpack.c.l.b16 %v7085
      %v7152 = vunpack.c.h.b16 %v7085
      %v7153 = vunpack.c.l.b16 %v7086
      %v7154 = vunpack.c.h.b16 %v7086
      %v7155 = vunpack.c.l.b16 %v7087
      %v7156 = vunpack.c.h.b16 %v7087
      %v7157 = vunpack.c.l.b16 %v7088
      %v7158 = vunpack.c.h.b16 %v7088
      %v7159 = vunpack.c.l.b16 %v7089
      %v7160 = vunpack.c.h.b16 %v7089
      %v7161 = vunpack.c.l.b16 %v7090
      %v7162 = vunpack.c.h.b16 %v7090
      %v7163 = vunpack.c.l.b16 %v7091
      %v7164 = vunpack.c.h.b16 %v7091
      %v7165 = vunpack.c.l.b16 %v7092
      %v7166 = vunpack.c.h.b16 %v7092
      %v7167 = vunpack.c.l.b16 %v7093
      %v7168 = vunpack.c.h.b16 %v7093
      %v7169 = vunpack.c.l.b16 %v7094
      %v7170 = vunpack.c.h.b16 %v7094
      %v7171 = vunpack.c.l.b16 %v7095
      %v7172 = vunpack.c.h.b16 %v7095
      %v7173 = vunpack.c.l.b16 %v7096
      %v7174 = vunpack.c.h.b16 %v7096
      %v7175 = vunpack.c.l.b16 %v7097
      %v7176 = vunpack.c.h.b16 %v7097
      %v7177 = vunpack.c.l.b16 %v7098
      %v7178 = vunpack.c.h.b16 %v7098
      %v7179 = vunpack.c.l.b16 %v7099
      %v7180 = vunpack.c.h.b16 %v7099
      %v7181 = vunpack.c.l.b16 %v7100
      %v7182 = vunpack.c.h.b16 %v7100
      %v7183 = vunpack.c.l.b16 %v7101
      %v7184 = vunpack.c.h.b16 %v7101
      %v7185 = vunpack.c.l.b16 %v7102
      %v7186 = vunpack.c.h.b16 %v7102
      %v7187 = vunpack.c.l.b16 %v7103
      %v7188 = vunpack.c.h.b16 %v7103
      %v7189 = vunpack.c.l.b16 %v7104
      %v7190 = vunpack.c.h.b16 %v7104
      %v7191 = vunpack.c.l.b16 %v7105
      %v7192 = vunpack.c.h.b16 %v7105
      %v7193 = vunpack.c.l.b16 %v7106
      %v7194 = vunpack.c.h.b16 %v7106
      %v7195 = vunpack.c.l.b16 %v7107
      %v7196 = vunpack.c.h.b16 %v7107
      %v7197 = vunpack.c.l.b16 %v7108
      %v7198 = vunpack.c.h.b16 %v7108
      %v7199 = vunpack.c.l.b16 %v7109
      %v7200 = vunpack.c.h.b16 %v7109
      %v7201 = vunpack.c.l.b16 %v7110
      %v7202 = vunpack.c.h.b16 %v7110
      %v7203 = vunpack.c.l.b16 %v7111
      %v7204 = vunpack.c.h.b16 %v7111
      %v7205 = vunpack.c.l.b16 %v7112
      %v7206 = vunpack.c.h.b16 %v7112
      %v7207 = vunpack.c.l.b16 %v7113
      %v7208 = vunpack.c.h.b16 %v7113
      %v7209 = vunpack.c.l.b16 %v7114
      %v7210 = vunpack.c.h.b16 %v7114
      %v7211 = vpack.c.b16 %v7151, %v7147
      %v7212 = vpack.c.b16 %v7152, %v7148
      %v7213 = vpack.c.b16 %v7153, %v7149
      %v7214 = vpack.c.b16 %v7154, %v7150
      %v7215 = vpack.c.b16 %v7159, %v7155
      %v7216 = vpack.c.b16 %v7160, %v7156
      %v7217 = vpack.c.b16 %v7161, %v7157
      %v7218 = vpack.c.b16 %v7162, %v7158
      %v7219 = vpack.c.b16 %v7167, %v7163
      %v7220 = vpack.c.b16 %v7168, %v7164
      %v7221 = vpack.c.b16 %v7169, %v7165
      %v7222 = vpack.c.b16 %v7170, %v7166
      %v7223 = vpack.c.b16 %v7175, %v7171
      %v7224 = vpack.c.b16 %v7176, %v7172
      %v7225 = vpack.c.b16 %v7177, %v7173
      %v7226 = vpack.c.b16 %v7178, %v7174
      %v7227 = vpack.c.b16 %v7183, %v7179
      %v7228 = vpack.c.b16 %v7184, %v7180
      %v7229 = vpack.c.b16 %v7185, %v7181
      %v7230 = vpack.c.b16 %v7186, %v7182
      %v7231 = vpack.c.b16 %v7191, %v7187
      %v7232 = vpack.c.b16 %v7192, %v7188
      %v7233 = vpack.c.b16 %v7193, %v7189
      %v7234 = vpack.c.b16 %v7194, %v7190
      %v7235 = vpack.c.b16 %v7199, %v7195
      %v7236 = vpack.c.b16 %v7200, %v7196
      %v7237 = vpack.c.b16 %v7201, %v7197
      %v7238 = vpack.c.b16 %v7202, %v7198
      %v7239 = vpack.c.b16 %v7207, %v7203
      %v7240 = vpack.c.b16 %v7208, %v7204
      %v7241 = vpack.c.b16 %v7209, %v7205
      %v7242 = vpack.c.b16 %v7210, %v7206
      %7275 = vmatpush.bf16.msra.mxu0 %v7239
      %7276 = vmatpush.bf16.msra.mxu0 %v7235
      %7277 = vmatpush.bf16.msra.mxu0 %v7231
      %7278 = vmatpush.bf16.msra.mxu0 %v7227
      %7279 = vmatpush.bf16.msra.mxu0 %v7223
      %7280 = vmatpush.bf16.msra.mxu0 %v7219
      %7281 = vmatpush.bf16.msra.mxu0 %v7215
      %7282 = vmatpush.bf16.msra.mxu0 %v7211
      %7283 = vmatmul.bf16.gmra.mxu0 %v184
      %v7284 = vpop.f32.mrf.mxu0
      %v7285 = vadd.f32 0.0, %v7284
      %v7286 = vpop.f32.mrf.mxu0
      %v7287 = vadd.f32 0.0, %v7286
      %7288 = vmatmul.bf16.gmra.mxu0 %v185
      %v7289 = vpop.f32.mrf.mxu0
      %v7290 = vadd.f32 0.0, %v7289
      %v7291 = vpop.f32.mrf.mxu0
      %v7292 = vadd.f32 0.0, %v7291
      %7293 = vdwg.mxu0
      %7294 = vmatpush.bf16.msra.mxu0 %v7240
      %7295 = vmatpush.bf16.msra.mxu0 %v7236
      %7296 = vmatpush.bf16.msra.mxu0 %v7232
      %7297 = vmatpush.bf16.msra.mxu0 %v7228
      %7298 = vmatpush.bf16.msra.mxu0 %v7224
      %7299 = vmatpush.bf16.msra.mxu0 %v7220
      %7300 = vmatpush.bf16.msra.mxu0 %v7216
      %7301 = vmatpush.bf16.msra.mxu0 %v7212
      %7302 = vmatmul.bf16.gmra.mxu0 %v184
      %v7303 = vpop.f32.mrf.mxu0
      %v7304 = vadd.f32 0.0, %v7303
      %v7305 = vpop.f32.mrf.mxu0
      %v7306 = vadd.f32 0.0, %v7305
      %7307 = vmatmul.bf16.gmra.mxu0 %v185
      %v7308 = vpop.f32.mrf.mxu0
      %v7309 = vadd.f32 0.0, %v7308
      %v7310 = vpop.f32.mrf.mxu0
      %v7311 = vadd.f32 0.0, %v7310
      %7312 = vdwg.mxu0
      %7313 = vmatpush.bf16.msra.mxu0 %v7241
      %7314 = vmatpush.bf16.msra.mxu0 %v7237
      %7315 = vmatpush.bf16.msra.mxu0 %v7233
      %7316 = vmatpush.bf16.msra.mxu0 %v7229
      %7317 = vmatpush.bf16.msra.mxu0 %v7225
      %7318 = vmatpush.bf16.msra.mxu0 %v7221
      %7319 = vmatpush.bf16.msra.mxu0 %v7217
      %7320 = vmatpush.bf16.msra.mxu0 %v7213
      %7321 = vmatmul.bf16.gmra.mxu0 %v184
      %v7322 = vpop.f32.mrf.mxu0
      %v7323 = vadd.f32 0.0, %v7322
      %v7324 = vpop.f32.mrf.mxu0
      %v7325 = vadd.f32 0.0, %v7324
      %7326 = vmatmul.bf16.gmra.mxu0 %v185
      %v7327 = vpop.f32.mrf.mxu0
      %v7328 = vadd.f32 0.0, %v7327
      %v7329 = vpop.f32.mrf.mxu0
      %v7330 = vadd.f32 0.0, %v7329
      %7331 = vdwg.mxu0
      %7332 = vmatpush.bf16.msra.mxu0 %v7242
      %7333 = vmatpush.bf16.msra.mxu0 %v7238
      %7334 = vmatpush.bf16.msra.mxu0 %v7234
      %7335 = vmatpush.bf16.msra.mxu0 %v7230
      %7336 = vmatpush.bf16.msra.mxu0 %v7226
      %7337 = vmatpush.bf16.msra.mxu0 %v7222
      %7338 = vmatpush.bf16.msra.mxu0 %v7218
      %7339 = vmatpush.bf16.msra.mxu0 %v7214
      %7340 = vmatmul.bf16.gmra.mxu0 %v184
      %v7341 = vpop.f32.mrf.mxu0
      %v7342 = vadd.f32 0.0, %v7341
      %v7343 = vpop.f32.mrf.mxu0
      %v7344 = vadd.f32 0.0, %v7343
      %7345 = vmatmul.bf16.gmra.mxu0 %v185
      %v7346 = vpop.f32.mrf.mxu0
      %v7347 = vadd.f32 0.0, %v7346
      %v7348 = vpop.f32.mrf.mxu0
      %v7349 = vadd.f32 0.0, %v7348
      %7350 = vdwg.mxu0
      %v7383 = vunpack.c.l.b16 %v7050
      %v7384 = vunpack.c.h.b16 %v7050
      %v7385 = vunpack.c.l.b16 %v7051
      %v7386 = vunpack.c.h.b16 %v7051
      %v7387 = vunpack.c.l.b16 %v7052
      %v7388 = vunpack.c.h.b16 %v7052
      %v7389 = vunpack.c.l.b16 %v7053
      %v7390 = vunpack.c.h.b16 %v7053
      %v7391 = vunpack.c.l.b16 %v7054
      %v7392 = vunpack.c.h.b16 %v7054
      %v7393 = vunpack.c.l.b16 %v7055
      %v7394 = vunpack.c.h.b16 %v7055
      %v7395 = vunpack.c.l.b16 %v7056
      %v7396 = vunpack.c.h.b16 %v7056
      %v7397 = vunpack.c.l.b16 %v7057
      %v7398 = vunpack.c.h.b16 %v7057
      %v7399 = vunpack.c.l.b16 %v7058
      %v7400 = vunpack.c.h.b16 %v7058
      %v7401 = vunpack.c.l.b16 %v7059
      %v7402 = vunpack.c.h.b16 %v7059
      %v7403 = vunpack.c.l.b16 %v7060
      %v7404 = vunpack.c.h.b16 %v7060
      %v7405 = vunpack.c.l.b16 %v7061
      %v7406 = vunpack.c.h.b16 %v7061
      %v7407 = vunpack.c.l.b16 %v7062
      %v7408 = vunpack.c.h.b16 %v7062
      %v7409 = vunpack.c.l.b16 %v7063
      %v7410 = vunpack.c.h.b16 %v7063
      %v7411 = vunpack.c.l.b16 %v7064
      %v7412 = vunpack.c.h.b16 %v7064
      %v7413 = vunpack.c.l.b16 %v7065
      %v7414 = vunpack.c.h.b16 %v7065
      %v7415 = vunpack.c.l.b16 %v7066
      %v7416 = vunpack.c.h.b16 %v7066
      %v7417 = vunpack.c.l.b16 %v7067
      %v7418 = vunpack.c.h.b16 %v7067
      %v7419 = vunpack.c.l.b16 %v7068
      %v7420 = vunpack.c.h.b16 %v7068
      %v7421 = vunpack.c.l.b16 %v7069
      %v7422 = vunpack.c.h.b16 %v7069
      %v7423 = vunpack.c.l.b16 %v7070
      %v7424 = vunpack.c.h.b16 %v7070
      %v7425 = vunpack.c.l.b16 %v7071
      %v7426 = vunpack.c.h.b16 %v7071
      %v7427 = vunpack.c.l.b16 %v7072
      %v7428 = vunpack.c.h.b16 %v7072
      %v7429 = vunpack.c.l.b16 %v7073
      %v7430 = vunpack.c.h.b16 %v7073
      %v7431 = vunpack.c.l.b16 %v7074
      %v7432 = vunpack.c.h.b16 %v7074
      %v7433 = vunpack.c.l.b16 %v7075
      %v7434 = vunpack.c.h.b16 %v7075
      %v7435 = vunpack.c.l.b16 %v7076
      %v7436 = vunpack.c.h.b16 %v7076
      %v7437 = vunpack.c.l.b16 %v7077
      %v7438 = vunpack.c.h.b16 %v7077
      %v7439 = vunpack.c.l.b16 %v7078
      %v7440 = vunpack.c.h.b16 %v7078
      %v7441 = vunpack.c.l.b16 %v7079
      %v7442 = vunpack.c.h.b16 %v7079
      %v7443 = vunpack.c.l.b16 %v7080
      %v7444 = vunpack.c.h.b16 %v7080
      %v7445 = vunpack.c.l.b16 %v7081
      %v7446 = vunpack.c.h.b16 %v7081
      %v7447 = vpack.c.b16 %v7387, %v7383
      %v7448 = vpack.c.b16 %v7388, %v7384
      %v7449 = vpack.c.b16 %v7389, %v7385
      %v7450 = vpack.c.b16 %v7390, %v7386
      %v7451 = vpack.c.b16 %v7395, %v7391
      %v7452 = vpack.c.b16 %v7396, %v7392
      %v7453 = vpack.c.b16 %v7397, %v7393
      %v7454 = vpack.c.b16 %v7398, %v7394
      %v7455 = vpack.c.b16 %v7403, %v7399
      %v7456 = vpack.c.b16 %v7404, %v7400
      %v7457 = vpack.c.b16 %v7405, %v7401
      %v7458 = vpack.c.b16 %v7406, %v7402
      %v7459 = vpack.c.b16 %v7411, %v7407
      %v7460 = vpack.c.b16 %v7412, %v7408
      %v7461 = vpack.c.b16 %v7413, %v7409
      %v7462 = vpack.c.b16 %v7414, %v7410
      %v7463 = vpack.c.b16 %v7419, %v7415
      %v7464 = vpack.c.b16 %v7420, %v7416
      %v7465 = vpack.c.b16 %v7421, %v7417
      %v7466 = vpack.c.b16 %v7422, %v7418
      %v7467 = vpack.c.b16 %v7427, %v7423
      %v7468 = vpack.c.b16 %v7428, %v7424
      %v7469 = vpack.c.b16 %v7429, %v7425
      %v7470 = vpack.c.b16 %v7430, %v7426
      %v7471 = vpack.c.b16 %v7435, %v7431
      %v7472 = vpack.c.b16 %v7436, %v7432
      %v7473 = vpack.c.b16 %v7437, %v7433
      %v7474 = vpack.c.b16 %v7438, %v7434
      %v7475 = vpack.c.b16 %v7443, %v7439
      %v7476 = vpack.c.b16 %v7444, %v7440
      %v7477 = vpack.c.b16 %v7445, %v7441
      %v7478 = vpack.c.b16 %v7446, %v7442
      %7511 = vmatpush.bf16.msra.mxu0 %v7475
      %7512 = vmatpush.bf16.msra.mxu0 %v7471
      %7513 = vmatpush.bf16.msra.mxu0 %v7467
      %7514 = vmatpush.bf16.msra.mxu0 %v7463
      %7515 = vmatpush.bf16.msra.mxu0 %v7459
      %7516 = vmatpush.bf16.msra.mxu0 %v7455
      %7517 = vmatpush.bf16.msra.mxu0 %v7451
      %7518 = vmatpush.bf16.msra.mxu0 %v7447
      %7519 = vmatmul.bf16.gmra.mxu0 %v182
      %v7520 = vpop.f32.mrf.mxu0
      %v7521 = vadd.f32 %v7285, %v7520
      %v7522 = vpop.f32.mrf.mxu0
      %v7523 = vadd.f32 %v7287, %v7522
      %7524 = vmatmul.bf16.gmra.mxu0 %v183
      %v7525 = vpop.f32.mrf.mxu0
      %v7526 = vadd.f32 %v7290, %v7525
      %v7527 = vpop.f32.mrf.mxu0
      %v7528 = vadd.f32 %v7292, %v7527
      %7529 = vdwg.mxu0
      %7530 = vmatpush.bf16.msra.mxu0 %v7476
      %7531 = vmatpush.bf16.msra.mxu0 %v7472
      %7532 = vmatpush.bf16.msra.mxu0 %v7468
      %7533 = vmatpush.bf16.msra.mxu0 %v7464
      %7534 = vmatpush.bf16.msra.mxu0 %v7460
      %7535 = vmatpush.bf16.msra.mxu0 %v7456
      %7536 = vmatpush.bf16.msra.mxu0 %v7452
      %7537 = vmatpush.bf16.msra.mxu0 %v7448
      %7538 = vmatmul.bf16.gmra.mxu0 %v182
      %v7539 = vpop.f32.mrf.mxu0
      %v7540 = vadd.f32 %v7304, %v7539
      %v7541 = vpop.f32.mrf.mxu0
      %v7542 = vadd.f32 %v7306, %v7541
      %7543 = vmatmul.bf16.gmra.mxu0 %v183
      %v7544 = vpop.f32.mrf.mxu0
      %v7545 = vadd.f32 %v7309, %v7544
      %v7546 = vpop.f32.mrf.mxu0
      %v7547 = vadd.f32 %v7311, %v7546
      %7548 = vdwg.mxu0
      %7549 = vmatpush.bf16.msra.mxu0 %v7477
      %7550 = vmatpush.bf16.msra.mxu0 %v7473
      %7551 = vmatpush.bf16.msra.mxu0 %v7469
      %7552 = vmatpush.bf16.msra.mxu0 %v7465
      %7553 = vmatpush.bf16.msra.mxu0 %v7461
      %7554 = vmatpush.bf16.msra.mxu0 %v7457
      %7555 = vmatpush.bf16.msra.mxu0 %v7453
      %7556 = vmatpush.bf16.msra.mxu0 %v7449
      %7557 = vmatmul.bf16.gmra.mxu0 %v182
      %v7558 = vpop.f32.mrf.mxu0
      %v7559 = vadd.f32 %v7323, %v7558
      %v7560 = vpop.f32.mrf.mxu0
      %v7561 = vadd.f32 %v7325, %v7560
      %7562 = vmatmul.bf16.gmra.mxu0 %v183
      %v7563 = vpop.f32.mrf.mxu0
      %v7564 = vadd.f32 %v7328, %v7563
      %v7565 = vpop.f32.mrf.mxu0
      %v7566 = vadd.f32 %v7330, %v7565
      %7567 = vdwg.mxu0
      %7568 = vmatpush.bf16.msra.mxu0 %v7478
      %7569 = vmatpush.bf16.msra.mxu0 %v7474
      %7570 = vmatpush.bf16.msra.mxu0 %v7470
      %7571 = vmatpush.bf16.msra.mxu0 %v7466
      %7572 = vmatpush.bf16.msra.mxu0 %v7462
      %7573 = vmatpush.bf16.msra.mxu0 %v7458
      %7574 = vmatpush.bf16.msra.mxu0 %v7454
      %7575 = vmatpush.bf16.msra.mxu0 %v7450
      %7576 = vmatmul.bf16.gmra.mxu0 %v182
      %v7577 = vpop.f32.mrf.mxu0
      %v7578 = vadd.f32 %v7342, %v7577
      %v7579 = vpop.f32.mrf.mxu0
      %v7580 = vadd.f32 %v7344, %v7579
      %7581 = vmatmul.bf16.gmra.mxu0 %v183
      %v7582 = vpop.f32.mrf.mxu0
      %v7583 = vadd.f32 %v7347, %v7582
      %v7584 = vpop.f32.mrf.mxu0
      %v7585 = vadd.f32 %v7349, %v7584
      %7586 = vdwg.mxu0
      %s7587 = scalar_lea.vmem %s3, 32
      %v7588 = vld [vmem:[%s7587] sm:$0xf]
      %v7590 = vperm.slane %v7588, 0
      %v7591 = vperm.slane %v7588, 1
      %v7592 = vperm.slane %v7588, 2
      %v7593 = vperm.slane %v7588, 3
      %v7598 = vadd.f32 %v7521, %v7590
      %v7599 = vadd.f32 %v7540, %v7591
      %v7600 = vadd.f32 %v7559, %v7592
      %v7601 = vadd.f32 %v7578, %v7593
      %v7602 = vadd.f32 %v7523, %v7590
      %v7603 = vadd.f32 %v7542, %v7591
      %v7604 = vadd.f32 %v7561, %v7592
      %v7605 = vadd.f32 %v7580, %v7593
      %v7606 = vadd.f32 %v7526, %v7590
      %v7607 = vadd.f32 %v7545, %v7591
      %v7608 = vadd.f32 %v7564, %v7592
      %v7609 = vadd.f32 %v7583, %v7593
      %v7610 = vadd.f32 %v7528, %v7590
      %v7611 = vadd.f32 %v7547, %v7591
      %v7612 = vadd.f32 %v7566, %v7592
      %v7613 = vadd.f32 %v7585, %v7593
      %v7614 = vxor.u32 %v7598, 2147483648
      %v7615 = vxor.u32 %v7602, 2147483648
      %v7616 = vxor.u32 %v7606, 2147483648
      %v7617 = vxor.u32 %v7610, 2147483648
      %v7618 = vmul.f32 %v7614, 1.442695
      %v7619 = vpow.pop %v7618
      %v7620 = vmul.f32 %v7615, 1.442695
      %v7621 = vpow.pop %v7620
      %v7622 = vmul.f32 %v7616, 1.442695
      %v7623 = vpow.pop %v7622
      %v7624 = vmul.f32 %v7617, 1.442695
      %v7625 = vpow.pop %v7624
      %v7626 = vadd.f32 %v7619, 1.0
      %v7627 = vadd.f32 %v7621, 1.0
      %v7628 = vadd.f32 %v7623, 1.0
      %v7629 = vadd.f32 %v7625, 1.0
      %v7630 = vrcp.pop %v7626
      %v7631 = vmul.f32 %v7626, %v7630
      %v7632 = vsub.f32 1.0, %v7631
      %v7633 = vmul.f32 %v7630, %v7632
      %v7634 = vadd.f32 %v7630, %v7633
      %vm7635 = vweird.f32 %v7626
      %vm7636 = vweird.f32 %v7630
      %vm7637 = vmor %vm7635, %vm7636
      %v7638 = vsel %vm7637, %v7630, %v7634
      %v7639 = vand.u32 2147483647, %v7626
      %vm7640 = vcmp.eq.f32.partialorder %v7639, 8.507059e+37
      %v7641 = vand.u32 %v7626, 2147483648
      %v7642 = vor.u32 1.1754944e-38, %v7641
      %v7643 = vsel %vm7640, %v7642, %v7638
      %v7644 = vmul.f32 1.0, %v7643
      %v7645 = vrcp.pop %v7627
      %v7646 = vmul.f32 %v7627, %v7645
      %v7647 = vsub.f32 1.0, %v7646
      %v7648 = vmul.f32 %v7645, %v7647
      %v7649 = vadd.f32 %v7645, %v7648
      %vm7650 = vweird.f32 %v7627
      %vm7651 = vweird.f32 %v7645
      %vm7652 = vmor %vm7650, %vm7651
      %v7653 = vsel %vm7652, %v7645, %v7649
      %v7654 = vand.u32 2147483647, %v7627
      %vm7655 = vcmp.eq.f32.partialorder %v7654, 8.507059e+37
      %v7656 = vand.u32 %v7627, 2147483648
      %v7657 = vor.u32 1.1754944e-38, %v7656
      %v7658 = vsel %vm7655, %v7657, %v7653
      %v7659 = vmul.f32 1.0, %v7658
      %v7660 = vrcp.pop %v7628
      %v7661 = vmul.f32 %v7628, %v7660
      %v7662 = vsub.f32 1.0, %v7661
      %v7663 = vmul.f32 %v7660, %v7662
      %v7664 = vadd.f32 %v7660, %v7663
      %vm7665 = vweird.f32 %v7628
      %vm7666 = vweird.f32 %v7660
      %vm7667 = vmor %vm7665, %vm7666
      %v7668 = vsel %vm7667, %v7660, %v7664
      %v7669 = vand.u32 2147483647, %v7628
      %vm7670 = vcmp.eq.f32.partialorder %v7669, 8.507059e+37
      %v7671 = vand.u32 %v7628, 2147483648
      %v7672 = vor.u32 1.1754944e-38, %v7671
      %v7673 = vsel %vm7670, %v7672, %v7668
      %v7674 = vmul.f32 1.0, %v7673
      %v7675 = vrcp.pop %v7629
      %v7676 = vmul.f32 %v7629, %v7675
      %v7677 = vsub.f32 1.0, %v7676
      %v7678 = vmul.f32 %v7675, %v7677
      %v7679 = vadd.f32 %v7675, %v7678
      %vm7680 = vweird.f32 %v7629
      %vm7681 = vweird.f32 %v7675
      %vm7682 = vmor %vm7680, %vm7681
      %v7683 = vsel %vm7682, %v7675, %v7679
      %v7684 = vand.u32 2147483647, %v7629
      %vm7685 = vcmp.eq.f32.partialorder %v7684, 8.507059e+37
      %v7686 = vand.u32 %v7629, 2147483648
      %v7687 = vor.u32 1.1754944e-38, %v7686
      %v7688 = vsel %vm7685, %v7687, %v7683
      %v7689 = vmul.f32 1.0, %v7688
      %v7690 = vxor.u32 %v7599, 2147483648
      %v7691 = vxor.u32 %v7603, 2147483648
      %v7692 = vxor.u32 %v7607, 2147483648
      %v7693 = vxor.u32 %v7611, 2147483648
      %v7694 = vmul.f32 %v7690, 1.442695
      %v7695 = vpow.pop %v7694
      %v7696 = vmul.f32 %v7691, 1.442695
      %v7697 = vpow.pop %v7696
      %v7698 = vmul.f32 %v7692, 1.442695
      %v7699 = vpow.pop %v7698
      %v7700 = vmul.f32 %v7693, 1.442695
      %v7701 = vpow.pop %v7700
      %v7702 = vadd.f32 %v7695, 1.0
      %v7703 = vadd.f32 %v7697, 1.0
      %v7704 = vadd.f32 %v7699, 1.0
      %v7705 = vadd.f32 %v7701, 1.0
      %v7706 = vrcp.pop %v7702
      %v7707 = vmul.f32 %v7702, %v7706
      %v7708 = vsub.f32 1.0, %v7707
      %v7709 = vmul.f32 %v7706, %v7708
      %v7710 = vadd.f32 %v7706, %v7709
      %vm7711 = vweird.f32 %v7702
      %vm7712 = vweird.f32 %v7706
      %vm7713 = vmor %vm7711, %vm7712
      %v7714 = vsel %vm7713, %v7706, %v7710
      %v7715 = vand.u32 2147483647, %v7702
      %vm7716 = vcmp.eq.f32.partialorder %v7715, 8.507059e+37
      %v7717 = vand.u32 %v7702, 2147483648
      %v7718 = vor.u32 1.1754944e-38, %v7717
      %v7719 = vsel %vm7716, %v7718, %v7714
      %v7720 = vmul.f32 1.0, %v7719
      %v7721 = vrcp.pop %v7703
      %v7722 = vmul.f32 %v7703, %v7721
      %v7723 = vsub.f32 1.0, %v7722
      %v7724 = vmul.f32 %v7721, %v7723
      %v7725 = vadd.f32 %v7721, %v7724
      %vm7726 = vweird.f32 %v7703
      %vm7727 = vweird.f32 %v7721
      %vm7728 = vmor %vm7726, %vm7727
      %v7729 = vsel %vm7728, %v7721, %v7725
      %v7730 = vand.u32 2147483647, %v7703
      %vm7731 = vcmp.eq.f32.partialorder %v7730, 8.507059e+37
      %v7732 = vand.u32 %v7703, 2147483648
      %v7733 = vor.u32 1.1754944e-38, %v7732
      %v7734 = vsel %vm7731, %v7733, %v7729
      %v7735 = vmul.f32 1.0, %v7734
      %v7736 = vrcp.pop %v7704
      %v7737 = vmul.f32 %v7704, %v7736
      %v7738 = vsub.f32 1.0, %v7737
      %v7739 = vmul.f32 %v7736, %v7738
      %v7740 = vadd.f32 %v7736, %v7739
      %vm7741 = vweird.f32 %v7704
      %vm7742 = vweird.f32 %v7736
      %vm7743 = vmor %vm7741, %vm7742
      %v7744 = vsel %vm7743, %v7736, %v7740
      %v7745 = vand.u32 2147483647, %v7704
      %vm7746 = vcmp.eq.f32.partialorder %v7745, 8.507059e+37
      %v7747 = vand.u32 %v7704, 2147483648
      %v7748 = vor.u32 1.1754944e-38, %v7747
      %v7749 = vsel %vm7746, %v7748, %v7744
      %v7750 = vmul.f32 1.0, %v7749
      %v7751 = vrcp.pop %v7705
      %v7752 = vmul.f32 %v7705, %v7751
      %v7753 = vsub.f32 1.0, %v7752
      %v7754 = vmul.f32 %v7751, %v7753
      %v7755 = vadd.f32 %v7751, %v7754
      %vm7756 = vweird.f32 %v7705
      %vm7757 = vweird.f32 %v7751
      %vm7758 = vmor %vm7756, %vm7757
      %v7759 = vsel %vm7758, %v7751, %v7755
      %v7760 = vand.u32 2147483647, %v7705
      %vm7761 = vcmp.eq.f32.partialorder %v7760, 8.507059e+37
      %v7762 = vand.u32 %v7705, 2147483648
      %v7763 = vor.u32 1.1754944e-38, %v7762
      %v7764 = vsel %vm7761, %v7763, %v7759
      %v7765 = vmul.f32 1.0, %v7764
      %v7766 = vtanh.pop %v7600
      %v7767 = vtanh.pop %v7604
      %v7768 = vtanh.pop %v7608
      %v7769 = vtanh.pop %v7612
      %v7770 = vxor.u32 %v7601, 2147483648
      %v7771 = vxor.u32 %v7605, 2147483648
      %v7772 = vxor.u32 %v7609, 2147483648
      %v7773 = vxor.u32 %v7613, 2147483648
      %v7774 = vmul.f32 %v7770, 1.442695
      %v7775 = vpow.pop %v7774
      %v7776 = vmul.f32 %v7771, 1.442695
      %v7777 = vpow.pop %v7776
      %v7778 = vmul.f32 %v7772, 1.442695
      %v7779 = vpow.pop %v7778
      %v7780 = vmul.f32 %v7773, 1.442695
      %v7781 = vpow.pop %v7780
      %v7782 = vadd.f32 %v7775, 1.0
      %v7783 = vadd.f32 %v7777, 1.0
      %v7784 = vadd.f32 %v7779, 1.0
      %v7785 = vadd.f32 %v7781, 1.0
      %v7786 = vrcp.pop %v7782
      %v7787 = vmul.f32 %v7782, %v7786
      %v7788 = vsub.f32 1.0, %v7787
      %v7789 = vmul.f32 %v7786, %v7788
      %v7790 = vadd.f32 %v7786, %v7789
      %vm7791 = vweird.f32 %v7782
      %vm7792 = vweird.f32 %v7786
      %vm7793 = vmor %vm7791, %vm7792
      %v7794 = vsel %vm7793, %v7786, %v7790
      %v7795 = vand.u32 2147483647, %v7782
      %vm7796 = vcmp.eq.f32.partialorder %v7795, 8.507059e+37
      %v7797 = vand.u32 %v7782, 2147483648
      %v7798 = vor.u32 1.1754944e-38, %v7797
      %v7799 = vsel %vm7796, %v7798, %v7794
      %v7800 = vmul.f32 1.0, %v7799
      %v7801 = vrcp.pop %v7783
      %v7802 = vmul.f32 %v7783, %v7801
      %v7803 = vsub.f32 1.0, %v7802
      %v7804 = vmul.f32 %v7801, %v7803
      %v7805 = vadd.f32 %v7801, %v7804
      %vm7806 = vweird.f32 %v7783
      %vm7807 = vweird.f32 %v7801
      %vm7808 = vmor %vm7806, %vm7807
      %v7809 = vsel %vm7808, %v7801, %v7805
      %v7810 = vand.u32 2147483647, %v7783
      %vm7811 = vcmp.eq.f32.partialorder %v7810, 8.507059e+37
      %v7812 = vand.u32 %v7783, 2147483648
      %v7813 = vor.u32 1.1754944e-38, %v7812
      %v7814 = vsel %vm7811, %v7813, %v7809
      %v7815 = vmul.f32 1.0, %v7814
      %v7816 = vrcp.pop %v7784
      %v7817 = vmul.f32 %v7784, %v7816
      %v7818 = vsub.f32 1.0, %v7817
      %v7819 = vmul.f32 %v7816, %v7818
      %v7820 = vadd.f32 %v7816, %v7819
      %vm7821 = vweird.f32 %v7784
      %vm7822 = vweird.f32 %v7816
      %vm7823 = vmor %vm7821, %vm7822
      %v7824 = vsel %vm7823, %v7816, %v7820
      %v7825 = vand.u32 2147483647, %v7784
      %vm7826 = vcmp.eq.f32.partialorder %v7825, 8.507059e+37
      %v7827 = vand.u32 %v7784, 2147483648
      %v7828 = vor.u32 1.1754944e-38, %v7827
      %v7829 = vsel %vm7826, %v7828, %v7824
      %v7830 = vmul.f32 1.0, %v7829
      %v7831 = vrcp.pop %v7785
      %v7832 = vmul.f32 %v7785, %v7831
      %v7833 = vsub.f32 1.0, %v7832
      %v7834 = vmul.f32 %v7831, %v7833
      %v7835 = vadd.f32 %v7831, %v7834
      %vm7836 = vweird.f32 %v7785
      %vm7837 = vweird.f32 %v7831
      %vm7838 = vmor %vm7836, %vm7837
      %v7839 = vsel %vm7838, %v7831, %v7835
      %v7840 = vand.u32 2147483647, %v7785
      %vm7841 = vcmp.eq.f32.partialorder %v7840, 8.507059e+37
      %v7842 = vand.u32 %v7785, 2147483648
      %v7843 = vor.u32 1.1754944e-38, %v7842
      %v7844 = vsel %vm7841, %v7843, %v7839
      %v7845 = vmul.f32 1.0, %v7844
      %v7846 = vmul.f32 %v7720, %v7045
      %v7847 = vmul.f32 %v7735, %v7046
      %v7848 = vmul.f32 %v7750, %v7047
      %v7849 = vmul.f32 %v7765, %v7048
      %v7850 = vmul.f32 %v7644, %v7766
      %v7851 = vmul.f32 %v7659, %v7767
      %v7852 = vmul.f32 %v7674, %v7768
      %v7853 = vmul.f32 %v7689, %v7769
      %v7854 = vadd.f32 %v7846, %v7850
      %v7855 = vadd.f32 %v7847, %v7851
      %v7856 = vadd.f32 %v7848, %v7852
      %v7857 = vadd.f32 %v7849, %v7853
      %v7858 = vtanh.pop %v7854
      %v7859 = vtanh.pop %v7855
      %v7860 = vtanh.pop %v7856
      %v7861 = vtanh.pop %v7857
      %v7862 = vmul.f32 %v7800, %v7858
      %v7863 = vmul.f32 %v7815, %v7859
      %v7864 = vmul.f32 %v7830, %v7860
      %v7865 = vmul.f32 %v7845, %v7861
      %p7866 = scmp.ge.s32.totalorder %s7043, 0
      %p7867 = scmp.lt.s32.totalorder %s7043, 2
      %p7868 = pnand %p7866, %p7867
      %p7869 = pneg %p7868
      %s7870 = scalar_select %p7869, 1, 0
      %s7871 = scvt.s32.f32 %s7870
      %v7872 = vstv %s7871
      %v7873 = vmul.f32 %v7872, %v7862
      %v7874 = vmul.f32 %v7872, %v7863
      %v7875 = vmul.f32 %v7872, %v7864
      %v7876 = vmul.f32 %v7872, %v7865
      %s7877 = ssub.f32 1.0, %s7871
      %v7878 = vstv %s7877
      %v7879 = vmul.f32 %v7878, %v159
      %v7880 = vmul.f32 %v7878, %v160
      %v7881 = vmul.f32 %v7878, %v161
      %v7882 = vmul.f32 %v7878, %v162
      %v7883 = vadd.f32 %v7873, %v7879
      %v7884 = vadd.f32 %v7874, %v7880
      %v7885 = vadd.f32 %v7875, %v7881
      %v7886 = vadd.f32 %v7876, %v7882
      %v7887 = vmul.f32 %v7872, %v7854
      %v7888 = vmul.f32 %v7872, %v7855
      %v7889 = vmul.f32 %v7872, %v7856
      %v7890 = vmul.f32 %v7872, %v7857
      %v7891 = vmul.f32 %v7878, %v7045
      %v7892 = vmul.f32 %v7878, %v7046
      %v7893 = vmul.f32 %v7878, %v7047
      %v7894 = vmul.f32 %v7878, %v7048
      %v7895 = vadd.f32 %v7887, %v7891
      %v7896 = vadd.f32 %v7888, %v7892
      %v7897 = vadd.f32 %v7889, %v7893
      %v7898 = vadd.f32 %v7890, %v7894
      %s7899 = ssub.s32 %s105, 9
      %s7900 = scalar_lea.vmem [#allocation3], 288
      %v7901 = vld [vmem:[%s7900] sm:$0xff]
      %v7902 = vld [vmem:[%s7900 + $0x8] sm:$0xff]
      %v7903 = vld [vmem:[%s7900 + $0x10] sm:$0xff]
      %v7904 = vld [vmem:[%s7900 + $0x18] sm:$0xff]
      %s7905 = scalar_lea.vmem %s1, 2304
      %v7906 = vld [vmem:[%s7905] sm:$0xff]
      %v7907 = vld [vmem:[%s7905 + $0x8] sm:$0xff]
      %v7908 = vld [vmem:[%s7905 + $0x10] sm:$0xff]
      %v7909 = vld [vmem:[%s7905 + $0x18] sm:$0xff]
      %v7910 = vld [vmem:[%s7905 + $0x20] sm:$0xff]
      %v7911 = vld [vmem:[%s7905 + $0x28] sm:$0xff]
      %v7912 = vld [vmem:[%s7905 + $0x30] sm:$0xff]
      %v7913 = vld [vmem:[%s7905 + $0x38] sm:$0xff]
      %v7914 = vld [vmem:[%s7905 + $0x40] sm:$0xff]
      %v7915 = vld [vmem:[%s7905 + $0x48] sm:$0xff]
      %v7916 = vld [vmem:[%s7905 + $0x50] sm:$0xff]
      %v7917 = vld [vmem:[%s7905 + $0x58] sm:$0xff]
      %v7918 = vld [vmem:[%s7905 + $0x60] sm:$0xff]
      %v7919 = vld [vmem:[%s7905 + $0x68] sm:$0xff]
      %v7920 = vld [vmem:[%s7905 + $0x70] sm:$0xff]
      %v7921 = vld [vmem:[%s7905 + $0x78] sm:$0xff]
      %v7922 = vld [vmem:[%s7905 + $0x80] sm:$0xff]
      %v7923 = vld [vmem:[%s7905 + $0x88] sm:$0xff]
      %v7924 = vld [vmem:[%s7905 + $0x90] sm:$0xff]
      %v7925 = vld [vmem:[%s7905 + $0x98] sm:$0xff]
      %v7926 = vld [vmem:[%s7905 + $0xa0] sm:$0xff]
      %v7927 = vld [vmem:[%s7905 + $0xa8] sm:$0xff]
      %v7928 = vld [vmem:[%s7905 + $0xb0] sm:$0xff]
      %v7929 = vld [vmem:[%s7905 + $0xb8] sm:$0xff]
      %v7930 = vld [vmem:[%s7905 + $0xc0] sm:$0xff]
      %v7931 = vld [vmem:[%s7905 + $0xc8] sm:$0xff]
      %v7932 = vld [vmem:[%s7905 + $0xd0] sm:$0xff]
      %v7933 = vld [vmem:[%s7905 + $0xd8] sm:$0xff]
      %v7934 = vld [vmem:[%s7905 + $0xe0] sm:$0xff]
      %v7935 = vld [vmem:[%s7905 + $0xe8] sm:$0xff]
      %v7936 = vld [vmem:[%s7905 + $0xf0] sm:$0xff]
      %v7937 = vld [vmem:[%s7905 + $0xf8] sm:$0xff]
      %s7938 = scalar_lea.vmem %s2, 2304
      %v7939 = vld [vmem:[%s7938] sm:$0xff]
      %v7940 = vld [vmem:[%s7938 + $0x8] sm:$0xff]
      %v7941 = vld [vmem:[%s7938 + $0x10] sm:$0xff]
      %v7942 = vld [vmem:[%s7938 + $0x18] sm:$0xff]
      %v7943 = vld [vmem:[%s7938 + $0x20] sm:$0xff]
      %v7944 = vld [vmem:[%s7938 + $0x28] sm:$0xff]
      %v7945 = vld [vmem:[%s7938 + $0x30] sm:$0xff]
      %v7946 = vld [vmem:[%s7938 + $0x38] sm:$0xff]
      %v7947 = vld [vmem:[%s7938 + $0x40] sm:$0xff]
      %v7948 = vld [vmem:[%s7938 + $0x48] sm:$0xff]
      %v7949 = vld [vmem:[%s7938 + $0x50] sm:$0xff]
      %v7950 = vld [vmem:[%s7938 + $0x58] sm:$0xff]
      %v7951 = vld [vmem:[%s7938 + $0x60] sm:$0xff]
      %v7952 = vld [vmem:[%s7938 + $0x68] sm:$0xff]
      %v7953 = vld [vmem:[%s7938 + $0x70] sm:$0xff]
      %v7954 = vld [vmem:[%s7938 + $0x78] sm:$0xff]
      %v7955 = vld [vmem:[%s7938 + $0x80] sm:$0xff]
      %v7956 = vld [vmem:[%s7938 + $0x88] sm:$0xff]
      %v7957 = vld [vmem:[%s7938 + $0x90] sm:$0xff]
      %v7958 = vld [vmem:[%s7938 + $0x98] sm:$0xff]
      %v7959 = vld [vmem:[%s7938 + $0xa0] sm:$0xff]
      %v7960 = vld [vmem:[%s7938 + $0xa8] sm:$0xff]
      %v7961 = vld [vmem:[%s7938 + $0xb0] sm:$0xff]
      %v7962 = vld [vmem:[%s7938 + $0xb8] sm:$0xff]
      %v7963 = vld [vmem:[%s7938 + $0xc0] sm:$0xff]
      %v7964 = vld [vmem:[%s7938 + $0xc8] sm:$0xff]
      %v7965 = vld [vmem:[%s7938 + $0xd0] sm:$0xff]
      %v7966 = vld [vmem:[%s7938 + $0xd8] sm:$0xff]
      %v7967 = vld [vmem:[%s7938 + $0xe0] sm:$0xff]
      %v7968 = vld [vmem:[%s7938 + $0xe8] sm:$0xff]
      %v7969 = vld [vmem:[%s7938 + $0xf0] sm:$0xff]
      %v7970 = vld [vmem:[%s7938 + $0xf8] sm:$0xff]
      %v8003 = vunpack.c.l.b16 %v7939
      %v8004 = vunpack.c.h.b16 %v7939
      %v8005 = vunpack.c.l.b16 %v7940
      %v8006 = vunpack.c.h.b16 %v7940
      %v8007 = vunpack.c.l.b16 %v7941
      %v8008 = vunpack.c.h.b16 %v7941
      %v8009 = vunpack.c.l.b16 %v7942
      %v8010 = vunpack.c.h.b16 %v7942
      %v8011 = vunpack.c.l.b16 %v7943
      %v8012 = vunpack.c.h.b16 %v7943
      %v8013 = vunpack.c.l.b16 %v7944
      %v8014 = vunpack.c.h.b16 %v7944
      %v8015 = vunpack.c.l.b16 %v7945
      %v8016 = vunpack.c.h.b16 %v7945
      %v8017 = vunpack.c.l.b16 %v7946
      %v8018 = vunpack.c.h.b16 %v7946
      %v8019 = vunpack.c.l.b16 %v7947
      %v8020 = vunpack.c.h.b16 %v7947
      %v8021 = vunpack.c.l.b16 %v7948
      %v8022 = vunpack.c.h.b16 %v7948
      %v8023 = vunpack.c.l.b16 %v7949
      %v8024 = vunpack.c.h.b16 %v7949
      %v8025 = vunpack.c.l.b16 %v7950
      %v8026 = vunpack.c.h.b16 %v7950
      %v8027 = vunpack.c.l.b16 %v7951
      %v8028 = vunpack.c.h.b16 %v7951
      %v8029 = vunpack.c.l.b16 %v7952
      %v8030 = vunpack.c.h.b16 %v7952
      %v8031 = vunpack.c.l.b16 %v7953
      %v8032 = vunpack.c.h.b16 %v7953
      %v8033 = vunpack.c.l.b16 %v7954
      %v8034 = vunpack.c.h.b16 %v7954
      %v8035 = vunpack.c.l.b16 %v7955
      %v8036 = vunpack.c.h.b16 %v7955
      %v8037 = vunpack.c.l.b16 %v7956
      %v8038 = vunpack.c.h.b16 %v7956
      %v8039 = vunpack.c.l.b16 %v7957
      %v8040 = vunpack.c.h.b16 %v7957
      %v8041 = vunpack.c.l.b16 %v7958
      %v8042 = vunpack.c.h.b16 %v7958
      %v8043 = vunpack.c.l.b16 %v7959
      %v8044 = vunpack.c.h.b16 %v7959
      %v8045 = vunpack.c.l.b16 %v7960
      %v8046 = vunpack.c.h.b16 %v7960
      %v8047 = vunpack.c.l.b16 %v7961
      %v8048 = vunpack.c.h.b16 %v7961
      %v8049 = vunpack.c.l.b16 %v7962
      %v8050 = vunpack.c.h.b16 %v7962
      %v8051 = vunpack.c.l.b16 %v7963
      %v8052 = vunpack.c.h.b16 %v7963
      %v8053 = vunpack.c.l.b16 %v7964
      %v8054 = vunpack.c.h.b16 %v7964
      %v8055 = vunpack.c.l.b16 %v7965
      %v8056 = vunpack.c.h.b16 %v7965
      %v8057 = vunpack.c.l.b16 %v7966
      %v8058 = vunpack.c.h.b16 %v7966
      %v8059 = vunpack.c.l.b16 %v7967
      %v8060 = vunpack.c.h.b16 %v7967
      %v8061 = vunpack.c.l.b16 %v7968
      %v8062 = vunpack.c.h.b16 %v7968
      %v8063 = vunpack.c.l.b16 %v7969
      %v8064 = vunpack.c.h.b16 %v7969
      %v8065 = vunpack.c.l.b16 %v7970
      %v8066 = vunpack.c.h.b16 %v7970
      %v8067 = vpack.c.b16 %v8007, %v8003
      %v8068 = vpack.c.b16 %v8008, %v8004
      %v8069 = vpack.c.b16 %v8009, %v8005
      %v8070 = vpack.c.b16 %v8010, %v8006
      %v8071 = vpack.c.b16 %v8015, %v8011
      %v8072 = vpack.c.b16 %v8016, %v8012
      %v8073 = vpack.c.b16 %v8017, %v8013
      %v8074 = vpack.c.b16 %v8018, %v8014
      %v8075 = vpack.c.b16 %v8023, %v8019
      %v8076 = vpack.c.b16 %v8024, %v8020
      %v8077 = vpack.c.b16 %v8025, %v8021
      %v8078 = vpack.c.b16 %v8026, %v8022
      %v8079 = vpack.c.b16 %v8031, %v8027
      %v8080 = vpack.c.b16 %v8032, %v8028
      %v8081 = vpack.c.b16 %v8033, %v8029
      %v8082 = vpack.c.b16 %v8034, %v8030
      %v8083 = vpack.c.b16 %v8039, %v8035
      %v8084 = vpack.c.b16 %v8040, %v8036
      %v8085 = vpack.c.b16 %v8041, %v8037
      %v8086 = vpack.c.b16 %v8042, %v8038
      %v8087 = vpack.c.b16 %v8047, %v8043
      %v8088 = vpack.c.b16 %v8048, %v8044
      %v8089 = vpack.c.b16 %v8049, %v8045
      %v8090 = vpack.c.b16 %v8050, %v8046
      %v8091 = vpack.c.b16 %v8055, %v8051
      %v8092 = vpack.c.b16 %v8056, %v8052
      %v8093 = vpack.c.b16 %v8057, %v8053
      %v8094 = vpack.c.b16 %v8058, %v8054
      %v8095 = vpack.c.b16 %v8063, %v8059
      %v8096 = vpack.c.b16 %v8064, %v8060
      %v8097 = vpack.c.b16 %v8065, %v8061
      %v8098 = vpack.c.b16 %v8066, %v8062
      %8131 = vmatpush.bf16.msra.mxu0 %v8095
      %8132 = vmatpush.bf16.msra.mxu0 %v8091
      %8133 = vmatpush.bf16.msra.mxu0 %v8087
      %8134 = vmatpush.bf16.msra.mxu0 %v8083
      %8135 = vmatpush.bf16.msra.mxu0 %v8079
      %8136 = vmatpush.bf16.msra.mxu0 %v8075
      %8137 = vmatpush.bf16.msra.mxu0 %v8071
      %8138 = vmatpush.bf16.msra.mxu0 %v8067
      %8139 = vmatmul.bf16.gmra.mxu0 %v186
      %v8140 = vpop.f32.mrf.mxu0
      %v8141 = vadd.f32 0.0, %v8140
      %v8142 = vpop.f32.mrf.mxu0
      %v8143 = vadd.f32 0.0, %v8142
      %8144 = vmatmul.bf16.gmra.mxu0 %v187
      %v8145 = vpop.f32.mrf.mxu0
      %v8146 = vadd.f32 0.0, %v8145
      %v8147 = vpop.f32.mrf.mxu0
      %v8148 = vadd.f32 0.0, %v8147
      %8149 = vdwg.mxu0
      %8150 = vmatpush.bf16.msra.mxu0 %v8096
      %8151 = vmatpush.bf16.msra.mxu0 %v8092
      %8152 = vmatpush.bf16.msra.mxu0 %v8088
      %8153 = vmatpush.bf16.msra.mxu0 %v8084
      %8154 = vmatpush.bf16.msra.mxu0 %v8080
      %8155 = vmatpush.bf16.msra.mxu0 %v8076
      %8156 = vmatpush.bf16.msra.mxu0 %v8072
      %8157 = vmatpush.bf16.msra.mxu0 %v8068
      %8158 = vmatmul.bf16.gmra.mxu0 %v186
      %v8159 = vpop.f32.mrf.mxu0
      %v8160 = vadd.f32 0.0, %v8159
      %v8161 = vpop.f32.mrf.mxu0
      %v8162 = vadd.f32 0.0, %v8161
      %8163 = vmatmul.bf16.gmra.mxu0 %v187
      %v8164 = vpop.f32.mrf.mxu0
      %v8165 = vadd.f32 0.0, %v8164
      %v8166 = vpop.f32.mrf.mxu0
      %v8167 = vadd.f32 0.0, %v8166
      %8168 = vdwg.mxu0
      %8169 = vmatpush.bf16.msra.mxu0 %v8097
      %8170 = vmatpush.bf16.msra.mxu0 %v8093
      %8171 = vmatpush.bf16.msra.mxu0 %v8089
      %8172 = vmatpush.bf16.msra.mxu0 %v8085
      %8173 = vmatpush.bf16.msra.mxu0 %v8081
      %8174 = vmatpush.bf16.msra.mxu0 %v8077
      %8175 = vmatpush.bf16.msra.mxu0 %v8073
      %8176 = vmatpush.bf16.msra.mxu0 %v8069
      %8177 = vmatmul.bf16.gmra.mxu0 %v186
      %v8178 = vpop.f32.mrf.mxu0
      %v8179 = vadd.f32 0.0, %v8178
      %v8180 = vpop.f32.mrf.mxu0
      %v8181 = vadd.f32 0.0, %v8180
      %8182 = vmatmul.bf16.gmra.mxu0 %v187
      %v8183 = vpop.f32.mrf.mxu0
      %v8184 = vadd.f32 0.0, %v8183
      %v8185 = vpop.f32.mrf.mxu0
      %v8186 = vadd.f32 0.0, %v8185
      %8187 = vdwg.mxu0
      %8188 = vmatpush.bf16.msra.mxu0 %v8098
      %8189 = vmatpush.bf16.msra.mxu0 %v8094
      %8190 = vmatpush.bf16.msra.mxu0 %v8090
      %8191 = vmatpush.bf16.msra.mxu0 %v8086
      %8192 = vmatpush.bf16.msra.mxu0 %v8082
      %8193 = vmatpush.bf16.msra.mxu0 %v8078
      %8194 = vmatpush.bf16.msra.mxu0 %v8074
      %8195 = vmatpush.bf16.msra.mxu0 %v8070
      %8196 = vmatmul.bf16.gmra.mxu0 %v186
      %v8197 = vpop.f32.mrf.mxu0
      %v8198 = vadd.f32 0.0, %v8197
      %v8199 = vpop.f32.mrf.mxu0
      %v8200 = vadd.f32 0.0, %v8199
      %8201 = vmatmul.bf16.gmra.mxu0 %v187
      %v8202 = vpop.f32.mrf.mxu0
      %v8203 = vadd.f32 0.0, %v8202
      %v8204 = vpop.f32.mrf.mxu0
      %v8205 = vadd.f32 0.0, %v8204
      %8206 = vdwg.mxu0
      %v8239 = vunpack.c.l.b16 %v7906
      %v8240 = vunpack.c.h.b16 %v7906
      %v8241 = vunpack.c.l.b16 %v7907
      %v8242 = vunpack.c.h.b16 %v7907
      %v8243 = vunpack.c.l.b16 %v7908
      %v8244 = vunpack.c.h.b16 %v7908
      %v8245 = vunpack.c.l.b16 %v7909
      %v8246 = vunpack.c.h.b16 %v7909
      %v8247 = vunpack.c.l.b16 %v7910
      %v8248 = vunpack.c.h.b16 %v7910
      %v8249 = vunpack.c.l.b16 %v7911
      %v8250 = vunpack.c.h.b16 %v7911
      %v8251 = vunpack.c.l.b16 %v7912
      %v8252 = vunpack.c.h.b16 %v7912
      %v8253 = vunpack.c.l.b16 %v7913
      %v8254 = vunpack.c.h.b16 %v7913
      %v8255 = vunpack.c.l.b16 %v7914
      %v8256 = vunpack.c.h.b16 %v7914
      %v8257 = vunpack.c.l.b16 %v7915
      %v8258 = vunpack.c.h.b16 %v7915
      %v8259 = vunpack.c.l.b16 %v7916
      %v8260 = vunpack.c.h.b16 %v7916
      %v8261 = vunpack.c.l.b16 %v7917
      %v8262 = vunpack.c.h.b16 %v7917
      %v8263 = vunpack.c.l.b16 %v7918
      %v8264 = vunpack.c.h.b16 %v7918
      %v8265 = vunpack.c.l.b16 %v7919
      %v8266 = vunpack.c.h.b16 %v7919
      %v8267 = vunpack.c.l.b16 %v7920
      %v8268 = vunpack.c.h.b16 %v7920
      %v8269 = vunpack.c.l.b16 %v7921
      %v8270 = vunpack.c.h.b16 %v7921
      %v8271 = vunpack.c.l.b16 %v7922
      %v8272 = vunpack.c.h.b16 %v7922
      %v8273 = vunpack.c.l.b16 %v7923
      %v8274 = vunpack.c.h.b16 %v7923
      %v8275 = vunpack.c.l.b16 %v7924
      %v8276 = vunpack.c.h.b16 %v7924
      %v8277 = vunpack.c.l.b16 %v7925
      %v8278 = vunpack.c.h.b16 %v7925
      %v8279 = vunpack.c.l.b16 %v7926
      %v8280 = vunpack.c.h.b16 %v7926
      %v8281 = vunpack.c.l.b16 %v7927
      %v8282 = vunpack.c.h.b16 %v7927
      %v8283 = vunpack.c.l.b16 %v7928
      %v8284 = vunpack.c.h.b16 %v7928
      %v8285 = vunpack.c.l.b16 %v7929
      %v8286 = vunpack.c.h.b16 %v7929
      %v8287 = vunpack.c.l.b16 %v7930
      %v8288 = vunpack.c.h.b16 %v7930
      %v8289 = vunpack.c.l.b16 %v7931
      %v8290 = vunpack.c.h.b16 %v7931
      %v8291 = vunpack.c.l.b16 %v7932
      %v8292 = vunpack.c.h.b16 %v7932
      %v8293 = vunpack.c.l.b16 %v7933
      %v8294 = vunpack.c.h.b16 %v7933
      %v8295 = vunpack.c.l.b16 %v7934
      %v8296 = vunpack.c.h.b16 %v7934
      %v8297 = vunpack.c.l.b16 %v7935
      %v8298 = vunpack.c.h.b16 %v7935
      %v8299 = vunpack.c.l.b16 %v7936
      %v8300 = vunpack.c.h.b16 %v7936
      %v8301 = vunpack.c.l.b16 %v7937
      %v8302 = vunpack.c.h.b16 %v7937
      %v8303 = vpack.c.b16 %v8243, %v8239
      %v8304 = vpack.c.b16 %v8244, %v8240
      %v8305 = vpack.c.b16 %v8245, %v8241
      %v8306 = vpack.c.b16 %v8246, %v8242
      %v8307 = vpack.c.b16 %v8251, %v8247
      %v8308 = vpack.c.b16 %v8252, %v8248
      %v8309 = vpack.c.b16 %v8253, %v8249
      %v8310 = vpack.c.b16 %v8254, %v8250
      %v8311 = vpack.c.b16 %v8259, %v8255
      %v8312 = vpack.c.b16 %v8260, %v8256
      %v8313 = vpack.c.b16 %v8261, %v8257
      %v8314 = vpack.c.b16 %v8262, %v8258
      %v8315 = vpack.c.b16 %v8267, %v8263
      %v8316 = vpack.c.b16 %v8268, %v8264
      %v8317 = vpack.c.b16 %v8269, %v8265
      %v8318 = vpack.c.b16 %v8270, %v8266
      %v8319 = vpack.c.b16 %v8275, %v8271
      %v8320 = vpack.c.b16 %v8276, %v8272
      %v8321 = vpack.c.b16 %v8277, %v8273
      %v8322 = vpack.c.b16 %v8278, %v8274
      %v8323 = vpack.c.b16 %v8283, %v8279
      %v8324 = vpack.c.b16 %v8284, %v8280
      %v8325 = vpack.c.b16 %v8285, %v8281
      %v8326 = vpack.c.b16 %v8286, %v8282
      %v8327 = vpack.c.b16 %v8291, %v8287
      %v8328 = vpack.c.b16 %v8292, %v8288
      %v8329 = vpack.c.b16 %v8293, %v8289
      %v8330 = vpack.c.b16 %v8294, %v8290
      %v8331 = vpack.c.b16 %v8299, %v8295
      %v8332 = vpack.c.b16 %v8300, %v8296
      %v8333 = vpack.c.b16 %v8301, %v8297
      %v8334 = vpack.c.b16 %v8302, %v8298
      %8367 = vmatpush.bf16.msra.mxu0 %v8331
      %8368 = vmatpush.bf16.msra.mxu0 %v8327
      %8369 = vmatpush.bf16.msra.mxu0 %v8323
      %8370 = vmatpush.bf16.msra.mxu0 %v8319
      %8371 = vmatpush.bf16.msra.mxu0 %v8315
      %8372 = vmatpush.bf16.msra.mxu0 %v8311
      %8373 = vmatpush.bf16.msra.mxu0 %v8307
      %8374 = vmatpush.bf16.msra.mxu0 %v8303
      %8375 = vmatmul.bf16.gmra.mxu0 %v184
      %v8376 = vpop.f32.mrf.mxu0
      %v8377 = vadd.f32 %v8141, %v8376
      %v8378 = vpop.f32.mrf.mxu0
      %v8379 = vadd.f32 %v8143, %v8378
      %8380 = vmatmul.bf16.gmra.mxu0 %v185
      %v8381 = vpop.f32.mrf.mxu0
      %v8382 = vadd.f32 %v8146, %v8381
      %v8383 = vpop.f32.mrf.mxu0
      %v8384 = vadd.f32 %v8148, %v8383
      %8385 = vdwg.mxu0
      %8386 = vmatpush.bf16.msra.mxu0 %v8332
      %8387 = vmatpush.bf16.msra.mxu0 %v8328
      %8388 = vmatpush.bf16.msra.mxu0 %v8324
      %8389 = vmatpush.bf16.msra.mxu0 %v8320
      %8390 = vmatpush.bf16.msra.mxu0 %v8316
      %8391 = vmatpush.bf16.msra.mxu0 %v8312
      %8392 = vmatpush.bf16.msra.mxu0 %v8308
      %8393 = vmatpush.bf16.msra.mxu0 %v8304
      %8394 = vmatmul.bf16.gmra.mxu0 %v184
      %v8395 = vpop.f32.mrf.mxu0
      %v8396 = vadd.f32 %v8160, %v8395
      %v8397 = vpop.f32.mrf.mxu0
      %v8398 = vadd.f32 %v8162, %v8397
      %8399 = vmatmul.bf16.gmra.mxu0 %v185
      %v8400 = vpop.f32.mrf.mxu0
      %v8401 = vadd.f32 %v8165, %v8400
      %v8402 = vpop.f32.mrf.mxu0
      %v8403 = vadd.f32 %v8167, %v8402
      %8404 = vdwg.mxu0
      %8405 = vmatpush.bf16.msra.mxu0 %v8333
      %8406 = vmatpush.bf16.msra.mxu0 %v8329
      %8407 = vmatpush.bf16.msra.mxu0 %v8325
      %8408 = vmatpush.bf16.msra.mxu0 %v8321
      %8409 = vmatpush.bf16.msra.mxu0 %v8317
      %8410 = vmatpush.bf16.msra.mxu0 %v8313
      %8411 = vmatpush.bf16.msra.mxu0 %v8309
      %8412 = vmatpush.bf16.msra.mxu0 %v8305
      %8413 = vmatmul.bf16.gmra.mxu0 %v184
      %v8414 = vpop.f32.mrf.mxu0
      %v8415 = vadd.f32 %v8179, %v8414
      %v8416 = vpop.f32.mrf.mxu0
      %v8417 = vadd.f32 %v8181, %v8416
      %8418 = vmatmul.bf16.gmra.mxu0 %v185
      %v8419 = vpop.f32.mrf.mxu0
      %v8420 = vadd.f32 %v8184, %v8419
      %v8421 = vpop.f32.mrf.mxu0
      %v8422 = vadd.f32 %v8186, %v8421
      %8423 = vdwg.mxu0
      %8424 = vmatpush.bf16.msra.mxu0 %v8334
      %8425 = vmatpush.bf16.msra.mxu0 %v8330
      %8426 = vmatpush.bf16.msra.mxu0 %v8326
      %8427 = vmatpush.bf16.msra.mxu0 %v8322
      %8428 = vmatpush.bf16.msra.mxu0 %v8318
      %8429 = vmatpush.bf16.msra.mxu0 %v8314
      %8430 = vmatpush.bf16.msra.mxu0 %v8310
      %8431 = vmatpush.bf16.msra.mxu0 %v8306
      %8432 = vmatmul.bf16.gmra.mxu0 %v184
      %v8433 = vpop.f32.mrf.mxu0
      %v8434 = vadd.f32 %v8198, %v8433
      %v8435 = vpop.f32.mrf.mxu0
      %v8436 = vadd.f32 %v8200, %v8435
      %8437 = vmatmul.bf16.gmra.mxu0 %v185
      %v8438 = vpop.f32.mrf.mxu0
      %v8439 = vadd.f32 %v8203, %v8438
      %v8440 = vpop.f32.mrf.mxu0
      %v8441 = vadd.f32 %v8205, %v8440
      %8442 = vdwg.mxu0
      %s8443 = scalar_lea.vmem %s3, 36
      %v8444 = vld [vmem:[%s8443] sm:$0xf]
      %v8446 = vperm.slane %v8444, 0
      %v8447 = vperm.slane %v8444, 1
      %v8448 = vperm.slane %v8444, 2
      %v8449 = vperm.slane %v8444, 3
      %v8454 = vadd.f32 %v8377, %v8446
      %v8455 = vadd.f32 %v8396, %v8447
      %v8456 = vadd.f32 %v8415, %v8448
      %v8457 = vadd.f32 %v8434, %v8449
      %v8458 = vadd.f32 %v8379, %v8446
      %v8459 = vadd.f32 %v8398, %v8447
      %v8460 = vadd.f32 %v8417, %v8448
      %v8461 = vadd.f32 %v8436, %v8449
      %v8462 = vadd.f32 %v8382, %v8446
      %v8463 = vadd.f32 %v8401, %v8447
      %v8464 = vadd.f32 %v8420, %v8448
      %v8465 = vadd.f32 %v8439, %v8449
      %v8466 = vadd.f32 %v8384, %v8446
      %v8467 = vadd.f32 %v8403, %v8447
      %v8468 = vadd.f32 %v8422, %v8448
      %v8469 = vadd.f32 %v8441, %v8449
      %v8470 = vxor.u32 %v8454, 2147483648
      %v8471 = vxor.u32 %v8458, 2147483648
      %v8472 = vxor.u32 %v8462, 2147483648
      %v8473 = vxor.u32 %v8466, 2147483648
      %v8474 = vmul.f32 %v8470, 1.442695
      %v8475 = vpow.pop %v8474
      %v8476 = vmul.f32 %v8471, 1.442695
      %v8477 = vpow.pop %v8476
      %v8478 = vmul.f32 %v8472, 1.442695
      %v8479 = vpow.pop %v8478
      %v8480 = vmul.f32 %v8473, 1.442695
      %v8481 = vpow.pop %v8480
      %v8482 = vadd.f32 %v8475, 1.0
      %v8483 = vadd.f32 %v8477, 1.0
      %v8484 = vadd.f32 %v8479, 1.0
      %v8485 = vadd.f32 %v8481, 1.0
      %v8486 = vrcp.pop %v8482
      %v8487 = vmul.f32 %v8482, %v8486
      %v8488 = vsub.f32 1.0, %v8487
      %v8489 = vmul.f32 %v8486, %v8488
      %v8490 = vadd.f32 %v8486, %v8489
      %vm8491 = vweird.f32 %v8482
      %vm8492 = vweird.f32 %v8486
      %vm8493 = vmor %vm8491, %vm8492
      %v8494 = vsel %vm8493, %v8486, %v8490
      %v8495 = vand.u32 2147483647, %v8482
      %vm8496 = vcmp.eq.f32.partialorder %v8495, 8.507059e+37
      %v8497 = vand.u32 %v8482, 2147483648
      %v8498 = vor.u32 1.1754944e-38, %v8497
      %v8499 = vsel %vm8496, %v8498, %v8494
      %v8500 = vmul.f32 1.0, %v8499
      %v8501 = vrcp.pop %v8483
      %v8502 = vmul.f32 %v8483, %v8501
      %v8503 = vsub.f32 1.0, %v8502
      %v8504 = vmul.f32 %v8501, %v8503
      %v8505 = vadd.f32 %v8501, %v8504
      %vm8506 = vweird.f32 %v8483
      %vm8507 = vweird.f32 %v8501
      %vm8508 = vmor %vm8506, %vm8507
      %v8509 = vsel %vm8508, %v8501, %v8505
      %v8510 = vand.u32 2147483647, %v8483
      %vm8511 = vcmp.eq.f32.partialorder %v8510, 8.507059e+37
      %v8512 = vand.u32 %v8483, 2147483648
      %v8513 = vor.u32 1.1754944e-38, %v8512
      %v8514 = vsel %vm8511, %v8513, %v8509
      %v8515 = vmul.f32 1.0, %v8514
      %v8516 = vrcp.pop %v8484
      %v8517 = vmul.f32 %v8484, %v8516
      %v8518 = vsub.f32 1.0, %v8517
      %v8519 = vmul.f32 %v8516, %v8518
      %v8520 = vadd.f32 %v8516, %v8519
      %vm8521 = vweird.f32 %v8484
      %vm8522 = vweird.f32 %v8516
      %vm8523 = vmor %vm8521, %vm8522
      %v8524 = vsel %vm8523, %v8516, %v8520
      %v8525 = vand.u32 2147483647, %v8484
      %vm8526 = vcmp.eq.f32.partialorder %v8525, 8.507059e+37
      %v8527 = vand.u32 %v8484, 2147483648
      %v8528 = vor.u32 1.1754944e-38, %v8527
      %v8529 = vsel %vm8526, %v8528, %v8524
      %v8530 = vmul.f32 1.0, %v8529
      %v8531 = vrcp.pop %v8485
      %v8532 = vmul.f32 %v8485, %v8531
      %v8533 = vsub.f32 1.0, %v8532
      %v8534 = vmul.f32 %v8531, %v8533
      %v8535 = vadd.f32 %v8531, %v8534
      %vm8536 = vweird.f32 %v8485
      %vm8537 = vweird.f32 %v8531
      %vm8538 = vmor %vm8536, %vm8537
      %v8539 = vsel %vm8538, %v8531, %v8535
      %v8540 = vand.u32 2147483647, %v8485
      %vm8541 = vcmp.eq.f32.partialorder %v8540, 8.507059e+37
      %v8542 = vand.u32 %v8485, 2147483648
      %v8543 = vor.u32 1.1754944e-38, %v8542
      %v8544 = vsel %vm8541, %v8543, %v8539
      %v8545 = vmul.f32 1.0, %v8544
      %v8546 = vxor.u32 %v8455, 2147483648
      %v8547 = vxor.u32 %v8459, 2147483648
      %v8548 = vxor.u32 %v8463, 2147483648
      %v8549 = vxor.u32 %v8467, 2147483648
      %v8550 = vmul.f32 %v8546, 1.442695
      %v8551 = vpow.pop %v8550
      %v8552 = vmul.f32 %v8547, 1.442695
      %v8553 = vpow.pop %v8552
      %v8554 = vmul.f32 %v8548, 1.442695
      %v8555 = vpow.pop %v8554
      %v8556 = vmul.f32 %v8549, 1.442695
      %v8557 = vpow.pop %v8556
      %v8558 = vadd.f32 %v8551, 1.0
      %v8559 = vadd.f32 %v8553, 1.0
      %v8560 = vadd.f32 %v8555, 1.0
      %v8561 = vadd.f32 %v8557, 1.0
      %v8562 = vrcp.pop %v8558
      %v8563 = vmul.f32 %v8558, %v8562
      %v8564 = vsub.f32 1.0, %v8563
      %v8565 = vmul.f32 %v8562, %v8564
      %v8566 = vadd.f32 %v8562, %v8565
      %vm8567 = vweird.f32 %v8558
      %vm8568 = vweird.f32 %v8562
      %vm8569 = vmor %vm8567, %vm8568
      %v8570 = vsel %vm8569, %v8562, %v8566
      %v8571 = vand.u32 2147483647, %v8558
      %vm8572 = vcmp.eq.f32.partialorder %v8571, 8.507059e+37
      %v8573 = vand.u32 %v8558, 2147483648
      %v8574 = vor.u32 1.1754944e-38, %v8573
      %v8575 = vsel %vm8572, %v8574, %v8570
      %v8576 = vmul.f32 1.0, %v8575
      %v8577 = vrcp.pop %v8559
      %v8578 = vmul.f32 %v8559, %v8577
      %v8579 = vsub.f32 1.0, %v8578
      %v8580 = vmul.f32 %v8577, %v8579
      %v8581 = vadd.f32 %v8577, %v8580
      %vm8582 = vweird.f32 %v8559
      %vm8583 = vweird.f32 %v8577
      %vm8584 = vmor %vm8582, %vm8583
      %v8585 = vsel %vm8584, %v8577, %v8581
      %v8586 = vand.u32 2147483647, %v8559
      %vm8587 = vcmp.eq.f32.partialorder %v8586, 8.507059e+37
      %v8588 = vand.u32 %v8559, 2147483648
      %v8589 = vor.u32 1.1754944e-38, %v8588
      %v8590 = vsel %vm8587, %v8589, %v8585
      %v8591 = vmul.f32 1.0, %v8590
      %v8592 = vrcp.pop %v8560
      %v8593 = vmul.f32 %v8560, %v8592
      %v8594 = vsub.f32 1.0, %v8593
      %v8595 = vmul.f32 %v8592, %v8594
      %v8596 = vadd.f32 %v8592, %v8595
      %vm8597 = vweird.f32 %v8560
      %vm8598 = vweird.f32 %v8592
      %vm8599 = vmor %vm8597, %vm8598
      %v8600 = vsel %vm8599, %v8592, %v8596
      %v8601 = vand.u32 2147483647, %v8560
      %vm8602 = vcmp.eq.f32.partialorder %v8601, 8.507059e+37
      %v8603 = vand.u32 %v8560, 2147483648
      %v8604 = vor.u32 1.1754944e-38, %v8603
      %v8605 = vsel %vm8602, %v8604, %v8600
      %v8606 = vmul.f32 1.0, %v8605
      %v8607 = vrcp.pop %v8561
      %v8608 = vmul.f32 %v8561, %v8607
      %v8609 = vsub.f32 1.0, %v8608
      %v8610 = vmul.f32 %v8607, %v8609
      %v8611 = vadd.f32 %v8607, %v8610
      %vm8612 = vweird.f32 %v8561
      %vm8613 = vweird.f32 %v8607
      %vm8614 = vmor %vm8612, %vm8613
      %v8615 = vsel %vm8614, %v8607, %v8611
      %v8616 = vand.u32 2147483647, %v8561
      %vm8617 = vcmp.eq.f32.partialorder %v8616, 8.507059e+37
      %v8618 = vand.u32 %v8561, 2147483648
      %v8619 = vor.u32 1.1754944e-38, %v8618
      %v8620 = vsel %vm8617, %v8619, %v8615
      %v8621 = vmul.f32 1.0, %v8620
      %v8622 = vtanh.pop %v8456
      %v8623 = vtanh.pop %v8460
      %v8624 = vtanh.pop %v8464
      %v8625 = vtanh.pop %v8468
      %v8626 = vxor.u32 %v8457, 2147483648
      %v8627 = vxor.u32 %v8461, 2147483648
      %v8628 = vxor.u32 %v8465, 2147483648
      %v8629 = vxor.u32 %v8469, 2147483648
      %v8630 = vmul.f32 %v8626, 1.442695
      %v8631 = vpow.pop %v8630
      %v8632 = vmul.f32 %v8627, 1.442695
      %v8633 = vpow.pop %v8632
      %v8634 = vmul.f32 %v8628, 1.442695
      %v8635 = vpow.pop %v8634
      %v8636 = vmul.f32 %v8629, 1.442695
      %v8637 = vpow.pop %v8636
      %v8638 = vadd.f32 %v8631, 1.0
      %v8639 = vadd.f32 %v8633, 1.0
      %v8640 = vadd.f32 %v8635, 1.0
      %v8641 = vadd.f32 %v8637, 1.0
      %v8642 = vrcp.pop %v8638
      %v8643 = vmul.f32 %v8638, %v8642
      %v8644 = vsub.f32 1.0, %v8643
      %v8645 = vmul.f32 %v8642, %v8644
      %v8646 = vadd.f32 %v8642, %v8645
      %vm8647 = vweird.f32 %v8638
      %vm8648 = vweird.f32 %v8642
      %vm8649 = vmor %vm8647, %vm8648
      %v8650 = vsel %vm8649, %v8642, %v8646
      %v8651 = vand.u32 2147483647, %v8638
      %vm8652 = vcmp.eq.f32.partialorder %v8651, 8.507059e+37
      %v8653 = vand.u32 %v8638, 2147483648
      %v8654 = vor.u32 1.1754944e-38, %v8653
      %v8655 = vsel %vm8652, %v8654, %v8650
      %v8656 = vmul.f32 1.0, %v8655
      %v8657 = vrcp.pop %v8639
      %v8658 = vmul.f32 %v8639, %v8657
      %v8659 = vsub.f32 1.0, %v8658
      %v8660 = vmul.f32 %v8657, %v8659
      %v8661 = vadd.f32 %v8657, %v8660
      %vm8662 = vweird.f32 %v8639
      %vm8663 = vweird.f32 %v8657
      %vm8664 = vmor %vm8662, %vm8663
      %v8665 = vsel %vm8664, %v8657, %v8661
      %v8666 = vand.u32 2147483647, %v8639
      %vm8667 = vcmp.eq.f32.partialorder %v8666, 8.507059e+37
      %v8668 = vand.u32 %v8639, 2147483648
      %v8669 = vor.u32 1.1754944e-38, %v8668
      %v8670 = vsel %vm8667, %v8669, %v8665
      %v8671 = vmul.f32 1.0, %v8670
      %v8672 = vrcp.pop %v8640
      %v8673 = vmul.f32 %v8640, %v8672
      %v8674 = vsub.f32 1.0, %v8673
      %v8675 = vmul.f32 %v8672, %v8674
      %v8676 = vadd.f32 %v8672, %v8675
      %vm8677 = vweird.f32 %v8640
      %vm8678 = vweird.f32 %v8672
      %vm8679 = vmor %vm8677, %vm8678
      %v8680 = vsel %vm8679, %v8672, %v8676
      %v8681 = vand.u32 2147483647, %v8640
      %vm8682 = vcmp.eq.f32.partialorder %v8681, 8.507059e+37
      %v8683 = vand.u32 %v8640, 2147483648
      %v8684 = vor.u32 1.1754944e-38, %v8683
      %v8685 = vsel %vm8682, %v8684, %v8680
      %v8686 = vmul.f32 1.0, %v8685
      %v8687 = vrcp.pop %v8641
      %v8688 = vmul.f32 %v8641, %v8687
      %v8689 = vsub.f32 1.0, %v8688
      %v8690 = vmul.f32 %v8687, %v8689
      %v8691 = vadd.f32 %v8687, %v8690
      %vm8692 = vweird.f32 %v8641
      %vm8693 = vweird.f32 %v8687
      %vm8694 = vmor %vm8692, %vm8693
      %v8695 = vsel %vm8694, %v8687, %v8691
      %v8696 = vand.u32 2147483647, %v8641
      %vm8697 = vcmp.eq.f32.partialorder %v8696, 8.507059e+37
      %v8698 = vand.u32 %v8641, 2147483648
      %v8699 = vor.u32 1.1754944e-38, %v8698
      %v8700 = vsel %vm8697, %v8699, %v8695
      %v8701 = vmul.f32 1.0, %v8700
      %v8702 = vmul.f32 %v8576, %v7901
      %v8703 = vmul.f32 %v8591, %v7902
      %v8704 = vmul.f32 %v8606, %v7903
      %v8705 = vmul.f32 %v8621, %v7904
      %v8706 = vmul.f32 %v8500, %v8622
      %v8707 = vmul.f32 %v8515, %v8623
      %v8708 = vmul.f32 %v8530, %v8624
      %v8709 = vmul.f32 %v8545, %v8625
      %v8710 = vadd.f32 %v8702, %v8706
      %v8711 = vadd.f32 %v8703, %v8707
      %v8712 = vadd.f32 %v8704, %v8708
      %v8713 = vadd.f32 %v8705, %v8709
      %v8714 = vtanh.pop %v8710
      %v8715 = vtanh.pop %v8711
      %v8716 = vtanh.pop %v8712
      %v8717 = vtanh.pop %v8713
      %v8718 = vmul.f32 %v8656, %v8714
      %v8719 = vmul.f32 %v8671, %v8715
      %v8720 = vmul.f32 %v8686, %v8716
      %v8721 = vmul.f32 %v8701, %v8717
      %p8722 = scmp.ge.s32.totalorder %s7899, 0
      %p8723 = scmp.lt.s32.totalorder %s7899, 2
      %p8724 = pnand %p8722, %p8723
      %p8725 = pneg %p8724
      %s8726 = scalar_select %p8725, 1, 0
      %s8727 = scvt.s32.f32 %s8726
      %v8728 = vstv %s8727
      %v8729 = vmul.f32 %v8728, %v8718
      %v8730 = vmul.f32 %v8728, %v8719
      %v8731 = vmul.f32 %v8728, %v8720
      %v8732 = vmul.f32 %v8728, %v8721
      %s8733 = ssub.f32 1.0, %s8727
      %v8734 = vstv %s8733
      %v8735 = vmul.f32 %v8734, %v164
      %v8736 = vmul.f32 %v8734, %v165
      %v8737 = vmul.f32 %v8734, %v166
      %v8738 = vmul.f32 %v8734, %v167
      %v8739 = vadd.f32 %v8729, %v8735
      %v8740 = vadd.f32 %v8730, %v8736
      %v8741 = vadd.f32 %v8731, %v8737
      %v8742 = vadd.f32 %v8732, %v8738
      %v8743 = vmul.f32 %v8728, %v8710
      %v8744 = vmul.f32 %v8728, %v8711
      %v8745 = vmul.f32 %v8728, %v8712
      %v8746 = vmul.f32 %v8728, %v8713
      %v8747 = vmul.f32 %v8734, %v7901
      %v8748 = vmul.f32 %v8734, %v7902
      %v8749 = vmul.f32 %v8734, %v7903
      %v8750 = vmul.f32 %v8734, %v7904
      %v8751 = vadd.f32 %v8743, %v8747
      %v8752 = vadd.f32 %v8744, %v8748
      %v8753 = vadd.f32 %v8745, %v8749
      %v8754 = vadd.f32 %v8746, %v8750
      %p8755 = scmp.gt.s32.totalorder %s7899, 0
      %s8756 = scalar_select %p8755, %s7899, 0
      %8757 = vst [vmem:[#allocation2] sm:$0xff] %v1035
      %8758 = vst [vmem:[#allocation2 + $0x8] sm:$0xff] %v1036
      %8759 = vst [vmem:[#allocation2 + $0x10] sm:$0xff] %v1037
      %8760 = vst [vmem:[#allocation2 + $0x18] sm:$0xff] %v1038
      %8761 = vst [vmem:[#allocation3] sm:$0xff] %v1047
      %8762 = vst [vmem:[#allocation3 + $0x8] sm:$0xff] %v1048
      %8763 = vst [vmem:[#allocation3 + $0x10] sm:$0xff] %v1049
      %8764 = vst [vmem:[#allocation3 + $0x18] sm:$0xff] %v1050
      %8765 = vst [vmem:[%s123] sm:$0xff] %v1891
      %8766 = vst [vmem:[%s123 + $0x8] sm:$0xff] %v1892
      %8767 = vst [vmem:[%s123 + $0x10] sm:$0xff] %v1893
      %8768 = vst [vmem:[%s123 + $0x18] sm:$0xff] %v1894
      %8769 = vst [vmem:[%s1052] sm:$0xff] %v1903
      %8770 = vst [vmem:[%s1052 + $0x8] sm:$0xff] %v1904
      %8771 = vst [vmem:[%s1052 + $0x10] sm:$0xff] %v1905
      %8772 = vst [vmem:[%s1052 + $0x18] sm:$0xff] %v1906
      %8773 = vst [vmem:[%s128] sm:$0xff] %v2747
      %8774 = vst [vmem:[%s128 + $0x8] sm:$0xff] %v2748
      %8775 = vst [vmem:[%s128 + $0x10] sm:$0xff] %v2749
      %8776 = vst [vmem:[%s128 + $0x18] sm:$0xff] %v2750
      %8777 = vst [vmem:[%s1908] sm:$0xff] %v2759
      %8778 = vst [vmem:[%s1908 + $0x8] sm:$0xff] %v2760
      %8779 = vst [vmem:[%s1908 + $0x10] sm:$0xff] %v2761
      %8780 = vst [vmem:[%s1908 + $0x18] sm:$0xff] %v2762
      %8781 = vst [vmem:[%s133] sm:$0xff] %v3603
      %8782 = vst [vmem:[%s133 + $0x8] sm:$0xff] %v3604
      %8783 = vst [vmem:[%s133 + $0x10] sm:$0xff] %v3605
      %8784 = vst [vmem:[%s133 + $0x18] sm:$0xff] %v3606
      %8785 = vst [vmem:[%s2764] sm:$0xff] %v3615
      %8786 = vst [vmem:[%s2764 + $0x8] sm:$0xff] %v3616
      %8787 = vst [vmem:[%s2764 + $0x10] sm:$0xff] %v3617
      %8788 = vst [vmem:[%s2764 + $0x18] sm:$0xff] %v3618
      %8789 = vst [vmem:[%s138] sm:$0xff] %v4459
      %8790 = vst [vmem:[%s138 + $0x8] sm:$0xff] %v4460
      %8791 = vst [vmem:[%s138 + $0x10] sm:$0xff] %v4461
      %8792 = vst [vmem:[%s138 + $0x18] sm:$0xff] %v4462
      %8793 = vst [vmem:[%s3620] sm:$0xff] %v4471
      %8794 = vst [vmem:[%s3620 + $0x8] sm:$0xff] %v4472
      %8795 = vst [vmem:[%s3620 + $0x10] sm:$0xff] %v4473
      %8796 = vst [vmem:[%s3620 + $0x18] sm:$0xff] %v4474
      %8797 = vst [vmem:[%s143] sm:$0xff] %v5315
      %8798 = vst [vmem:[%s143 + $0x8] sm:$0xff] %v5316
      %8799 = vst [vmem:[%s143 + $0x10] sm:$0xff] %v5317
      %8800 = vst [vmem:[%s143 + $0x18] sm:$0xff] %v5318
      %8801 = vst [vmem:[%s4476] sm:$0xff] %v5327
      %8802 = vst [vmem:[%s4476 + $0x8] sm:$0xff] %v5328
      %8803 = vst [vmem:[%s4476 + $0x10] sm:$0xff] %v5329
      %8804 = vst [vmem:[%s4476 + $0x18] sm:$0xff] %v5330
      %8805 = vst [vmem:[%s148] sm:$0xff] %v6171
      %8806 = vst [vmem:[%s148 + $0x8] sm:$0xff] %v6172
      %8807 = vst [vmem:[%s148 + $0x10] sm:$0xff] %v6173
      %8808 = vst [vmem:[%s148 + $0x18] sm:$0xff] %v6174
      %8809 = vst [vmem:[%s5332] sm:$0xff] %v6183
      %8810 = vst [vmem:[%s5332 + $0x8] sm:$0xff] %v6184
      %8811 = vst [vmem:[%s5332 + $0x10] sm:$0xff] %v6185
      %8812 = vst [vmem:[%s5332 + $0x18] sm:$0xff] %v6186
      %8813 = vst [vmem:[%s153] sm:$0xff] %v7027
      %8814 = vst [vmem:[%s153 + $0x8] sm:$0xff] %v7028
      %8815 = vst [vmem:[%s153 + $0x10] sm:$0xff] %v7029
      %8816 = vst [vmem:[%s153 + $0x18] sm:$0xff] %v7030
      %8817 = vst [vmem:[%s6188] sm:$0xff] %v7039
      %8818 = vst [vmem:[%s6188 + $0x8] sm:$0xff] %v7040
      %8819 = vst [vmem:[%s6188 + $0x10] sm:$0xff] %v7041
      %8820 = vst [vmem:[%s6188 + $0x18] sm:$0xff] %v7042
      %8821 = vst [vmem:[%s158] sm:$0xff] %v7883
      %8822 = vst [vmem:[%s158 + $0x8] sm:$0xff] %v7884
      %8823 = vst [vmem:[%s158 + $0x10] sm:$0xff] %v7885
      %8824 = vst [vmem:[%s158 + $0x18] sm:$0xff] %v7886
      %8825 = vst [vmem:[%s7044] sm:$0xff] %v7895
      %8826 = vst [vmem:[%s7044 + $0x8] sm:$0xff] %v7896
      %8827 = vst [vmem:[%s7044 + $0x10] sm:$0xff] %v7897
      %8828 = vst [vmem:[%s7044 + $0x18] sm:$0xff] %v7898
      %8829 = vst [vmem:[%s163] sm:$0xff] %v8739
      %8830 = vst [vmem:[%s163 + $0x8] sm:$0xff] %v8740
      %8831 = vst [vmem:[%s163 + $0x10] sm:$0xff] %v8741
      %8832 = vst [vmem:[%s163 + $0x18] sm:$0xff] %v8742
      %8833 = vst [vmem:[%s7900] sm:$0xff] %v8751
      %8834 = vst [vmem:[%s7900 + $0x8] sm:$0xff] %v8752
      %8835 = vst [vmem:[%s7900 + $0x10] sm:$0xff] %v8753
      %8836 = vst [vmem:[%s7900 + $0x18] sm:$0xff] %v8754
      %s8837 = scalar_lea.vmem [#allocation4], %s8756
      %8838 = vst [vmem:[%s8837 - $0x7] sm:$0x80] %v8721
    $region30: #{net3_forward.1} parent=1 // loop_footer
      %s109 = sadd.s32 1, %s105
    $region31: #{net3_forward.1} parent=1 // loop_footer_branch
      %104 = sbr.rel target = $region27
    $region32: #{net3_forward.1} parent=1 // loop_exit
      _
    %v8839 = vld [vmem:[#allocation4] sm:$0x3]
    %v8840 = vpack.c.bf16 %v8839, %v8839
    %v8841 = vld [vmem:[%s4] sm:$0xf]
    %v8842 = vld [vmem:[%s4 + $0x4] sm:$0xf]
    %v8843 = vld [vmem:[%s4 + $0x8] sm:$0xf]
    %v8844 = vld [vmem:[%s4 + $0xc] sm:$0xf]
    %v8845 = vld [vmem:[%s4 + $0x10] sm:$0xf]
    %v8846 = vld [vmem:[%s4 + $0x14] sm:$0xf]
    %v8847 = vld [vmem:[%s4 + $0x18] sm:$0xf]
    %v8848 = vld [vmem:[%s4 + $0x1c] sm:$0xf]
    %v8849 = vld [vmem:[%s4 + $0x20] sm:$0xf]
    %v8850 = vld [vmem:[%s4 + $0x24] sm:$0xf]
    %v8851 = vld [vmem:[%s4 + $0x28] sm:$0xf]
    %v8852 = vld [vmem:[%s4 + $0x2c] sm:$0xf]
    %v8853 = vld [vmem:[%s4 + $0x30] sm:$0xf]
    %v8854 = vld [vmem:[%s4 + $0x34] sm:$0xf]
    %v8855 = vld [vmem:[%s4 + $0x38] sm:$0xf]
    %v8856 = vld [vmem:[%s4 + $0x3c] sm:$0xf]
    %v8857 = vld [vmem:[%s5] sm:$0x1]
    %v8859 = vperm.slane %v8857, 0
    %v8877 = vunpack.c.l.b16 %v8841
    %v8878 = vunpack.c.l.b16 %v8842
    %v8879 = vunpack.c.l.b16 %v8843
    %v8880 = vunpack.c.l.b16 %v8844
    %v8881 = vunpack.c.l.b16 %v8845
    %v8882 = vunpack.c.l.b16 %v8846
    %v8883 = vunpack.c.l.b16 %v8847
    %v8884 = vunpack.c.l.b16 %v8848
    %v8885 = vunpack.c.l.b16 %v8849
    %v8886 = vunpack.c.l.b16 %v8850
    %v8887 = vunpack.c.l.b16 %v8851
    %v8888 = vunpack.c.l.b16 %v8852
    %v8889 = vunpack.c.l.b16 %v8853
    %v8890 = vunpack.c.l.b16 %v8854
    %v8891 = vunpack.c.l.b16 %v8855
    %v8892 = vunpack.c.l.b16 %v8856
    %v8893 = vpack.c.b16 %v8878, %v8877
    %v8894 = vpack.c.b16 %v8880, %v8879
    %v8895 = vpack.c.b16 %v8882, %v8881
    %v8896 = vpack.c.b16 %v8884, %v8883
    %v8897 = vpack.c.b16 %v8886, %v8885
    %v8898 = vpack.c.b16 %v8888, %v8887
    %v8899 = vpack.c.b16 %v8890, %v8889
    %v8900 = vpack.c.b16 %v8892, %v8891
    %8909 = vmatpush.bf16.msra.mxu0 %v8900
    %8910 = vmatpush.bf16.msra.mxu0 %v8899
    %8911 = vmatpush.bf16.msra.mxu0 %v8898
    %8912 = vmatpush.bf16.msra.mxu0 %v8897
    %8913 = vmatpush.bf16.msra.mxu0 %v8896
    %8914 = vmatpush.bf16.msra.mxu0 %v8895
    %8915 = vmatpush.bf16.msra.mxu0 %v8894
    %8916 = vmatpush.bf16.msra.mxu0 %v8893
    %8917 = vmatmul.bf16.gmra.mxu0 %v8840
    %v8918 = vpop.f32.mrf.mxu0
    %v8919 = vadd.f32 %v8859, %v8918
    %v8920 = vpop.f32.mrf.mxu0
    %8921 = vdwg.mxu0
    %8922 = vst [vmem:[#allocation5] sm:$0x3] %v8919
    // Predicated region
    $region33: #{net3_forward.1} parent=1 // pred_check
      _
    $region34: #{net3_forward.1} parent=1 // pred_check_branch
      %8924 = sbr.rel (0) target = $region36
    $region35: #{net3_forward.1} parent=1 // pred_region
      %8926 = vsyncadd [#allocation6], 0
      %s8928 = sshll.u32 [#allocation5], 4
      %s8929 = int_to_ptr.vmem [resolvable:$true] %s8928
      %s8930 = sshll.u32 %s6, 4
      %s8931 = int_to_ptr.hbm [resolvable:$true] %s8930
      %8933 = dma.vmem_to_hbm [thread:$0]  %s8929, 32, %s8931, [#allocation6]
    $region36: #{net3_forward.1} parent=1 // pred_fallthru
      _
    // Predicated region
    $region37: #{net3_forward.1} parent=1 // pred_check
      _
    $region38: #{net3_forward.1} parent=1 // pred_check_branch
      %8935 = sbr.rel (0) target = $region40
    $region39: #{net3_forward.1} parent=1 // pred_region
      %8937 = dma.done [#allocation6], 32
    $region40: #{net3_forward.1} parent=1 // pred_fallthru
      _
    %8938 = vsyncpa [#allocation6], 1

</llo_original>
